<compile_context>
chip_gen: v7x
topology: tpu7x:2x2x1
jax: 0.10.0
libtpu: 0.0.40
codegen_flags: <defaults>
</compile_context>

<pallas_src>
import math
import functools

import jax
import jax.numpy as jnp
from jax.experimental import pallas as pl
from jax.experimental.pallas import tpu as pltpu


# ----------------------- in-kernel helpers -----------------------

def _layer_norm(x, g, b, eps):
    # x: (S, E), g/b: (1, E)
    mean = jnp.mean(x, axis=-1, keepdims=True)
    xc = x - mean
    var = jnp.mean(xc * xc, axis=-1, keepdims=True)
    return xc * jax.lax.rsqrt(var + eps) * g + b


def _mha_proj(q_in, kv_in, in_w_ref, in_b_ref, out_w_ref, *, nhead, mask=None):
    """Multi-head attention incl. out-projection (bias added by caller).

    q_in: (Sq, E), kv_in: (Sk, E)
    in_w_ref:  (1, 3H, E, hd)  -- per-head Wq (0..H-1), Wk (H..2H-1), Wv (2H..3H-1)
    in_b_ref:  (1, 3H, 1, hd)
    out_w_ref: (1, H, hd, E)   -- per-head rows of the out-projection
    Returns (Sq, E).
    """
    Sq, E = q_in.shape
    hd = E // nhead
    scale = 1.0 / math.sqrt(hd)
    acc = None
    for h in range(nhead):                                    # static loop over heads
        wq, bq = in_w_ref[0, h], in_b_ref[0, h]
        wk, bk = in_w_ref[0, nhead + h], in_b_ref[0, nhead + h]
        wv, bv = in_w_ref[0, 2 * nhead + h], in_b_ref[0, 2 * nhead + h]
        qh = (jnp.dot(q_in, wq, preferred_element_type=jnp.float32) + bq) * scale   # (Sq, hd)
        kh = jnp.dot(kv_in, wk, preferred_element_type=jnp.float32) + bk            # (Sk, hd)
        vh = jnp.dot(kv_in, wv, preferred_element_type=jnp.float32) + bv            # (Sk, hd)
        s = jax.lax.dot_general(qh, kh, (((1,), (1,)), ((), ())),
                                preferred_element_type=jnp.float32)                 # (Sq, Sk)
        if mask is not None:
            s = s + mask
        s = s - jnp.max(s, axis=-1, keepdims=True)
        p = jnp.exp(s)
        p = p * pl.reciprocal(jnp.sum(p, axis=-1, keepdims=True), approx=True)
        oh = jnp.dot(p, vh, preferred_element_type=jnp.float32)                      # (Sq, hd)
        c = jnp.dot(oh, out_w_ref[0, h], preferred_element_type=jnp.float32)         # (Sq, E)
        acc = c if acc is None else acc + c
    return acc


# ----------------------- fused encoder stack -----------------------

def _encoder_stack_kernel(x_ref, in_w_ref, in_b_ref, out_w_ref, out_b_ref,
                          ln1_g_ref, ln1_b_ref, w1_ref, b1_ref, w2_ref, b2_ref,
                          ln2_g_ref, ln2_b_ref,
                          o_ref, carry_ref, *, nhead, eps):
    l = pl.program_id(1)

    @pl.when(l == 0)
    def _():
        carry_ref[...] = x_ref[...]

    x = carry_ref[...]                                                    # (S, E)
    a = _mha_proj(x, x, in_w_ref, in_b_ref, out_w_ref, nhead=nhead) + out_b_ref[0]
    h1 = _layer_norm(x + a, ln1_g_ref[0], ln1_b_ref[0], eps)
    ff = jnp.maximum(jnp.dot(h1, w1_ref[0], preferred_element_type=jnp.float32)
                     + b1_ref[0], 0.0)
    ff = jnp.dot(ff, w2_ref[0], preferred_element_type=jnp.float32) + b2_ref[0]
    y = _layer_norm(h1 + ff, ln2_g_ref[0], ln2_b_ref[0], eps)
    carry_ref[...] = y

    @pl.when(l == pl.num_programs(1) - 1)
    def _():
        o_ref[...] = y


def encoder_stack(x, p, *, B, nhead, eps=1e-5):
    """x: (B*S, E) batch-major.  Runs all encoder layers in one pallas_call."""
    NB, E = x.shape
    S = NB // B
    L = p["in_w"].shape[0]
    H = nhead
    hd = E // H
    F = p["w1"].shape[2]

    act_map = lambda b, l: (b, 0)
    w3 = lambda b, l: (l, 0, 0)
    w4 = lambda b, l: (l, 0, 0, 0)

    return pl.pallas_call(
        functools.partial(_encoder_stack_kernel, nhead=nhead, eps=eps),
        out_shape=jax.ShapeDtypeStruct((NB, E), jnp.float32),
        grid=(B, L),
        in_specs=[
            pl.BlockSpec((S, E), act_map),            # x (layer-0 input, resident per batch)
            pl.BlockSpec((1, 3 * H, E, hd), w4),      # in_w
            pl.BlockSpec((1, 3 * H, 1, hd), w4),      # in_b
            pl.BlockSpec((1, H, hd, E), w4),          # out_w
            pl.BlockSpec((1, 1, E), w3),              # out_b
            pl.BlockSpec((1, 1, E), w3),              # ln1_g
            pl.BlockSpec((1, 1, E), w3),              # ln1_b
            pl.BlockSpec((1, E, F), w3),              # w1
            pl.BlockSpec((1, 1, F), w3),              # b1
            pl.BlockSpec((1, F, E), w3),              # w2
            pl.BlockSpec((1, 1, E), w3),              # b2
            pl.BlockSpec((1, 1, E), w3),              # ln2_g
            pl.BlockSpec((1, 1, E), w3),              # ln2_b
        ],
        out_specs=pl.BlockSpec((S, E), act_map),
        scratch_shapes=[pltpu.VMEM((S, E), jnp.float32)],
        compiler_params=pltpu.CompilerParams(
            dimension_semantics=("parallel", "arbitrary")),
    )(x, p["in_w"], p["in_b"], p["out_w"], p["out_b"],
      p["ln1_g"], p["ln1_b"], p["w1"], p["b1"], p["w2"], p["b2"],
      p["ln2_g"], p["ln2_b"])


# ----------------------- fused decoder stack (+ classifier) -----------------------

def _decoder_stack_kernel(y_ref, mem_ref, mask_ref,
                          sa_in_w_ref, sa_in_b_ref, sa_out_w_ref, sa_out_b_ref,
                          ca_in_w_ref, ca_in_b_ref, ca_out_w_ref, ca_out_b_ref,
                          w1_ref, b1_ref, w2_ref, b2_ref,
                          ln1_g_ref, ln1_b_ref, ln2_g_ref, ln2_b_ref,
                          ln3_g_ref, ln3_b_ref,
                          fc_w_ref, fc_b_ref,
                          logits_ref, carry_ref, *, nhead, eps):
    l = pl.program_id(1)

    @pl.when(l == 0)
    def _():
        carry_ref[...] = y_ref[...]

    y = carry_ref[...]                                                    # (Sy, E)
    mask = mask_ref[...]                                                  # (Sy, Sy) additive
    # masked self-attention
    a = _mha_proj(y, y, sa_in_w_ref, sa_in_b_ref, sa_out_w_ref,
                  nhead=nhead, mask=mask) + sa_out_b_ref[0]
    h1 = _layer_norm(y + a, ln1_g_ref[0], ln1_b_ref[0], eps)
    # cross-attention against VMEM-resident encoder memory
    mem = mem_ref[...]                                                    # (Sx, E)
    a2 = _mha_proj(h1, mem, ca_in_w_ref, ca_in_b_ref, ca_out_w_ref,
                   nhead=nhead) + ca_out_b_ref[0]
    h2 = _layer_norm(h1 + a2, ln2_g_ref[0], ln2_b_ref[0], eps)
    # feed-forward
    ff = jnp.maximum(jnp.dot(h2, w1_ref[0], preferred_element_type=jnp.float32)
                     + b1_ref[0], 0.0)
    ff = jnp.dot(ff, w2_ref[0], preferred_element_type=jnp.float32) + b2_ref[0]
    h3 = _layer_norm(h2 + ff, ln3_g_ref[0], ln3_b_ref[0], eps)
    carry_ref[...] = h3

    @pl.when(l == pl.num_programs(1) - 1)
    def _():
        # lane-dense classifier (fc padded to a multiple of 128 lanes at init) fused in.
        logits_ref[...] = (jnp.dot(h3, fc_w_ref[...], preferred_element_type=jnp.float32)
                           + fc_b_ref[...])


def decoder_stack(y, memory, mask, p, fc_w, fc_b, *, B, nhead, eps=1e-5):
    """y: (B*Sy, E), memory: (B*Sx, E).  Runs all decoder layers + classifier in one call."""
    NBy, E = y.shape
    Sy = NBy // B
    Sx = memory.shape[0] // B
    L = p["sa_in_w"].shape[0]
    H = nhead
    hd = E // H
    F = p["w1"].shape[2]
    Cp = fc_w.shape[1]

    act_map = lambda b, l: (b, 0)
    const2 = lambda b, l: (0, 0)
    w3 = lambda b, l: (l, 0, 0)
    w4 = lambda b, l: (l, 0, 0, 0)

    return pl.pallas_call(
        functools.partial(_decoder_stack_kernel, nhead=nhead, eps=eps),
        out_shape=jax.ShapeDtypeStruct((NBy, Cp), jnp.float32),
        grid=(B, L),
        in_specs=[
            pl.BlockSpec((Sy, E), act_map),           # y (layer-0 input)
            pl.BlockSpec((Sx, E), act_map),           # encoder memory
            pl.BlockSpec((Sy, Sy), const2),           # causal mask
            pl.BlockSpec((1, 3 * H, E, hd), w4),      # self-attn in_w
            pl.BlockSpec((1, 3 * H, 1, hd), w4),      # self-attn in_b
            pl.BlockSpec((1, H, hd, E), w4),          # self-attn out_w
            pl.BlockSpec((1, 1, E), w3),              # self-attn out_b
            pl.BlockSpec((1, 3 * H, E, hd), w4),      # cross-attn in_w
            pl.BlockSpec((1, 3 * H, 1, hd), w4),      # cross-attn in_b
            pl.BlockSpec((1, H, hd, E), w4),          # cross-attn out_w
            pl.BlockSpec((1, 1, E), w3),              # cross-attn out_b
            pl.BlockSpec((1, E, F), w3),              # w1
            pl.BlockSpec((1, 1, F), w3),              # b1
            pl.BlockSpec((1, F, E), w3),              # w2
            pl.BlockSpec((1, 1, E), w3),              # b2
            pl.BlockSpec((1, 1, E), w3),              # ln1_g
            pl.BlockSpec((1, 1, E), w3),              # ln1_b
            pl.BlockSpec((1, 1, E), w3),              # ln2_g
            pl.BlockSpec((1, 1, E), w3),              # ln2_b
            pl.BlockSpec((1, 1, E), w3),              # ln3_g
            pl.BlockSpec((1, 1, E), w3),              # ln3_b
            pl.BlockSpec((E, Cp), const2),            # fc_w (lane-dense, padded)
            pl.BlockSpec((1, Cp), const2),            # fc_b
        ],
        out_specs=pl.BlockSpec((Sy, Cp), act_map),
        scratch_shapes=[pltpu.VMEM((Sy, E), jnp.float32)],
        compiler_params=pltpu.CompilerParams(
            dimension_semantics=("parallel", "arbitrary")),
    )(y, memory, mask,
      p["sa_in_w"], p["sa_in_b"], p["sa_out_w"], p["sa_out_b"],
      p["ca_in_w"], p["ca_in_b"], p["ca_out_w"], p["ca_out_b"],
      p["w1"], p["b1"], p["w2"], p["b2"],
      p["ln1_g"], p["ln1_b"], p["ln2_g"], p["ln2_b"], p["ln3_g"], p["ln3_b"],
      fc_w, fc_b)


# ----------------------- JAX glue (embedding / PE / mask / forward) -----------------------

def positional_encoding_table(max_len, d_model):
    position = jnp.arange(max_len, dtype=jnp.float32)[:, None]
    div_term = jnp.exp(jnp.arange(0, d_model, 2, dtype=jnp.float32)
                       * (-math.log(10000.0) / d_model))
    pe = jnp.zeros((max_len, d_model), jnp.float32)
    pe = pe.at[:, 0::2].set(jnp.sin(position * div_term))
    pe = pe.at[:, 1::2].set(jnp.cos(position * div_term))
    return pe


def generate_square_subsequent_mask(size):
    # -1e30 instead of -inf: identical result when each row has >=1 unmasked entry (true here).
    allowed = jnp.tril(jnp.ones((size, size), jnp.float32)) == 1
    return jnp.where(allowed, 0.0, -1e30).astype(jnp.float32)


def transformer_forward(params, x_tokens, y_tokens, nhead):
    emb = params["embedding"]
    C, E = emb.shape
    B, Sx = x_tokens.shape
    Sy = y_tokens.shape[1]
    pe = params["pe"]
    scale = math.sqrt(E)

    # TODO(synk): embedding gather + positional-encoding add kept in plain JAX (tiny int gather,
    #             no hot-path benefit); dropout layers are identity (eval mode).
    x = jnp.take(emb, x_tokens, axis=0) * scale + pe[:Sx][None, :, :]   # (B, Sx, E)
    y = jnp.take(emb, y_tokens, axis=0) * scale + pe[:Sy][None, :, :]   # (B, Sy, E)
    x = x.reshape(B * Sx, E)
    y = y.reshape(B * Sy, E)

    memory = encoder_stack(x, params["enc"], B=B, nhead=nhead)          # (B*Sx, E)
    tgt_mask = params["y_mask"][:Sy, :Sy]
    logits_p = decoder_stack(y, memory, tgt_mask, params["dec"],
                             params["fc_w"], params["fc_b"], B=B, nhead=nhead)  # (B*Sy, Cp)
    logits = logits_p[:, :C].reshape(B, Sy, C)
    return jnp.transpose(logits, (0, 2, 1))                             # (B, C, Sy)


# ----------------------- deterministic parameter init (stacked per-layer weights) -----------

def init_params(key, num_classes, dim, nhead, num_layers, dim_ff, max_output_length,
                max_len=5000):
    L, H = num_layers, nhead
    hd = dim // nhead
    keys = iter(jax.random.split(key, 256))

    def nrm(shape, s=0.05):
        return jax.random.normal(next(keys), shape, jnp.float32) * s

    def zeros(shape):
        return jnp.zeros(shape, jnp.float32)

    def ones(shape):
        return jnp.ones(shape, jnp.float32)

    def mha():
        # per-head in-projection (q heads, k heads, v heads) and per-head out-projection rows
        return (nrm((L, 3 * H, dim, hd)), zeros((L, 3 * H, 1, hd)),
                nrm((L, H, hd, dim)), zeros((L, 1, dim)))

    e_in_w, e_in_b, e_out_w, e_out_b = mha()
    enc = dict(in_w=e_in_w, in_b=e_in_b, out_w=e_out_w, out_b=e_out_b,
               ln1_g=ones((L, 1, dim)), ln1_b=zeros((L, 1, dim)),
               w1=nrm((L, dim, dim_ff)), b1=zeros((L, 1, dim_ff)),
               w2=nrm((L, dim_ff, dim)), b2=zeros((L, 1, dim)),
               ln2_g=ones((L, 1, dim)), ln2_b=zeros((L, 1, dim)))

    s_in_w, s_in_b, s_out_w, s_out_b = mha()
    c_in_w, c_in_b, c_out_w, c_out_b = mha()
    dec = dict(sa_in_w=s_in_w, sa_in_b=s_in_b, sa_out_w=s_out_w, sa_out_b=s_out_b,
               ca_in_w=c_in_w, ca_in_b=c_in_b, ca_out_w=c_out_w, ca_out_b=c_out_b,
               w1=nrm((L, dim, dim_ff)), b1=zeros((L, 1, dim_ff)),
               w2=nrm((L, dim_ff, dim)), b2=zeros((L, 1, dim)),
               ln1_g=ones((L, 1, dim)), ln1_b=zeros((L, 1, dim)),
               ln2_g=ones((L, 1, dim)), ln2_b=zeros((L, 1, dim)),
               ln3_g=ones((L, 1, dim)), ln3_b=zeros((L, 1, dim)))

    # lane-dense classifier: pad class dim to a multiple of 128 ONCE at init (not per forward)
    Cp = ((num_classes + 127) // 128) * 128
    fc_w = jax.random.uniform(next(keys), (dim, num_classes), jnp.float32, -0.1, 0.1)
    fc_w = jnp.pad(fc_w, ((0, 0), (0, Cp - num_classes)))
    fc_b = jnp.zeros((1, Cp), jnp.float32)

    return dict(
        embedding=jax.random.uniform(next(keys), (num_classes, dim), jnp.float32, -0.1, 0.1),
        pe=positional_encoding_table(max_len, dim),
        y_mask=generate_square_subsequent_mask(max_output_length),
        enc=enc, dec=dec, fc_w=fc_w, fc_b=fc_b,
    )


# ----------------------- main -----------------------

if __name__ == "__main__":
    num_classes = 16
    max_output_length = 8
    dim = 32          # small d_model (module default 128); nhead=4, num_layers=4, dim_ff=dim
    nhead = 4
    num_layers = 4
    B, Sx, Sy = 2, 8, 8

    root = jax.random.PRNGKey(0)
    kp, kx, ky = jax.random.split(root, 3)
    params = init_params(kp, num_classes, dim, nhead, num_layers, dim, max_output_length)
    x = jax.random.randint(kx, (B, Sx), 0, num_classes, dtype=jnp.int32)
    y = jax.random.randint(ky, (B, Sy), 0, num_classes, dtype=jnp.int32)

    fwd = jax.jit(transformer_forward, static_argnames=("nhead",))
    out = fwd(params, x, y, nhead=nhead)
    out = jax.block_until_ready(out)

    assert out.shape == (B, num_classes, Sy), out.shape
    assert bool(jnp.all(jnp.isfinite(out)))
    print("KERNEL_OK")
</pallas_src>

<mosaic_0001>
module attributes {stable_mosaic.version = 11 : i64} {
  func.func @_encoder_stack_kernel(%arg0: i32, %arg1: i32, %arg2: memref<8x32xf32, #tpu.memory_space<vmem>>, %arg3: memref<1x12x32x8xf32, #tpu.memory_space<vmem>>, %arg4: memref<1x12x1x8xf32, #tpu.memory_space<vmem>>, %arg5: memref<1x4x8x32xf32, #tpu.memory_space<vmem>>, %arg6: memref<1x1x32xf32, #tpu.memory_space<vmem>>, %arg7: memref<1x1x32xf32, #tpu.memory_space<vmem>>, %arg8: memref<1x1x32xf32, #tpu.memory_space<vmem>>, %arg9: memref<1x32x32xf32, #tpu.memory_space<vmem>>, %arg10: memref<1x1x32xf32, #tpu.memory_space<vmem>>, %arg11: memref<1x32x32xf32, #tpu.memory_space<vmem>>, %arg12: memref<1x1x32xf32, #tpu.memory_space<vmem>>, %arg13: memref<1x1x32xf32, #tpu.memory_space<vmem>>, %arg14: memref<1x1x32xf32, #tpu.memory_space<vmem>>, %arg15: memref<8x32xf32, #tpu.memory_space<vmem>>, %arg16: memref<8x32xf32, #tpu.memory_space<vmem>>) attributes {dimension_semantics = [#tpu.dimension_semantics<parallel>, #tpu.dimension_semantics<arbitrary>], iteration_bounds = array<i64: 2, 4>, scalar_prefetch = 0 : i64, scratch_operands = 1 : i64, tpu.core_type = #tpu.core_type<tc>, window_params = [{transform_indices = @transform_0, window_bounds = array<i64: 8, 32>}, {transform_indices = @transform_1, window_bounds = array<i64: 1, 12, 32, 8>}, {transform_indices = @transform_2, window_bounds = array<i64: 1, 12, 1, 8>}, {transform_indices = @transform_3, window_bounds = array<i64: 1, 4, 8, 32>}, {transform_indices = @transform_4, window_bounds = array<i64: 1, 1, 32>}, {transform_indices = @transform_5, window_bounds = array<i64: 1, 1, 32>}, {transform_indices = @transform_6, window_bounds = array<i64: 1, 1, 32>}, {transform_indices = @transform_7, window_bounds = array<i64: 1, 32, 32>}, {transform_indices = @transform_8, window_bounds = array<i64: 1, 1, 32>}, {transform_indices = @transform_9, window_bounds = array<i64: 1, 32, 32>}, {transform_indices = @transform_10, window_bounds = array<i64: 1, 1, 32>}, {transform_indices = @transform_11, window_bounds = array<i64: 1, 1, 32>}, {transform_indices = @transform_12, window_bounds = array<i64: 1, 1, 32>}, {transform_indices = @transform_13, window_bounds = array<i64: 8, 32>}]} {
    %c0_i32 = arith.constant 0 : i32
    %0 = arith.cmpi eq, %arg1, %c0_i32 : i32
    %1 = arith.extui %0 : i1 to i32
    %c0_i32_0 = arith.constant 0 : i32
    %2 = arith.cmpi ne, %1, %c0_i32_0 : i32
    scf.if %2 {
      %c0_181 = arith.constant 0 : index
      %c0_182 = arith.constant 0 : index
      %233 = vector.load %arg2[%c0_181, %c0_182] : memref<8x32xf32, #tpu.memory_space<vmem>>, vector<8x32xf32>
      %c0_183 = arith.constant 0 : index
      %c0_184 = arith.constant 0 : index
      %234 = vector.load %arg16[%c0_183, %c0_184] : memref<8x32xf32, #tpu.memory_space<vmem>>, vector<8x32xf32>
      tpu.vector_store %arg16[%c0_183, %c0_184], %233 {strides = array<i32>} : memref<8x32xf32, #tpu.memory_space<vmem>>, vector<8x32xf32>,
    } else {
    }
    %c0 = arith.constant 0 : index
    %c0_1 = arith.constant 0 : index
    %3 = vector.load %arg16[%c0, %c0_1] : memref<8x32xf32, #tpu.memory_space<vmem>>, vector<8x32xf32>
    %c0_2 = arith.constant 0 : index
    %c0_3 = arith.constant 0 : index
    %c0_4 = arith.constant 0 : index
    %c0_5 = arith.constant 0 : index
    %4 = vector.load %arg3[%c0_2, %c0_3, %c0_4, %c0_5] : memref<1x12x32x8xf32, #tpu.memory_space<vmem>>, vector<1x1x32x8xf32>
    %5 = vector.shape_cast %4 : vector<1x1x32x8xf32> to vector<32x8xf32>
    %c0_6 = arith.constant 0 : index
    %c0_7 = arith.constant 0 : index
    %c0_8 = arith.constant 0 : index
    %c0_9 = arith.constant 0 : index
    %6 = vector.load %arg4[%c0_6, %c0_7, %c0_8, %c0_9] : memref<1x12x1x8xf32, #tpu.memory_space<vmem>>, vector<1x1x1x8xf32>
    %7 = vector.shape_cast %6 : vector<1x1x1x8xf32> to vector<1x8xf32>
    %c0_10 = arith.constant 0 : index
    %c4 = arith.constant 4 : index
    %c0_11 = arith.constant 0 : index
    %c0_12 = arith.constant 0 : index
    %8 = vector.load %arg3[%c0_10, %c4, %c0_11, %c0_12] : memref<1x12x32x8xf32, #tpu.memory_space<vmem>>, vector<1x1x32x8xf32>
    %9 = vector.shape_cast %8 : vector<1x1x32x8xf32> to vector<32x8xf32>
    %c0_13 = arith.constant 0 : index
    %c4_14 = arith.constant 4 : index
    %c0_15 = arith.constant 0 : index
    %c0_16 = arith.constant 0 : index
    %10 = vector.load %arg4[%c0_13, %c4_14, %c0_15, %c0_16] : memref<1x12x1x8xf32, #tpu.memory_space<vmem>>, vector<1x1x1x8xf32>
    %11 = vector.shape_cast %10 : vector<1x1x1x8xf32> to vector<1x8xf32>
    %c0_17 = arith.constant 0 : index
    %c8 = arith.constant 8 : index
    %c0_18 = arith.constant 0 : index
    %c0_19 = arith.constant 0 : index
    %12 = vector.load %arg3[%c0_17, %c8, %c0_18, %c0_19] : memref<1x12x32x8xf32, #tpu.memory_space<vmem>>, vector<1x1x32x8xf32>
    %13 = vector.shape_cast %12 : vector<1x1x32x8xf32> to vector<32x8xf32>
    %c0_20 = arith.constant 0 : index
    %c8_21 = arith.constant 8 : index
    %c0_22 = arith.constant 0 : index
    %c0_23 = arith.constant 0 : index
    %14 = vector.load %arg4[%c0_20, %c8_21, %c0_22, %c0_23] : memref<1x12x1x8xf32, #tpu.memory_space<vmem>>, vector<1x1x1x8xf32>
    %15 = vector.shape_cast %14 : vector<1x1x1x8xf32> to vector<1x8xf32>
    %cst = arith.constant dense<0.000000e+00> : vector<8x8xf32>
    %16 = tpu.matmul %3, %5, %cst {dimension_numbers = #tpu.dot_dimension_numbers<[1], [0], [0], [1], [0, 0, 1, 1], [], []>} : vector<8x32xf32>, vector<32x8xf32>, vector<8x8xf32> -> vector<8x8xf32>
    %17 = vector.broadcast %7 : vector<1x8xf32> to vector<8x8xf32>
    %18 = arith.addf %16, %17 : vector<8x8xf32>
    %cst_24 = arith.constant 0.353553385 : f32
    %19 = vector.broadcast %cst_24 : f32 to vector<8x8xf32>
    %20 = arith.mulf %18, %19 : vector<8x8xf32>
    %cst_25 = arith.constant dense<0.000000e+00> : vector<8x8xf32>
    %21 = tpu.matmul %3, %9, %cst_25 {dimension_numbers = #tpu.dot_dimension_numbers<[1], [0], [0], [1], [0, 0, 1, 1], [], []>} : vector<8x32xf32>, vector<32x8xf32>, vector<8x8xf32> -> vector<8x8xf32>
    %22 = vector.broadcast %11 : vector<1x8xf32> to vector<8x8xf32>
    %23 = arith.addf %21, %22 : vector<8x8xf32>
    %cst_26 = arith.constant dense<0.000000e+00> : vector<8x8xf32>
    %24 = tpu.matmul %3, %13, %cst_26 {dimension_numbers = #tpu.dot_dimension_numbers<[1], [0], [0], [1], [0, 0, 1, 1], [], []>} : vector<8x32xf32>, vector<32x8xf32>, vector<8x8xf32> -> vector<8x8xf32>
    %25 = vector.broadcast %15 : vector<1x8xf32> to vector<8x8xf32>
    %26 = arith.addf %24, %25 : vector<8x8xf32>
    %cst_27 = arith.constant dense<0.000000e+00> : vector<8x8xf32>
    %27 = tpu.matmul %20, %23, %cst_27 {dimension_numbers = #tpu.dot_dimension_numbers<[1], [1], [0], [0], [0, 0, 1, 0], [], []>} : vector<8x8xf32>, vector<8x8xf32>, vector<8x8xf32> -> vector<8x8xf32>
    %cst_28 = arith.constant dense<0xFF800000> : vector<8xf32>
    %28 = vector.multi_reduction <maximumf>, %27, %cst_28 [1] : vector<8x8xf32> to vector<8xf32>
    %29 = vector.shape_cast %28 : vector<8xf32> to vector<8x1xf32>
    %30 = vector.broadcast %29 : vector<8x1xf32> to vector<8x8xf32>
    %31 = arith.subf %27, %30 : vector<8x8xf32>
    %32 = math.exp %31 : vector<8x8xf32>
    %cst_29 = arith.constant dense<0.000000e+00> : vector<8xf32>
    %33 = vector.multi_reduction <add>, %32, %cst_29 [1] : vector<8x8xf32> to vector<8xf32>
    %34 = vector.shape_cast %33 : vector<8xf32> to vector<8x1xf32>
    %35 = tpu.reciprocal %34 {approx = true} : vector<8x1xf32> -> vector<8x1xf32>
    %36 = vector.broadcast %35 : vector<8x1xf32> to vector<8x8xf32>
    %37 = arith.mulf %32, %36 : vector<8x8xf32>
    %cst_30 = arith.constant dense<0.000000e+00> : vector<8x8xf32>
    %38 = tpu.matmul %37, %26, %cst_30 {dimension_numbers = #tpu.dot_dimension_numbers<[1], [0], [0], [1], [0, 0, 1, 1], [], []>} : vector<8x8xf32>, vector<8x8xf32>, vector<8x8xf32> -> vector<8x8xf32>
    %c0_31 = arith.constant 0 : index
    %c0_32 = arith.constant 0 : index
    %c0_33 = arith.constant 0 : index
    %c0_34 = arith.constant 0 : index
    %39 = vector.load %arg5[%c0_31, %c0_32, %c0_33, %c0_34] : memref<1x4x8x32xf32, #tpu.memory_space<vmem>>, vector<1x1x8x32xf32>
    %40 = vector.shape_cast %39 : vector<1x1x8x32xf32> to vector<8x32xf32>
    %cst_35 = arith.constant dense<0.000000e+00> : vector<8x32xf32>
    %41 = tpu.matmul %38, %40, %cst_35 {dimension_numbers = #tpu.dot_dimension_numbers<[1], [0], [0], [1], [0, 0, 1, 1], [], []>} : vector<8x8xf32>, vector<8x32xf32>, vector<8x32xf32> -> vector<8x32xf32>
    %c0_36 = arith.constant 0 : index
    %c1 = arith.constant 1 : index
    %c0_37 = arith.constant 0 : index
    %c0_38 = arith.constant 0 : index
    %42 = vector.load %arg3[%c0_36, %c1, %c0_37, %c0_38] : memref<1x12x32x8xf32, #tpu.memory_space<vmem>>, vector<1x1x32x8xf32>
    %43 = vector.shape_cast %42 : vector<1x1x32x8xf32> to vector<32x8xf32>
    %c0_39 = arith.constant 0 : index
    %c1_40 = arith.constant 1 : index
    %c0_41 = arith.constant 0 : index
    %c0_42 = arith.constant 0 : index
    %44 = vector.load %arg4[%c0_39, %c1_40, %c0_41, %c0_42] : memref<1x12x1x8xf32, #tpu.memory_space<vmem>>, vector<1x1x1x8xf32>
    %45 = vector.shape_cast %44 : vector<1x1x1x8xf32> to vector<1x8xf32>
    %c0_43 = arith.constant 0 : index
    %c5 = arith.constant 5 : index
    %c0_44 = arith.constant 0 : index
    %c0_45 = arith.constant 0 : index
    %46 = vector.load %arg3[%c0_43, %c5, %c0_44, %c0_45] : memref<1x12x32x8xf32, #tpu.memory_space<vmem>>, vector<1x1x32x8xf32>
    %47 = vector.shape_cast %46 : vector<1x1x32x8xf32> to vector<32x8xf32>
    %c0_46 = arith.constant 0 : index
    %c5_47 = arith.constant 5 : index
    %c0_48 = arith.constant 0 : index
    %c0_49 = arith.constant 0 : index
    %48 = vector.load %arg4[%c0_46, %c5_47, %c0_48, %c0_49] : memref<1x12x1x8xf32, #tpu.memory_space<vmem>>, vector<1x1x1x8xf32>
    %49 = vector.shape_cast %48 : vector<1x1x1x8xf32> to vector<1x8xf32>
    %c0_50 = arith.constant 0 : index
    %c9 = arith.constant 9 : index
    %c0_51 = arith.constant 0 : index
    %c0_52 = arith.constant 0 : index
    %50 = vector.load %arg3[%c0_50, %c9, %c0_51, %c0_52] : memref<1x12x32x8xf32, #tpu.memory_space<vmem>>, vector<1x1x32x8xf32>
    %51 = vector.shape_cast %50 : vector<1x1x32x8xf32> to vector<32x8xf32>
    %c0_53 = arith.constant 0 : index
    %c9_54 = arith.constant 9 : index
    %c0_55 = arith.constant 0 : index
    %c0_56 = arith.constant 0 : index
    %52 = vector.load %arg4[%c0_53, %c9_54, %c0_55, %c0_56] : memref<1x12x1x8xf32, #tpu.memory_space<vmem>>, vector<1x1x1x8xf32>
    %53 = vector.shape_cast %52 : vector<1x1x1x8xf32> to vector<1x8xf32>
    %cst_57 = arith.constant dense<0.000000e+00> : vector<8x8xf32>
    %54 = tpu.matmul %3, %43, %cst_57 {dimension_numbers = #tpu.dot_dimension_numbers<[1], [0], [0], [1], [0, 0, 1, 1], [], []>} : vector<8x32xf32>, vector<32x8xf32>, vector<8x8xf32> -> vector<8x8xf32>
    %55 = vector.broadcast %45 : vector<1x8xf32> to vector<8x8xf32>
    %56 = arith.addf %54, %55 : vector<8x8xf32>
    %cst_58 = arith.constant 0.353553385 : f32
    %57 = vector.broadcast %cst_58 : f32 to vector<8x8xf32>
    %58 = arith.mulf %56, %57 : vector<8x8xf32>
    %cst_59 = arith.constant dense<0.000000e+00> : vector<8x8xf32>
    %59 = tpu.matmul %3, %47, %cst_59 {dimension_numbers = #tpu.dot_dimension_numbers<[1], [0], [0], [1], [0, 0, 1, 1], [], []>} : vector<8x32xf32>, vector<32x8xf32>, vector<8x8xf32> -> vector<8x8xf32>
    %60 = vector.broadcast %49 : vector<1x8xf32> to vector<8x8xf32>
    %61 = arith.addf %59, %60 : vector<8x8xf32>
    %cst_60 = arith.constant dense<0.000000e+00> : vector<8x8xf32>
    %62 = tpu.matmul %3, %51, %cst_60 {dimension_numbers = #tpu.dot_dimension_numbers<[1], [0], [0], [1], [0, 0, 1, 1], [], []>} : vector<8x32xf32>, vector<32x8xf32>, vector<8x8xf32> -> vector<8x8xf32>
    %63 = vector.broadcast %53 : vector<1x8xf32> to vector<8x8xf32>
    %64 = arith.addf %62, %63 : vector<8x8xf32>
    %cst_61 = arith.constant dense<0.000000e+00> : vector<8x8xf32>
    %65 = tpu.matmul %58, %61, %cst_61 {dimension_numbers = #tpu.dot_dimension_numbers<[1], [1], [0], [0], [0, 0, 1, 0], [], []>} : vector<8x8xf32>, vector<8x8xf32>, vector<8x8xf32> -> vector<8x8xf32>
    %cst_62 = arith.constant dense<0xFF800000> : vector<8xf32>
    %66 = vector.multi_reduction <maximumf>, %65, %cst_62 [1] : vector<8x8xf32> to vector<8xf32>
    %67 = vector.shape_cast %66 : vector<8xf32> to vector<8x1xf32>
    %68 = vector.broadcast %67 : vector<8x1xf32> to vector<8x8xf32>
    %69 = arith.subf %65, %68 : vector<8x8xf32>
    %70 = math.exp %69 : vector<8x8xf32>
    %cst_63 = arith.constant dense<0.000000e+00> : vector<8xf32>
    %71 = vector.multi_reduction <add>, %70, %cst_63 [1] : vector<8x8xf32> to vector<8xf32>
    %72 = vector.shape_cast %71 : vector<8xf32> to vector<8x1xf32>
    %73 = tpu.reciprocal %72 {approx = true} : vector<8x1xf32> -> vector<8x1xf32>
    %74 = vector.broadcast %73 : vector<8x1xf32> to vector<8x8xf32>
    %75 = arith.mulf %70, %74 : vector<8x8xf32>
    %cst_64 = arith.constant dense<0.000000e+00> : vector<8x8xf32>
    %76 = tpu.matmul %75, %64, %cst_64 {dimension_numbers = #tpu.dot_dimension_numbers<[1], [0], [0], [1], [0, 0, 1, 1], [], []>} : vector<8x8xf32>, vector<8x8xf32>, vector<8x8xf32> -> vector<8x8xf32>
    %c0_65 = arith.constant 0 : index
    %c1_66 = arith.constant 1 : index
    %c0_67 = arith.constant 0 : index
    %c0_68 = arith.constant 0 : index
    %77 = vector.load %arg5[%c0_65, %c1_66, %c0_67, %c0_68] : memref<1x4x8x32xf32, #tpu.memory_space<vmem>>, vector<1x1x8x32xf32>
    %78 = vector.shape_cast %77 : vector<1x1x8x32xf32> to vector<8x32xf32>
    %cst_69 = arith.constant dense<0.000000e+00> : vector<8x32xf32>
    %79 = tpu.matmul %76, %78, %cst_69 {dimension_numbers = #tpu.dot_dimension_numbers<[1], [0], [0], [1], [0, 0, 1, 1], [], []>} : vector<8x8xf32>, vector<8x32xf32>, vector<8x32xf32> -> vector<8x32xf32>
    %80 = arith.addf %41, %79 : vector<8x32xf32>
    %c0_70 = arith.constant 0 : index
    %c2 = arith.constant 2 : index
    %c0_71 = arith.constant 0 : index
    %c0_72 = arith.constant 0 : index
    %81 = vector.load %arg3[%c0_70, %c2, %c0_71, %c0_72] : memref<1x12x32x8xf32, #tpu.memory_space<vmem>>, vector<1x1x32x8xf32>
    %82 = vector.shape_cast %81 : vector<1x1x32x8xf32> to vector<32x8xf32>
    %c0_73 = arith.constant 0 : index
    %c2_74 = arith.constant 2 : index
    %c0_75 = arith.constant 0 : index
    %c0_76 = arith.constant 0 : index
    %83 = vector.load %arg4[%c0_73, %c2_74, %c0_75, %c0_76] : memref<1x12x1x8xf32, #tpu.memory_space<vmem>>, vector<1x1x1x8xf32>
    %84 = vector.shape_cast %83 : vector<1x1x1x8xf32> to vector<1x8xf32>
    %c0_77 = arith.constant 0 : index
    %c6 = arith.constant 6 : index
    %c0_78 = arith.constant 0 : index
    %c0_79 = arith.constant 0 : index
    %85 = vector.load %arg3[%c0_77, %c6, %c0_78, %c0_79] : memref<1x12x32x8xf32, #tpu.memory_space<vmem>>, vector<1x1x32x8xf32>
    %86 = vector.shape_cast %85 : vector<1x1x32x8xf32> to vector<32x8xf32>
    %c0_80 = arith.constant 0 : index
    %c6_81 = arith.constant 6 : index
    %c0_82 = arith.constant 0 : index
    %c0_83 = arith.constant 0 : index
    %87 = vector.load %arg4[%c0_80, %c6_81, %c0_82, %c0_83] : memref<1x12x1x8xf32, #tpu.memory_space<vmem>>, vector<1x1x1x8xf32>
    %88 = vector.shape_cast %87 : vector<1x1x1x8xf32> to vector<1x8xf32>
    %c0_84 = arith.constant 0 : index
    %c10 = arith.constant 10 : index
    %c0_85 = arith.constant 0 : index
    %c0_86 = arith.constant 0 : index
    %89 = vector.load %arg3[%c0_84, %c10, %c0_85, %c0_86] : memref<1x12x32x8xf32, #tpu.memory_space<vmem>>, vector<1x1x32x8xf32>
    %90 = vector.shape_cast %89 : vector<1x1x32x8xf32> to vector<32x8xf32>
    %c0_87 = arith.constant 0 : index
    %c10_88 = arith.constant 10 : index
    %c0_89 = arith.constant 0 : index
    %c0_90 = arith.constant 0 : index
    %91 = vector.load %arg4[%c0_87, %c10_88, %c0_89, %c0_90] : memref<1x12x1x8xf32, #tpu.memory_space<vmem>>, vector<1x1x1x8xf32>
    %92 = vector.shape_cast %91 : vector<1x1x1x8xf32> to vector<1x8xf32>
    %cst_91 = arith.constant dense<0.000000e+00> : vector<8x8xf32>
    %93 = tpu.matmul %3, %82, %cst_91 {dimension_numbers = #tpu.dot_dimension_numbers<[1], [0], [0], [1], [0, 0, 1, 1], [], []>} : vector<8x32xf32>, vector<32x8xf32>, vector<8x8xf32> -> vector<8x8xf32>
    %94 = vector.broadcast %84 : vector<1x8xf32> to vector<8x8xf32>
    %95 = arith.addf %93, %94 : vector<8x8xf32>
    %cst_92 = arith.constant 0.353553385 : f32
    %96 = vector.broadcast %cst_92 : f32 to vector<8x8xf32>
    %97 = arith.mulf %95, %96 : vector<8x8xf32>
    %cst_93 = arith.constant dense<0.000000e+00> : vector<8x8xf32>
    %98 = tpu.matmul %3, %86, %cst_93 {dimension_numbers = #tpu.dot_dimension_numbers<[1], [0], [0], [1], [0, 0, 1, 1], [], []>} : vector<8x32xf32>, vector<32x8xf32>, vector<8x8xf32> -> vector<8x8xf32>
    %99 = vector.broadcast %88 : vector<1x8xf32> to vector<8x8xf32>
    %100 = arith.addf %98, %99 : vector<8x8xf32>
    %cst_94 = arith.constant dense<0.000000e+00> : vector<8x8xf32>
    %101 = tpu.matmul %3, %90, %cst_94 {dimension_numbers = #tpu.dot_dimension_numbers<[1], [0], [0], [1], [0, 0, 1, 1], [], []>} : vector<8x32xf32>, vector<32x8xf32>, vector<8x8xf32> -> vector<8x8xf32>
    %102 = vector.broadcast %92 : vector<1x8xf32> to vector<8x8xf32>
    %103 = arith.addf %101, %102 : vector<8x8xf32>
    %cst_95 = arith.constant dense<0.000000e+00> : vector<8x8xf32>
    %104 = tpu.matmul %97, %100, %cst_95 {dimension_numbers = #tpu.dot_dimension_numbers<[1], [1], [0], [0], [0, 0, 1, 0], [], []>} : vector<8x8xf32>, vector<8x8xf32>, vector<8x8xf32> -> vector<8x8xf32>
    %cst_96 = arith.constant dense<0xFF800000> : vector<8xf32>
    %105 = vector.multi_reduction <maximumf>, %104, %cst_96 [1] : vector<8x8xf32> to vector<8xf32>
    %106 = vector.shape_cast %105 : vector<8xf32> to vector<8x1xf32>
    %107 = vector.broadcast %106 : vector<8x1xf32> to vector<8x8xf32>
    %108 = arith.subf %104, %107 : vector<8x8xf32>
    %109 = math.exp %108 : vector<8x8xf32>
    %cst_97 = arith.constant dense<0.000000e+00> : vector<8xf32>
    %110 = vector.multi_reduction <add>, %109, %cst_97 [1] : vector<8x8xf32> to vector<8xf32>
    %111 = vector.shape_cast %110 : vector<8xf32> to vector<8x1xf32>
    %112 = tpu.reciprocal %111 {approx = true} : vector<8x1xf32> -> vector<8x1xf32>
    %113 = vector.broadcast %112 : vector<8x1xf32> to vector<8x8xf32>
    %114 = arith.mulf %109, %113 : vector<8x8xf32>
    %cst_98 = arith.constant dense<0.000000e+00> : vector<8x8xf32>
    %115 = tpu.matmul %114, %103, %cst_98 {dimension_numbers = #tpu.dot_dimension_numbers<[1], [0], [0], [1], [0, 0, 1, 1], [], []>} : vector<8x8xf32>, vector<8x8xf32>, vector<8x8xf32> -> vector<8x8xf32>
    %c0_99 = arith.constant 0 : index
    %c2_100 = arith.constant 2 : index
    %c0_101 = arith.constant 0 : index
    %c0_102 = arith.constant 0 : index
    %116 = vector.load %arg5[%c0_99, %c2_100, %c0_101, %c0_102] : memref<1x4x8x32xf32, #tpu.memory_space<vmem>>, vector<1x1x8x32xf32>
    %117 = vector.shape_cast %116 : vector<1x1x8x32xf32> to vector<8x32xf32>
    %cst_103 = arith.constant dense<0.000000e+00> : vector<8x32xf32>
    %118 = tpu.matmul %115, %117, %cst_103 {dimension_numbers = #tpu.dot_dimension_numbers<[1], [0], [0], [1], [0, 0, 1, 1], [], []>} : vector<8x8xf32>, vector<8x32xf32>, vector<8x32xf32> -> vector<8x32xf32>
    %119 = arith.addf %80, %118 : vector<8x32xf32>
    %c0_104 = arith.constant 0 : index
    %c3 = arith.constant 3 : index
    %c0_105 = arith.constant 0 : index
    %c0_106 = arith.constant 0 : index
    %120 = vector.load %arg3[%c0_104, %c3, %c0_105, %c0_106] : memref<1x12x32x8xf32, #tpu.memory_space<vmem>>, vector<1x1x32x8xf32>
    %121 = vector.shape_cast %120 : vector<1x1x32x8xf32> to vector<32x8xf32>
    %c0_107 = arith.constant 0 : index
    %c3_108 = arith.constant 3 : index
    %c0_109 = arith.constant 0 : index
    %c0_110 = arith.constant 0 : index
    %122 = vector.load %arg4[%c0_107, %c3_108, %c0_109, %c0_110] : memref<1x12x1x8xf32, #tpu.memory_space<vmem>>, vector<1x1x1x8xf32>
    %123 = vector.shape_cast %122 : vector<1x1x1x8xf32> to vector<1x8xf32>
    %c0_111 = arith.constant 0 : index
    %c7 = arith.constant 7 : index
    %c0_112 = arith.constant 0 : index
    %c0_113 = arith.constant 0 : index
    %124 = vector.load %arg3[%c0_111, %c7, %c0_112, %c0_113] : memref<1x12x32x8xf32, #tpu.memory_space<vmem>>, vector<1x1x32x8xf32>
    %125 = vector.shape_cast %124 : vector<1x1x32x8xf32> to vector<32x8xf32>
    %c0_114 = arith.constant 0 : index
    %c7_115 = arith.constant 7 : index
    %c0_116 = arith.constant 0 : index
    %c0_117 = arith.constant 0 : index
    %126 = vector.load %arg4[%c0_114, %c7_115, %c0_116, %c0_117] : memref<1x12x1x8xf32, #tpu.memory_space<vmem>>, vector<1x1x1x8xf32>
    %127 = vector.shape_cast %126 : vector<1x1x1x8xf32> to vector<1x8xf32>
    %c0_118 = arith.constant 0 : index
    %c11 = arith.constant 11 : index
    %c0_119 = arith.constant 0 : index
    %c0_120 = arith.constant 0 : index
    %128 = vector.load %arg3[%c0_118, %c11, %c0_119, %c0_120] : memref<1x12x32x8xf32, #tpu.memory_space<vmem>>, vector<1x1x32x8xf32>
    %129 = vector.shape_cast %128 : vector<1x1x32x8xf32> to vector<32x8xf32>
    %c0_121 = arith.constant 0 : index
    %c11_122 = arith.constant 11 : index
    %c0_123 = arith.constant 0 : index
    %c0_124 = arith.constant 0 : index
    %130 = vector.load %arg4[%c0_121, %c11_122, %c0_123, %c0_124] : memref<1x12x1x8xf32, #tpu.memory_space<vmem>>, vector<1x1x1x8xf32>
    %131 = vector.shape_cast %130 : vector<1x1x1x8xf32> to vector<1x8xf32>
    %cst_125 = arith.constant dense<0.000000e+00> : vector<8x8xf32>
    %132 = tpu.matmul %3, %121, %cst_125 {dimension_numbers = #tpu.dot_dimension_numbers<[1], [0], [0], [1], [0, 0, 1, 1], [], []>} : vector<8x32xf32>, vector<32x8xf32>, vector<8x8xf32> -> vector<8x8xf32>
    %133 = vector.broadcast %123 : vector<1x8xf32> to vector<8x8xf32>
    %134 = arith.addf %132, %133 : vector<8x8xf32>
    %cst_126 = arith.constant 0.353553385 : f32
    %135 = vector.broadcast %cst_126 : f32 to vector<8x8xf32>
    %136 = arith.mulf %134, %135 : vector<8x8xf32>
    %cst_127 = arith.constant dense<0.000000e+00> : vector<8x8xf32>
    %137 = tpu.matmul %3, %125, %cst_127 {dimension_numbers = #tpu.dot_dimension_numbers<[1], [0], [0], [1], [0, 0, 1, 1], [], []>} : vector<8x32xf32>, vector<32x8xf32>, vector<8x8xf32> -> vector<8x8xf32>
    %138 = vector.broadcast %127 : vector<1x8xf32> to vector<8x8xf32>
    %139 = arith.addf %137, %138 : vector<8x8xf32>
    %cst_128 = arith.constant dense<0.000000e+00> : vector<8x8xf32>
    %140 = tpu.matmul %3, %129, %cst_128 {dimension_numbers = #tpu.dot_dimension_numbers<[1], [0], [0], [1], [0, 0, 1, 1], [], []>} : vector<8x32xf32>, vector<32x8xf32>, vector<8x8xf32> -> vector<8x8xf32>
    %141 = vector.broadcast %131 : vector<1x8xf32> to vector<8x8xf32>
    %142 = arith.addf %140, %141 : vector<8x8xf32>
    %cst_129 = arith.constant dense<0.000000e+00> : vector<8x8xf32>
    %143 = tpu.matmul %136, %139, %cst_129 {dimension_numbers = #tpu.dot_dimension_numbers<[1], [1], [0], [0], [0, 0, 1, 0], [], []>} : vector<8x8xf32>, vector<8x8xf32>, vector<8x8xf32> -> vector<8x8xf32>
    %cst_130 = arith.constant dense<0xFF800000> : vector<8xf32>
    %144 = vector.multi_reduction <maximumf>, %143, %cst_130 [1] : vector<8x8xf32> to vector<8xf32>
    %145 = vector.shape_cast %144 : vector<8xf32> to vector<8x1xf32>
    %146 = vector.broadcast %145 : vector<8x1xf32> to vector<8x8xf32>
    %147 = arith.subf %143, %146 : vector<8x8xf32>
    %148 = math.exp %147 : vector<8x8xf32>
    %cst_131 = arith.constant dense<0.000000e+00> : vector<8xf32>
    %149 = vector.multi_reduction <add>, %148, %cst_131 [1] : vector<8x8xf32> to vector<8xf32>
    %150 = vector.shape_cast %149 : vector<8xf32> to vector<8x1xf32>
    %151 = tpu.reciprocal %150 {approx = true} : vector<8x1xf32> -> vector<8x1xf32>
    %152 = vector.broadcast %151 : vector<8x1xf32> to vector<8x8xf32>
    %153 = arith.mulf %148, %152 : vector<8x8xf32>
    %cst_132 = arith.constant dense<0.000000e+00> : vector<8x8xf32>
    %154 = tpu.matmul %153, %142, %cst_132 {dimension_numbers = #tpu.dot_dimension_numbers<[1], [0], [0], [1], [0, 0, 1, 1], [], []>} : vector<8x8xf32>, vector<8x8xf32>, vector<8x8xf32> -> vector<8x8xf32>
    %c0_133 = arith.constant 0 : index
    %c3_134 = arith.constant 3 : index
    %c0_135 = arith.constant 0 : index
    %c0_136 = arith.constant 0 : index
    %155 = vector.load %arg5[%c0_133, %c3_134, %c0_135, %c0_136] : memref<1x4x8x32xf32, #tpu.memory_space<vmem>>, vector<1x1x8x32xf32>
    %156 = vector.shape_cast %155 : vector<1x1x8x32xf32> to vector<8x32xf32>
    %cst_137 = arith.constant dense<0.000000e+00> : vector<8x32xf32>
    %157 = tpu.matmul %154, %156, %cst_137 {dimension_numbers = #tpu.dot_dimension_numbers<[1], [0], [0], [1], [0, 0, 1, 1], [], []>} : vector<8x8xf32>, vector<8x32xf32>, vector<8x32xf32> -> vector<8x32xf32>
    %158 = arith.addf %119, %157 : vector<8x32xf32>
    %c0_138 = arith.constant 0 : index
    %c0_139 = arith.constant 0 : index
    %c0_140 = arith.constant 0 : index
    %159 = vector.load %arg6[%c0_138, %c0_139, %c0_140] : memref<1x1x32xf32, #tpu.memory_space<vmem>>, vector<1x1x32xf32>
    %160 = vector.shape_cast %159 : vector<1x1x32xf32> to vector<1x32xf32>
    %161 = vector.broadcast %160 : vector<1x32xf32> to vector<8x32xf32>
    %162 = arith.addf %158, %161 : vector<8x32xf32>
    %163 = arith.addf %3, %162 : vector<8x32xf32>
    %c0_141 = arith.constant 0 : index
    %c0_142 = arith.constant 0 : index
    %c0_143 = arith.constant 0 : index
    %164 = vector.load %arg7[%c0_141, %c0_142, %c0_143] : memref<1x1x32xf32, #tpu.memory_space<vmem>>, vector<1x1x32xf32>
    %165 = vector.shape_cast %164 : vector<1x1x32xf32> to vector<1x32xf32>
    %c0_144 = arith.constant 0 : index
    %c0_145 = arith.constant 0 : index
    %c0_146 = arith.constant 0 : index
    %166 = vector.load %arg8[%c0_144, %c0_145, %c0_146] : memref<1x1x32xf32, #tpu.memory_space<vmem>>, vector<1x1x32xf32>
    %167 = vector.shape_cast %166 : vector<1x1x32xf32> to vector<1x32xf32>
    %cst_147 = arith.constant dense<0.000000e+00> : vector<8xf32>
    %168 = vector.multi_reduction <add>, %163, %cst_147 [1] : vector<8x32xf32> to vector<8xf32>
    %169 = vector.shape_cast %168 : vector<8xf32> to vector<8x1xf32>
    %cst_148 = arith.constant 3.200000e+01 : f32
    %170 = vector.broadcast %cst_148 : f32 to vector<8x1xf32>
    %171 = arith.divf %169, %170 : vector<8x1xf32>
    %172 = vector.broadcast %171 : vector<8x1xf32> to vector<8x32xf32>
    %173 = arith.subf %163, %172 : vector<8x32xf32>
    %174 = arith.mulf %173, %173 : vector<8x32xf32>
    %cst_149 = arith.constant dense<0.000000e+00> : vector<8xf32>
    %175 = vector.multi_reduction <add>, %174, %cst_149 [1] : vector<8x32xf32> to vector<8xf32>
    %176 = vector.shape_cast %175 : vector<8xf32> to vector<8x1xf32>
    %cst_150 = arith.constant 3.200000e+01 : f32
    %177 = vector.broadcast %cst_150 : f32 to vector<8x1xf32>
    %178 = arith.divf %176, %177 : vector<8x1xf32>
    %cst_151 = arith.constant 9.99999974E-6 : f32
    %179 = vector.broadcast %cst_151 : f32 to vector<8x1xf32>
    %180 = arith.addf %178, %179 : vector<8x1xf32>
    %181 = math.rsqrt %180 : vector<8x1xf32>
    %182 = vector.broadcast %181 : vector<8x1xf32> to vector<8x32xf32>
    %183 = arith.mulf %173, %182 : vector<8x32xf32>
    %184 = vector.broadcast %165 : vector<1x32xf32> to vector<8x32xf32>
    %185 = arith.mulf %183, %184 : vector<8x32xf32>
    %186 = vector.broadcast %167 : vector<1x32xf32> to vector<8x32xf32>
    %187 = arith.addf %185, %186 : vector<8x32xf32>
    %c0_152 = arith.constant 0 : index
    %c0_153 = arith.constant 0 : index
    %c0_154 = arith.constant 0 : index
    %188 = vector.load %arg9[%c0_152, %c0_153, %c0_154] : memref<1x32x32xf32, #tpu.memory_space<vmem>>, vector<1x32x32xf32>
    %189 = vector.shape_cast %188 : vector<1x32x32xf32> to vector<32x32xf32>
    %cst_155 = arith.constant dense<0.000000e+00> : vector<8x32xf32>
    %190 = tpu.matmul %187, %189, %cst_155 {dimension_numbers = #tpu.dot_dimension_numbers<[1], [0], [0], [1], [0, 0, 1, 1], [], []>} : vector<8x32xf32>, vector<32x32xf32>, vector<8x32xf32> -> vector<8x32xf32>
    %c0_156 = arith.constant 0 : index
    %c0_157 = arith.constant 0 : index
    %c0_158 = arith.constant 0 : index
    %191 = vector.load %arg10[%c0_156, %c0_157, %c0_158] : memref<1x1x32xf32, #tpu.memory_space<vmem>>, vector<1x1x32xf32>
    %192 = vector.shape_cast %191 : vector<1x1x32xf32> to vector<1x32xf32>
    %193 = vector.broadcast %192 : vector<1x32xf32> to vector<8x32xf32>
    %194 = arith.addf %190, %193 : vector<8x32xf32>
    %cst_159 = arith.constant 0.000000e+00 : f32
    %195 = vector.broadcast %cst_159 : f32 to vector<8x32xf32>
    %196 = arith.maximumf %194, %195 : vector<8x32xf32>
    %c0_160 = arith.constant 0 : index
    %c0_161 = arith.constant 0 : index
    %c0_162 = arith.constant 0 : index
    %197 = vector.load %arg11[%c0_160, %c0_161, %c0_162] : memref<1x32x32xf32, #tpu.memory_space<vmem>>, vector<1x32x32xf32>
    %198 = vector.shape_cast %197 : vector<1x32x32xf32> to vector<32x32xf32>
    %cst_163 = arith.constant dense<0.000000e+00> : vector<8x32xf32>
    %199 = tpu.matmul %196, %198, %cst_163 {dimension_numbers = #tpu.dot_dimension_numbers<[1], [0], [0], [1], [0, 0, 1, 1], [], []>} : vector<8x32xf32>, vector<32x32xf32>, vector<8x32xf32> -> vector<8x32xf32>
    %c0_164 = arith.constant 0 : index
    %c0_165 = arith.constant 0 : index
    %c0_166 = arith.constant 0 : index
    %200 = vector.load %arg12[%c0_164, %c0_165, %c0_166] : memref<1x1x32xf32, #tpu.memory_space<vmem>>, vector<1x1x32xf32>
    %201 = vector.shape_cast %200 : vector<1x1x32xf32> to vector<1x32xf32>
    %202 = vector.broadcast %201 : vector<1x32xf32> to vector<8x32xf32>
    %203 = arith.addf %199, %202 : vector<8x32xf32>
    %204 = arith.addf %187, %203 : vector<8x32xf32>
    %c0_167 = arith.constant 0 : index
    %c0_168 = arith.constant 0 : index
    %c0_169 = arith.constant 0 : index
    %205 = vector.load %arg13[%c0_167, %c0_168, %c0_169] : memref<1x1x32xf32, #tpu.memory_space<vmem>>, vector<1x1x32xf32>
    %206 = vector.shape_cast %205 : vector<1x1x32xf32> to vector<1x32xf32>
    %c0_170 = arith.constant 0 : index
    %c0_171 = arith.constant 0 : index
    %c0_172 = arith.constant 0 : index
    %207 = vector.load %arg14[%c0_170, %c0_171, %c0_172] : memref<1x1x32xf32, #tpu.memory_space<vmem>>, vector<1x1x32xf32>
    %208 = vector.shape_cast %207 : vector<1x1x32xf32> to vector<1x32xf32>
    %cst_173 = arith.constant dense<0.000000e+00> : vector<8xf32>
    %209 = vector.multi_reduction <add>, %204, %cst_173 [1] : vector<8x32xf32> to vector<8xf32>
    %210 = vector.shape_cast %209 : vector<8xf32> to vector<8x1xf32>
    %cst_174 = arith.constant 3.200000e+01 : f32
    %211 = vector.broadcast %cst_174 : f32 to vector<8x1xf32>
    %212 = arith.divf %210, %211 : vector<8x1xf32>
    %213 = vector.broadcast %212 : vector<8x1xf32> to vector<8x32xf32>
    %214 = arith.subf %204, %213 : vector<8x32xf32>
    %215 = arith.mulf %214, %214 : vector<8x32xf32>
    %cst_175 = arith.constant dense<0.000000e+00> : vector<8xf32>
    %216 = vector.multi_reduction <add>, %215, %cst_175 [1] : vector<8x32xf32> to vector<8xf32>
    %217 = vector.shape_cast %216 : vector<8xf32> to vector<8x1xf32>
    %cst_176 = arith.constant 3.200000e+01 : f32
    %218 = vector.broadcast %cst_176 : f32 to vector<8x1xf32>
    %219 = arith.divf %217, %218 : vector<8x1xf32>
    %cst_177 = arith.constant 9.99999974E-6 : f32
    %220 = vector.broadcast %cst_177 : f32 to vector<8x1xf32>
    %221 = arith.addf %219, %220 : vector<8x1xf32>
    %222 = math.rsqrt %221 : vector<8x1xf32>
    %223 = vector.broadcast %222 : vector<8x1xf32> to vector<8x32xf32>
    %224 = arith.mulf %214, %223 : vector<8x32xf32>
    %225 = vector.broadcast %206 : vector<1x32xf32> to vector<8x32xf32>
    %226 = arith.mulf %224, %225 : vector<8x32xf32>
    %227 = vector.broadcast %208 : vector<1x32xf32> to vector<8x32xf32>
    %228 = arith.addf %226, %227 : vector<8x32xf32>
    %c0_178 = arith.constant 0 : index
    %c0_179 = arith.constant 0 : index
    %229 = vector.load %arg16[%c0_178, %c0_179] : memref<8x32xf32, #tpu.memory_space<vmem>>, vector<8x32xf32>
    tpu.vector_store %arg16[%c0_178, %c0_179], %228 {strides = array<i32>} : memref<8x32xf32, #tpu.memory_space<vmem>>, vector<8x32xf32>,
    %c3_i32 = arith.constant 3 : i32
    %230 = arith.cmpi eq, %arg1, %c3_i32 : i32
    %231 = arith.extui %230 : i1 to i32
    %c0_i32_180 = arith.constant 0 : i32
    %232 = arith.cmpi ne, %231, %c0_i32_180 : i32
    scf.if %232 {
      %c0_181 = arith.constant 0 : index
      %c0_182 = arith.constant 0 : index
      %233 = vector.load %arg15[%c0_181, %c0_182] : memref<8x32xf32, #tpu.memory_space<vmem>>, vector<8x32xf32>
      tpu.vector_store %arg15[%c0_181, %c0_182], %228 {strides = array<i32>} : memref<8x32xf32, #tpu.memory_space<vmem>>, vector<8x32xf32>,
    } else {
    }
    return
  }
  func.func @transform_0(%arg0: i32, %arg1: i32) -> (i32, i32) {
    %c0_i32 = arith.constant 0 : i32
    %c0_i32_0 = arith.constant 0 : i32
    return %arg0, %c0_i32 : i32, i32
  }
  func.func @transform_1(%arg0: i32, %arg1: i32) -> (i32, i32, i32, i32) {
    %c0_i32 = arith.constant 0 : i32
    %c0_i32_0 = arith.constant 0 : i32
    %c0_i32_1 = arith.constant 0 : i32
    %c0_i32_2 = arith.constant 0 : i32
    return %arg1, %c0_i32, %c0_i32_0, %c0_i32_1 : i32, i32, i32, i32
  }
  func.func @transform_2(%arg0: i32, %arg1: i32) -> (i32, i32, i32, i32) {
    %c0_i32 = arith.constant 0 : i32
    %c0_i32_0 = arith.constant 0 : i32
    %c0_i32_1 = arith.constant 0 : i32
    %c0_i32_2 = arith.constant 0 : i32
    return %arg1, %c0_i32, %c0_i32_0, %c0_i32_1 : i32, i32, i32, i32
  }
  func.func @transform_3(%arg0: i32, %arg1: i32) -> (i32, i32, i32, i32) {
    %c0_i32 = arith.constant 0 : i32
    %c0_i32_0 = arith.constant 0 : i32
    %c0_i32_1 = arith.constant 0 : i32
    %c0_i32_2 = arith.constant 0 : i32
    return %arg1, %c0_i32, %c0_i32_0, %c0_i32_1 : i32, i32, i32, i32
  }
  func.func @transform_4(%arg0: i32, %arg1: i32) -> (i32, i32, i32) {
    %c0_i32 = arith.constant 0 : i32
    %c0_i32_0 = arith.constant 0 : i32
    %c0_i32_1 = arith.constant 0 : i32
    return %arg1, %c0_i32, %c0_i32_0 : i32, i32, i32
  }
  func.func @transform_5(%arg0: i32, %arg1: i32) -> (i32, i32, i32) {
    %c0_i32 = arith.constant 0 : i32
    %c0_i32_0 = arith.constant 0 : i32
    %c0_i32_1 = arith.constant 0 : i32
    return %arg1, %c0_i32, %c0_i32_0 : i32, i32, i32
  }
  func.func @transform_6(%arg0: i32, %arg1: i32) -> (i32, i32, i32) {
    %c0_i32 = arith.constant 0 : i32
    %c0_i32_0 = arith.constant 0 : i32
    %c0_i32_1 = arith.constant 0 : i32
    return %arg1, %c0_i32, %c0_i32_0 : i32, i32, i32
  }
  func.func @transform_7(%arg0: i32, %arg1: i32) -> (i32, i32, i32) {
    %c0_i32 = arith.constant 0 : i32
    %c0_i32_0 = arith.constant 0 : i32
    %c0_i32_1 = arith.constant 0 : i32
    return %arg1, %c0_i32, %c0_i32_0 : i32, i32, i32
  }
  func.func @transform_8(%arg0: i32, %arg1: i32) -> (i32, i32, i32) {
    %c0_i32 = arith.constant 0 : i32
    %c0_i32_0 = arith.constant 0 : i32
    %c0_i32_1 = arith.constant 0 : i32
    return %arg1, %c0_i32, %c0_i32_0 : i32, i32, i32
  }
  func.func @transform_9(%arg0: i32, %arg1: i32) -> (i32, i32, i32) {
    %c0_i32 = arith.constant 0 : i32
    %c0_i32_0 = arith.constant 0 : i32
    %c0_i32_1 = arith.constant 0 : i32
    return %arg1, %c0_i32, %c0_i32_0 : i32, i32, i32
  }
  func.func @transform_10(%arg0: i32, %arg1: i32) -> (i32, i32, i32) {
    %c0_i32 = arith.constant 0 : i32
    %c0_i32_0 = arith.constant 0 : i32
    %c0_i32_1 = arith.constant 0 : i32
    return %arg1, %c0_i32, %c0_i32_0 : i32, i32, i32
  }
  func.func @transform_11(%arg0: i32, %arg1: i32) -> (i32, i32, i32) {
    %c0_i32 = arith.constant 0 : i32
    %c0_i32_0 = arith.constant 0 : i32
    %c0_i32_1 = arith.constant 0 : i32
    return %arg1, %c0_i32, %c0_i32_0 : i32, i32, i32
  }
  func.func @transform_12(%arg0: i32, %arg1: i32) -> (i32, i32, i32) {
    %c0_i32 = arith.constant 0 : i32
    %c0_i32_0 = arith.constant 0 : i32
    %c0_i32_1 = arith.constant 0 : i32
    return %arg1, %c0_i32, %c0_i32_0 : i32, i32, i32
  }
  func.func @transform_13(%arg0: i32, %arg1: i32) -> (i32, i32) {
    %c0_i32 = arith.constant 0 : i32
    %c0_i32_0 = arith.constant 0 : i32
    return %arg0, %c0_i32 : i32, i32
  }
}

module attributes {stable_mosaic.version = 11 : i64} {
  func.func @_decoder_stack_kernel(%arg0: i32, %arg1: i32, %arg2: memref<8x32xf32, #tpu.memory_space<vmem>>, %arg3: memref<8x32xf32, #tpu.memory_space<vmem>>, %arg4: memref<8x8xf32, #tpu.memory_space<vmem>>, %arg5: memref<1x12x32x8xf32, #tpu.memory_space<vmem>>, %arg6: memref<1x12x1x8xf32, #tpu.memory_space<vmem>>, %arg7: memref<1x4x8x32xf32, #tpu.memory_space<vmem>>, %arg8: memref<1x1x32xf32, #tpu.memory_space<vmem>>, %arg9: memref<1x12x32x8xf32, #tpu.memory_space<vmem>>, %arg10: memref<1x12x1x8xf32, #tpu.memory_space<vmem>>, %arg11: memref<1x4x8x32xf32, #tpu.memory_space<vmem>>, %arg12: memref<1x1x32xf32, #tpu.memory_space<vmem>>, %arg13: memref<1x32x32xf32, #tpu.memory_space<vmem>>, %arg14: memref<1x1x32xf32, #tpu.memory_space<vmem>>, %arg15: memref<1x32x32xf32, #tpu.memory_space<vmem>>, %arg16: memref<1x1x32xf32, #tpu.memory_space<vmem>>, %arg17: memref<1x1x32xf32, #tpu.memory_space<vmem>>, %arg18: memref<1x1x32xf32, #tpu.memory_space<vmem>>, %arg19: memref<1x1x32xf32, #tpu.memory_space<vmem>>, %arg20: memref<1x1x32xf32, #tpu.memory_space<vmem>>, %arg21: memref<1x1x32xf32, #tpu.memory_space<vmem>>, %arg22: memref<1x1x32xf32, #tpu.memory_space<vmem>>, %arg23: memref<32x128xf32, #tpu.memory_space<vmem>>, %arg24: memref<1x128xf32, #tpu.memory_space<vmem>>, %arg25: memref<8x128xf32, #tpu.memory_space<vmem>>, %arg26: memref<8x32xf32, #tpu.memory_space<vmem>>) attributes {dimension_semantics = [#tpu.dimension_semantics<parallel>, #tpu.dimension_semantics<arbitrary>], iteration_bounds = array<i64: 2, 4>, scalar_prefetch = 0 : i64, scratch_operands = 1 : i64, tpu.core_type = #tpu.core_type<tc>, window_params = [{transform_indices = @transform_0, window_bounds = array<i64: 8, 32>}, {transform_indices = @transform_1, window_bounds = array<i64: 8, 32>}, {pipeline_mode = #tpu.pipeline_mode<synchronous>, transform_indices = @transform_2, window_bounds = array<i64: 8, 8>}, {transform_indices = @transform_3, window_bounds = array<i64: 1, 12, 32, 8>}, {transform_indices = @transform_4, window_bounds = array<i64: 1, 12, 1, 8>}, {transform_indices = @transform_5, window_bounds = array<i64: 1, 4, 8, 32>}, {transform_indices = @transform_6, window_bounds = array<i64: 1, 1, 32>}, {transform_indices = @transform_7, window_bounds = array<i64: 1, 12, 32, 8>}, {transform_indices = @transform_8, window_bounds = array<i64: 1, 12, 1, 8>}, {transform_indices = @transform_9, window_bounds = array<i64: 1, 4, 8, 32>}, {transform_indices = @transform_10, window_bounds = array<i64: 1, 1, 32>}, {transform_indices = @transform_11, window_bounds = array<i64: 1, 32, 32>}, {transform_indices = @transform_12, window_bounds = array<i64: 1, 1, 32>}, {transform_indices = @transform_13, window_bounds = array<i64: 1, 32, 32>}, {transform_indices = @transform_14, window_bounds = array<i64: 1, 1, 32>}, {transform_indices = @transform_15, window_bounds = array<i64: 1, 1, 32>}, {transform_indices = @transform_16, window_bounds = array<i64: 1, 1, 32>}, {transform_indices = @transform_17, window_bounds = array<i64: 1, 1, 32>}, {transform_indices = @transform_18, window_bounds = array<i64: 1, 1, 32>}, {transform_indices = @transform_19, window_bounds = array<i64: 1, 1, 32>}, {transform_indices = @transform_20, window_bounds = array<i64: 1, 1, 32>}, {pipeline_mode = #tpu.pipeline_mode<synchronous>, transform_indices = @transform_21, window_bounds = array<i64: 32, 128>}, {pipeline_mode = #tpu.pipeline_mode<synchronous>, transform_indices = @transform_22, window_bounds = array<i64: 1, 128>}, {transform_indices = @transform_23, window_bounds = array<i64: 8, 128>}]} {
    %c0_i32 = arith.constant 0 : i32
    %0 = arith.cmpi eq, %arg1, %c0_i32 : i32
    %1 = arith.extui %0 : i1 to i32
    %c0_i32_0 = arith.constant 0 : i32
    %2 = arith.cmpi ne, %1, %c0_i32_0 : i32
    scf.if %2 {
      %c0_347 = arith.constant 0 : index
      %c0_348 = arith.constant 0 : index
      %423 = vector.load %arg2[%c0_347, %c0_348] : memref<8x32xf32, #tpu.memory_space<vmem>>, vector<8x32xf32>
      %c0_349 = arith.constant 0 : index
      %c0_350 = arith.constant 0 : index
      %424 = vector.load %arg26[%c0_349, %c0_350] : memref<8x32xf32, #tpu.memory_space<vmem>>, vector<8x32xf32>
      tpu.vector_store %arg26[%c0_349, %c0_350], %423 {strides = array<i32>} : memref<8x32xf32, #tpu.memory_space<vmem>>, vector<8x32xf32>,
    } else {
    }
    %c0 = arith.constant 0 : index
    %c0_1 = arith.constant 0 : index
    %3 = vector.load %arg26[%c0, %c0_1] : memref<8x32xf32, #tpu.memory_space<vmem>>, vector<8x32xf32>
    %c0_2 = arith.constant 0 : index
    %c0_3 = arith.constant 0 : index
    %4 = vector.load %arg4[%c0_2, %c0_3] : memref<8x8xf32, #tpu.memory_space<vmem>>, vector<8x8xf32>
    %c0_4 = arith.constant 0 : index
    %c0_5 = arith.constant 0 : index
    %c0_6 = arith.constant 0 : index
    %c0_7 = arith.constant 0 : index
    %5 = vector.load %arg5[%c0_4, %c0_5, %c0_6, %c0_7] : memref<1x12x32x8xf32, #tpu.memory_space<vmem>>, vector<1x1x32x8xf32>
    %6 = vector.shape_cast %5 : vector<1x1x32x8xf32> to vector<32x8xf32>
    %c0_8 = arith.constant 0 : index
    %c0_9 = arith.constant 0 : index
    %c0_10 = arith.constant 0 : index
    %c0_11 = arith.constant 0 : index
    %7 = vector.load %arg6[%c0_8, %c0_9, %c0_10, %c0_11] : memref<1x12x1x8xf32, #tpu.memory_space<vmem>>, vector<1x1x1x8xf32>
    %8 = vector.shape_cast %7 : vector<1x1x1x8xf32> to vector<1x8xf32>
    %c0_12 = arith.constant 0 : index
    %c4 = arith.constant 4 : index
    %c0_13 = arith.constant 0 : index
    %c0_14 = arith.constant 0 : index
    %9 = vector.load %arg5[%c0_12, %c4, %c0_13, %c0_14] : memref<1x12x32x8xf32, #tpu.memory_space<vmem>>, vector<1x1x32x8xf32>
    %10 = vector.shape_cast %9 : vector<1x1x32x8xf32> to vector<32x8xf32>
    %c0_15 = arith.constant 0 : index
    %c4_16 = arith.constant 4 : index
    %c0_17 = arith.constant 0 : index
    %c0_18 = arith.constant 0 : index
    %11 = vector.load %arg6[%c0_15, %c4_16, %c0_17, %c0_18] : memref<1x12x1x8xf32, #tpu.memory_space<vmem>>, vector<1x1x1x8xf32>
    %12 = vector.shape_cast %11 : vector<1x1x1x8xf32> to vector<1x8xf32>
    %c0_19 = arith.constant 0 : index
    %c8 = arith.constant 8 : index
    %c0_20 = arith.constant 0 : index
    %c0_21 = arith.constant 0 : index
    %13 = vector.load %arg5[%c0_19, %c8, %c0_20, %c0_21] : memref<1x12x32x8xf32, #tpu.memory_space<vmem>>, vector<1x1x32x8xf32>
    %14 = vector.shape_cast %13 : vector<1x1x32x8xf32> to vector<32x8xf32>
    %c0_22 = arith.constant 0 : index
    %c8_23 = arith.constant 8 : index
    %c0_24 = arith.constant 0 : index
    %c0_25 = arith.constant 0 : index
    %15 = vector.load %arg6[%c0_22, %c8_23, %c0_24, %c0_25] : memref<1x12x1x8xf32, #tpu.memory_space<vmem>>, vector<1x1x1x8xf32>
    %16 = vector.shape_cast %15 : vector<1x1x1x8xf32> to vector<1x8xf32>
    %cst = arith.constant dense<0.000000e+00> : vector<8x8xf32>
    %17 = tpu.matmul %3, %6, %cst {dimension_numbers = #tpu.dot_dimension_numbers<[1], [0], [0], [1], [0, 0, 1, 1], [], []>} : vector<8x32xf32>, vector<32x8xf32>, vector<8x8xf32> -> vector<8x8xf32>
    %18 = vector.broadcast %8 : vector<1x8xf32> to vector<8x8xf32>
    %19 = arith.addf %17, %18 : vector<8x8xf32>
    %cst_26 = arith.constant 0.353553385 : f32
    %20 = vector.broadcast %cst_26 : f32 to vector<8x8xf32>
    %21 = arith.mulf %19, %20 : vector<8x8xf32>
    %cst_27 = arith.constant dense<0.000000e+00> : vector<8x8xf32>
    %22 = tpu.matmul %3, %10, %cst_27 {dimension_numbers = #tpu.dot_dimension_numbers<[1], [0], [0], [1], [0, 0, 1, 1], [], []>} : vector<8x32xf32>, vector<32x8xf32>, vector<8x8xf32> -> vector<8x8xf32>
    %23 = vector.broadcast %12 : vector<1x8xf32> to vector<8x8xf32>
    %24 = arith.addf %22, %23 : vector<8x8xf32>
    %cst_28 = arith.constant dense<0.000000e+00> : vector<8x8xf32>
    %25 = tpu.matmul %3, %14, %cst_28 {dimension_numbers = #tpu.dot_dimension_numbers<[1], [0], [0], [1], [0, 0, 1, 1], [], []>} : vector<8x32xf32>, vector<32x8xf32>, vector<8x8xf32> -> vector<8x8xf32>
    %26 = vector.broadcast %16 : vector<1x8xf32> to vector<8x8xf32>
    %27 = arith.addf %25, %26 : vector<8x8xf32>
    %cst_29 = arith.constant dense<0.000000e+00> : vector<8x8xf32>
    %28 = tpu.matmul %21, %24, %cst_29 {dimension_numbers = #tpu.dot_dimension_numbers<[1], [1], [0], [0], [0, 0, 1, 0], [], []>} : vector<8x8xf32>, vector<8x8xf32>, vector<8x8xf32> -> vector<8x8xf32>
    %29 = arith.addf %28, %4 : vector<8x8xf32>
    %cst_30 = arith.constant dense<0xFF800000> : vector<8xf32>
    %30 = vector.multi_reduction <maximumf>, %29, %cst_30 [1] : vector<8x8xf32> to vector<8xf32>
    %31 = vector.shape_cast %30 : vector<8xf32> to vector<8x1xf32>
    %32 = vector.broadcast %31 : vector<8x1xf32> to vector<8x8xf32>
    %33 = arith.subf %29, %32 : vector<8x8xf32>
    %34 = math.exp %33 : vector<8x8xf32>
    %cst_31 = arith.constant dense<0.000000e+00> : vector<8xf32>
    %35 = vector.multi_reduction <add>, %34, %cst_31 [1] : vector<8x8xf32> to vector<8xf32>
    %36 = vector.shape_cast %35 : vector<8xf32> to vector<8x1xf32>
    %37 = tpu.reciprocal %36 {approx = true} : vector<8x1xf32> -> vector<8x1xf32>
    %38 = vector.broadcast %37 : vector<8x1xf32> to vector<8x8xf32>
    %39 = arith.mulf %34, %38 : vector<8x8xf32>
    %cst_32 = arith.constant dense<0.000000e+00> : vector<8x8xf32>
    %40 = tpu.matmul %39, %27, %cst_32 {dimension_numbers = #tpu.dot_dimension_numbers<[1], [0], [0], [1], [0, 0, 1, 1], [], []>} : vector<8x8xf32>, vector<8x8xf32>, vector<8x8xf32> -> vector<8x8xf32>
    %c0_33 = arith.constant 0 : index
    %c0_34 = arith.constant 0 : index
    %c0_35 = arith.constant 0 : index
    %c0_36 = arith.constant 0 : index
    %41 = vector.load %arg7[%c0_33, %c0_34, %c0_35, %c0_36] : memref<1x4x8x32xf32, #tpu.memory_space<vmem>>, vector<1x1x8x32xf32>
    %42 = vector.shape_cast %41 : vector<1x1x8x32xf32> to vector<8x32xf32>
    %cst_37 = arith.constant dense<0.000000e+00> : vector<8x32xf32>
    %43 = tpu.matmul %40, %42, %cst_37 {dimension_numbers = #tpu.dot_dimension_numbers<[1], [0], [0], [1], [0, 0, 1, 1], [], []>} : vector<8x8xf32>, vector<8x32xf32>, vector<8x32xf32> -> vector<8x32xf32>
    %c0_38 = arith.constant 0 : index
    %c1 = arith.constant 1 : index
    %c0_39 = arith.constant 0 : index
    %c0_40 = arith.constant 0 : index
    %44 = vector.load %arg5[%c0_38, %c1, %c0_39, %c0_40] : memref<1x12x32x8xf32, #tpu.memory_space<vmem>>, vector<1x1x32x8xf32>
    %45 = vector.shape_cast %44 : vector<1x1x32x8xf32> to vector<32x8xf32>
    %c0_41 = arith.constant 0 : index
    %c1_42 = arith.constant 1 : index
    %c0_43 = arith.constant 0 : index
    %c0_44 = arith.constant 0 : index
    %46 = vector.load %arg6[%c0_41, %c1_42, %c0_43, %c0_44] : memref<1x12x1x8xf32, #tpu.memory_space<vmem>>, vector<1x1x1x8xf32>
    %47 = vector.shape_cast %46 : vector<1x1x1x8xf32> to vector<1x8xf32>
    %c0_45 = arith.constant 0 : index
    %c5 = arith.constant 5 : index
    %c0_46 = arith.constant 0 : index
    %c0_47 = arith.constant 0 : index
    %48 = vector.load %arg5[%c0_45, %c5, %c0_46, %c0_47] : memref<1x12x32x8xf32, #tpu.memory_space<vmem>>, vector<1x1x32x8xf32>
    %49 = vector.shape_cast %48 : vector<1x1x32x8xf32> to vector<32x8xf32>
    %c0_48 = arith.constant 0 : index
    %c5_49 = arith.constant 5 : index
    %c0_50 = arith.constant 0 : index
    %c0_51 = arith.constant 0 : index
    %50 = vector.load %arg6[%c0_48, %c5_49, %c0_50, %c0_51] : memref<1x12x1x8xf32, #tpu.memory_space<vmem>>, vector<1x1x1x8xf32>
    %51 = vector.shape_cast %50 : vector<1x1x1x8xf32> to vector<1x8xf32>
    %c0_52 = arith.constant 0 : index
    %c9 = arith.constant 9 : index
    %c0_53 = arith.constant 0 : index
    %c0_54 = arith.constant 0 : index
    %52 = vector.load %arg5[%c0_52, %c9, %c0_53, %c0_54] : memref<1x12x32x8xf32, #tpu.memory_space<vmem>>, vector<1x1x32x8xf32>
    %53 = vector.shape_cast %52 : vector<1x1x32x8xf32> to vector<32x8xf32>
    %c0_55 = arith.constant 0 : index
    %c9_56 = arith.constant 9 : index
    %c0_57 = arith.constant 0 : index
    %c0_58 = arith.constant 0 : index
    %54 = vector.load %arg6[%c0_55, %c9_56, %c0_57, %c0_58] : memref<1x12x1x8xf32, #tpu.memory_space<vmem>>, vector<1x1x1x8xf32>
    %55 = vector.shape_cast %54 : vector<1x1x1x8xf32> to vector<1x8xf32>
    %cst_59 = arith.constant dense<0.000000e+00> : vector<8x8xf32>
    %56 = tpu.matmul %3, %45, %cst_59 {dimension_numbers = #tpu.dot_dimension_numbers<[1], [0], [0], [1], [0, 0, 1, 1], [], []>} : vector<8x32xf32>, vector<32x8xf32>, vector<8x8xf32> -> vector<8x8xf32>
    %57 = vector.broadcast %47 : vector<1x8xf32> to vector<8x8xf32>
    %58 = arith.addf %56, %57 : vector<8x8xf32>
    %cst_60 = arith.constant 0.353553385 : f32
    %59 = vector.broadcast %cst_60 : f32 to vector<8x8xf32>
    %60 = arith.mulf %58, %59 : vector<8x8xf32>
    %cst_61 = arith.constant dense<0.000000e+00> : vector<8x8xf32>
    %61 = tpu.matmul %3, %49, %cst_61 {dimension_numbers = #tpu.dot_dimension_numbers<[1], [0], [0], [1], [0, 0, 1, 1], [], []>} : vector<8x32xf32>, vector<32x8xf32>, vector<8x8xf32> -> vector<8x8xf32>
    %62 = vector.broadcast %51 : vector<1x8xf32> to vector<8x8xf32>
    %63 = arith.addf %61, %62 : vector<8x8xf32>
    %cst_62 = arith.constant dense<0.000000e+00> : vector<8x8xf32>
    %64 = tpu.matmul %3, %53, %cst_62 {dimension_numbers = #tpu.dot_dimension_numbers<[1], [0], [0], [1], [0, 0, 1, 1], [], []>} : vector<8x32xf32>, vector<32x8xf32>, vector<8x8xf32> -> vector<8x8xf32>
    %65 = vector.broadcast %55 : vector<1x8xf32> to vector<8x8xf32>
    %66 = arith.addf %64, %65 : vector<8x8xf32>
    %cst_63 = arith.constant dense<0.000000e+00> : vector<8x8xf32>
    %67 = tpu.matmul %60, %63, %cst_63 {dimension_numbers = #tpu.dot_dimension_numbers<[1], [1], [0], [0], [0, 0, 1, 0], [], []>} : vector<8x8xf32>, vector<8x8xf32>, vector<8x8xf32> -> vector<8x8xf32>
    %68 = arith.addf %67, %4 : vector<8x8xf32>
    %cst_64 = arith.constant dense<0xFF800000> : vector<8xf32>
    %69 = vector.multi_reduction <maximumf>, %68, %cst_64 [1] : vector<8x8xf32> to vector<8xf32>
    %70 = vector.shape_cast %69 : vector<8xf32> to vector<8x1xf32>
    %71 = vector.broadcast %70 : vector<8x1xf32> to vector<8x8xf32>
    %72 = arith.subf %68, %71 : vector<8x8xf32>
    %73 = math.exp %72 : vector<8x8xf32>
    %cst_65 = arith.constant dense<0.000000e+00> : vector<8xf32>
    %74 = vector.multi_reduction <add>, %73, %cst_65 [1] : vector<8x8xf32> to vector<8xf32>
    %75 = vector.shape_cast %74 : vector<8xf32> to vector<8x1xf32>
    %76 = tpu.reciprocal %75 {approx = true} : vector<8x1xf32> -> vector<8x1xf32>
    %77 = vector.broadcast %76 : vector<8x1xf32> to vector<8x8xf32>
    %78 = arith.mulf %73, %77 : vector<8x8xf32>
    %cst_66 = arith.constant dense<0.000000e+00> : vector<8x8xf32>
    %79 = tpu.matmul %78, %66, %cst_66 {dimension_numbers = #tpu.dot_dimension_numbers<[1], [0], [0], [1], [0, 0, 1, 1], [], []>} : vector<8x8xf32>, vector<8x8xf32>, vector<8x8xf32> -> vector<8x8xf32>
    %c0_67 = arith.constant 0 : index
    %c1_68 = arith.constant 1 : index
    %c0_69 = arith.constant 0 : index
    %c0_70 = arith.constant 0 : index
    %80 = vector.load %arg7[%c0_67, %c1_68, %c0_69, %c0_70] : memref<1x4x8x32xf32, #tpu.memory_space<vmem>>, vector<1x1x8x32xf32>
    %81 = vector.shape_cast %80 : vector<1x1x8x32xf32> to vector<8x32xf32>
    %cst_71 = arith.constant dense<0.000000e+00> : vector<8x32xf32>
    %82 = tpu.matmul %79, %81, %cst_71 {dimension_numbers = #tpu.dot_dimension_numbers<[1], [0], [0], [1], [0, 0, 1, 1], [], []>} : vector<8x8xf32>, vector<8x32xf32>, vector<8x32xf32> -> vector<8x32xf32>
    %83 = arith.addf %43, %82 : vector<8x32xf32>
    %c0_72 = arith.constant 0 : index
    %c2 = arith.constant 2 : index
    %c0_73 = arith.constant 0 : index
    %c0_74 = arith.constant 0 : index
    %84 = vector.load %arg5[%c0_72, %c2, %c0_73, %c0_74] : memref<1x12x32x8xf32, #tpu.memory_space<vmem>>, vector<1x1x32x8xf32>
    %85 = vector.shape_cast %84 : vector<1x1x32x8xf32> to vector<32x8xf32>
    %c0_75 = arith.constant 0 : index
    %c2_76 = arith.constant 2 : index
    %c0_77 = arith.constant 0 : index
    %c0_78 = arith.constant 0 : index
    %86 = vector.load %arg6[%c0_75, %c2_76, %c0_77, %c0_78] : memref<1x12x1x8xf32, #tpu.memory_space<vmem>>, vector<1x1x1x8xf32>
    %87 = vector.shape_cast %86 : vector<1x1x1x8xf32> to vector<1x8xf32>
    %c0_79 = arith.constant 0 : index
    %c6 = arith.constant 6 : index
    %c0_80 = arith.constant 0 : index
    %c0_81 = arith.constant 0 : index
    %88 = vector.load %arg5[%c0_79, %c6, %c0_80, %c0_81] : memref<1x12x32x8xf32, #tpu.memory_space<vmem>>, vector<1x1x32x8xf32>
    %89 = vector.shape_cast %88 : vector<1x1x32x8xf32> to vector<32x8xf32>
    %c0_82 = arith.constant 0 : index
    %c6_83 = arith.constant 6 : index
    %c0_84 = arith.constant 0 : index
    %c0_85 = arith.constant 0 : index
    %90 = vector.load %arg6[%c0_82, %c6_83, %c0_84, %c0_85] : memref<1x12x1x8xf32, #tpu.memory_space<vmem>>, vector<1x1x1x8xf32>
    %91 = vector.shape_cast %90 : vector<1x1x1x8xf32> to vector<1x8xf32>
    %c0_86 = arith.constant 0 : index
    %c10 = arith.constant 10 : index
    %c0_87 = arith.constant 0 : index
    %c0_88 = arith.constant 0 : index
    %92 = vector.load %arg5[%c0_86, %c10, %c0_87, %c0_88] : memref<1x12x32x8xf32, #tpu.memory_space<vmem>>, vector<1x1x32x8xf32>
    %93 = vector.shape_cast %92 : vector<1x1x32x8xf32> to vector<32x8xf32>
    %c0_89 = arith.constant 0 : index
    %c10_90 = arith.constant 10 : index
    %c0_91 = arith.constant 0 : index
    %c0_92 = arith.constant 0 : index
    %94 = vector.load %arg6[%c0_89, %c10_90, %c0_91, %c0_92] : memref<1x12x1x8xf32, #tpu.memory_space<vmem>>, vector<1x1x1x8xf32>
    %95 = vector.shape_cast %94 : vector<1x1x1x8xf32> to vector<1x8xf32>
    %cst_93 = arith.constant dense<0.000000e+00> : vector<8x8xf32>
    %96 = tpu.matmul %3, %85, %cst_93 {dimension_numbers = #tpu.dot_dimension_numbers<[1], [0], [0], [1], [0, 0, 1, 1], [], []>} : vector<8x32xf32>, vector<32x8xf32>, vector<8x8xf32> -> vector<8x8xf32>
    %97 = vector.broadcast %87 : vector<1x8xf32> to vector<8x8xf32>
    %98 = arith.addf %96, %97 : vector<8x8xf32>
    %cst_94 = arith.constant 0.353553385 : f32
    %99 = vector.broadcast %cst_94 : f32 to vector<8x8xf32>
    %100 = arith.mulf %98, %99 : vector<8x8xf32>
    %cst_95 = arith.constant dense<0.000000e+00> : vector<8x8xf32>
    %101 = tpu.matmul %3, %89, %cst_95 {dimension_numbers = #tpu.dot_dimension_numbers<[1], [0], [0], [1], [0, 0, 1, 1], [], []>} : vector<8x32xf32>, vector<32x8xf32>, vector<8x8xf32> -> vector<8x8xf32>
    %102 = vector.broadcast %91 : vector<1x8xf32> to vector<8x8xf32>
    %103 = arith.addf %101, %102 : vector<8x8xf32>
    %cst_96 = arith.constant dense<0.000000e+00> : vector<8x8xf32>
    %104 = tpu.matmul %3, %93, %cst_96 {dimension_numbers = #tpu.dot_dimension_numbers<[1], [0], [0], [1], [0, 0, 1, 1], [], []>} : vector<8x32xf32>, vector<32x8xf32>, vector<8x8xf32> -> vector<8x8xf32>
    %105 = vector.broadcast %95 : vector<1x8xf32> to vector<8x8xf32>
    %106 = arith.addf %104, %105 : vector<8x8xf32>
    %cst_97 = arith.constant dense<0.000000e+00> : vector<8x8xf32>
    %107 = tpu.matmul %100, %103, %cst_97 {dimension_numbers = #tpu.dot_dimension_numbers<[1], [1], [0], [0], [0, 0, 1, 0], [], []>} : vector<8x8xf32>, vector<8x8xf32>, vector<8x8xf32> -> vector<8x8xf32>
    %108 = arith.addf %107, %4 : vector<8x8xf32>
    %cst_98 = arith.constant dense<0xFF800000> : vector<8xf32>
    %109 = vector.multi_reduction <maximumf>, %108, %cst_98 [1] : vector<8x8xf32> to vector<8xf32>
    %110 = vector.shape_cast %109 : vector<8xf32> to vector<8x1xf32>
    %111 = vector.broadcast %110 : vector<8x1xf32> to vector<8x8xf32>
    %112 = arith.subf %108, %111 : vector<8x8xf32>
    %113 = math.exp %112 : vector<8x8xf32>
    %cst_99 = arith.constant dense<0.000000e+00> : vector<8xf32>
    %114 = vector.multi_reduction <add>, %113, %cst_99 [1] : vector<8x8xf32> to vector<8xf32>
    %115 = vector.shape_cast %114 : vector<8xf32> to vector<8x1xf32>
    %116 = tpu.reciprocal %115 {approx = true} : vector<8x1xf32> -> vector<8x1xf32>
    %117 = vector.broadcast %116 : vector<8x1xf32> to vector<8x8xf32>
    %118 = arith.mulf %113, %117 : vector<8x8xf32>
    %cst_100 = arith.constant dense<0.000000e+00> : vector<8x8xf32>
    %119 = tpu.matmul %118, %106, %cst_100 {dimension_numbers = #tpu.dot_dimension_numbers<[1], [0], [0], [1], [0, 0, 1, 1], [], []>} : vector<8x8xf32>, vector<8x8xf32>, vector<8x8xf32> -> vector<8x8xf32>
    %c0_101 = arith.constant 0 : index
    %c2_102 = arith.constant 2 : index
    %c0_103 = arith.constant 0 : index
    %c0_104 = arith.constant 0 : index
    %120 = vector.load %arg7[%c0_101, %c2_102, %c0_103, %c0_104] : memref<1x4x8x32xf32, #tpu.memory_space<vmem>>, vector<1x1x8x32xf32>
    %121 = vector.shape_cast %120 : vector<1x1x8x32xf32> to vector<8x32xf32>
    %cst_105 = arith.constant dense<0.000000e+00> : vector<8x32xf32>
    %122 = tpu.matmul %119, %121, %cst_105 {dimension_numbers = #tpu.dot_dimension_numbers<[1], [0], [0], [1], [0, 0, 1, 1], [], []>} : vector<8x8xf32>, vector<8x32xf32>, vector<8x32xf32> -> vector<8x32xf32>
    %123 = arith.addf %83, %122 : vector<8x32xf32>
    %c0_106 = arith.constant 0 : index
    %c3 = arith.constant 3 : index
    %c0_107 = arith.constant 0 : index
    %c0_108 = arith.constant 0 : index
    %124 = vector.load %arg5[%c0_106, %c3, %c0_107, %c0_108] : memref<1x12x32x8xf32, #tpu.memory_space<vmem>>, vector<1x1x32x8xf32>
    %125 = vector.shape_cast %124 : vector<1x1x32x8xf32> to vector<32x8xf32>
    %c0_109 = arith.constant 0 : index
    %c3_110 = arith.constant 3 : index
    %c0_111 = arith.constant 0 : index
    %c0_112 = arith.constant 0 : index
    %126 = vector.load %arg6[%c0_109, %c3_110, %c0_111, %c0_112] : memref<1x12x1x8xf32, #tpu.memory_space<vmem>>, vector<1x1x1x8xf32>
    %127 = vector.shape_cast %126 : vector<1x1x1x8xf32> to vector<1x8xf32>
    %c0_113 = arith.constant 0 : index
    %c7 = arith.constant 7 : index
    %c0_114 = arith.constant 0 : index
    %c0_115 = arith.constant 0 : index
    %128 = vector.load %arg5[%c0_113, %c7, %c0_114, %c0_115] : memref<1x12x32x8xf32, #tpu.memory_space<vmem>>, vector<1x1x32x8xf32>
    %129 = vector.shape_cast %128 : vector<1x1x32x8xf32> to vector<32x8xf32>
    %c0_116 = arith.constant 0 : index
    %c7_117 = arith.constant 7 : index
    %c0_118 = arith.constant 0 : index
    %c0_119 = arith.constant 0 : index
    %130 = vector.load %arg6[%c0_116, %c7_117, %c0_118, %c0_119] : memref<1x12x1x8xf32, #tpu.memory_space<vmem>>, vector<1x1x1x8xf32>
    %131 = vector.shape_cast %130 : vector<1x1x1x8xf32> to vector<1x8xf32>
    %c0_120 = arith.constant 0 : index
    %c11 = arith.constant 11 : index
    %c0_121 = arith.constant 0 : index
    %c0_122 = arith.constant 0 : index
    %132 = vector.load %arg5[%c0_120, %c11, %c0_121, %c0_122] : memref<1x12x32x8xf32, #tpu.memory_space<vmem>>, vector<1x1x32x8xf32>
    %133 = vector.shape_cast %132 : vector<1x1x32x8xf32> to vector<32x8xf32>
    %c0_123 = arith.constant 0 : index
    %c11_124 = arith.constant 11 : index
    %c0_125 = arith.constant 0 : index
    %c0_126 = arith.constant 0 : index
    %134 = vector.load %arg6[%c0_123, %c11_124, %c0_125, %c0_126] : memref<1x12x1x8xf32, #tpu.memory_space<vmem>>, vector<1x1x1x8xf32>
    %135 = vector.shape_cast %134 : vector<1x1x1x8xf32> to vector<1x8xf32>
    %cst_127 = arith.constant dense<0.000000e+00> : vector<8x8xf32>
    %136 = tpu.matmul %3, %125, %cst_127 {dimension_numbers = #tpu.dot_dimension_numbers<[1], [0], [0], [1], [0, 0, 1, 1], [], []>} : vector<8x32xf32>, vector<32x8xf32>, vector<8x8xf32> -> vector<8x8xf32>
    %137 = vector.broadcast %127 : vector<1x8xf32> to vector<8x8xf32>
    %138 = arith.addf %136, %137 : vector<8x8xf32>
    %cst_128 = arith.constant 0.353553385 : f32
    %139 = vector.broadcast %cst_128 : f32 to vector<8x8xf32>
    %140 = arith.mulf %138, %139 : vector<8x8xf32>
    %cst_129 = arith.constant dense<0.000000e+00> : vector<8x8xf32>
    %141 = tpu.matmul %3, %129, %cst_129 {dimension_numbers = #tpu.dot_dimension_numbers<[1], [0], [0], [1], [0, 0, 1, 1], [], []>} : vector<8x32xf32>, vector<32x8xf32>, vector<8x8xf32> -> vector<8x8xf32>
    %142 = vector.broadcast %131 : vector<1x8xf32> to vector<8x8xf32>
    %143 = arith.addf %141, %142 : vector<8x8xf32>
    %cst_130 = arith.constant dense<0.000000e+00> : vector<8x8xf32>
    %144 = tpu.matmul %3, %133, %cst_130 {dimension_numbers = #tpu.dot_dimension_numbers<[1], [0], [0], [1], [0, 0, 1, 1], [], []>} : vector<8x32xf32>, vector<32x8xf32>, vector<8x8xf32> -> vector<8x8xf32>
    %145 = vector.broadcast %135 : vector<1x8xf32> to vector<8x8xf32>
    %146 = arith.addf %144, %145 : vector<8x8xf32>
    %cst_131 = arith.constant dense<0.000000e+00> : vector<8x8xf32>
    %147 = tpu.matmul %140, %143, %cst_131 {dimension_numbers = #tpu.dot_dimension_numbers<[1], [1], [0], [0], [0, 0, 1, 0], [], []>} : vector<8x8xf32>, vector<8x8xf32>, vector<8x8xf32> -> vector<8x8xf32>
    %148 = arith.addf %147, %4 : vector<8x8xf32>
    %cst_132 = arith.constant dense<0xFF800000> : vector<8xf32>
    %149 = vector.multi_reduction <maximumf>, %148, %cst_132 [1] : vector<8x8xf32> to vector<8xf32>
    %150 = vector.shape_cast %149 : vector<8xf32> to vector<8x1xf32>
    %151 = vector.broadcast %150 : vector<8x1xf32> to vector<8x8xf32>
    %152 = arith.subf %148, %151 : vector<8x8xf32>
    %153 = math.exp %152 : vector<8x8xf32>
    %cst_133 = arith.constant dense<0.000000e+00> : vector<8xf32>
    %154 = vector.multi_reduction <add>, %153, %cst_133 [1] : vector<8x8xf32> to vector<8xf32>
    %155 = vector.shape_cast %154 : vector<8xf32> to vector<8x1xf32>
    %156 = tpu.reciprocal %155 {approx = true} : vector<8x1xf32> -> vector<8x1xf32>
    %157 = vector.broadcast %156 : vector<8x1xf32> to vector<8x8xf32>
    %158 = arith.mulf %153, %157 : vector<8x8xf32>
    %cst_134 = arith.constant dense<0.000000e+00> : vector<8x8xf32>
    %159 = tpu.matmul %158, %146, %cst_134 {dimension_numbers = #tpu.dot_dimension_numbers<[1], [0], [0], [1], [0, 0, 1, 1], [], []>} : vector<8x8xf32>, vector<8x8xf32>, vector<8x8xf32> -> vector<8x8xf32>
    %c0_135 = arith.constant 0 : index
    %c3_136 = arith.constant 3 : index
    %c0_137 = arith.constant 0 : index
    %c0_138 = arith.constant 0 : index
    %160 = vector.load %arg7[%c0_135, %c3_136, %c0_137, %c0_138] : memref<1x4x8x32xf32, #tpu.memory_space<vmem>>, vector<1x1x8x32xf32>
    %161 = vector.shape_cast %160 : vector<1x1x8x32xf32> to vector<8x32xf32>
    %cst_139 = arith.constant dense<0.000000e+00> : vector<8x32xf32>
    %162 = tpu.matmul %159, %161, %cst_139 {dimension_numbers = #tpu.dot_dimension_numbers<[1], [0], [0], [1], [0, 0, 1, 1], [], []>} : vector<8x8xf32>, vector<8x32xf32>, vector<8x32xf32> -> vector<8x32xf32>
    %163 = arith.addf %123, %162 : vector<8x32xf32>
    %c0_140 = arith.constant 0 : index
    %c0_141 = arith.constant 0 : index
    %c0_142 = arith.constant 0 : index
    %164 = vector.load %arg8[%c0_140, %c0_141, %c0_142] : memref<1x1x32xf32, #tpu.memory_space<vmem>>, vector<1x1x32xf32>
    %165 = vector.shape_cast %164 : vector<1x1x32xf32> to vector<1x32xf32>
    %166 = vector.broadcast %165 : vector<1x32xf32> to vector<8x32xf32>
    %167 = arith.addf %163, %166 : vector<8x32xf32>
    %168 = arith.addf %3, %167 : vector<8x32xf32>
    %c0_143 = arith.constant 0 : index
    %c0_144 = arith.constant 0 : index
    %c0_145 = arith.constant 0 : index
    %169 = vector.load %arg17[%c0_143, %c0_144, %c0_145] : memref<1x1x32xf32, #tpu.memory_space<vmem>>, vector<1x1x32xf32>
    %170 = vector.shape_cast %169 : vector<1x1x32xf32> to vector<1x32xf32>
    %c0_146 = arith.constant 0 : index
    %c0_147 = arith.constant 0 : index
    %c0_148 = arith.constant 0 : index
    %171 = vector.load %arg18[%c0_146, %c0_147, %c0_148] : memref<1x1x32xf32, #tpu.memory_space<vmem>>, vector<1x1x32xf32>
    %172 = vector.shape_cast %171 : vector<1x1x32xf32> to vector<1x32xf32>
    %cst_149 = arith.constant dense<0.000000e+00> : vector<8xf32>
    %173 = vector.multi_reduction <add>, %168, %cst_149 [1] : vector<8x32xf32> to vector<8xf32>
    %174 = vector.shape_cast %173 : vector<8xf32> to vector<8x1xf32>
    %cst_150 = arith.constant 3.200000e+01 : f32
    %175 = vector.broadcast %cst_150 : f32 to vector<8x1xf32>
    %176 = arith.divf %174, %175 : vector<8x1xf32>
    %177 = vector.broadcast %176 : vector<8x1xf32> to vector<8x32xf32>
    %178 = arith.subf %168, %177 : vector<8x32xf32>
    %179 = arith.mulf %178, %178 : vector<8x32xf32>
    %cst_151 = arith.constant dense<0.000000e+00> : vector<8xf32>
    %180 = vector.multi_reduction <add>, %179, %cst_151 [1] : vector<8x32xf32> to vector<8xf32>
    %181 = vector.shape_cast %180 : vector<8xf32> to vector<8x1xf32>
    %cst_152 = arith.constant 3.200000e+01 : f32
    %182 = vector.broadcast %cst_152 : f32 to vector<8x1xf32>
    %183 = arith.divf %181, %182 : vector<8x1xf32>
    %cst_153 = arith.constant 9.99999974E-6 : f32
    %184 = vector.broadcast %cst_153 : f32 to vector<8x1xf32>
    %185 = arith.addf %183, %184 : vector<8x1xf32>
    %186 = math.rsqrt %185 : vector<8x1xf32>
    %187 = vector.broadcast %186 : vector<8x1xf32> to vector<8x32xf32>
    %188 = arith.mulf %178, %187 : vector<8x32xf32>
    %189 = vector.broadcast %170 : vector<1x32xf32> to vector<8x32xf32>
    %190 = arith.mulf %188, %189 : vector<8x32xf32>
    %191 = vector.broadcast %172 : vector<1x32xf32> to vector<8x32xf32>
    %192 = arith.addf %190, %191 : vector<8x32xf32>
    %c0_154 = arith.constant 0 : index
    %c0_155 = arith.constant 0 : index
    %193 = vector.load %arg3[%c0_154, %c0_155] : memref<8x32xf32, #tpu.memory_space<vmem>>, vector<8x32xf32>
    %c0_156 = arith.constant 0 : index
    %c0_157 = arith.constant 0 : index
    %c0_158 = arith.constant 0 : index
    %c0_159 = arith.constant 0 : index
    %194 = vector.load %arg9[%c0_156, %c0_157, %c0_158, %c0_159] : memref<1x12x32x8xf32, #tpu.memory_space<vmem>>, vector<1x1x32x8xf32>
    %195 = vector.shape_cast %194 : vector<1x1x32x8xf32> to vector<32x8xf32>
    %c0_160 = arith.constant 0 : index
    %c0_161 = arith.constant 0 : index
    %c0_162 = arith.constant 0 : index
    %c0_163 = arith.constant 0 : index
    %196 = vector.load %arg10[%c0_160, %c0_161, %c0_162, %c0_163] : memref<1x12x1x8xf32, #tpu.memory_space<vmem>>, vector<1x1x1x8xf32>
    %197 = vector.shape_cast %196 : vector<1x1x1x8xf32> to vector<1x8xf32>
    %c0_164 = arith.constant 0 : index
    %c4_165 = arith.constant 4 : index
    %c0_166 = arith.constant 0 : index
    %c0_167 = arith.constant 0 : index
    %198 = vector.load %arg9[%c0_164, %c4_165, %c0_166, %c0_167] : memref<1x12x32x8xf32, #tpu.memory_space<vmem>>, vector<1x1x32x8xf32>
    %199 = vector.shape_cast %198 : vector<1x1x32x8xf32> to vector<32x8xf32>
    %c0_168 = arith.constant 0 : index
    %c4_169 = arith.constant 4 : index
    %c0_170 = arith.constant 0 : index
    %c0_171 = arith.constant 0 : index
    %200 = vector.load %arg10[%c0_168, %c4_169, %c0_170, %c0_171] : memref<1x12x1x8xf32, #tpu.memory_space<vmem>>, vector<1x1x1x8xf32>
    %201 = vector.shape_cast %200 : vector<1x1x1x8xf32> to vector<1x8xf32>
    %c0_172 = arith.constant 0 : index
    %c8_173 = arith.constant 8 : index
    %c0_174 = arith.constant 0 : index
    %c0_175 = arith.constant 0 : index
    %202 = vector.load %arg9[%c0_172, %c8_173, %c0_174, %c0_175] : memref<1x12x32x8xf32, #tpu.memory_space<vmem>>, vector<1x1x32x8xf32>
    %203 = vector.shape_cast %202 : vector<1x1x32x8xf32> to vector<32x8xf32>
    %c0_176 = arith.constant 0 : index
    %c8_177 = arith.constant 8 : index
    %c0_178 = arith.constant 0 : index
    %c0_179 = arith.constant 0 : index
    %204 = vector.load %arg10[%c0_176, %c8_177, %c0_178, %c0_179] : memref<1x12x1x8xf32, #tpu.memory_space<vmem>>, vector<1x1x1x8xf32>
    %205 = vector.shape_cast %204 : vector<1x1x1x8xf32> to vector<1x8xf32>
    %cst_180 = arith.constant dense<0.000000e+00> : vector<8x8xf32>
    %206 = tpu.matmul %192, %195, %cst_180 {dimension_numbers = #tpu.dot_dimension_numbers<[1], [0], [0], [1], [0, 0, 1, 1], [], []>} : vector<8x32xf32>, vector<32x8xf32>, vector<8x8xf32> -> vector<8x8xf32>
    %207 = vector.broadcast %197 : vector<1x8xf32> to vector<8x8xf32>
    %208 = arith.addf %206, %207 : vector<8x8xf32>
    %cst_181 = arith.constant 0.353553385 : f32
    %209 = vector.broadcast %cst_181 : f32 to vector<8x8xf32>
    %210 = arith.mulf %208, %209 : vector<8x8xf32>
    %cst_182 = arith.constant dense<0.000000e+00> : vector<8x8xf32>
    %211 = tpu.matmul %193, %199, %cst_182 {dimension_numbers = #tpu.dot_dimension_numbers<[1], [0], [0], [1], [0, 0, 1, 1], [], []>} : vector<8x32xf32>, vector<32x8xf32>, vector<8x8xf32> -> vector<8x8xf32>
    %212 = vector.broadcast %201 : vector<1x8xf32> to vector<8x8xf32>
    %213 = arith.addf %211, %212 : vector<8x8xf32>
    %cst_183 = arith.constant dense<0.000000e+00> : vector<8x8xf32>
    %214 = tpu.matmul %193, %203, %cst_183 {dimension_numbers = #tpu.dot_dimension_numbers<[1], [0], [0], [1], [0, 0, 1, 1], [], []>} : vector<8x32xf32>, vector<32x8xf32>, vector<8x8xf32> -> vector<8x8xf32>
    %215 = vector.broadcast %205 : vector<1x8xf32> to vector<8x8xf32>
    %216 = arith.addf %214, %215 : vector<8x8xf32>
    %cst_184 = arith.constant dense<0.000000e+00> : vector<8x8xf32>
    %217 = tpu.matmul %210, %213, %cst_184 {dimension_numbers = #tpu.dot_dimension_numbers<[1], [1], [0], [0], [0, 0, 1, 0], [], []>} : vector<8x8xf32>, vector<8x8xf32>, vector<8x8xf32> -> vector<8x8xf32>
    %cst_185 = arith.constant dense<0xFF800000> : vector<8xf32>
    %218 = vector.multi_reduction <maximumf>, %217, %cst_185 [1] : vector<8x8xf32> to vector<8xf32>
    %219 = vector.shape_cast %218 : vector<8xf32> to vector<8x1xf32>
    %220 = vector.broadcast %219 : vector<8x1xf32> to vector<8x8xf32>
    %221 = arith.subf %217, %220 : vector<8x8xf32>
    %222 = math.exp %221 : vector<8x8xf32>
    %cst_186 = arith.constant dense<0.000000e+00> : vector<8xf32>
    %223 = vector.multi_reduction <add>, %222, %cst_186 [1] : vector<8x8xf32> to vector<8xf32>
    %224 = vector.shape_cast %223 : vector<8xf32> to vector<8x1xf32>
    %225 = tpu.reciprocal %224 {approx = true} : vector<8x1xf32> -> vector<8x1xf32>
    %226 = vector.broadcast %225 : vector<8x1xf32> to vector<8x8xf32>
    %227 = arith.mulf %222, %226 : vector<8x8xf32>
    %cst_187 = arith.constant dense<0.000000e+00> : vector<8x8xf32>
    %228 = tpu.matmul %227, %216, %cst_187 {dimension_numbers = #tpu.dot_dimension_numbers<[1], [0], [0], [1], [0, 0, 1, 1], [], []>} : vector<8x8xf32>, vector<8x8xf32>, vector<8x8xf32> -> vector<8x8xf32>
    %c0_188 = arith.constant 0 : index
    %c0_189 = arith.constant 0 : index
    %c0_190 = arith.constant 0 : index
    %c0_191 = arith.constant 0 : index
    %229 = vector.load %arg11[%c0_188, %c0_189, %c0_190, %c0_191] : memref<1x4x8x32xf32, #tpu.memory_space<vmem>>, vector<1x1x8x32xf32>
    %230 = vector.shape_cast %229 : vector<1x1x8x32xf32> to vector<8x32xf32>
    %cst_192 = arith.constant dense<0.000000e+00> : vector<8x32xf32>
    %231 = tpu.matmul %228, %230, %cst_192 {dimension_numbers = #tpu.dot_dimension_numbers<[1], [0], [0], [1], [0, 0, 1, 1], [], []>} : vector<8x8xf32>, vector<8x32xf32>, vector<8x32xf32> -> vector<8x32xf32>
    %c0_193 = arith.constant 0 : index
    %c1_194 = arith.constant 1 : index
    %c0_195 = arith.constant 0 : index
    %c0_196 = arith.constant 0 : index
    %232 = vector.load %arg9[%c0_193, %c1_194, %c0_195, %c0_196] : memref<1x12x32x8xf32, #tpu.memory_space<vmem>>, vector<1x1x32x8xf32>
    %233 = vector.shape_cast %232 : vector<1x1x32x8xf32> to vector<32x8xf32>
    %c0_197 = arith.constant 0 : index
    %c1_198 = arith.constant 1 : index
    %c0_199 = arith.constant 0 : index
    %c0_200 = arith.constant 0 : index
    %234 = vector.load %arg10[%c0_197, %c1_198, %c0_199, %c0_200] : memref<1x12x1x8xf32, #tpu.memory_space<vmem>>, vector<1x1x1x8xf32>
    %235 = vector.shape_cast %234 : vector<1x1x1x8xf32> to vector<1x8xf32>
    %c0_201 = arith.constant 0 : index
    %c5_202 = arith.constant 5 : index
    %c0_203 = arith.constant 0 : index
    %c0_204 = arith.constant 0 : index
    %236 = vector.load %arg9[%c0_201, %c5_202, %c0_203, %c0_204] : memref<1x12x32x8xf32, #tpu.memory_space<vmem>>, vector<1x1x32x8xf32>
    %237 = vector.shape_cast %236 : vector<1x1x32x8xf32> to vector<32x8xf32>
    %c0_205 = arith.constant 0 : index
    %c5_206 = arith.constant 5 : index
    %c0_207 = arith.constant 0 : index
    %c0_208 = arith.constant 0 : index
    %238 = vector.load %arg10[%c0_205, %c5_206, %c0_207, %c0_208] : memref<1x12x1x8xf32, #tpu.memory_space<vmem>>, vector<1x1x1x8xf32>
    %239 = vector.shape_cast %238 : vector<1x1x1x8xf32> to vector<1x8xf32>
    %c0_209 = arith.constant 0 : index
    %c9_210 = arith.constant 9 : index
    %c0_211 = arith.constant 0 : index
    %c0_212 = arith.constant 0 : index
    %240 = vector.load %arg9[%c0_209, %c9_210, %c0_211, %c0_212] : memref<1x12x32x8xf32, #tpu.memory_space<vmem>>, vector<1x1x32x8xf32>
    %241 = vector.shape_cast %240 : vector<1x1x32x8xf32> to vector<32x8xf32>
    %c0_213 = arith.constant 0 : index
    %c9_214 = arith.constant 9 : index
    %c0_215 = arith.constant 0 : index
    %c0_216 = arith.constant 0 : index
    %242 = vector.load %arg10[%c0_213, %c9_214, %c0_215, %c0_216] : memref<1x12x1x8xf32, #tpu.memory_space<vmem>>, vector<1x1x1x8xf32>
    %243 = vector.shape_cast %242 : vector<1x1x1x8xf32> to vector<1x8xf32>
    %cst_217 = arith.constant dense<0.000000e+00> : vector<8x8xf32>
    %244 = tpu.matmul %192, %233, %cst_217 {dimension_numbers = #tpu.dot_dimension_numbers<[1], [0], [0], [1], [0, 0, 1, 1], [], []>} : vector<8x32xf32>, vector<32x8xf32>, vector<8x8xf32> -> vector<8x8xf32>
    %245 = vector.broadcast %235 : vector<1x8xf32> to vector<8x8xf32>
    %246 = arith.addf %244, %245 : vector<8x8xf32>
    %cst_218 = arith.constant 0.353553385 : f32
    %247 = vector.broadcast %cst_218 : f32 to vector<8x8xf32>
    %248 = arith.mulf %246, %247 : vector<8x8xf32>
    %cst_219 = arith.constant dense<0.000000e+00> : vector<8x8xf32>
    %249 = tpu.matmul %193, %237, %cst_219 {dimension_numbers = #tpu.dot_dimension_numbers<[1], [0], [0], [1], [0, 0, 1, 1], [], []>} : vector<8x32xf32>, vector<32x8xf32>, vector<8x8xf32> -> vector<8x8xf32>
    %250 = vector.broadcast %239 : vector<1x8xf32> to vector<8x8xf32>
    %251 = arith.addf %249, %250 : vector<8x8xf32>
    %cst_220 = arith.constant dense<0.000000e+00> : vector<8x8xf32>
    %252 = tpu.matmul %193, %241, %cst_220 {dimension_numbers = #tpu.dot_dimension_numbers<[1], [0], [0], [1], [0, 0, 1, 1], [], []>} : vector<8x32xf32>, vector<32x8xf32>, vector<8x8xf32> -> vector<8x8xf32>
    %253 = vector.broadcast %243 : vector<1x8xf32> to vector<8x8xf32>
    %254 = arith.addf %252, %253 : vector<8x8xf32>
    %cst_221 = arith.constant dense<0.000000e+00> : vector<8x8xf32>
    %255 = tpu.matmul %248, %251, %cst_221 {dimension_numbers = #tpu.dot_dimension_numbers<[1], [1], [0], [0], [0, 0, 1, 0], [], []>} : vector<8x8xf32>, vector<8x8xf32>, vector<8x8xf32> -> vector<8x8xf32>
    %cst_222 = arith.constant dense<0xFF800000> : vector<8xf32>
    %256 = vector.multi_reduction <maximumf>, %255, %cst_222 [1] : vector<8x8xf32> to vector<8xf32>
    %257 = vector.shape_cast %256 : vector<8xf32> to vector<8x1xf32>
    %258 = vector.broadcast %257 : vector<8x1xf32> to vector<8x8xf32>
    %259 = arith.subf %255, %258 : vector<8x8xf32>
    %260 = math.exp %259 : vector<8x8xf32>
    %cst_223 = arith.constant dense<0.000000e+00> : vector<8xf32>
    %261 = vector.multi_reduction <add>, %260, %cst_223 [1] : vector<8x8xf32> to vector<8xf32>
    %262 = vector.shape_cast %261 : vector<8xf32> to vector<8x1xf32>
    %263 = tpu.reciprocal %262 {approx = true} : vector<8x1xf32> -> vector<8x1xf32>
    %264 = vector.broadcast %263 : vector<8x1xf32> to vector<8x8xf32>
    %265 = arith.mulf %260, %264 : vector<8x8xf32>
    %cst_224 = arith.constant dense<0.000000e+00> : vector<8x8xf32>
    %266 = tpu.matmul %265, %254, %cst_224 {dimension_numbers = #tpu.dot_dimension_numbers<[1], [0], [0], [1], [0, 0, 1, 1], [], []>} : vector<8x8xf32>, vector<8x8xf32>, vector<8x8xf32> -> vector<8x8xf32>
    %c0_225 = arith.constant 0 : index
    %c1_226 = arith.constant 1 : index
    %c0_227 = arith.constant 0 : index
    %c0_228 = arith.constant 0 : index
    %267 = vector.load %arg11[%c0_225, %c1_226, %c0_227, %c0_228] : memref<1x4x8x32xf32, #tpu.memory_space<vmem>>, vector<1x1x8x32xf32>
    %268 = vector.shape_cast %267 : vector<1x1x8x32xf32> to vector<8x32xf32>
    %cst_229 = arith.constant dense<0.000000e+00> : vector<8x32xf32>
    %269 = tpu.matmul %266, %268, %cst_229 {dimension_numbers = #tpu.dot_dimension_numbers<[1], [0], [0], [1], [0, 0, 1, 1], [], []>} : vector<8x8xf32>, vector<8x32xf32>, vector<8x32xf32> -> vector<8x32xf32>
    %270 = arith.addf %231, %269 : vector<8x32xf32>
    %c0_230 = arith.constant 0 : index
    %c2_231 = arith.constant 2 : index
    %c0_232 = arith.constant 0 : index
    %c0_233 = arith.constant 0 : index
    %271 = vector.load %arg9[%c0_230, %c2_231, %c0_232, %c0_233] : memref<1x12x32x8xf32, #tpu.memory_space<vmem>>, vector<1x1x32x8xf32>
    %272 = vector.shape_cast %271 : vector<1x1x32x8xf32> to vector<32x8xf32>
    %c0_234 = arith.constant 0 : index
    %c2_235 = arith.constant 2 : index
    %c0_236 = arith.constant 0 : index
    %c0_237 = arith.constant 0 : index
    %273 = vector.load %arg10[%c0_234, %c2_235, %c0_236, %c0_237] : memref<1x12x1x8xf32, #tpu.memory_space<vmem>>, vector<1x1x1x8xf32>
    %274 = vector.shape_cast %273 : vector<1x1x1x8xf32> to vector<1x8xf32>
    %c0_238 = arith.constant 0 : index
    %c6_239 = arith.constant 6 : index
    %c0_240 = arith.constant 0 : index
    %c0_241 = arith.constant 0 : index
    %275 = vector.load %arg9[%c0_238, %c6_239, %c0_240, %c0_241] : memref<1x12x32x8xf32, #tpu.memory_space<vmem>>, vector<1x1x32x8xf32>
    %276 = vector.shape_cast %275 : vector<1x1x32x8xf32> to vector<32x8xf32>
    %c0_242 = arith.constant 0 : index
    %c6_243 = arith.constant 6 : index
    %c0_244 = arith.constant 0 : index
    %c0_245 = arith.constant 0 : index
    %277 = vector.load %arg10[%c0_242, %c6_243, %c0_244, %c0_245] : memref<1x12x1x8xf32, #tpu.memory_space<vmem>>, vector<1x1x1x8xf32>
    %278 = vector.shape_cast %277 : vector<1x1x1x8xf32> to vector<1x8xf32>
    %c0_246 = arith.constant 0 : index
    %c10_247 = arith.constant 10 : index
    %c0_248 = arith.constant 0 : index
    %c0_249 = arith.constant 0 : index
    %279 = vector.load %arg9[%c0_246, %c10_247, %c0_248, %c0_249] : memref<1x12x32x8xf32, #tpu.memory_space<vmem>>, vector<1x1x32x8xf32>
    %280 = vector.shape_cast %279 : vector<1x1x32x8xf32> to vector<32x8xf32>
    %c0_250 = arith.constant 0 : index
    %c10_251 = arith.constant 10 : index
    %c0_252 = arith.constant 0 : index
    %c0_253 = arith.constant 0 : index
    %281 = vector.load %arg10[%c0_250, %c10_251, %c0_252, %c0_253] : memref<1x12x1x8xf32, #tpu.memory_space<vmem>>, vector<1x1x1x8xf32>
    %282 = vector.shape_cast %281 : vector<1x1x1x8xf32> to vector<1x8xf32>
    %cst_254 = arith.constant dense<0.000000e+00> : vector<8x8xf32>
    %283 = tpu.matmul %192, %272, %cst_254 {dimension_numbers = #tpu.dot_dimension_numbers<[1], [0], [0], [1], [0, 0, 1, 1], [], []>} : vector<8x32xf32>, vector<32x8xf32>, vector<8x8xf32> -> vector<8x8xf32>
    %284 = vector.broadcast %274 : vector<1x8xf32> to vector<8x8xf32>
    %285 = arith.addf %283, %284 : vector<8x8xf32>
    %cst_255 = arith.constant 0.353553385 : f32
    %286 = vector.broadcast %cst_255 : f32 to vector<8x8xf32>
    %287 = arith.mulf %285, %286 : vector<8x8xf32>
    %cst_256 = arith.constant dense<0.000000e+00> : vector<8x8xf32>
    %288 = tpu.matmul %193, %276, %cst_256 {dimension_numbers = #tpu.dot_dimension_numbers<[1], [0], [0], [1], [0, 0, 1, 1], [], []>} : vector<8x32xf32>, vector<32x8xf32>, vector<8x8xf32> -> vector<8x8xf32>
    %289 = vector.broadcast %278 : vector<1x8xf32> to vector<8x8xf32>
    %290 = arith.addf %288, %289 : vector<8x8xf32>
    %cst_257 = arith.constant dense<0.000000e+00> : vector<8x8xf32>
    %291 = tpu.matmul %193, %280, %cst_257 {dimension_numbers = #tpu.dot_dimension_numbers<[1], [0], [0], [1], [0, 0, 1, 1], [], []>} : vector<8x32xf32>, vector<32x8xf32>, vector<8x8xf32> -> vector<8x8xf32>
    %292 = vector.broadcast %282 : vector<1x8xf32> to vector<8x8xf32>
    %293 = arith.addf %291, %292 : vector<8x8xf32>
    %cst_258 = arith.constant dense<0.000000e+00> : vector<8x8xf32>
    %294 = tpu.matmul %287, %290, %cst_258 {dimension_numbers = #tpu.dot_dimension_numbers<[1], [1], [0], [0], [0, 0, 1, 0], [], []>} : vector<8x8xf32>, vector<8x8xf32>, vector<8x8xf32> -> vector<8x8xf32>
    %cst_259 = arith.constant dense<0xFF800000> : vector<8xf32>
    %295 = vector.multi_reduction <maximumf>, %294, %cst_259 [1] : vector<8x8xf32> to vector<8xf32>
    %296 = vector.shape_cast %295 : vector<8xf32> to vector<8x1xf32>
    %297 = vector.broadcast %296 : vector<8x1xf32> to vector<8x8xf32>
    %298 = arith.subf %294, %297 : vector<8x8xf32>
    %299 = math.exp %298 : vector<8x8xf32>
    %cst_260 = arith.constant dense<0.000000e+00> : vector<8xf32>
    %300 = vector.multi_reduction <add>, %299, %cst_260 [1] : vector<8x8xf32> to vector<8xf32>
    %301 = vector.shape_cast %300 : vector<8xf32> to vector<8x1xf32>
    %302 = tpu.reciprocal %301 {approx = true} : vector<8x1xf32> -> vector<8x1xf32>
    %303 = vector.broadcast %302 : vector<8x1xf32> to vector<8x8xf32>
    %304 = arith.mulf %299, %303 : vector<8x8xf32>
    %cst_261 = arith.constant dense<0.000000e+00> : vector<8x8xf32>
    %305 = tpu.matmul %304, %293, %cst_261 {dimension_numbers = #tpu.dot_dimension_numbers<[1], [0], [0], [1], [0, 0, 1, 1], [], []>} : vector<8x8xf32>, vector<8x8xf32>, vector<8x8xf32> -> vector<8x8xf32>
    %c0_262 = arith.constant 0 : index
    %c2_263 = arith.constant 2 : index
    %c0_264 = arith.constant 0 : index
    %c0_265 = arith.constant 0 : index
    %306 = vector.load %arg11[%c0_262, %c2_263, %c0_264, %c0_265] : memref<1x4x8x32xf32, #tpu.memory_space<vmem>>, vector<1x1x8x32xf32>
    %307 = vector.shape_cast %306 : vector<1x1x8x32xf32> to vector<8x32xf32>
    %cst_266 = arith.constant dense<0.000000e+00> : vector<8x32xf32>
    %308 = tpu.matmul %305, %307, %cst_266 {dimension_numbers = #tpu.dot_dimension_numbers<[1], [0], [0], [1], [0, 0, 1, 1], [], []>} : vector<8x8xf32>, vector<8x32xf32>, vector<8x32xf32> -> vector<8x32xf32>
    %309 = arith.addf %270, %308 : vector<8x32xf32>
    %c0_267 = arith.constant 0 : index
    %c3_268 = arith.constant 3 : index
    %c0_269 = arith.constant 0 : index
    %c0_270 = arith.constant 0 : index
    %310 = vector.load %arg9[%c0_267, %c3_268, %c0_269, %c0_270] : memref<1x12x32x8xf32, #tpu.memory_space<vmem>>, vector<1x1x32x8xf32>
    %311 = vector.shape_cast %310 : vector<1x1x32x8xf32> to vector<32x8xf32>
    %c0_271 = arith.constant 0 : index
    %c3_272 = arith.constant 3 : index
    %c0_273 = arith.constant 0 : index
    %c0_274 = arith.constant 0 : index
    %312 = vector.load %arg10[%c0_271, %c3_272, %c0_273, %c0_274] : memref<1x12x1x8xf32, #tpu.memory_space<vmem>>, vector<1x1x1x8xf32>
    %313 = vector.shape_cast %312 : vector<1x1x1x8xf32> to vector<1x8xf32>
    %c0_275 = arith.constant 0 : index
    %c7_276 = arith.constant 7 : index
    %c0_277 = arith.constant 0 : index
    %c0_278 = arith.constant 0 : index
    %314 = vector.load %arg9[%c0_275, %c7_276, %c0_277, %c0_278] : memref<1x12x32x8xf32, #tpu.memory_space<vmem>>, vector<1x1x32x8xf32>
    %315 = vector.shape_cast %314 : vector<1x1x32x8xf32> to vector<32x8xf32>
    %c0_279 = arith.constant 0 : index
    %c7_280 = arith.constant 7 : index
    %c0_281 = arith.constant 0 : index
    %c0_282 = arith.constant 0 : index
    %316 = vector.load %arg10[%c0_279, %c7_280, %c0_281, %c0_282] : memref<1x12x1x8xf32, #tpu.memory_space<vmem>>, vector<1x1x1x8xf32>
    %317 = vector.shape_cast %316 : vector<1x1x1x8xf32> to vector<1x8xf32>
    %c0_283 = arith.constant 0 : index
    %c11_284 = arith.constant 11 : index
    %c0_285 = arith.constant 0 : index
    %c0_286 = arith.constant 0 : index
    %318 = vector.load %arg9[%c0_283, %c11_284, %c0_285, %c0_286] : memref<1x12x32x8xf32, #tpu.memory_space<vmem>>, vector<1x1x32x8xf32>
    %319 = vector.shape_cast %318 : vector<1x1x32x8xf32> to vector<32x8xf32>
    %c0_287 = arith.constant 0 : index
    %c11_288 = arith.constant 11 : index
    %c0_289 = arith.constant 0 : index
    %c0_290 = arith.constant 0 : index
    %320 = vector.load %arg10[%c0_287, %c11_288, %c0_289, %c0_290] : memref<1x12x1x8xf32, #tpu.memory_space<vmem>>, vector<1x1x1x8xf32>
    %321 = vector.shape_cast %320 : vector<1x1x1x8xf32> to vector<1x8xf32>
    %cst_291 = arith.constant dense<0.000000e+00> : vector<8x8xf32>
    %322 = tpu.matmul %192, %311, %cst_291 {dimension_numbers = #tpu.dot_dimension_numbers<[1], [0], [0], [1], [0, 0, 1, 1], [], []>} : vector<8x32xf32>, vector<32x8xf32>, vector<8x8xf32> -> vector<8x8xf32>
    %323 = vector.broadcast %313 : vector<1x8xf32> to vector<8x8xf32>
    %324 = arith.addf %322, %323 : vector<8x8xf32>
    %cst_292 = arith.constant 0.353553385 : f32
    %325 = vector.broadcast %cst_292 : f32 to vector<8x8xf32>
    %326 = arith.mulf %324, %325 : vector<8x8xf32>
    %cst_293 = arith.constant dense<0.000000e+00> : vector<8x8xf32>
    %327 = tpu.matmul %193, %315, %cst_293 {dimension_numbers = #tpu.dot_dimension_numbers<[1], [0], [0], [1], [0, 0, 1, 1], [], []>} : vector<8x32xf32>, vector<32x8xf32>, vector<8x8xf32> -> vector<8x8xf32>
    %328 = vector.broadcast %317 : vector<1x8xf32> to vector<8x8xf32>
    %329 = arith.addf %327, %328 : vector<8x8xf32>
    %cst_294 = arith.constant dense<0.000000e+00> : vector<8x8xf32>
    %330 = tpu.matmul %193, %319, %cst_294 {dimension_numbers = #tpu.dot_dimension_numbers<[1], [0], [0], [1], [0, 0, 1, 1], [], []>} : vector<8x32xf32>, vector<32x8xf32>, vector<8x8xf32> -> vector<8x8xf32>
    %331 = vector.broadcast %321 : vector<1x8xf32> to vector<8x8xf32>
    %332 = arith.addf %330, %331 : vector<8x8xf32>
    %cst_295 = arith.constant dense<0.000000e+00> : vector<8x8xf32>
    %333 = tpu.matmul %326, %329, %cst_295 {dimension_numbers = #tpu.dot_dimension_numbers<[1], [1], [0], [0], [0, 0, 1, 0], [], []>} : vector<8x8xf32>, vector<8x8xf32>, vector<8x8xf32> -> vector<8x8xf32>
    %cst_296 = arith.constant dense<0xFF800000> : vector<8xf32>
    %334 = vector.multi_reduction <maximumf>, %333, %cst_296 [1] : vector<8x8xf32> to vector<8xf32>
    %335 = vector.shape_cast %334 : vector<8xf32> to vector<8x1xf32>
    %336 = vector.broadcast %335 : vector<8x1xf32> to vector<8x8xf32>
    %337 = arith.subf %333, %336 : vector<8x8xf32>
    %338 = math.exp %337 : vector<8x8xf32>
    %cst_297 = arith.constant dense<0.000000e+00> : vector<8xf32>
    %339 = vector.multi_reduction <add>, %338, %cst_297 [1] : vector<8x8xf32> to vector<8xf32>
    %340 = vector.shape_cast %339 : vector<8xf32> to vector<8x1xf32>
    %341 = tpu.reciprocal %340 {approx = true} : vector<8x1xf32> -> vector<8x1xf32>
    %342 = vector.broadcast %341 : vector<8x1xf32> to vector<8x8xf32>
    %343 = arith.mulf %338, %342 : vector<8x8xf32>
    %cst_298 = arith.constant dense<0.000000e+00> : vector<8x8xf32>
    %344 = tpu.matmul %343, %332, %cst_298 {dimension_numbers = #tpu.dot_dimension_numbers<[1], [0], [0], [1], [0, 0, 1, 1], [], []>} : vector<8x8xf32>, vector<8x8xf32>, vector<8x8xf32> -> vector<8x8xf32>
    %c0_299 = arith.constant 0 : index
    %c3_300 = arith.constant 3 : index
    %c0_301 = arith.constant 0 : index
    %c0_302 = arith.constant 0 : index
    %345 = vector.load %arg11[%c0_299, %c3_300, %c0_301, %c0_302] : memref<1x4x8x32xf32, #tpu.memory_space<vmem>>, vector<1x1x8x32xf32>
    %346 = vector.shape_cast %345 : vector<1x1x8x32xf32> to vector<8x32xf32>
    %cst_303 = arith.constant dense<0.000000e+00> : vector<8x32xf32>
    %347 = tpu.matmul %344, %346, %cst_303 {dimension_numbers = #tpu.dot_dimension_numbers<[1], [0], [0], [1], [0, 0, 1, 1], [], []>} : vector<8x8xf32>, vector<8x32xf32>, vector<8x32xf32> -> vector<8x32xf32>
    %348 = arith.addf %309, %347 : vector<8x32xf32>
    %c0_304 = arith.constant 0 : index
    %c0_305 = arith.constant 0 : index
    %c0_306 = arith.constant 0 : index
    %349 = vector.load %arg12[%c0_304, %c0_305, %c0_306] : memref<1x1x32xf32, #tpu.memory_space<vmem>>, vector<1x1x32xf32>
    %350 = vector.shape_cast %349 : vector<1x1x32xf32> to vector<1x32xf32>
    %351 = vector.broadcast %350 : vector<1x32xf32> to vector<8x32xf32>
    %352 = arith.addf %348, %351 : vector<8x32xf32>
    %353 = arith.addf %192, %352 : vector<8x32xf32>
    %c0_307 = arith.constant 0 : index
    %c0_308 = arith.constant 0 : index
    %c0_309 = arith.constant 0 : index
    %354 = vector.load %arg19[%c0_307, %c0_308, %c0_309] : memref<1x1x32xf32, #tpu.memory_space<vmem>>, vector<1x1x32xf32>
    %355 = vector.shape_cast %354 : vector<1x1x32xf32> to vector<1x32xf32>
    %c0_310 = arith.constant 0 : index
    %c0_311 = arith.constant 0 : index
    %c0_312 = arith.constant 0 : index
    %356 = vector.load %arg20[%c0_310, %c0_311, %c0_312] : memref<1x1x32xf32, #tpu.memory_space<vmem>>, vector<1x1x32xf32>
    %357 = vector.shape_cast %356 : vector<1x1x32xf32> to vector<1x32xf32>
    %cst_313 = arith.constant dense<0.000000e+00> : vector<8xf32>
    %358 = vector.multi_reduction <add>, %353, %cst_313 [1] : vector<8x32xf32> to vector<8xf32>
    %359 = vector.shape_cast %358 : vector<8xf32> to vector<8x1xf32>
    %cst_314 = arith.constant 3.200000e+01 : f32
    %360 = vector.broadcast %cst_314 : f32 to vector<8x1xf32>
    %361 = arith.divf %359, %360 : vector<8x1xf32>
    %362 = vector.broadcast %361 : vector<8x1xf32> to vector<8x32xf32>
    %363 = arith.subf %353, %362 : vector<8x32xf32>
    %364 = arith.mulf %363, %363 : vector<8x32xf32>
    %cst_315 = arith.constant dense<0.000000e+00> : vector<8xf32>
    %365 = vector.multi_reduction <add>, %364, %cst_315 [1] : vector<8x32xf32> to vector<8xf32>
    %366 = vector.shape_cast %365 : vector<8xf32> to vector<8x1xf32>
    %cst_316 = arith.constant 3.200000e+01 : f32
    %367 = vector.broadcast %cst_316 : f32 to vector<8x1xf32>
    %368 = arith.divf %366, %367 : vector<8x1xf32>
    %cst_317 = arith.constant 9.99999974E-6 : f32
    %369 = vector.broadcast %cst_317 : f32 to vector<8x1xf32>
    %370 = arith.addf %368, %369 : vector<8x1xf32>
    %371 = math.rsqrt %370 : vector<8x1xf32>
    %372 = vector.broadcast %371 : vector<8x1xf32> to vector<8x32xf32>
    %373 = arith.mulf %363, %372 : vector<8x32xf32>
    %374 = vector.broadcast %355 : vector<1x32xf32> to vector<8x32xf32>
    %375 = arith.mulf %373, %374 : vector<8x32xf32>
    %376 = vector.broadcast %357 : vector<1x32xf32> to vector<8x32xf32>
    %377 = arith.addf %375, %376 : vector<8x32xf32>
    %c0_318 = arith.constant 0 : index
    %c0_319 = arith.constant 0 : index
    %c0_320 = arith.constant 0 : index
    %378 = vector.load %arg13[%c0_318, %c0_319, %c0_320] : memref<1x32x32xf32, #tpu.memory_space<vmem>>, vector<1x32x32xf32>
    %379 = vector.shape_cast %378 : vector<1x32x32xf32> to vector<32x32xf32>
    %cst_321 = arith.constant dense<0.000000e+00> : vector<8x32xf32>
    %380 = tpu.matmul %377, %379, %cst_321 {dimension_numbers = #tpu.dot_dimension_numbers<[1], [0], [0], [1], [0, 0, 1, 1], [], []>} : vector<8x32xf32>, vector<32x32xf32>, vector<8x32xf32> -> vector<8x32xf32>
    %c0_322 = arith.constant 0 : index
    %c0_323 = arith.constant 0 : index
    %c0_324 = arith.constant 0 : index
    %381 = vector.load %arg14[%c0_322, %c0_323, %c0_324] : memref<1x1x32xf32, #tpu.memory_space<vmem>>, vector<1x1x32xf32>
    %382 = vector.shape_cast %381 : vector<1x1x32xf32> to vector<1x32xf32>
    %383 = vector.broadcast %382 : vector<1x32xf32> to vector<8x32xf32>
    %384 = arith.addf %380, %383 : vector<8x32xf32>
    %cst_325 = arith.constant 0.000000e+00 : f32
    %385 = vector.broadcast %cst_325 : f32 to vector<8x32xf32>
    %386 = arith.maximumf %384, %385 : vector<8x32xf32>
    %c0_326 = arith.constant 0 : index
    %c0_327 = arith.constant 0 : index
    %c0_328 = arith.constant 0 : index
    %387 = vector.load %arg15[%c0_326, %c0_327, %c0_328] : memref<1x32x32xf32, #tpu.memory_space<vmem>>, vector<1x32x32xf32>
    %388 = vector.shape_cast %387 : vector<1x32x32xf32> to vector<32x32xf32>
    %cst_329 = arith.constant dense<0.000000e+00> : vector<8x32xf32>
    %389 = tpu.matmul %386, %388, %cst_329 {dimension_numbers = #tpu.dot_dimension_numbers<[1], [0], [0], [1], [0, 0, 1, 1], [], []>} : vector<8x32xf32>, vector<32x32xf32>, vector<8x32xf32> -> vector<8x32xf32>
    %c0_330 = arith.constant 0 : index
    %c0_331 = arith.constant 0 : index
    %c0_332 = arith.constant 0 : index
    %390 = vector.load %arg16[%c0_330, %c0_331, %c0_332] : memref<1x1x32xf32, #tpu.memory_space<vmem>>, vector<1x1x32xf32>
    %391 = vector.shape_cast %390 : vector<1x1x32xf32> to vector<1x32xf32>
    %392 = vector.broadcast %391 : vector<1x32xf32> to vector<8x32xf32>
    %393 = arith.addf %389, %392 : vector<8x32xf32>
    %394 = arith.addf %377, %393 : vector<8x32xf32>
    %c0_333 = arith.constant 0 : index
    %c0_334 = arith.constant 0 : index
    %c0_335 = arith.constant 0 : index
    %395 = vector.load %arg21[%c0_333, %c0_334, %c0_335] : memref<1x1x32xf32, #tpu.memory_space<vmem>>, vector<1x1x32xf32>
    %396 = vector.shape_cast %395 : vector<1x1x32xf32> to vector<1x32xf32>
    %c0_336 = arith.constant 0 : index
    %c0_337 = arith.constant 0 : index
    %c0_338 = arith.constant 0 : index
    %397 = vector.load %arg22[%c0_336, %c0_337, %c0_338] : memref<1x1x32xf32, #tpu.memory_space<vmem>>, vector<1x1x32xf32>
    %398 = vector.shape_cast %397 : vector<1x1x32xf32> to vector<1x32xf32>
    %cst_339 = arith.constant dense<0.000000e+00> : vector<8xf32>
    %399 = vector.multi_reduction <add>, %394, %cst_339 [1] : vector<8x32xf32> to vector<8xf32>
    %400 = vector.shape_cast %399 : vector<8xf32> to vector<8x1xf32>
    %cst_340 = arith.constant 3.200000e+01 : f32
    %401 = vector.broadcast %cst_340 : f32 to vector<8x1xf32>
    %402 = arith.divf %400, %401 : vector<8x1xf32>
    %403 = vector.broadcast %402 : vector<8x1xf32> to vector<8x32xf32>
    %404 = arith.subf %394, %403 : vector<8x32xf32>
    %405 = arith.mulf %404, %404 : vector<8x32xf32>
    %cst_341 = arith.constant dense<0.000000e+00> : vector<8xf32>
    %406 = vector.multi_reduction <add>, %405, %cst_341 [1] : vector<8x32xf32> to vector<8xf32>
    %407 = vector.shape_cast %406 : vector<8xf32> to vector<8x1xf32>
    %cst_342 = arith.constant 3.200000e+01 : f32
    %408 = vector.broadcast %cst_342 : f32 to vector<8x1xf32>
    %409 = arith.divf %407, %408 : vector<8x1xf32>
    %cst_343 = arith.constant 9.99999974E-6 : f32
    %410 = vector.broadcast %cst_343 : f32 to vector<8x1xf32>
    %411 = arith.addf %409, %410 : vector<8x1xf32>
    %412 = math.rsqrt %411 : vector<8x1xf32>
    %413 = vector.broadcast %412 : vector<8x1xf32> to vector<8x32xf32>
    %414 = arith.mulf %404, %413 : vector<8x32xf32>
    %415 = vector.broadcast %396 : vector<1x32xf32> to vector<8x32xf32>
    %416 = arith.mulf %414, %415 : vector<8x32xf32>
    %417 = vector.broadcast %398 : vector<1x32xf32> to vector<8x32xf32>
    %418 = arith.addf %416, %417 : vector<8x32xf32>
    %c0_344 = arith.constant 0 : index
    %c0_345 = arith.constant 0 : index
    %419 = vector.load %arg26[%c0_344, %c0_345] : memref<8x32xf32, #tpu.memory_space<vmem>>, vector<8x32xf32>
    tpu.vector_store %arg26[%c0_344, %c0_345], %418 {strides = array<i32>} : memref<8x32xf32, #tpu.memory_space<vmem>>, vector<8x32xf32>,
    %c3_i32 = arith.constant 3 : i32
    %420 = arith.cmpi eq, %arg1, %c3_i32 : i32
    %421 = arith.extui %420 : i1 to i32
    %c0_i32_346 = arith.constant 0 : i32
    %422 = arith.cmpi ne, %421, %c0_i32_346 : i32
    scf.if %422 {
      %c0_347 = arith.constant 0 : index
      %c0_348 = arith.constant 0 : index
      %423 = vector.load %arg23[%c0_347, %c0_348] : memref<32x128xf32, #tpu.memory_space<vmem>>, vector<32x128xf32>
      %cst_349 = arith.constant dense<0.000000e+00> : vector<8x128xf32>
      %424 = tpu.matmul %418, %423, %cst_349 {dimension_numbers = #tpu.dot_dimension_numbers<[1], [0], [0], [1], [0, 0, 1, 1], [], []>} : vector<8x32xf32>, vector<32x128xf32>, vector<8x128xf32> -> vector<8x128xf32>
      %c0_350 = arith.constant 0 : index
      %c0_351 = arith.constant 0 : index
      %425 = vector.load %arg24[%c0_350, %c0_351] : memref<1x128xf32, #tpu.memory_space<vmem>>, vector<1x128xf32>
      %426 = vector.broadcast %425 : vector<1x128xf32> to vector<8x128xf32>
      %427 = arith.addf %424, %426 : vector<8x128xf32>
      %c0_352 = arith.constant 0 : index
      %c0_353 = arith.constant 0 : index
      %428 = vector.load %arg25[%c0_352, %c0_353] : memref<8x128xf32, #tpu.memory_space<vmem>>, vector<8x128xf32>
      tpu.vector_store %arg25[%c0_352, %c0_353], %427 {strides = array<i32>} : memref<8x128xf32, #tpu.memory_space<vmem>>, vector<8x128xf32>,
    } else {
    }
    return
  }
  func.func @transform_0(%arg0: i32, %arg1: i32) -> (i32, i32) {
    %c0_i32 = arith.constant 0 : i32
    %c0_i32_0 = arith.constant 0 : i32
    return %arg0, %c0_i32 : i32, i32
  }
  func.func @transform_1(%arg0: i32, %arg1: i32) -> (i32, i32) {
    %c0_i32 = arith.constant 0 : i32
    %c0_i32_0 = arith.constant 0 : i32
    return %arg0, %c0_i32 : i32, i32
  }
  func.func @transform_2(%arg0: i32, %arg1: i32) -> (i32, i32) {
    %c0_i32 = arith.constant 0 : i32
    %c0_i32_0 = arith.constant 0 : i32
    %c0_i32_1 = arith.constant 0 : i32
    return %c0_i32, %c0_i32_0 : i32, i32
  }
  func.func @transform_3(%arg0: i32, %arg1: i32) -> (i32, i32, i32, i32) {
    %c0_i32 = arith.constant 0 : i32
    %c0_i32_0 = arith.constant 0 : i32
    %c0_i32_1 = arith.constant 0 : i32
    %c0_i32_2 = arith.constant 0 : i32
    return %arg1, %c0_i32, %c0_i32_0, %c0_i32_1 : i32, i32, i32, i32
  }
  func.func @transform_4(%arg0: i32, %arg1: i32) -> (i32, i32, i32, i32) {
    %c0_i32 = arith.constant 0 : i32
    %c0_i32_0 = arith.constant 0 : i32
    %c0_i32_1 = arith.constant 0 : i32
    %c0_i32_2 = arith.constant 0 : i32
    return %arg1, %c0_i32, %c0_i32_0, %c0_i32_1 : i32, i32, i32, i32
  }
  func.func @transform_5(%arg0: i32, %arg1: i32) -> (i32, i32, i32, i32) {
    %c0_i32 = arith.constant 0 : i32
    %c0_i32_0 = arith.constant 0 : i32
    %c0_i32_1 = arith.constant 0 : i32
    %c0_i32_2 = arith.constant 0 : i32
    return %arg1, %c0_i32, %c0_i32_0, %c0_i32_1 : i32, i32, i32, i32
  }
  func.func @transform_6(%arg0: i32, %arg1: i32) -> (i32, i32, i32) {
    %c0_i32 = arith.constant 0 : i32
    %c0_i32_0 = arith.constant 0 : i32
    %c0_i32_1 = arith.constant 0 : i32
    return %arg1, %c0_i32, %c0_i32_0 : i32, i32, i32
  }
  func.func @transform_7(%arg0: i32, %arg1: i32) -> (i32, i32, i32, i32) {
    %c0_i32 = arith.constant 0 : i32
    %c0_i32_0 = arith.constant 0 : i32
    %c0_i32_1 = arith.constant 0 : i32
    %c0_i32_2 = arith.constant 0 : i32
    return %arg1, %c0_i32, %c0_i32_0, %c0_i32_1 : i32, i32, i32, i32
  }
  func.func @transform_8(%arg0: i32, %arg1: i32) -> (i32, i32, i32, i32) {
    %c0_i32 = arith.constant 0 : i32
    %c0_i32_0 = arith.constant 0 : i32
    %c0_i32_1 = arith.constant 0 : i32
    %c0_i32_2 = arith.constant 0 : i32
    return %arg1, %c0_i32, %c0_i32_0, %c0_i32_1 : i32, i32, i32, i32
  }
  func.func @transform_9(%arg0: i32, %arg1: i32) -> (i32, i32, i32, i32) {
    %c0_i32 = arith.constant 0 : i32
    %c0_i32_0 = arith.constant 0 : i32
    %c0_i32_1 = arith.constant 0 : i32
    %c0_i32_2 = arith.constant 0 : i32
    return %arg1, %c0_i32, %c0_i32_0, %c0_i32_1 : i32, i32, i32, i32
  }
  func.func @transform_10(%arg0: i32, %arg1: i32) -> (i32, i32, i32) {
    %c0_i32 = arith.constant 0 : i32
    %c0_i32_0 = arith.constant 0 : i32
    %c0_i32_1 = arith.constant 0 : i32
    return %arg1, %c0_i32, %c0_i32_0 : i32, i32, i32
  }
  func.func @transform_11(%arg0: i32, %arg1: i32) -> (i32, i32, i32) {
    %c0_i32 = arith.constant 0 : i32
    %c0_i32_0 = arith.constant 0 : i32
    %c0_i32_1 = arith.constant 0 : i32
    return %arg1, %c0_i32, %c0_i32_0 : i32, i32, i32
  }
  func.func @transform_12(%arg0: i32, %arg1: i32) -> (i32, i32, i32) {
    %c0_i32 = arith.constant 0 : i32
    %c0_i32_0 = arith.constant 0 : i32
    %c0_i32_1 = arith.constant 0 : i32
    return %arg1, %c0_i32, %c0_i32_0 : i32, i32, i32
  }
  func.func @transform_13(%arg0: i32, %arg1: i32) -> (i32, i32, i32) {
    %c0_i32 = arith.constant 0 : i32
    %c0_i32_0 = arith.constant 0 : i32
    %c0_i32_1 = arith.constant 0 : i32
    return %arg1, %c0_i32, %c0_i32_0 : i32, i32, i32
  }
  func.func @transform_14(%arg0: i32, %arg1: i32) -> (i32, i32, i32) {
    %c0_i32 = arith.constant 0 : i32
    %c0_i32_0 = arith.constant 0 : i32
    %c0_i32_1 = arith.constant 0 : i32
    return %arg1, %c0_i32, %c0_i32_0 : i32, i32, i32
  }
  func.func @transform_15(%arg0: i32, %arg1: i32) -> (i32, i32, i32) {
    %c0_i32 = arith.constant 0 : i32
    %c0_i32_0 = arith.constant 0 : i32
    %c0_i32_1 = arith.constant 0 : i32
    return %arg1, %c0_i32, %c0_i32_0 : i32, i32, i32
  }
  func.func @transform_16(%arg0: i32, %arg1: i32) -> (i32, i32, i32) {
    %c0_i32 = arith.constant 0 : i32
    %c0_i32_0 = arith.constant 0 : i32
    %c0_i32_1 = arith.constant 0 : i32
    return %arg1, %c0_i32, %c0_i32_0 : i32, i32, i32
  }
  func.func @transform_17(%arg0: i32, %arg1: i32) -> (i32, i32, i32) {
    %c0_i32 = arith.constant 0 : i32
    %c0_i32_0 = arith.constant 0 : i32
    %c0_i32_1 = arith.constant 0 : i32
    return %arg1, %c0_i32, %c0_i32_0 : i32, i32, i32
  }
  func.func @transform_18(%arg0: i32, %arg1: i32) -> (i32, i32, i32) {
    %c0_i32 = arith.constant 0 : i32
    %c0_i32_0 = arith.constant 0 : i32
    %c0_i32_1 = arith.constant 0 : i32
    return %arg1, %c0_i32, %c0_i32_0 : i32, i32, i32
  }
  func.func @transform_19(%arg0: i32, %arg1: i32) -> (i32, i32, i32) {
    %c0_i32 = arith.constant 0 : i32
    %c0_i32_0 = arith.constant 0 : i32
    %c0_i32_1 = arith.constant 0 : i32
    return %arg1, %c0_i32, %c0_i32_0 : i32, i32, i32
  }
  func.func @transform_20(%arg0: i32, %arg1: i32) -> (i32, i32, i32) {
    %c0_i32 = arith.constant 0 : i32
    %c0_i32_0 = arith.constant 0 : i32
    %c0_i32_1 = arith.constant 0 : i32
    return %arg1, %c0_i32, %c0_i32_0 : i32, i32, i32
  }
  func.func @transform_21(%arg0: i32, %arg1: i32) -> (i32, i32) {
    %c0_i32 = arith.constant 0 : i32
    %c0_i32_0 = arith.constant 0 : i32
    %c0_i32_1 = arith.constant 0 : i32
    return %c0_i32, %c0_i32_0 : i32, i32
  }
  func.func @transform_22(%arg0: i32, %arg1: i32) -> (i32, i32) {
    %c0_i32 = arith.constant 0 : i32
    %c0_i32_0 = arith.constant 0 : i32
    %c0_i32_1 = arith.constant 0 : i32
    return %c0_i32, %c0_i32_0 : i32, i32
  }
  func.func @transform_23(%arg0: i32, %arg1: i32) -> (i32, i32) {
    %c0_i32 = arith.constant 0 : i32
    %c0_i32_0 = arith.constant 0 : i32
    return %arg0, %c0_i32 : i32, i32
  }
}

</mosaic_0001>

<llo_original>
// kernel: transformer_forward.2
$region0: #{transformer_forward.2}
  #allocation0 [shape = 'u32[]', space=smem, size = 0x4, offset = 0x4, fixed_abs, tag = 'smem constant byte address 0x4 - core index']
  #allocation1 [shape = 'u32[144,128]{1,0:T(1,128)}', space=vmem, size = 0x12000, scoped, tag = 'internal scratch']
  #allocation2 [shape = 'f32[8,32]{1,0:T(8,128)}', space=vmem, size = 0x1000, scoped, tag = 'scratch operand']
  %s0 = inlined_call_operand.vmem [shape: f32[16,32], index: 0, kind: input, shape index: {}]
  %s1 = inlined_call_operand.vmem [shape: f32[4,12,32,8], index: 1, kind: input, shape index: {}]
  %s2 = inlined_call_operand.vmem [shape: f32[4,12,1,8], index: 2, kind: input, shape index: {}]
  %s3 = inlined_call_operand.vmem [shape: f32[4,4,8,32], index: 3, kind: input, shape index: {}]
  %s4 = inlined_call_operand.vmem [shape: f32[4,1,32], index: 4, kind: input, shape index: {}]
  %s5 = inlined_call_operand.vmem [shape: f32[4,1,32], index: 5, kind: input, shape index: {}]
  %s6 = inlined_call_operand.vmem [shape: f32[4,1,32], index: 6, kind: input, shape index: {}]
  %s7 = inlined_call_operand.vmem [shape: f32[4,32,32], index: 7, kind: input, shape index: {}]
  %s8 = inlined_call_operand.vmem [shape: f32[4,1,32], index: 8, kind: input, shape index: {}]
  %s9 = inlined_call_operand.vmem [shape: f32[4,32,32], index: 9, kind: input, shape index: {}]
  %s10 = inlined_call_operand.vmem [shape: f32[4,1,32], index: 10, kind: input, shape index: {}]
  %s11 = inlined_call_operand.vmem [shape: f32[4,1,32], index: 11, kind: input, shape index: {}]
  %s12 = inlined_call_operand.vmem [shape: f32[4,1,32], index: 12, kind: input, shape index: {}]
  %s13 = inlined_call_operand.vmem [shape: f32[16,32], index: 13, kind: output, shape index: {}]
  %s14 = sld [smem:[#allocation0]]
  $region93: #{transformer_forward.2} parent=0
    _
  %s16 = ssub.s32 1, %s14
  %s17 = scalar_select 0, %s16, %s14
  loop: start=0, step=1, limit=10
  $region2: #{transformer_forward.2} parent=0 // loop_pre_header
    _
  $region3: #{transformer_forward.2} parent=0 // loop_header
    %s19 = sphi 0, %s23
    %p20 = scmp.ge.s32.totalorder %s19, 10
    %s26 = sphi 0, %s38
    %s27 = sphi 0, %s34
    %s28 = sphi 0, %s26
    %s29 = sphi 0, %s27
    %s30 = sphi 0, %s28
    %s31 = sphi 0, %s29
    %s41 = sphi 0, %s43
    %s44 = sphi 0, %s41
    %s45 = sphi 0, %s44
    %s61 = sphi 0, %s45
    %s67 = sphi 0, %s69
    %s70 = sphi 0, %s67
    %s71 = sphi 0, %s70
    %s87 = sphi 0, %s71
    %s93 = sphi 0, %s95
    %s96 = sphi 0, %s93
    %s97 = sphi 0, %s96
    %s113 = sphi 0, %s97
    %s119 = sphi 0, %s121
    %s122 = sphi 0, %s119
    %s123 = sphi 0, %s122
    %s139 = sphi 0, %s123
    %s145 = sphi 0, %s147
    %s148 = sphi 0, %s145
    %s149 = sphi 0, %s148
    %s165 = sphi 0, %s149
    %s171 = sphi 0, %s173
    %s174 = sphi 0, %s171
    %s175 = sphi 0, %s174
    %s191 = sphi 0, %s175
    %s197 = sphi 0, %s199
    %s200 = sphi 0, %s197
    %s201 = sphi 0, %s200
    %s217 = sphi 0, %s201
    %s223 = sphi 0, %s225
    %s226 = sphi 0, %s223
    %s227 = sphi 0, %s226
    %s243 = sphi 0, %s227
    %s249 = sphi 0, %s251
    %s252 = sphi 0, %s249
    %s253 = sphi 0, %s252
    %s269 = sphi 0, %s253
    %s275 = sphi 0, %s277
    %s278 = sphi 0, %s275
    %s279 = sphi 0, %s278
    %s295 = sphi 0, %s279
    %s301 = sphi 0, %s303
    %s304 = sphi 0, %s301
    %s305 = sphi 0, %s304
    %s321 = sphi 0, %s305
    %s327 = sphi 0, %s329
    %s330 = sphi 0, %s327
    %s331 = sphi 0, %s330
    %s347 = sphi 0, %s331
    %s353 = sphi 0, %s355
    %s356 = sphi 0, %s353
    %s357 = sphi 0, %s356
    %s373 = sphi 0, %s357
    %s379 = sphi 0, %s381
    %s382 = sphi 0, %s379
    %s383 = sphi 0, %s382
    %s399 = sphi 0, %s383
  $region4: #{transformer_forward.2} parent=0 // loop_header_branch
    %22 = sbr.rel (%p20) target = $region8
  $region5: #{transformer_forward.2} parent=0 // loop_body
    %s24 = ssub.s32 %s19, 1
    %s25 = ssub.s32 %s19, 2
    %s32 = sadd.s32 1, %s27
    %p33 = scmp.ge.s32.totalorder %s32, 4
    %s34 = scalar_select %p33, 0, %s32
    %s35 = sadd.s32 1, %s26
    %s36 = scalar_select %p33, %s35, %s26
    %p37 = scmp.ge.s32.totalorder %s36, 2
    %s38 = scalar_select %p37, 0, %s36
    %s39 = ssub.s32 %s26, %s38
    %p40 = scmp.eq.s32.totalorder %s39, 0
    %s42 = sadd.s32 %s41, 1
    %s43 = scalar_select %p40, %s41, %s42
    %p46 = pneg %p40
    %p47 = scmp.eq.s32.totalorder %s19, 7
    %p48 = por %p46, %p47
    %p49 = scmp.ne.s32.totalorder %s41, %s44
    %p50 = scmp.eq.s32.totalorder %s19, 0
    %p51 = por %p49, %p50
    %p52 = scmp.ne.s32.totalorder %s41, %s44
    %p53 = scmp.eq.s32.totalorder %s24, 7
    %p54 = por %p52, %p53
    %p55 = scmp.ne.s32.totalorder %s44, %s45
    %p56 = scmp.eq.s32.totalorder %s24, 0
    %p57 = por %p55, %p56
    %p58 = scmp.ne.s32.totalorder %s44, %s45
    %p59 = scmp.eq.s32.totalorder %s25, 7
    %p60 = por %p58, %p59
    %p62 = scmp.ne.s32.totalorder %s45, %s61
    %p63 = scmp.eq.s32.totalorder %s25, 0
    %p64 = por %p62, %p63
    %s65 = ssub.s32 %s27, %s34
    %p66 = scmp.eq.s32.totalorder %s65, 0
    %s68 = sadd.s32 %s67, 1
    %s69 = scalar_select %p66, %s67, %s68
    %p72 = pneg %p66
    %p73 = scmp.eq.s32.totalorder %s19, 7
    %p74 = por %p72, %p73
    %p75 = scmp.ne.s32.totalorder %s67, %s70
    %p76 = scmp.eq.s32.totalorder %s19, 0
    %p77 = por %p75, %p76
    %p78 = scmp.ne.s32.totalorder %s67, %s70
    %p79 = scmp.eq.s32.totalorder %s24, 7
    %p80 = por %p78, %p79
    %p81 = scmp.ne.s32.totalorder %s70, %s71
    %p82 = scmp.eq.s32.totalorder %s24, 0
    %p83 = por %p81, %p82
    %p84 = scmp.ne.s32.totalorder %s70, %s71
    %p85 = scmp.eq.s32.totalorder %s25, 7
    %p86 = por %p84, %p85
    %p88 = scmp.ne.s32.totalorder %s71, %s87
    %p89 = scmp.eq.s32.totalorder %s25, 0
    %p90 = por %p88, %p89
    %s91 = ssub.s32 %s27, %s34
    %p92 = scmp.eq.s32.totalorder %s91, 0
    %s94 = sadd.s32 %s93, 1
    %s95 = scalar_select %p92, %s93, %s94
    %p98 = pneg %p92
    %p99 = scmp.eq.s32.totalorder %s19, 7
    %p100 = por %p98, %p99
    %p101 = scmp.ne.s32.totalorder %s93, %s96
    %p102 = scmp.eq.s32.totalorder %s19, 0
    %p103 = por %p101, %p102
    %p104 = scmp.ne.s32.totalorder %s93, %s96
    %p105 = scmp.eq.s32.totalorder %s24, 7
    %p106 = por %p104, %p105
    %p107 = scmp.ne.s32.totalorder %s96, %s97
    %p108 = scmp.eq.s32.totalorder %s24, 0
    %p109 = por %p107, %p108
    %p110 = scmp.ne.s32.totalorder %s96, %s97
    %p111 = scmp.eq.s32.totalorder %s25, 7
    %p112 = por %p110, %p111
    %p114 = scmp.ne.s32.totalorder %s97, %s113
    %p115 = scmp.eq.s32.totalorder %s25, 0
    %p116 = por %p114, %p115
    %s117 = ssub.s32 %s27, %s34
    %p118 = scmp.eq.s32.totalorder %s117, 0
    %s120 = sadd.s32 %s119, 1
    %s121 = scalar_select %p118, %s119, %s120
    %p124 = pneg %p118
    %p125 = scmp.eq.s32.totalorder %s19, 7
    %p126 = por %p124, %p125
    %p127 = scmp.ne.s32.totalorder %s119, %s122
    %p128 = scmp.eq.s32.totalorder %s19, 0
    %p129 = por %p127, %p128
    %p130 = scmp.ne.s32.totalorder %s119, %s122
    %p131 = scmp.eq.s32.totalorder %s24, 7
    %p132 = por %p130, %p131
    %p133 = scmp.ne.s32.totalorder %s122, %s123
    %p134 = scmp.eq.s32.totalorder %s24, 0
    %p135 = por %p133, %p134
    %p136 = scmp.ne.s32.totalorder %s122, %s123
    %p137 = scmp.eq.s32.totalorder %s25, 7
    %p138 = por %p136, %p137
    %p140 = scmp.ne.s32.totalorder %s123, %s139
    %p141 = scmp.eq.s32.totalorder %s25, 0
    %p142 = por %p140, %p141
    %s143 = ssub.s32 %s27, %s34
    %p144 = scmp.eq.s32.totalorder %s143, 0
    %s146 = sadd.s32 %s145, 1
    %s147 = scalar_select %p144, %s145, %s146
    %p150 = pneg %p144
    %p151 = scmp.eq.s32.totalorder %s19, 7
    %p152 = por %p150, %p151
    %p153 = scmp.ne.s32.totalorder %s145, %s148
    %p154 = scmp.eq.s32.totalorder %s19, 0
    %p155 = por %p153, %p154
    %p156 = scmp.ne.s32.totalorder %s145, %s148
    %p157 = scmp.eq.s32.totalorder %s24, 7
    %p158 = por %p156, %p157
    %p159 = scmp.ne.s32.totalorder %s148, %s149
    %p160 = scmp.eq.s32.totalorder %s24, 0
    %p161 = por %p159, %p160
    %p162 = scmp.ne.s32.totalorder %s148, %s149
    %p163 = scmp.eq.s32.totalorder %s25, 7
    %p164 = por %p162, %p163
    %p166 = scmp.ne.s32.totalorder %s149, %s165
    %p167 = scmp.eq.s32.totalorder %s25, 0
    %p168 = por %p166, %p167
    %s169 = ssub.s32 %s27, %s34
    %p170 = scmp.eq.s32.totalorder %s169, 0
    %s172 = sadd.s32 %s171, 1
    %s173 = scalar_select %p170, %s171, %s172
    %p176 = pneg %p170
    %p177 = scmp.eq.s32.totalorder %s19, 7
    %p178 = por %p176, %p177
    %p179 = scmp.ne.s32.totalorder %s171, %s174
    %p180 = scmp.eq.s32.totalorder %s19, 0
    %p181 = por %p179, %p180
    %p182 = scmp.ne.s32.totalorder %s171, %s174
    %p183 = scmp.eq.s32.totalorder %s24, 7
    %p184 = por %p182, %p183
    %p185 = scmp.ne.s32.totalorder %s174, %s175
    %p186 = scmp.eq.s32.totalorder %s24, 0
    %p187 = por %p185, %p186
    %p188 = scmp.ne.s32.totalorder %s174, %s175
    %p189 = scmp.eq.s32.totalorder %s25, 7
    %p190 = por %p188, %p189
    %p192 = scmp.ne.s32.totalorder %s175, %s191
    %p193 = scmp.eq.s32.totalorder %s25, 0
    %p194 = por %p192, %p193
    %s195 = ssub.s32 %s27, %s34
    %p196 = scmp.eq.s32.totalorder %s195, 0
    %s198 = sadd.s32 %s197, 1
    %s199 = scalar_select %p196, %s197, %s198
    %p202 = pneg %p196
    %p203 = scmp.eq.s32.totalorder %s19, 7
    %p204 = por %p202, %p203
    %p205 = scmp.ne.s32.totalorder %s197, %s200
    %p206 = scmp.eq.s32.totalorder %s19, 0
    %p207 = por %p205, %p206
    %p208 = scmp.ne.s32.totalorder %s197, %s200
    %p209 = scmp.eq.s32.totalorder %s24, 7
    %p210 = por %p208, %p209
    %p211 = scmp.ne.s32.totalorder %s200, %s201
    %p212 = scmp.eq.s32.totalorder %s24, 0
    %p213 = por %p211, %p212
    %p214 = scmp.ne.s32.totalorder %s200, %s201
    %p215 = scmp.eq.s32.totalorder %s25, 7
    %p216 = por %p214, %p215
    %p218 = scmp.ne.s32.totalorder %s201, %s217
    %p219 = scmp.eq.s32.totalorder %s25, 0
    %p220 = por %p218, %p219
    %s221 = ssub.s32 %s27, %s34
    %p222 = scmp.eq.s32.totalorder %s221, 0
    %s224 = sadd.s32 %s223, 1
    %s225 = scalar_select %p222, %s223, %s224
    %p228 = pneg %p222
    %p229 = scmp.eq.s32.totalorder %s19, 7
    %p230 = por %p228, %p229
    %p231 = scmp.ne.s32.totalorder %s223, %s226
    %p232 = scmp.eq.s32.totalorder %s19, 0
    %p233 = por %p231, %p232
    %p234 = scmp.ne.s32.totalorder %s223, %s226
    %p235 = scmp.eq.s32.totalorder %s24, 7
    %p236 = por %p234, %p235
    %p237 = scmp.ne.s32.totalorder %s226, %s227
    %p238 = scmp.eq.s32.totalorder %s24, 0
    %p239 = por %p237, %p238
    %p240 = scmp.ne.s32.totalorder %s226, %s227
    %p241 = scmp.eq.s32.totalorder %s25, 7
    %p242 = por %p240, %p241
    %p244 = scmp.ne.s32.totalorder %s227, %s243
    %p245 = scmp.eq.s32.totalorder %s25, 0
    %p246 = por %p244, %p245
    %s247 = ssub.s32 %s27, %s34
    %p248 = scmp.eq.s32.totalorder %s247, 0
    %s250 = sadd.s32 %s249, 1
    %s251 = scalar_select %p248, %s249, %s250
    %p254 = pneg %p248
    %p255 = scmp.eq.s32.totalorder %s19, 7
    %p256 = por %p254, %p255
    %p257 = scmp.ne.s32.totalorder %s249, %s252
    %p258 = scmp.eq.s32.totalorder %s19, 0
    %p259 = por %p257, %p258
    %p260 = scmp.ne.s32.totalorder %s249, %s252
    %p261 = scmp.eq.s32.totalorder %s24, 7
    %p262 = por %p260, %p261
    %p263 = scmp.ne.s32.totalorder %s252, %s253
    %p264 = scmp.eq.s32.totalorder %s24, 0
    %p265 = por %p263, %p264
    %p266 = scmp.ne.s32.totalorder %s252, %s253
    %p267 = scmp.eq.s32.totalorder %s25, 7
    %p268 = por %p266, %p267
    %p270 = scmp.ne.s32.totalorder %s253, %s269
    %p271 = scmp.eq.s32.totalorder %s25, 0
    %p272 = por %p270, %p271
    %s273 = ssub.s32 %s27, %s34
    %p274 = scmp.eq.s32.totalorder %s273, 0
    %s276 = sadd.s32 %s275, 1
    %s277 = scalar_select %p274, %s275, %s276
    %p280 = pneg %p274
    %p281 = scmp.eq.s32.totalorder %s19, 7
    %p282 = por %p280, %p281
    %p283 = scmp.ne.s32.totalorder %s275, %s278
    %p284 = scmp.eq.s32.totalorder %s19, 0
    %p285 = por %p283, %p284
    %p286 = scmp.ne.s32.totalorder %s275, %s278
    %p287 = scmp.eq.s32.totalorder %s24, 7
    %p288 = por %p286, %p287
    %p289 = scmp.ne.s32.totalorder %s278, %s279
    %p290 = scmp.eq.s32.totalorder %s24, 0
    %p291 = por %p289, %p290
    %p292 = scmp.ne.s32.totalorder %s278, %s279
    %p293 = scmp.eq.s32.totalorder %s25, 7
    %p294 = por %p292, %p293
    %p296 = scmp.ne.s32.totalorder %s279, %s295
    %p297 = scmp.eq.s32.totalorder %s25, 0
    %p298 = por %p296, %p297
    %s299 = ssub.s32 %s27, %s34
    %p300 = scmp.eq.s32.totalorder %s299, 0
    %s302 = sadd.s32 %s301, 1
    %s303 = scalar_select %p300, %s301, %s302
    %p306 = pneg %p300
    %p307 = scmp.eq.s32.totalorder %s19, 7
    %p308 = por %p306, %p307
    %p309 = scmp.ne.s32.totalorder %s301, %s304
    %p310 = scmp.eq.s32.totalorder %s19, 0
    %p311 = por %p309, %p310
    %p312 = scmp.ne.s32.totalorder %s301, %s304
    %p313 = scmp.eq.s32.totalorder %s24, 7
    %p314 = por %p312, %p313
    %p315 = scmp.ne.s32.totalorder %s304, %s305
    %p316 = scmp.eq.s32.totalorder %s24, 0
    %p317 = por %p315, %p316
    %p318 = scmp.ne.s32.totalorder %s304, %s305
    %p319 = scmp.eq.s32.totalorder %s25, 7
    %p320 = por %p318, %p319
    %p322 = scmp.ne.s32.totalorder %s305, %s321
    %p323 = scmp.eq.s32.totalorder %s25, 0
    %p324 = por %p322, %p323
    %s325 = ssub.s32 %s27, %s34
    %p326 = scmp.eq.s32.totalorder %s325, 0
    %s328 = sadd.s32 %s327, 1
    %s329 = scalar_select %p326, %s327, %s328
    %p332 = pneg %p326
    %p333 = scmp.eq.s32.totalorder %s19, 7
    %p334 = por %p332, %p333
    %p335 = scmp.ne.s32.totalorder %s327, %s330
    %p336 = scmp.eq.s32.totalorder %s19, 0
    %p337 = por %p335, %p336
    %p338 = scmp.ne.s32.totalorder %s327, %s330
    %p339 = scmp.eq.s32.totalorder %s24, 7
    %p340 = por %p338, %p339
    %p341 = scmp.ne.s32.totalorder %s330, %s331
    %p342 = scmp.eq.s32.totalorder %s24, 0
    %p343 = por %p341, %p342
    %p344 = scmp.ne.s32.totalorder %s330, %s331
    %p345 = scmp.eq.s32.totalorder %s25, 7
    %p346 = por %p344, %p345
    %p348 = scmp.ne.s32.totalorder %s331, %s347
    %p349 = scmp.eq.s32.totalorder %s25, 0
    %p350 = por %p348, %p349
    %s351 = ssub.s32 %s27, %s34
    %p352 = scmp.eq.s32.totalorder %s351, 0
    %s354 = sadd.s32 %s353, 1
    %s355 = scalar_select %p352, %s353, %s354
    %p358 = pneg %p352
    %p359 = scmp.eq.s32.totalorder %s19, 7
    %p360 = por %p358, %p359
    %p361 = scmp.ne.s32.totalorder %s353, %s356
    %p362 = scmp.eq.s32.totalorder %s19, 0
    %p363 = por %p361, %p362
    %p364 = scmp.ne.s32.totalorder %s353, %s356
    %p365 = scmp.eq.s32.totalorder %s24, 7
    %p366 = por %p364, %p365
    %p367 = scmp.ne.s32.totalorder %s356, %s357
    %p368 = scmp.eq.s32.totalorder %s24, 0
    %p369 = por %p367, %p368
    %p370 = scmp.ne.s32.totalorder %s356, %s357
    %p371 = scmp.eq.s32.totalorder %s25, 7
    %p372 = por %p370, %p371
    %p374 = scmp.ne.s32.totalorder %s357, %s373
    %p375 = scmp.eq.s32.totalorder %s25, 0
    %p376 = por %p374, %p375
    %s377 = ssub.s32 %s26, %s38
    %p378 = scmp.eq.s32.totalorder %s377, 0
    %s380 = sadd.s32 %s379, 1
    %s381 = scalar_select %p378, %s379, %s380
    %p384 = pneg %p378
    %p385 = scmp.eq.s32.totalorder %s19, 7
    %p386 = por %p384, %p385
    %p387 = scmp.ne.s32.totalorder %s379, %s382
    %p388 = scmp.eq.s32.totalorder %s19, 0
    %p389 = por %p387, %p388
    %p390 = scmp.ne.s32.totalorder %s379, %s382
    %p391 = scmp.eq.s32.totalorder %s24, 7
    %p392 = por %p390, %p391
    %p393 = scmp.ne.s32.totalorder %s382, %s383
    %p394 = scmp.eq.s32.totalorder %s24, 0
    %p395 = por %p393, %p394
    %p396 = scmp.ne.s32.totalorder %s382, %s383
    %p397 = scmp.eq.s32.totalorder %s25, 7
    %p398 = por %p396, %p397
    %p400 = scmp.ne.s32.totalorder %s383, %s399
    %p401 = scmp.eq.s32.totalorder %s25, 0
    %p402 = por %p400, %p401
    %p403 = scmp.le.s32.totalorder 1, %s19
    %p404 = scmp.lt.s32.totalorder %s19, 9
    %p405 = pnand %p403, %p404
    %p406 = pneg %p405
    // Predicated region
    $region9: #{transformer_forward.2} parent=5 // pred_check
      _
    $region10: #{transformer_forward.2} parent=5 // pred_check_branch
      %408 = sbr.rel (%p405) target = $region12
    $region11: #{transformer_forward.2} parent=5 // pred_region
      %s409 = ssub.s32 %s19, 1
    $region12: #{transformer_forward.2} parent=5 // pred_fallthru
      _
    %p410 = scmp.lt.s32.totalorder %s19, 8
    // Predicated region
    $region13: #{transformer_forward.2} parent=5 // pred_check
      %p411 = pneg %p410
    $region14: #{transformer_forward.2} parent=5 // pred_check_branch
      %413 = sbr.rel (%p411) target = $region16
    $region15: #{transformer_forward.2} parent=5 // pred_region
      // Predicated region
      $region17: #{transformer_forward.2} parent=15 // pred_check
        %p414 = pneg %p51
      $region18: #{transformer_forward.2} parent=15 // pred_check_branch
        %416 = sbr.rel (%p414) target = $region20
      $region19: #{transformer_forward.2} parent=15 // pred_region
        %p417 = scmp.lt.s32.totalorder %s26, 1
        %s418 = scalar_select %p417, %s26, 1
        %s419 = smul.addr %s418, 8
        %s420 = scalar_lea.vmem %s0, %s419
      $region20: #{transformer_forward.2} parent=15 // pred_fallthru
        _
      // Predicated region
      $region21: #{transformer_forward.2} parent=15 // pred_check
        %p421 = pneg %p77
      $region22: #{transformer_forward.2} parent=15 // pred_check_branch
        %423 = sbr.rel (%p421) target = $region24
      $region23: #{transformer_forward.2} parent=15 // pred_region
        %p424 = scmp.lt.s32.totalorder %s27, 3
        %s425 = scalar_select %p424, %s27, 3
        %s426 = smul.addr %s425, 48
        %s427 = smul.addr %s426, 8
        %s428 = scalar_lea.vmem %s1, %s427
      $region24: #{transformer_forward.2} parent=15 // pred_fallthru
        _
      // Predicated region
      $region25: #{transformer_forward.2} parent=15 // pred_check
        %p429 = pneg %p103
      $region26: #{transformer_forward.2} parent=15 // pred_check_branch
        %431 = sbr.rel (%p429) target = $region28
      $region27: #{transformer_forward.2} parent=15 // pred_region
        %p432 = scmp.lt.s32.totalorder %s27, 3
        %s433 = scalar_select %p432, %s27, 3
        %s434 = smul.addr %s433, 12
        %s435 = scalar_lea.vmem %s2, %s434
      $region28: #{transformer_forward.2} parent=15 // pred_fallthru
        _
      // Predicated region
      $region29: #{transformer_forward.2} parent=15 // pred_check
        %p436 = pneg %p129
      $region30: #{transformer_forward.2} parent=15 // pred_check_branch
        %438 = sbr.rel (%p436) target = $region32
      $region31: #{transformer_forward.2} parent=15 // pred_region
        %p439 = scmp.lt.s32.totalorder %s27, 3
        %s440 = scalar_select %p439, %s27, 3
        %s441 = smul.addr %s440, 4
        %s442 = smul.addr %s441, 8
        %s443 = scalar_lea.vmem %s3, %s442
      $region32: #{transformer_forward.2} parent=15 // pred_fallthru
        _
      // Predicated region
      $region33: #{transformer_forward.2} parent=15 // pred_check
        %p444 = pneg %p155
      $region34: #{transformer_forward.2} parent=15 // pred_check_branch
        %446 = sbr.rel (%p444) target = $region36
      $region35: #{transformer_forward.2} parent=15 // pred_region
        %p447 = scmp.lt.s32.totalorder %s27, 3
        %s448 = scalar_select %p447, %s27, 3
        %s449 = scalar_lea.vmem %s4, %s448
      $region36: #{transformer_forward.2} parent=15 // pred_fallthru
        _
      // Predicated region
      $region37: #{transformer_forward.2} parent=15 // pred_check
        %p450 = pneg %p181
      $region38: #{transformer_forward.2} parent=15 // pred_check_branch
        %452 = sbr.rel (%p450) target = $region40
      $region39: #{transformer_forward.2} parent=15 // pred_region
        %p453 = scmp.lt.s32.totalorder %s27, 3
        %s454 = scalar_select %p453, %s27, 3
        %s455 = scalar_lea.vmem %s5, %s454
      $region40: #{transformer_forward.2} parent=15 // pred_fallthru
        _
      // Predicated region
      $region41: #{transformer_forward.2} parent=15 // pred_check
        %p456 = pneg %p207
      $region42: #{transformer_forward.2} parent=15 // pred_check_branch
        %458 = sbr.rel (%p456) target = $region44
      $region43: #{transformer_forward.2} parent=15 // pred_region
        %p459 = scmp.lt.s32.totalorder %s27, 3
        %s460 = scalar_select %p459, %s27, 3
        %s461 = scalar_lea.vmem %s6, %s460
      $region44: #{transformer_forward.2} parent=15 // pred_fallthru
        _
      // Predicated region
      $region45: #{transformer_forward.2} parent=15 // pred_check
        %p462 = pneg %p233
      $region46: #{transformer_forward.2} parent=15 // pred_check_branch
        %464 = sbr.rel (%p462) target = $region48
      $region47: #{transformer_forward.2} parent=15 // pred_region
        %p465 = scmp.lt.s32.totalorder %s27, 3
        %s466 = scalar_select %p465, %s27, 3
        %s467 = smul.addr %s466, 4
        %s468 = smul.addr %s467, 8
        %s469 = scalar_lea.vmem %s7, %s468
      $region48: #{transformer_forward.2} parent=15 // pred_fallthru
        _
      // Predicated region
      $region49: #{transformer_forward.2} parent=15 // pred_check
        %p470 = pneg %p259
      $region50: #{transformer_forward.2} parent=15 // pred_check_branch
        %472 = sbr.rel (%p470) target = $region52
      $region51: #{transformer_forward.2} parent=15 // pred_region
        %p473 = scmp.lt.s32.totalorder %s27, 3
        %s474 = scalar_select %p473, %s27, 3
        %s475 = scalar_lea.vmem %s8, %s474
      $region52: #{transformer_forward.2} parent=15 // pred_fallthru
        _
      // Predicated region
      $region53: #{transformer_forward.2} parent=15 // pred_check
        %p476 = pneg %p285
      $region54: #{transformer_forward.2} parent=15 // pred_check_branch
        %478 = sbr.rel (%p476) target = $region56
      $region55: #{transformer_forward.2} parent=15 // pred_region
        %p479 = scmp.lt.s32.totalorder %s27, 3
        %s480 = scalar_select %p479, %s27, 3
        %s481 = smul.addr %s480, 4
        %s482 = smul.addr %s481, 8
        %s483 = scalar_lea.vmem %s9, %s482
      $region56: #{transformer_forward.2} parent=15 // pred_fallthru
        _
      // Predicated region
      $region57: #{transformer_forward.2} parent=15 // pred_check
        %p484 = pneg %p311
      $region58: #{transformer_forward.2} parent=15 // pred_check_branch
        %486 = sbr.rel (%p484) target = $region60
      $region59: #{transformer_forward.2} parent=15 // pred_region
        %p487 = scmp.lt.s32.totalorder %s27, 3
        %s488 = scalar_select %p487, %s27, 3
        %s489 = scalar_lea.vmem %s10, %s488
      $region60: #{transformer_forward.2} parent=15 // pred_fallthru
        _
      // Predicated region
      $region61: #{transformer_forward.2} parent=15 // pred_check
        %p490 = pneg %p337
      $region62: #{transformer_forward.2} parent=15 // pred_check_branch
        %492 = sbr.rel (%p490) target = $region64
      $region63: #{transformer_forward.2} parent=15 // pred_region
        %p493 = scmp.lt.s32.totalorder %s27, 3
        %s494 = scalar_select %p493, %s27, 3
        %s495 = scalar_lea.vmem %s11, %s494
      $region64: #{transformer_forward.2} parent=15 // pred_fallthru
        _
      // Predicated region
      $region65: #{transformer_forward.2} parent=15 // pred_check
        %p496 = pneg %p363
      $region66: #{transformer_forward.2} parent=15 // pred_check_branch
        %498 = sbr.rel (%p496) target = $region68
      $region67: #{transformer_forward.2} parent=15 // pred_region
        %p499 = scmp.lt.s32.totalorder %s27, 3
        %s500 = scalar_select %p499, %s27, 3
        %s501 = scalar_lea.vmem %s12, %s500
      $region68: #{transformer_forward.2} parent=15 // pred_fallthru
        _
    $region16: #{transformer_forward.2} parent=5 // pred_fallthru
      _
    %p502 = scmp.le.s32.totalorder 1, %s19
    %p503 = scmp.lt.s32.totalorder %s19, 9
    %p504 = pnand %p502, %p503
    %p505 = pneg %p504
    // Predicated region
    $region69: #{transformer_forward.2} parent=5 // pred_check
      _
    $region70: #{transformer_forward.2} parent=5 // pred_check_branch
      %507 = sbr.rel (%p504) target = $region72
    $region71: #{transformer_forward.2} parent=5 // pred_region
      %s508 = ssub.s32 %s19, 1
      %p509 = scmp.lt.s32.totalorder %s28, 1
      %s510 = scalar_select %p509, %s28, 1
      %s511 = smul.addr %s510, 8
      %s512 = scalar_lea.vmem %s0, %s511
      %p513 = pneg %p57
      %p514 = pneg %p54
      %p515 = scmp.lt.s32.totalorder %s29, 3
      %s516 = scalar_select %p515, %s29, 3
      %s517 = smul.addr %s516, 48
      %s518 = smul.addr %s517, 8
      %s519 = scalar_lea.vmem %s1, %s518
      %p520 = pneg %p83
      %p521 = pneg %p80
      %p522 = scmp.lt.s32.totalorder %s29, 3
      %s523 = scalar_select %p522, %s29, 3
      %s524 = smul.addr %s523, 12
      %s525 = scalar_lea.vmem %s2, %s524
      %p526 = pneg %p109
      %p527 = pneg %p106
      %p528 = scmp.lt.s32.totalorder %s29, 3
      %s529 = scalar_select %p528, %s29, 3
      %s530 = smul.addr %s529, 4
      %s531 = smul.addr %s530, 8
      %s532 = scalar_lea.vmem %s3, %s531
      %p533 = pneg %p135
      %p534 = pneg %p132
      %p535 = scmp.lt.s32.totalorder %s29, 3
      %s536 = scalar_select %p535, %s29, 3
      %s537 = scalar_lea.vmem %s4, %s536
      %p538 = pneg %p161
      %p539 = pneg %p158
      %p540 = scmp.lt.s32.totalorder %s29, 3
      %s541 = scalar_select %p540, %s29, 3
      %s542 = scalar_lea.vmem %s5, %s541
      %p543 = pneg %p187
      %p544 = pneg %p184
      %p545 = scmp.lt.s32.totalorder %s29, 3
      %s546 = scalar_select %p545, %s29, 3
      %s547 = scalar_lea.vmem %s6, %s546
      %p548 = pneg %p213
      %p549 = pneg %p210
      %p550 = scmp.lt.s32.totalorder %s29, 3
      %s551 = scalar_select %p550, %s29, 3
      %s552 = smul.addr %s551, 4
      %s553 = smul.addr %s552, 8
      %s554 = scalar_lea.vmem %s7, %s553
      %p555 = pneg %p239
      %p556 = pneg %p236
      %p557 = scmp.lt.s32.totalorder %s29, 3
      %s558 = scalar_select %p557, %s29, 3
      %s559 = scalar_lea.vmem %s8, %s558
      %p560 = pneg %p265
      %p561 = pneg %p262
      %p562 = scmp.lt.s32.totalorder %s29, 3
      %s563 = scalar_select %p562, %s29, 3
      %s564 = smul.addr %s563, 4
      %s565 = smul.addr %s564, 8
      %s566 = scalar_lea.vmem %s9, %s565
      %p567 = pneg %p291
      %p568 = pneg %p288
      %p569 = scmp.lt.s32.totalorder %s29, 3
      %s570 = scalar_select %p569, %s29, 3
      %s571 = scalar_lea.vmem %s10, %s570
      %p572 = pneg %p317
      %p573 = pneg %p314
      %p574 = scmp.lt.s32.totalorder %s29, 3
      %s575 = scalar_select %p574, %s29, 3
      %s576 = scalar_lea.vmem %s11, %s575
      %p577 = pneg %p343
      %p578 = pneg %p340
      %p579 = scmp.lt.s32.totalorder %s29, 3
      %s580 = scalar_select %p579, %s29, 3
      %s581 = scalar_lea.vmem %s12, %s580
      %p582 = pneg %p369
      %p583 = pneg %p366
      %p584 = pneg %p395
      %p585 = pneg %p392
      %p586 = scmp.lt.s32.totalorder %s28, 1
      %s587 = scalar_select %p586, %s28, 1
      %s588 = smul.addr %s587, 8
      %s589 = scalar_lea.vmem %s13, %s588
      %p590 = scmp.lt.s32.totalorder %s28, 1
      %s591 = scalar_select %p590, %s28, 1
      %s592 = smul.addr %s591, 8
      %s593 = scalar_lea.vmem %s0, %s592
      %p594 = scmp.lt.s32.totalorder %s29, 3
      %s595 = scalar_select %p594, %s29, 3
      %s596 = smul.addr %s595, 48
      %s597 = smul.addr %s596, 8
      %s598 = scalar_lea.vmem %s1, %s597
      %p599 = scmp.lt.s32.totalorder %s29, 3
      %s600 = scalar_select %p599, %s29, 3
      %s601 = smul.addr %s600, 12
      %s602 = scalar_lea.vmem %s2, %s601
      %p603 = scmp.lt.s32.totalorder %s29, 3
      %s604 = scalar_select %p603, %s29, 3
      %s605 = smul.addr %s604, 4
      %s606 = smul.addr %s605, 8
      %s607 = scalar_lea.vmem %s3, %s606
      %p608 = scmp.lt.s32.totalorder %s29, 3
      %s609 = scalar_select %p608, %s29, 3
      %s610 = scalar_lea.vmem %s4, %s609
      %p611 = scmp.lt.s32.totalorder %s29, 3
      %s612 = scalar_select %p611, %s29, 3
      %s613 = scalar_lea.vmem %s5, %s612
      %p614 = scmp.lt.s32.totalorder %s29, 3
      %s615 = scalar_select %p614, %s29, 3
      %s616 = scalar_lea.vmem %s6, %s615
      %p617 = scmp.lt.s32.totalorder %s29, 3
      %s618 = scalar_select %p617, %s29, 3
      %s619 = smul.addr %s618, 4
      %s620 = smul.addr %s619, 8
      %s621 = scalar_lea.vmem %s7, %s620
      %p622 = scmp.lt.s32.totalorder %s29, 3
      %s623 = scalar_select %p622, %s29, 3
      %s624 = scalar_lea.vmem %s8, %s623
      %p625 = scmp.lt.s32.totalorder %s29, 3
      %s626 = scalar_select %p625, %s29, 3
      %s627 = smul.addr %s626, 4
      %s628 = smul.addr %s627, 8
      %s629 = scalar_lea.vmem %s9, %s628
      %p630 = scmp.lt.s32.totalorder %s29, 3
      %s631 = scalar_select %p630, %s29, 3
      %s632 = scalar_lea.vmem %s10, %s631
      %p633 = scmp.lt.s32.totalorder %s29, 3
      %s634 = scalar_select %p633, %s29, 3
      %s635 = scalar_lea.vmem %s11, %s634
      %p636 = scmp.lt.s32.totalorder %s29, 3
      %s637 = scalar_select %p636, %s29, 3
      %s638 = scalar_lea.vmem %s12, %s637
      %p639 = scmp.lt.s32.totalorder %s28, 1
      %s640 = scalar_select %p639, %s28, 1
      %s641 = smul.addr %s640, 8
      %s642 = scalar_lea.vmem %s13, %s641
      %p643 = scmp.eq.s32.totalorder %s29, 0
      // Predicated region
      $region73: #{transformer_forward.2} parent=71 // pred_check
        %p644 = pneg %p643
      $region74: #{transformer_forward.2} parent=71 // pred_check_branch
        %646 = sbr.rel (%p644) target = $region76
      $region75: #{transformer_forward.2} parent=71 // pred_region
        %v647 = vld [vmem:[%s593] sm:$0xff]
        %vm648 = vcmask 261120
        %649 = vst.msk [vmem:[#allocation2] sm:$0xff] %vm648, %v647
      $region76: #{transformer_forward.2} parent=71 // pred_fallthru
        _
      %v650 = vld [vmem:[#allocation2] sm:$0xff]
      %v651 = vld [vmem:[%s598] sm:$0xff]
      %v652 = vld [vmem:[%s598 + $0x8] sm:$0xff]
      %v653 = vld [vmem:[%s598 + $0x10] sm:$0xff]
      %v654 = vld [vmem:[%s598 + $0x18] sm:$0xff]
      %v655 = vld [vmem:[%s602] sm:$0x1]
      %s656 = scalar_lea.vmem %s598, 128
      %v657 = vld [vmem:[%s656] sm:$0xff]
      %v658 = vld [vmem:[%s656 + $0x8] sm:$0xff]
      %v659 = vld [vmem:[%s656 + $0x10] sm:$0xff]
      %v660 = vld [vmem:[%s656 + $0x18] sm:$0xff]
      %s661 = scalar_lea.vmem %s602, 4
      %v662 = vld [vmem:[%s661] sm:$0x1]
      %s663 = scalar_lea.vmem %s598, 256
      %v664 = vld [vmem:[%s663] sm:$0xff]
      %v665 = vld [vmem:[%s663 + $0x8] sm:$0xff]
      %v666 = vld [vmem:[%s663 + $0x10] sm:$0xff]
      %v667 = vld [vmem:[%s663 + $0x18] sm:$0xff]
      %s668 = scalar_lea.vmem %s602, 8
      %v669 = vld [vmem:[%s668] sm:$0x1]
      %v671 = vlaneseq
      %v672 = vshrl.u32 %v671, 7
      %v673 = vsub.s32 0, %v672
      %v674 = vrot.slane %v655, %v673
      %vm676 = vcmask 261120
      %v678 = vsel %vm676, %v650, 0
      %680 = vmatprep.subr.mxu0 0.0
      %681 = vmatpush1.msra.mxu0 %v651
      %682 = vmatprep.subr.mxu0 0.0
      %683 = vmatpush1.msra.mxu0 %v652
      %684 = vmatprep.subr.mxu0 0.0
      %685 = vmatpush1.msra.mxu0 %v653
      %686 = vmatprep.subr.mxu0 0.0
      %687 = vmatpush1.msra.mxu0 %v654
      %688 = vmatprep.subr.mxu0 0.0
      %689 = vmatpush1.msra.mxu0 0.0
      %690 = vmatprep.subr.mxu0 0.0
      %691 = vmatpush1.msra.mxu0 0.0
      %692 = vmatprep.subr.mxu0 0.0
      %693 = vmatpush1.msra.mxu0 0.0
      %694 = vmatprep.subr.mxu0 0.0
      %695 = vmatpush1.msra.mxu0 0.0
      %696 = vmatprep.subr.mxu0 0.0
      %697 = vmatpush1.msra.mxu0 0.0
      %698 = vmatprep.subr.mxu0 0.0
      %699 = vmatpush1.msra.mxu0 0.0
      %700 = vmatprep.subr.mxu0 0.0
      %701 = vmatpush1.msra.mxu0 0.0
      %702 = vmatprep.subr.mxu0 0.0
      %703 = vmatpush1.msra.mxu0 0.0
      %704 = vmatprep.subr.mxu0 0.0
      %705 = vmatpush1.msra.mxu0 0.0
      %706 = vmatprep.subr.mxu0 0.0
      %707 = vmatpush1.msra.mxu0 0.0
      %708 = vmatprep.subr.mxu0 0.0
      %709 = vmatpush1.msra.mxu0 0.0
      %710 = vmatprep.subr.mxu0 0.0
      %711 = vmatpush1.msra.mxu0 0.0
      %712 = vmatprep.subr.mxu0 0.0
      %713 = vmatpush1.msra.mxu0 0.0
      %714 = vmatprep.subr.mxu0 0.0
      %715 = vmatpush1.msra.mxu0 0.0
      %716 = vmatprep.subr.mxu0 0.0
      %717 = vmatpush1.msra.mxu0 0.0
      %718 = vmatprep.subr.mxu0 0.0
      %719 = vmatpush1.msra.mxu0 0.0
      %720 = vmatprep.subr.mxu0 0.0
      %721 = vmatpush1.msra.mxu0 0.0
      %722 = vmatprep.subr.mxu0 0.0
      %723 = vmatpush1.msra.mxu0 0.0
      %724 = vmatprep.subr.mxu0 0.0
      %725 = vmatpush1.msra.mxu0 0.0
      %726 = vmatprep.subr.mxu0 0.0
      %727 = vmatpush1.msra.mxu0 0.0
      %728 = vmatprep.subr.mxu0 0.0
      %729 = vmatpush1.msra.mxu0 0.0
      %730 = vmatprep.subr.mxu0 0.0
      %731 = vmatpush1.msra.mxu0 0.0
      %732 = vmatprep.subr.mxu0 0.0
      %733 = vmatpush1.msra.mxu0 0.0
      %734 = vmatprep.subr.mxu0 0.0
      %735 = vmatpush1.msra.mxu0 0.0
      %736 = vmatprep.subr.mxu0 0.0
      %737 = vmatpush1.msra.mxu0 0.0
      %738 = vmatprep.subr.mxu0 0.0
      %739 = vmatpush1.msra.mxu0 0.0
      %740 = vmatprep.subr.mxu0 0.0
      %741 = vmatpush1.msra.mxu0 0.0
      %742 = vmatprep.subr.mxu0 0.0
      %743 = vmatpush1.msra.mxu0 0.0
      %744 = vmatprep.mubr.f32.mxu0 0.0
      %745 = vmatmul.mubr.f32.gmra.mrb[0].mxu0 %v678
      %v746 = vpop.f32.mrb[0].mxu0
      %v747 = vadd.f32 %v674, %v746
      %v748 = vpop.f32.mrb[0].mxu0
      %749 = vdwg.mxu0
      %v750 = vmul.f32 %v747, 0.35355338
      %v752 = vlaneseq
      %v753 = vshrl.u32 %v752, 7
      %v754 = vsub.s32 0, %v753
      %v755 = vrot.slane %v662, %v754
      %757 = vmatprep.subr.mxu0 0.0
      %758 = vmatpush1.msra.mxu0 %v657
      %759 = vmatprep.subr.mxu0 0.0
      %760 = vmatpush1.msra.mxu0 %v658
      %761 = vmatprep.subr.mxu0 0.0
      %762 = vmatpush1.msra.mxu0 %v659
      %763 = vmatprep.subr.mxu0 0.0
      %764 = vmatpush1.msra.mxu0 %v660
      %765 = vmatprep.subr.mxu0 0.0
      %766 = vmatpush1.msra.mxu0 0.0
      %767 = vmatprep.subr.mxu0 0.0
      %768 = vmatpush1.msra.mxu0 0.0
      %769 = vmatprep.subr.mxu0 0.0
      %770 = vmatpush1.msra.mxu0 0.0
      %771 = vmatprep.subr.mxu0 0.0
      %772 = vmatpush1.msra.mxu0 0.0
      %773 = vmatprep.subr.mxu0 0.0
      %774 = vmatpush1.msra.mxu0 0.0
      %775 = vmatprep.subr.mxu0 0.0
      %776 = vmatpush1.msra.mxu0 0.0
      %777 = vmatprep.subr.mxu0 0.0
      %778 = vmatpush1.msra.mxu0 0.0
      %779 = vmatprep.subr.mxu0 0.0
      %780 = vmatpush1.msra.mxu0 0.0
      %781 = vmatprep.subr.mxu0 0.0
      %782 = vmatpush1.msra.mxu0 0.0
      %783 = vmatprep.subr.mxu0 0.0
      %784 = vmatpush1.msra.mxu0 0.0
      %785 = vmatprep.subr.mxu0 0.0
      %786 = vmatpush1.msra.mxu0 0.0
      %787 = vmatprep.subr.mxu0 0.0
      %788 = vmatpush1.msra.mxu0 0.0
      %789 = vmatprep.subr.mxu0 0.0
      %790 = vmatpush1.msra.mxu0 0.0
      %791 = vmatprep.subr.mxu0 0.0
      %792 = vmatpush1.msra.mxu0 0.0
      %793 = vmatprep.subr.mxu0 0.0
      %794 = vmatpush1.msra.mxu0 0.0
      %795 = vmatprep.subr.mxu0 0.0
      %796 = vmatpush1.msra.mxu0 0.0
      %797 = vmatprep.subr.mxu0 0.0
      %798 = vmatpush1.msra.mxu0 0.0
      %799 = vmatprep.subr.mxu0 0.0
      %800 = vmatpush1.msra.mxu0 0.0
      %801 = vmatprep.subr.mxu0 0.0
      %802 = vmatpush1.msra.mxu0 0.0
      %803 = vmatprep.subr.mxu0 0.0
      %804 = vmatpush1.msra.mxu0 0.0
      %805 = vmatprep.subr.mxu0 0.0
      %806 = vmatpush1.msra.mxu0 0.0
      %807 = vmatprep.subr.mxu0 0.0
      %808 = vmatpush1.msra.mxu0 0.0
      %809 = vmatprep.subr.mxu0 0.0
      %810 = vmatpush1.msra.mxu0 0.0
      %811 = vmatprep.subr.mxu0 0.0
      %812 = vmatpush1.msra.mxu0 0.0
      %813 = vmatprep.subr.mxu0 0.0
      %814 = vmatpush1.msra.mxu0 0.0
      %815 = vmatprep.subr.mxu0 0.0
      %816 = vmatpush1.msra.mxu0 0.0
      %817 = vmatprep.subr.mxu0 0.0
      %818 = vmatpush1.msra.mxu0 0.0
      %819 = vmatprep.subr.mxu0 0.0
      %820 = vmatpush1.msra.mxu0 0.0
      %821 = vmatprep.mubr.f32.mxu0 0.0
      %822 = vmatmul.mubr.f32.gmra.mrb[0].mxu0 %v678
      %v823 = vpop.f32.mrb[0].mxu0
      %v824 = vadd.f32 %v755, %v823
      %v825 = vpop.f32.mrb[0].mxu0
      %826 = vdwg.mxu0
      %v828 = vlaneseq
      %v829 = vshrl.u32 %v828, 7
      %v830 = vsub.s32 0, %v829
      %v831 = vrot.slane %v669, %v830
      %833 = vmatprep.subr.mxu0 0.0
      %834 = vmatpush1.msra.mxu0 %v664
      %835 = vmatprep.subr.mxu0 0.0
      %836 = vmatpush1.msra.mxu0 %v665
      %837 = vmatprep.subr.mxu0 0.0
      %838 = vmatpush1.msra.mxu0 %v666
      %839 = vmatprep.subr.mxu0 0.0
      %840 = vmatpush1.msra.mxu0 %v667
      %841 = vmatprep.subr.mxu0 0.0
      %842 = vmatpush1.msra.mxu0 0.0
      %843 = vmatprep.subr.mxu0 0.0
      %844 = vmatpush1.msra.mxu0 0.0
      %845 = vmatprep.subr.mxu0 0.0
      %846 = vmatpush1.msra.mxu0 0.0
      %847 = vmatprep.subr.mxu0 0.0
      %848 = vmatpush1.msra.mxu0 0.0
      %849 = vmatprep.subr.mxu0 0.0
      %850 = vmatpush1.msra.mxu0 0.0
      %851 = vmatprep.subr.mxu0 0.0
      %852 = vmatpush1.msra.mxu0 0.0
      %853 = vmatprep.subr.mxu0 0.0
      %854 = vmatpush1.msra.mxu0 0.0
      %855 = vmatprep.subr.mxu0 0.0
      %856 = vmatpush1.msra.mxu0 0.0
      %857 = vmatprep.subr.mxu0 0.0
      %858 = vmatpush1.msra.mxu0 0.0
      %859 = vmatprep.subr.mxu0 0.0
      %860 = vmatpush1.msra.mxu0 0.0
      %861 = vmatprep.subr.mxu0 0.0
      %862 = vmatpush1.msra.mxu0 0.0
      %863 = vmatprep.subr.mxu0 0.0
      %864 = vmatpush1.msra.mxu0 0.0
      %865 = vmatprep.subr.mxu0 0.0
      %866 = vmatpush1.msra.mxu0 0.0
      %867 = vmatprep.subr.mxu0 0.0
      %868 = vmatpush1.msra.mxu0 0.0
      %869 = vmatprep.subr.mxu0 0.0
      %870 = vmatpush1.msra.mxu0 0.0
      %871 = vmatprep.subr.mxu0 0.0
      %872 = vmatpush1.msra.mxu0 0.0
      %873 = vmatprep.subr.mxu0 0.0
      %874 = vmatpush1.msra.mxu0 0.0
      %875 = vmatprep.subr.mxu0 0.0
      %876 = vmatpush1.msra.mxu0 0.0
      %877 = vmatprep.subr.mxu0 0.0
      %878 = vmatpush1.msra.mxu0 0.0
      %879 = vmatprep.subr.mxu0 0.0
      %880 = vmatpush1.msra.mxu0 0.0
      %881 = vmatprep.subr.mxu0 0.0
      %882 = vmatpush1.msra.mxu0 0.0
      %883 = vmatprep.subr.mxu0 0.0
      %884 = vmatpush1.msra.mxu0 0.0
      %885 = vmatprep.subr.mxu0 0.0
      %886 = vmatpush1.msra.mxu0 0.0
      %887 = vmatprep.subr.mxu0 0.0
      %888 = vmatpush1.msra.mxu0 0.0
      %889 = vmatprep.subr.mxu0 0.0
      %890 = vmatpush1.msra.mxu0 0.0
      %891 = vmatprep.subr.mxu0 0.0
      %892 = vmatpush1.msra.mxu0 0.0
      %893 = vmatprep.subr.mxu0 0.0
      %894 = vmatpush1.msra.mxu0 0.0
      %895 = vmatprep.subr.mxu0 0.0
      %896 = vmatpush1.msra.mxu0 0.0
      %897 = vmatprep.mubr.f32.mxu0 0.0
      %898 = vmatmul.mubr.f32.gmra.mrb[0].mxu0 %v678
      %v899 = vpop.f32.mrb[0].mxu0
      %v900 = vadd.f32 %v831, %v899
      %v901 = vpop.f32.mrb[0].mxu0
      %902 = vdwg.mxu0
      %vm903 = vcmask 64512
      %v905 = vsel %vm903, %v750, 0
      %v908 = vsel %vm903, %v824, 0
      %910 = vmatprep.subr.mxu0 0.0
      %911 = vmatpush1.xpose.msra.mxu0 %v908
      %912 = vmatprep.subr.mxu0 0.0
      %913 = vmatpush1.xpose.msra.mxu0 0.0
      %914 = vmatprep.subr.mxu0 0.0
      %915 = vmatpush1.xpose.msra.mxu0 0.0
      %916 = vmatprep.subr.mxu0 0.0
      %917 = vmatpush1.xpose.msra.mxu0 0.0
      %918 = vmatprep.subr.mxu0 0.0
      %919 = vmatpush1.xpose.msra.mxu0 0.0
      %920 = vmatprep.subr.mxu0 0.0
      %921 = vmatpush1.xpose.msra.mxu0 0.0
      %922 = vmatprep.subr.mxu0 0.0
      %923 = vmatpush1.xpose.msra.mxu0 0.0
      %924 = vmatprep.subr.mxu0 0.0
      %925 = vmatpush1.xpose.msra.mxu0 0.0
      %926 = vmatprep.subr.mxu0 0.0
      %927 = vmatpush1.xpose.msra.mxu0 0.0
      %928 = vmatprep.subr.mxu0 0.0
      %929 = vmatpush1.xpose.msra.mxu0 0.0
      %930 = vmatprep.subr.mxu0 0.0
      %931 = vmatpush1.xpose.msra.mxu0 0.0
      %932 = vmatprep.subr.mxu0 0.0
      %933 = vmatpush1.xpose.msra.mxu0 0.0
      %934 = vmatprep.subr.mxu0 0.0
      %935 = vmatpush1.xpose.msra.mxu0 0.0
      %936 = vmatprep.subr.mxu0 0.0
      %937 = vmatpush1.xpose.msra.mxu0 0.0
      %938 = vmatprep.subr.mxu0 0.0
      %939 = vmatpush1.xpose.msra.mxu0 0.0
      %940 = vmatprep.subr.mxu0 0.0
      %941 = vmatpush1.xpose.msra.mxu0 0.0
      %942 = vmatprep.subr.mxu0 0.0
      %943 = vmatpush1.xpose.msra.mxu0 0.0
      %944 = vmatprep.subr.mxu0 0.0
      %945 = vmatpush1.xpose.msra.mxu0 0.0
      %946 = vmatprep.subr.mxu0 0.0
      %947 = vmatpush1.xpose.msra.mxu0 0.0
      %948 = vmatprep.subr.mxu0 0.0
      %949 = vmatpush1.xpose.msra.mxu0 0.0
      %950 = vmatprep.subr.mxu0 0.0
      %951 = vmatpush1.xpose.msra.mxu0 0.0
      %952 = vmatprep.subr.mxu0 0.0
      %953 = vmatpush1.xpose.msra.mxu0 0.0
      %954 = vmatprep.subr.mxu0 0.0
      %955 = vmatpush1.xpose.msra.mxu0 0.0
      %956 = vmatprep.subr.mxu0 0.0
      %957 = vmatpush1.xpose.msra.mxu0 0.0
      %958 = vmatprep.subr.mxu0 0.0
      %959 = vmatpush1.xpose.msra.mxu0 0.0
      %960 = vmatprep.subr.mxu0 0.0
      %961 = vmatpush1.xpose.msra.mxu0 0.0
      %962 = vmatprep.subr.mxu0 0.0
      %963 = vmatpush1.xpose.msra.mxu0 0.0
      %964 = vmatprep.subr.mxu0 0.0
      %965 = vmatpush1.xpose.msra.mxu0 0.0
      %966 = vmatprep.subr.mxu0 0.0
      %967 = vmatpush1.xpose.msra.mxu0 0.0
      %968 = vmatprep.subr.mxu0 0.0
      %969 = vmatpush1.xpose.msra.mxu0 0.0
      %970 = vmatprep.subr.mxu0 0.0
      %971 = vmatpush1.xpose.msra.mxu0 0.0
      %972 = vmatprep.subr.mxu0 0.0
      %973 = vmatpush1.xpose.msra.mxu0 0.0
      %974 = vmatprep.mubr.f32.mxu0 0.0
      %975 = vmatmul.mubr.f32.gmra.mrb[0].mxu0 %v905
      %v976 = vpop.f32.mrb[0].mxu0
      %v977 = vadd.f32 0.0, %v976
      %v978 = vpop.f32.mrb[0].mxu0
      %979 = vdwg.mxu0
      %v980 = vsel %vm903, %v977, -inf
      %981 = vmax.xlane.f32.xlu0 %v980
      %v982 = vpop.xlane.xlu0 %981
      %v983 = vsub.f32 %v977, %v982
      %v984 = vmul.f32 %v983, 1.442695
      %v985 = vpow.pop %v984
      %v986 = vsel %vm903, %v985, 0.0
      %987 = vadd.xlane.f32.xlu0 %v986
      %v988 = vpop.xlane.xlu0 %987
      %v989 = vrcp.pop %v988
      %v990 = vmul.f32 %v985, %v989
      %v992 = vsel %vm903, %v990, 0
      %994 = vmatprep.subr.mxu0 0.0
      %995 = vmatpush1.msra.mxu0 %v900
      %996 = vmatprep.subr.mxu0 0.0
      %997 = vmatpush1.msra.mxu0 0.0
      %998 = vmatprep.subr.mxu0 0.0
      %999 = vmatpush1.msra.mxu0 0.0
      %1000 = vmatprep.subr.mxu0 0.0
      %1001 = vmatpush1.msra.mxu0 0.0
      %1002 = vmatprep.subr.mxu0 0.0
      %1003 = vmatpush1.msra.mxu0 0.0
      %1004 = vmatprep.subr.mxu0 0.0
      %1005 = vmatpush1.msra.mxu0 0.0
      %1006 = vmatprep.subr.mxu0 0.0
      %1007 = vmatpush1.msra.mxu0 0.0
      %1008 = vmatprep.subr.mxu0 0.0
      %1009 = vmatpush1.msra.mxu0 0.0
      %1010 = vmatprep.subr.mxu0 0.0
      %1011 = vmatpush1.msra.mxu0 0.0
      %1012 = vmatprep.subr.mxu0 0.0
      %1013 = vmatpush1.msra.mxu0 0.0
      %1014 = vmatprep.subr.mxu0 0.0
      %1015 = vmatpush1.msra.mxu0 0.0
      %1016 = vmatprep.subr.mxu0 0.0
      %1017 = vmatpush1.msra.mxu0 0.0
      %1018 = vmatprep.subr.mxu0 0.0
      %1019 = vmatpush1.msra.mxu0 0.0
      %1020 = vmatprep.subr.mxu0 0.0
      %1021 = vmatpush1.msra.mxu0 0.0
      %1022 = vmatprep.subr.mxu0 0.0
      %1023 = vmatpush1.msra.mxu0 0.0
      %1024 = vmatprep.subr.mxu0 0.0
      %1025 = vmatpush1.msra.mxu0 0.0
      %1026 = vmatprep.subr.mxu0 0.0
      %1027 = vmatpush1.msra.mxu0 0.0
      %1028 = vmatprep.subr.mxu0 0.0
      %1029 = vmatpush1.msra.mxu0 0.0
      %1030 = vmatprep.subr.mxu0 0.0
      %1031 = vmatpush1.msra.mxu0 0.0
      %1032 = vmatprep.subr.mxu0 0.0
      %1033 = vmatpush1.msra.mxu0 0.0
      %1034 = vmatprep.subr.mxu0 0.0
      %1035 = vmatpush1.msra.mxu0 0.0
      %1036 = vmatprep.subr.mxu0 0.0
      %1037 = vmatpush1.msra.mxu0 0.0
      %1038 = vmatprep.subr.mxu0 0.0
      %1039 = vmatpush1.msra.mxu0 0.0
      %1040 = vmatprep.subr.mxu0 0.0
      %1041 = vmatpush1.msra.mxu0 0.0
      %1042 = vmatprep.subr.mxu0 0.0
      %1043 = vmatpush1.msra.mxu0 0.0
      %1044 = vmatprep.subr.mxu0 0.0
      %1045 = vmatpush1.msra.mxu0 0.0
      %1046 = vmatprep.subr.mxu0 0.0
      %1047 = vmatpush1.msra.mxu0 0.0
      %1048 = vmatprep.subr.mxu0 0.0
      %1049 = vmatpush1.msra.mxu0 0.0
      %1050 = vmatprep.subr.mxu0 0.0
      %1051 = vmatpush1.msra.mxu0 0.0
      %1052 = vmatprep.subr.mxu0 0.0
      %1053 = vmatpush1.msra.mxu0 0.0
      %1054 = vmatprep.subr.mxu0 0.0
      %1055 = vmatpush1.msra.mxu0 0.0
      %1056 = vmatprep.subr.mxu0 0.0
      %1057 = vmatpush1.msra.mxu0 0.0
      %1058 = vmatprep.mubr.f32.mxu0 0.0
      %1059 = vmatmul.mubr.f32.gmra.mrb[0].mxu0 %v992
      %v1060 = vpop.f32.mrb[0].mxu0
      %v1061 = vadd.f32 0.0, %v1060
      %v1062 = vpop.f32.mrb[0].mxu0
      %1063 = vdwg.mxu0
      %v1064 = vld [vmem:[%s607] sm:$0xff]
      %s1065 = scalar_lea.vmem %s598, 32
      %v1066 = vld [vmem:[%s1065] sm:$0xff]
      %v1067 = vld [vmem:[%s1065 + $0x8] sm:$0xff]
      %v1068 = vld [vmem:[%s1065 + $0x10] sm:$0xff]
      %v1069 = vld [vmem:[%s1065 + $0x18] sm:$0xff]
      %s1070 = scalar_lea.vmem %s602, 1
      %v1071 = vld [vmem:[%s1070] sm:$0x1]
      %s1072 = scalar_lea.vmem %s598, 160
      %v1073 = vld [vmem:[%s1072] sm:$0xff]
      %v1074 = vld [vmem:[%s1072 + $0x8] sm:$0xff]
      %v1075 = vld [vmem:[%s1072 + $0x10] sm:$0xff]
      %v1076 = vld [vmem:[%s1072 + $0x18] sm:$0xff]
      %s1077 = scalar_lea.vmem %s602, 5
      %v1078 = vld [vmem:[%s1077] sm:$0x1]
      %s1079 = scalar_lea.vmem %s598, 288
      %v1080 = vld [vmem:[%s1079] sm:$0xff]
      %v1081 = vld [vmem:[%s1079 + $0x8] sm:$0xff]
      %v1082 = vld [vmem:[%s1079 + $0x10] sm:$0xff]
      %v1083 = vld [vmem:[%s1079 + $0x18] sm:$0xff]
      %s1084 = scalar_lea.vmem %s602, 9
      %v1085 = vld [vmem:[%s1084] sm:$0x1]
      %v1087 = vlaneseq
      %v1088 = vshrl.u32 %v1087, 7
      %v1089 = vsub.s32 0, %v1088
      %v1090 = vrot.slane %v1071, %v1089
      %1092 = vmatprep.subr.mxu0 0.0
      %1093 = vmatpush1.msra.mxu0 %v1066
      %1094 = vmatprep.subr.mxu0 0.0
      %1095 = vmatpush1.msra.mxu0 %v1067
      %1096 = vmatprep.subr.mxu0 0.0
      %1097 = vmatpush1.msra.mxu0 %v1068
      %1098 = vmatprep.subr.mxu0 0.0
      %1099 = vmatpush1.msra.mxu0 %v1069
      %1100 = vmatprep.subr.mxu0 0.0
      %1101 = vmatpush1.msra.mxu0 0.0
      %1102 = vmatprep.subr.mxu0 0.0
      %1103 = vmatpush1.msra.mxu0 0.0
      %1104 = vmatprep.subr.mxu0 0.0
      %1105 = vmatpush1.msra.mxu0 0.0
      %1106 = vmatprep.subr.mxu0 0.0
      %1107 = vmatpush1.msra.mxu0 0.0
      %1108 = vmatprep.subr.mxu0 0.0
      %1109 = vmatpush1.msra.mxu0 0.0
      %1110 = vmatprep.subr.mxu0 0.0
      %1111 = vmatpush1.msra.mxu0 0.0
      %1112 = vmatprep.subr.mxu0 0.0
      %1113 = vmatpush1.msra.mxu0 0.0
      %1114 = vmatprep.subr.mxu0 0.0
      %1115 = vmatpush1.msra.mxu0 0.0
      %1116 = vmatprep.subr.mxu0 0.0
      %1117 = vmatpush1.msra.mxu0 0.0
      %1118 = vmatprep.subr.mxu0 0.0
      %1119 = vmatpush1.msra.mxu0 0.0
      %1120 = vmatprep.subr.mxu0 0.0
      %1121 = vmatpush1.msra.mxu0 0.0
      %1122 = vmatprep.subr.mxu0 0.0
      %1123 = vmatpush1.msra.mxu0 0.0
      %1124 = vmatprep.subr.mxu0 0.0
      %1125 = vmatpush1.msra.mxu0 0.0
      %1126 = vmatprep.subr.mxu0 0.0
      %1127 = vmatpush1.msra.mxu0 0.0
      %1128 = vmatprep.subr.mxu0 0.0
      %1129 = vmatpush1.msra.mxu0 0.0
      %1130 = vmatprep.subr.mxu0 0.0
      %1131 = vmatpush1.msra.mxu0 0.0
      %1132 = vmatprep.subr.mxu0 0.0
      %1133 = vmatpush1.msra.mxu0 0.0
      %1134 = vmatprep.subr.mxu0 0.0
      %1135 = vmatpush1.msra.mxu0 0.0
      %1136 = vmatprep.subr.mxu0 0.0
      %1137 = vmatpush1.msra.mxu0 0.0
      %1138 = vmatprep.subr.mxu0 0.0
      %1139 = vmatpush1.msra.mxu0 0.0
      %1140 = vmatprep.subr.mxu0 0.0
      %1141 = vmatpush1.msra.mxu0 0.0
      %1142 = vmatprep.subr.mxu0 0.0
      %1143 = vmatpush1.msra.mxu0 0.0
      %1144 = vmatprep.subr.mxu0 0.0
      %1145 = vmatpush1.msra.mxu0 0.0
      %1146 = vmatprep.subr.mxu0 0.0
      %1147 = vmatpush1.msra.mxu0 0.0
      %1148 = vmatprep.subr.mxu0 0.0
      %1149 = vmatpush1.msra.mxu0 0.0
      %1150 = vmatprep.subr.mxu0 0.0
      %1151 = vmatpush1.msra.mxu0 0.0
      %1152 = vmatprep.subr.mxu0 0.0
      %1153 = vmatpush1.msra.mxu0 0.0
      %1154 = vmatprep.subr.mxu0 0.0
      %1155 = vmatpush1.msra.mxu0 0.0
      %1156 = vmatprep.mubr.f32.mxu0 0.0
      %1157 = vmatmul.mubr.f32.gmra.mrb[0].mxu0 %v678
      %v1158 = vpop.f32.mrb[0].mxu0
      %v1159 = vadd.f32 %v1090, %v1158
      %v1160 = vpop.f32.mrb[0].mxu0
      %1161 = vdwg.mxu0
      %v1162 = vmul.f32 %v1159, 0.35355338
      %v1164 = vlaneseq
      %v1165 = vshrl.u32 %v1164, 7
      %v1166 = vsub.s32 0, %v1165
      %v1167 = vrot.slane %v1078, %v1166
      %1169 = vmatprep.subr.mxu0 0.0
      %1170 = vmatpush1.msra.mxu0 %v1073
      %1171 = vmatprep.subr.mxu0 0.0
      %1172 = vmatpush1.msra.mxu0 %v1074
      %1173 = vmatprep.subr.mxu0 0.0
      %1174 = vmatpush1.msra.mxu0 %v1075
      %1175 = vmatprep.subr.mxu0 0.0
      %1176 = vmatpush1.msra.mxu0 %v1076
      %1177 = vmatprep.subr.mxu0 0.0
      %1178 = vmatpush1.msra.mxu0 0.0
      %1179 = vmatprep.subr.mxu0 0.0
      %1180 = vmatpush1.msra.mxu0 0.0
      %1181 = vmatprep.subr.mxu0 0.0
      %1182 = vmatpush1.msra.mxu0 0.0
      %1183 = vmatprep.subr.mxu0 0.0
      %1184 = vmatpush1.msra.mxu0 0.0
      %1185 = vmatprep.subr.mxu0 0.0
      %1186 = vmatpush1.msra.mxu0 0.0
      %1187 = vmatprep.subr.mxu0 0.0
      %1188 = vmatpush1.msra.mxu0 0.0
      %1189 = vmatprep.subr.mxu0 0.0
      %1190 = vmatpush1.msra.mxu0 0.0
      %1191 = vmatprep.subr.mxu0 0.0
      %1192 = vmatpush1.msra.mxu0 0.0
      %1193 = vmatprep.subr.mxu0 0.0
      %1194 = vmatpush1.msra.mxu0 0.0
      %1195 = vmatprep.subr.mxu0 0.0
      %1196 = vmatpush1.msra.mxu0 0.0
      %1197 = vmatprep.subr.mxu0 0.0
      %1198 = vmatpush1.msra.mxu0 0.0
      %1199 = vmatprep.subr.mxu0 0.0
      %1200 = vmatpush1.msra.mxu0 0.0
      %1201 = vmatprep.subr.mxu0 0.0
      %1202 = vmatpush1.msra.mxu0 0.0
      %1203 = vmatprep.subr.mxu0 0.0
      %1204 = vmatpush1.msra.mxu0 0.0
      %1205 = vmatprep.subr.mxu0 0.0
      %1206 = vmatpush1.msra.mxu0 0.0
      %1207 = vmatprep.subr.mxu0 0.0
      %1208 = vmatpush1.msra.mxu0 0.0
      %1209 = vmatprep.subr.mxu0 0.0
      %1210 = vmatpush1.msra.mxu0 0.0
      %1211 = vmatprep.subr.mxu0 0.0
      %1212 = vmatpush1.msra.mxu0 0.0
      %1213 = vmatprep.subr.mxu0 0.0
      %1214 = vmatpush1.msra.mxu0 0.0
      %1215 = vmatprep.subr.mxu0 0.0
      %1216 = vmatpush1.msra.mxu0 0.0
      %1217 = vmatprep.subr.mxu0 0.0
      %1218 = vmatpush1.msra.mxu0 0.0
      %1219 = vmatprep.subr.mxu0 0.0
      %1220 = vmatpush1.msra.mxu0 0.0
      %1221 = vmatprep.subr.mxu0 0.0
      %1222 = vmatpush1.msra.mxu0 0.0
      %1223 = vmatprep.subr.mxu0 0.0
      %1224 = vmatpush1.msra.mxu0 0.0
      %1225 = vmatprep.subr.mxu0 0.0
      %1226 = vmatpush1.msra.mxu0 0.0
      %1227 = vmatprep.subr.mxu0 0.0
      %1228 = vmatpush1.msra.mxu0 0.0
      %1229 = vmatprep.subr.mxu0 0.0
      %1230 = vmatpush1.msra.mxu0 0.0
      %1231 = vmatprep.subr.mxu0 0.0
      %1232 = vmatpush1.msra.mxu0 0.0
      %1233 = vmatprep.mubr.f32.mxu0 0.0
      %1234 = vmatmul.mubr.f32.gmra.mrb[0].mxu0 %v678
      %v1235 = vpop.f32.mrb[0].mxu0
      %v1236 = vadd.f32 %v1167, %v1235
      %v1237 = vpop.f32.mrb[0].mxu0
      %1238 = vdwg.mxu0
      %v1240 = vlaneseq
      %v1241 = vshrl.u32 %v1240, 7
      %v1242 = vsub.s32 0, %v1241
      %v1243 = vrot.slane %v1085, %v1242
      %1245 = vmatprep.subr.mxu0 0.0
      %1246 = vmatpush1.msra.mxu0 %v1080
      %1247 = vmatprep.subr.mxu0 0.0
      %1248 = vmatpush1.msra.mxu0 %v1081
      %1249 = vmatprep.subr.mxu0 0.0
      %1250 = vmatpush1.msra.mxu0 %v1082
      %1251 = vmatprep.subr.mxu0 0.0
      %1252 = vmatpush1.msra.mxu0 %v1083
      %1253 = vmatprep.subr.mxu0 0.0
      %1254 = vmatpush1.msra.mxu0 0.0
      %1255 = vmatprep.subr.mxu0 0.0
      %1256 = vmatpush1.msra.mxu0 0.0
      %1257 = vmatprep.subr.mxu0 0.0
      %1258 = vmatpush1.msra.mxu0 0.0
      %1259 = vmatprep.subr.mxu0 0.0
      %1260 = vmatpush1.msra.mxu0 0.0
      %1261 = vmatprep.subr.mxu0 0.0
      %1262 = vmatpush1.msra.mxu0 0.0
      %1263 = vmatprep.subr.mxu0 0.0
      %1264 = vmatpush1.msra.mxu0 0.0
      %1265 = vmatprep.subr.mxu0 0.0
      %1266 = vmatpush1.msra.mxu0 0.0
      %1267 = vmatprep.subr.mxu0 0.0
      %1268 = vmatpush1.msra.mxu0 0.0
      %1269 = vmatprep.subr.mxu0 0.0
      %1270 = vmatpush1.msra.mxu0 0.0
      %1271 = vmatprep.subr.mxu0 0.0
      %1272 = vmatpush1.msra.mxu0 0.0
      %1273 = vmatprep.subr.mxu0 0.0
      %1274 = vmatpush1.msra.mxu0 0.0
      %1275 = vmatprep.subr.mxu0 0.0
      %1276 = vmatpush1.msra.mxu0 0.0
      %1277 = vmatprep.subr.mxu0 0.0
      %1278 = vmatpush1.msra.mxu0 0.0
      %1279 = vmatprep.subr.mxu0 0.0
      %1280 = vmatpush1.msra.mxu0 0.0
      %1281 = vmatprep.subr.mxu0 0.0
      %1282 = vmatpush1.msra.mxu0 0.0
      %1283 = vmatprep.subr.mxu0 0.0
      %1284 = vmatpush1.msra.mxu0 0.0
      %1285 = vmatprep.subr.mxu0 0.0
      %1286 = vmatpush1.msra.mxu0 0.0
      %1287 = vmatprep.subr.mxu0 0.0
      %1288 = vmatpush1.msra.mxu0 0.0
      %1289 = vmatprep.subr.mxu0 0.0
      %1290 = vmatpush1.msra.mxu0 0.0
      %1291 = vmatprep.subr.mxu0 0.0
      %1292 = vmatpush1.msra.mxu0 0.0
      %1293 = vmatprep.subr.mxu0 0.0
      %1294 = vmatpush1.msra.mxu0 0.0
      %1295 = vmatprep.subr.mxu0 0.0
      %1296 = vmatpush1.msra.mxu0 0.0
      %1297 = vmatprep.subr.mxu0 0.0
      %1298 = vmatpush1.msra.mxu0 0.0
      %1299 = vmatprep.subr.mxu0 0.0
      %1300 = vmatpush1.msra.mxu0 0.0
      %1301 = vmatprep.subr.mxu0 0.0
      %1302 = vmatpush1.msra.mxu0 0.0
      %1303 = vmatprep.subr.mxu0 0.0
      %1304 = vmatpush1.msra.mxu0 0.0
      %1305 = vmatprep.subr.mxu0 0.0
      %1306 = vmatpush1.msra.mxu0 0.0
      %1307 = vmatprep.subr.mxu0 0.0
      %1308 = vmatpush1.msra.mxu0 0.0
      %1309 = vmatprep.mubr.f32.mxu0 0.0
      %1310 = vmatmul.mubr.f32.gmra.mrb[0].mxu0 %v678
      %v1311 = vpop.f32.mrb[0].mxu0
      %v1312 = vadd.f32 %v1243, %v1311
      %v1313 = vpop.f32.mrb[0].mxu0
      %1314 = vdwg.mxu0
      %v1316 = vsel %vm903, %v1162, 0
      %v1319 = vsel %vm903, %v1236, 0
      %1321 = vmatprep.subr.mxu0 0.0
      %1322 = vmatpush1.xpose.msra.mxu0 %v1319
      %1323 = vmatprep.subr.mxu0 0.0
      %1324 = vmatpush1.xpose.msra.mxu0 0.0
      %1325 = vmatprep.subr.mxu0 0.0
      %1326 = vmatpush1.xpose.msra.mxu0 0.0
      %1327 = vmatprep.subr.mxu0 0.0
      %1328 = vmatpush1.xpose.msra.mxu0 0.0
      %1329 = vmatprep.subr.mxu0 0.0
      %1330 = vmatpush1.xpose.msra.mxu0 0.0
      %1331 = vmatprep.subr.mxu0 0.0
      %1332 = vmatpush1.xpose.msra.mxu0 0.0
      %1333 = vmatprep.subr.mxu0 0.0
      %1334 = vmatpush1.xpose.msra.mxu0 0.0
      %1335 = vmatprep.subr.mxu0 0.0
      %1336 = vmatpush1.xpose.msra.mxu0 0.0
      %1337 = vmatprep.subr.mxu0 0.0
      %1338 = vmatpush1.xpose.msra.mxu0 0.0
      %1339 = vmatprep.subr.mxu0 0.0
      %1340 = vmatpush1.xpose.msra.mxu0 0.0
      %1341 = vmatprep.subr.mxu0 0.0
      %1342 = vmatpush1.xpose.msra.mxu0 0.0
      %1343 = vmatprep.subr.mxu0 0.0
      %1344 = vmatpush1.xpose.msra.mxu0 0.0
      %1345 = vmatprep.subr.mxu0 0.0
      %1346 = vmatpush1.xpose.msra.mxu0 0.0
      %1347 = vmatprep.subr.mxu0 0.0
      %1348 = vmatpush1.xpose.msra.mxu0 0.0
      %1349 = vmatprep.subr.mxu0 0.0
      %1350 = vmatpush1.xpose.msra.mxu0 0.0
      %1351 = vmatprep.subr.mxu0 0.0
      %1352 = vmatpush1.xpose.msra.mxu0 0.0
      %1353 = vmatprep.subr.mxu0 0.0
      %1354 = vmatpush1.xpose.msra.mxu0 0.0
      %1355 = vmatprep.subr.mxu0 0.0
      %1356 = vmatpush1.xpose.msra.mxu0 0.0
      %1357 = vmatprep.subr.mxu0 0.0
      %1358 = vmatpush1.xpose.msra.mxu0 0.0
      %1359 = vmatprep.subr.mxu0 0.0
      %1360 = vmatpush1.xpose.msra.mxu0 0.0
      %1361 = vmatprep.subr.mxu0 0.0
      %1362 = vmatpush1.xpose.msra.mxu0 0.0
      %1363 = vmatprep.subr.mxu0 0.0
      %1364 = vmatpush1.xpose.msra.mxu0 0.0
      %1365 = vmatprep.subr.mxu0 0.0
      %1366 = vmatpush1.xpose.msra.mxu0 0.0
      %1367 = vmatprep.subr.mxu0 0.0
      %1368 = vmatpush1.xpose.msra.mxu0 0.0
      %1369 = vmatprep.subr.mxu0 0.0
      %1370 = vmatpush1.xpose.msra.mxu0 0.0
      %1371 = vmatprep.subr.mxu0 0.0
      %1372 = vmatpush1.xpose.msra.mxu0 0.0
      %1373 = vmatprep.subr.mxu0 0.0
      %1374 = vmatpush1.xpose.msra.mxu0 0.0
      %1375 = vmatprep.subr.mxu0 0.0
      %1376 = vmatpush1.xpose.msra.mxu0 0.0
      %1377 = vmatprep.subr.mxu0 0.0
      %1378 = vmatpush1.xpose.msra.mxu0 0.0
      %1379 = vmatprep.subr.mxu0 0.0
      %1380 = vmatpush1.xpose.msra.mxu0 0.0
      %1381 = vmatprep.subr.mxu0 0.0
      %1382 = vmatpush1.xpose.msra.mxu0 0.0
      %1383 = vmatprep.subr.mxu0 0.0
      %1384 = vmatpush1.xpose.msra.mxu0 0.0
      %1385 = vmatprep.mubr.f32.mxu0 0.0
      %1386 = vmatmul.mubr.f32.gmra.mrb[0].mxu0 %v1316
      %v1387 = vpop.f32.mrb[0].mxu0
      %v1388 = vadd.f32 0.0, %v1387
      %v1389 = vpop.f32.mrb[0].mxu0
      %1390 = vdwg.mxu0
      %v1391 = vsel %vm903, %v1388, -inf
      %1392 = vmax.xlane.f32.xlu0 %v1391
      %v1393 = vpop.xlane.xlu0 %1392
      %v1394 = vsub.f32 %v1388, %v1393
      %v1395 = vmul.f32 %v1394, 1.442695
      %v1396 = vpow.pop %v1395
      %v1397 = vsel %vm903, %v1396, 0.0
      %1398 = vadd.xlane.f32.xlu0 %v1397
      %v1399 = vpop.xlane.xlu0 %1398
      %v1400 = vrcp.pop %v1399
      %v1401 = vmul.f32 %v1396, %v1400
      %v1403 = vsel %vm903, %v1401, 0
      %1405 = vmatprep.subr.mxu0 0.0
      %1406 = vmatpush1.msra.mxu0 %v1312
      %1407 = vmatprep.subr.mxu0 0.0
      %1408 = vmatpush1.msra.mxu0 0.0
      %1409 = vmatprep.subr.mxu0 0.0
      %1410 = vmatpush1.msra.mxu0 0.0
      %1411 = vmatprep.subr.mxu0 0.0
      %1412 = vmatpush1.msra.mxu0 0.0
      %1413 = vmatprep.subr.mxu0 0.0
      %1414 = vmatpush1.msra.mxu0 0.0
      %1415 = vmatprep.subr.mxu0 0.0
      %1416 = vmatpush1.msra.mxu0 0.0
      %1417 = vmatprep.subr.mxu0 0.0
      %1418 = vmatpush1.msra.mxu0 0.0
      %1419 = vmatprep.subr.mxu0 0.0
      %1420 = vmatpush1.msra.mxu0 0.0
      %1421 = vmatprep.subr.mxu0 0.0
      %1422 = vmatpush1.msra.mxu0 0.0
      %1423 = vmatprep.subr.mxu0 0.0
      %1424 = vmatpush1.msra.mxu0 0.0
      %1425 = vmatprep.subr.mxu0 0.0
      %1426 = vmatpush1.msra.mxu0 0.0
      %1427 = vmatprep.subr.mxu0 0.0
      %1428 = vmatpush1.msra.mxu0 0.0
      %1429 = vmatprep.subr.mxu0 0.0
      %1430 = vmatpush1.msra.mxu0 0.0
      %1431 = vmatprep.subr.mxu0 0.0
      %1432 = vmatpush1.msra.mxu0 0.0
      %1433 = vmatprep.subr.mxu0 0.0
      %1434 = vmatpush1.msra.mxu0 0.0
      %1435 = vmatprep.subr.mxu0 0.0
      %1436 = vmatpush1.msra.mxu0 0.0
      %1437 = vmatprep.subr.mxu0 0.0
      %1438 = vmatpush1.msra.mxu0 0.0
      %1439 = vmatprep.subr.mxu0 0.0
      %1440 = vmatpush1.msra.mxu0 0.0
      %1441 = vmatprep.subr.mxu0 0.0
      %1442 = vmatpush1.msra.mxu0 0.0
      %1443 = vmatprep.subr.mxu0 0.0
      %1444 = vmatpush1.msra.mxu0 0.0
      %1445 = vmatprep.subr.mxu0 0.0
      %1446 = vmatpush1.msra.mxu0 0.0
      %1447 = vmatprep.subr.mxu0 0.0
      %1448 = vmatpush1.msra.mxu0 0.0
      %1449 = vmatprep.subr.mxu0 0.0
      %1450 = vmatpush1.msra.mxu0 0.0
      %1451 = vmatprep.subr.mxu0 0.0
      %1452 = vmatpush1.msra.mxu0 0.0
      %1453 = vmatprep.subr.mxu0 0.0
      %1454 = vmatpush1.msra.mxu0 0.0
      %1455 = vmatprep.subr.mxu0 0.0
      %1456 = vmatpush1.msra.mxu0 0.0
      %1457 = vmatprep.subr.mxu0 0.0
      %1458 = vmatpush1.msra.mxu0 0.0
      %1459 = vmatprep.subr.mxu0 0.0
      %1460 = vmatpush1.msra.mxu0 0.0
      %1461 = vmatprep.subr.mxu0 0.0
      %1462 = vmatpush1.msra.mxu0 0.0
      %1463 = vmatprep.subr.mxu0 0.0
      %1464 = vmatpush1.msra.mxu0 0.0
      %1465 = vmatprep.subr.mxu0 0.0
      %1466 = vmatpush1.msra.mxu0 0.0
      %1467 = vmatprep.subr.mxu0 0.0
      %1468 = vmatpush1.msra.mxu0 0.0
      %1469 = vmatprep.mubr.f32.mxu0 0.0
      %1470 = vmatmul.mubr.f32.gmra.mrb[0].mxu0 %v1403
      %v1471 = vpop.f32.mrb[0].mxu0
      %v1472 = vadd.f32 0.0, %v1471
      %v1473 = vpop.f32.mrb[0].mxu0
      %1474 = vdwg.mxu0
      %s1475 = scalar_lea.vmem %s607, 8
      %v1476 = vld [vmem:[%s1475] sm:$0xff]
      %v1478 = vsel %vm903, %v1472, 0
      %1480 = vmatprep.subr.mxu0 0.0
      %1481 = vmatpush1.msra.mxu0 %v1476
      %1482 = vmatprep.subr.mxu0 0.0
      %1483 = vmatpush1.msra.mxu0 0.0
      %1484 = vmatprep.subr.mxu0 0.0
      %1485 = vmatpush1.msra.mxu0 0.0
      %1486 = vmatprep.subr.mxu0 0.0
      %1487 = vmatpush1.msra.mxu0 0.0
      %1488 = vmatprep.subr.mxu0 0.0
      %1489 = vmatpush1.msra.mxu0 0.0
      %1490 = vmatprep.subr.mxu0 0.0
      %1491 = vmatpush1.msra.mxu0 0.0
      %1492 = vmatprep.subr.mxu0 0.0
      %1493 = vmatpush1.msra.mxu0 0.0
      %1494 = vmatprep.subr.mxu0 0.0
      %1495 = vmatpush1.msra.mxu0 0.0
      %1496 = vmatprep.subr.mxu0 0.0
      %1497 = vmatpush1.msra.mxu0 0.0
      %1498 = vmatprep.subr.mxu0 0.0
      %1499 = vmatpush1.msra.mxu0 0.0
      %1500 = vmatprep.subr.mxu0 0.0
      %1501 = vmatpush1.msra.mxu0 0.0
      %1502 = vmatprep.subr.mxu0 0.0
      %1503 = vmatpush1.msra.mxu0 0.0
      %1504 = vmatprep.subr.mxu0 0.0
      %1505 = vmatpush1.msra.mxu0 0.0
      %1506 = vmatprep.subr.mxu0 0.0
      %1507 = vmatpush1.msra.mxu0 0.0
      %1508 = vmatprep.subr.mxu0 0.0
      %1509 = vmatpush1.msra.mxu0 0.0
      %1510 = vmatprep.subr.mxu0 0.0
      %1511 = vmatpush1.msra.mxu0 0.0
      %1512 = vmatprep.subr.mxu0 0.0
      %1513 = vmatpush1.msra.mxu0 0.0
      %1514 = vmatprep.subr.mxu0 0.0
      %1515 = vmatpush1.msra.mxu0 0.0
      %1516 = vmatprep.subr.mxu0 0.0
      %1517 = vmatpush1.msra.mxu0 0.0
      %1518 = vmatprep.subr.mxu0 0.0
      %1519 = vmatpush1.msra.mxu0 0.0
      %1520 = vmatprep.subr.mxu0 0.0
      %1521 = vmatpush1.msra.mxu0 0.0
      %1522 = vmatprep.subr.mxu0 0.0
      %1523 = vmatpush1.msra.mxu0 0.0
      %1524 = vmatprep.subr.mxu0 0.0
      %1525 = vmatpush1.msra.mxu0 0.0
      %1526 = vmatprep.subr.mxu0 0.0
      %1527 = vmatpush1.msra.mxu0 0.0
      %1528 = vmatprep.subr.mxu0 0.0
      %1529 = vmatpush1.msra.mxu0 0.0
      %1530 = vmatprep.subr.mxu0 0.0
      %1531 = vmatpush1.msra.mxu0 0.0
      %1532 = vmatprep.subr.mxu0 0.0
      %1533 = vmatpush1.msra.mxu0 0.0
      %1534 = vmatprep.subr.mxu0 0.0
      %1535 = vmatpush1.msra.mxu0 0.0
      %1536 = vmatprep.subr.mxu0 0.0
      %1537 = vmatpush1.msra.mxu0 0.0
      %1538 = vmatprep.subr.mxu0 0.0
      %1539 = vmatpush1.msra.mxu0 0.0
      %1540 = vmatprep.subr.mxu0 0.0
      %1541 = vmatpush1.msra.mxu0 0.0
      %1542 = vmatprep.subr.mxu0 0.0
      %1543 = vmatpush1.msra.mxu0 0.0
      %1544 = vmatprep.mubr.f32.mxu0 0.0
      %1545 = vmatmul.mubr.f32.gmra.mrb[0].mxu0 %v1478
      %v1546 = vpop.f32.mrb[0].mxu0
      %v1547 = vadd.f32 0.0, %v1546
      %v1548 = vpop.f32.mrb[0].mxu0
      %1549 = vdwg.mxu0
      %v1551 = vsel %vm903, %v1061, 0
      %1553 = vmatprep.subr.mxu0 0.0
      %1554 = vmatpush1.msra.mxu0 %v1064
      %1555 = vmatprep.subr.mxu0 0.0
      %1556 = vmatpush1.msra.mxu0 0.0
      %1557 = vmatprep.subr.mxu0 0.0
      %1558 = vmatpush1.msra.mxu0 0.0
      %1559 = vmatprep.subr.mxu0 0.0
      %1560 = vmatpush1.msra.mxu0 0.0
      %1561 = vmatprep.subr.mxu0 0.0
      %1562 = vmatpush1.msra.mxu0 0.0
      %1563 = vmatprep.subr.mxu0 0.0
      %1564 = vmatpush1.msra.mxu0 0.0
      %1565 = vmatprep.subr.mxu0 0.0
      %1566 = vmatpush1.msra.mxu0 0.0
      %1567 = vmatprep.subr.mxu0 0.0
      %1568 = vmatpush1.msra.mxu0 0.0
      %1569 = vmatprep.subr.mxu0 0.0
      %1570 = vmatpush1.msra.mxu0 0.0
      %1571 = vmatprep.subr.mxu0 0.0
      %1572 = vmatpush1.msra.mxu0 0.0
      %1573 = vmatprep.subr.mxu0 0.0
      %1574 = vmatpush1.msra.mxu0 0.0
      %1575 = vmatprep.subr.mxu0 0.0
      %1576 = vmatpush1.msra.mxu0 0.0
      %1577 = vmatprep.subr.mxu0 0.0
      %1578 = vmatpush1.msra.mxu0 0.0
      %1579 = vmatprep.subr.mxu0 0.0
      %1580 = vmatpush1.msra.mxu0 0.0
      %1581 = vmatprep.subr.mxu0 0.0
      %1582 = vmatpush1.msra.mxu0 0.0
      %1583 = vmatprep.subr.mxu0 0.0
      %1584 = vmatpush1.msra.mxu0 0.0
      %1585 = vmatprep.subr.mxu0 0.0
      %1586 = vmatpush1.msra.mxu0 0.0
      %1587 = vmatprep.subr.mxu0 0.0
      %1588 = vmatpush1.msra.mxu0 0.0
      %1589 = vmatprep.subr.mxu0 0.0
      %1590 = vmatpush1.msra.mxu0 0.0
      %1591 = vmatprep.subr.mxu0 0.0
      %1592 = vmatpush1.msra.mxu0 0.0
      %1593 = vmatprep.subr.mxu0 0.0
      %1594 = vmatpush1.msra.mxu0 0.0
      %1595 = vmatprep.subr.mxu0 0.0
      %1596 = vmatpush1.msra.mxu0 0.0
      %1597 = vmatprep.subr.mxu0 0.0
      %1598 = vmatpush1.msra.mxu0 0.0
      %1599 = vmatprep.subr.mxu0 0.0
      %1600 = vmatpush1.msra.mxu0 0.0
      %1601 = vmatprep.subr.mxu0 0.0
      %1602 = vmatpush1.msra.mxu0 0.0
      %1603 = vmatprep.subr.mxu0 0.0
      %1604 = vmatpush1.msra.mxu0 0.0
      %1605 = vmatprep.subr.mxu0 0.0
      %1606 = vmatpush1.msra.mxu0 0.0
      %1607 = vmatprep.subr.mxu0 0.0
      %1608 = vmatpush1.msra.mxu0 0.0
      %1609 = vmatprep.subr.mxu0 0.0
      %1610 = vmatpush1.msra.mxu0 0.0
      %1611 = vmatprep.subr.mxu0 0.0
      %1612 = vmatpush1.msra.mxu0 0.0
      %1613 = vmatprep.subr.mxu0 0.0
      %1614 = vmatpush1.msra.mxu0 0.0
      %1615 = vmatprep.subr.mxu0 0.0
      %1616 = vmatpush1.msra.mxu0 0.0
      %1617 = vmatprep.mubr.f32.mxu0 0.0
      %1618 = vmatmul.mubr.f32.gmra.mrb[0].mxu0 %v1551
      %v1619 = vpop.f32.mrb[0].mxu0
      %v1620 = vadd.f32 %v1547, %v1619
      %v1621 = vpop.f32.mrb[0].mxu0
      %1622 = vdwg.mxu0
      %s1623 = scalar_lea.vmem %s598, 64
      %v1624 = vld [vmem:[%s1623] sm:$0xff]
      %v1625 = vld [vmem:[%s1623 + $0x8] sm:$0xff]
      %v1626 = vld [vmem:[%s1623 + $0x10] sm:$0xff]
      %v1627 = vld [vmem:[%s1623 + $0x18] sm:$0xff]
      %s1628 = scalar_lea.vmem %s602, 2
      %v1629 = vld [vmem:[%s1628] sm:$0x1]
      %s1630 = scalar_lea.vmem %s598, 192
      %v1631 = vld [vmem:[%s1630] sm:$0xff]
      %v1632 = vld [vmem:[%s1630 + $0x8] sm:$0xff]
      %v1633 = vld [vmem:[%s1630 + $0x10] sm:$0xff]
      %v1634 = vld [vmem:[%s1630 + $0x18] sm:$0xff]
      %s1635 = scalar_lea.vmem %s602, 6
      %v1636 = vld [vmem:[%s1635] sm:$0x1]
      %s1637 = scalar_lea.vmem %s598, 320
      %v1638 = vld [vmem:[%s1637] sm:$0xff]
      %v1639 = vld [vmem:[%s1637 + $0x8] sm:$0xff]
      %v1640 = vld [vmem:[%s1637 + $0x10] sm:$0xff]
      %v1641 = vld [vmem:[%s1637 + $0x18] sm:$0xff]
      %s1642 = scalar_lea.vmem %s602, 10
      %v1643 = vld [vmem:[%s1642] sm:$0x1]
      %v1645 = vlaneseq
      %v1646 = vshrl.u32 %v1645, 7
      %v1647 = vsub.s32 0, %v1646
      %v1648 = vrot.slane %v1629, %v1647
      %1650 = vmatprep.subr.mxu0 0.0
      %1651 = vmatpush1.msra.mxu0 %v1624
      %1652 = vmatprep.subr.mxu0 0.0
      %1653 = vmatpush1.msra.mxu0 %v1625
      %1654 = vmatprep.subr.mxu0 0.0
      %1655 = vmatpush1.msra.mxu0 %v1626
      %1656 = vmatprep.subr.mxu0 0.0
      %1657 = vmatpush1.msra.mxu0 %v1627
      %1658 = vmatprep.subr.mxu0 0.0
      %1659 = vmatpush1.msra.mxu0 0.0
      %1660 = vmatprep.subr.mxu0 0.0
      %1661 = vmatpush1.msra.mxu0 0.0
      %1662 = vmatprep.subr.mxu0 0.0
      %1663 = vmatpush1.msra.mxu0 0.0
      %1664 = vmatprep.subr.mxu0 0.0
      %1665 = vmatpush1.msra.mxu0 0.0
      %1666 = vmatprep.subr.mxu0 0.0
      %1667 = vmatpush1.msra.mxu0 0.0
      %1668 = vmatprep.subr.mxu0 0.0
      %1669 = vmatpush1.msra.mxu0 0.0
      %1670 = vmatprep.subr.mxu0 0.0
      %1671 = vmatpush1.msra.mxu0 0.0
      %1672 = vmatprep.subr.mxu0 0.0
      %1673 = vmatpush1.msra.mxu0 0.0
      %1674 = vmatprep.subr.mxu0 0.0
      %1675 = vmatpush1.msra.mxu0 0.0
      %1676 = vmatprep.subr.mxu0 0.0
      %1677 = vmatpush1.msra.mxu0 0.0
      %1678 = vmatprep.subr.mxu0 0.0
      %1679 = vmatpush1.msra.mxu0 0.0
      %1680 = vmatprep.subr.mxu0 0.0
      %1681 = vmatpush1.msra.mxu0 0.0
      %1682 = vmatprep.subr.mxu0 0.0
      %1683 = vmatpush1.msra.mxu0 0.0
      %1684 = vmatprep.subr.mxu0 0.0
      %1685 = vmatpush1.msra.mxu0 0.0
      %1686 = vmatprep.subr.mxu0 0.0
      %1687 = vmatpush1.msra.mxu0 0.0
      %1688 = vmatprep.subr.mxu0 0.0
      %1689 = vmatpush1.msra.mxu0 0.0
      %1690 = vmatprep.subr.mxu0 0.0
      %1691 = vmatpush1.msra.mxu0 0.0
      %1692 = vmatprep.subr.mxu0 0.0
      %1693 = vmatpush1.msra.mxu0 0.0
      %1694 = vmatprep.subr.mxu0 0.0
      %1695 = vmatpush1.msra.mxu0 0.0
      %1696 = vmatprep.subr.mxu0 0.0
      %1697 = vmatpush1.msra.mxu0 0.0
      %1698 = vmatprep.subr.mxu0 0.0
      %1699 = vmatpush1.msra.mxu0 0.0
      %1700 = vmatprep.subr.mxu0 0.0
      %1701 = vmatpush1.msra.mxu0 0.0
      %1702 = vmatprep.subr.mxu0 0.0
      %1703 = vmatpush1.msra.mxu0 0.0
      %1704 = vmatprep.subr.mxu0 0.0
      %1705 = vmatpush1.msra.mxu0 0.0
      %1706 = vmatprep.subr.mxu0 0.0
      %1707 = vmatpush1.msra.mxu0 0.0
      %1708 = vmatprep.subr.mxu0 0.0
      %1709 = vmatpush1.msra.mxu0 0.0
      %1710 = vmatprep.subr.mxu0 0.0
      %1711 = vmatpush1.msra.mxu0 0.0
      %1712 = vmatprep.subr.mxu0 0.0
      %1713 = vmatpush1.msra.mxu0 0.0
      %1714 = vmatprep.mubr.f32.mxu0 0.0
      %1715 = vmatmul.mubr.f32.gmra.mrb[0].mxu0 %v678
      %v1716 = vpop.f32.mrb[0].mxu0
      %v1717 = vadd.f32 %v1648, %v1716
      %v1718 = vpop.f32.mrb[0].mxu0
      %1719 = vdwg.mxu0
      %v1720 = vmul.f32 %v1717, 0.35355338
      %v1722 = vlaneseq
      %v1723 = vshrl.u32 %v1722, 7
      %v1724 = vsub.s32 0, %v1723
      %v1725 = vrot.slane %v1636, %v1724
      %1727 = vmatprep.subr.mxu0 0.0
      %1728 = vmatpush1.msra.mxu0 %v1631
      %1729 = vmatprep.subr.mxu0 0.0
      %1730 = vmatpush1.msra.mxu0 %v1632
      %1731 = vmatprep.subr.mxu0 0.0
      %1732 = vmatpush1.msra.mxu0 %v1633
      %1733 = vmatprep.subr.mxu0 0.0
      %1734 = vmatpush1.msra.mxu0 %v1634
      %1735 = vmatprep.subr.mxu0 0.0
      %1736 = vmatpush1.msra.mxu0 0.0
      %1737 = vmatprep.subr.mxu0 0.0
      %1738 = vmatpush1.msra.mxu0 0.0
      %1739 = vmatprep.subr.mxu0 0.0
      %1740 = vmatpush1.msra.mxu0 0.0
      %1741 = vmatprep.subr.mxu0 0.0
      %1742 = vmatpush1.msra.mxu0 0.0
      %1743 = vmatprep.subr.mxu0 0.0
      %1744 = vmatpush1.msra.mxu0 0.0
      %1745 = vmatprep.subr.mxu0 0.0
      %1746 = vmatpush1.msra.mxu0 0.0
      %1747 = vmatprep.subr.mxu0 0.0
      %1748 = vmatpush1.msra.mxu0 0.0
      %1749 = vmatprep.subr.mxu0 0.0
      %1750 = vmatpush1.msra.mxu0 0.0
      %1751 = vmatprep.subr.mxu0 0.0
      %1752 = vmatpush1.msra.mxu0 0.0
      %1753 = vmatprep.subr.mxu0 0.0
      %1754 = vmatpush1.msra.mxu0 0.0
      %1755 = vmatprep.subr.mxu0 0.0
      %1756 = vmatpush1.msra.mxu0 0.0
      %1757 = vmatprep.subr.mxu0 0.0
      %1758 = vmatpush1.msra.mxu0 0.0
      %1759 = vmatprep.subr.mxu0 0.0
      %1760 = vmatpush1.msra.mxu0 0.0
      %1761 = vmatprep.subr.mxu0 0.0
      %1762 = vmatpush1.msra.mxu0 0.0
      %1763 = vmatprep.subr.mxu0 0.0
      %1764 = vmatpush1.msra.mxu0 0.0
      %1765 = vmatprep.subr.mxu0 0.0
      %1766 = vmatpush1.msra.mxu0 0.0
      %1767 = vmatprep.subr.mxu0 0.0
      %1768 = vmatpush1.msra.mxu0 0.0
      %1769 = vmatprep.subr.mxu0 0.0
      %1770 = vmatpush1.msra.mxu0 0.0
      %1771 = vmatprep.subr.mxu0 0.0
      %1772 = vmatpush1.msra.mxu0 0.0
      %1773 = vmatprep.subr.mxu0 0.0
      %1774 = vmatpush1.msra.mxu0 0.0
      %1775 = vmatprep.subr.mxu0 0.0
      %1776 = vmatpush1.msra.mxu0 0.0
      %1777 = vmatprep.subr.mxu0 0.0
      %1778 = vmatpush1.msra.mxu0 0.0
      %1779 = vmatprep.subr.mxu0 0.0
      %1780 = vmatpush1.msra.mxu0 0.0
      %1781 = vmatprep.subr.mxu0 0.0
      %1782 = vmatpush1.msra.mxu0 0.0
      %1783 = vmatprep.subr.mxu0 0.0
      %1784 = vmatpush1.msra.mxu0 0.0
      %1785 = vmatprep.subr.mxu0 0.0
      %1786 = vmatpush1.msra.mxu0 0.0
      %1787 = vmatprep.subr.mxu0 0.0
      %1788 = vmatpush1.msra.mxu0 0.0
      %1789 = vmatprep.subr.mxu0 0.0
      %1790 = vmatpush1.msra.mxu0 0.0
      %1791 = vmatprep.mubr.f32.mxu0 0.0
      %1792 = vmatmul.mubr.f32.gmra.mrb[0].mxu0 %v678
      %v1793 = vpop.f32.mrb[0].mxu0
      %v1794 = vadd.f32 %v1725, %v1793
      %v1795 = vpop.f32.mrb[0].mxu0
      %1796 = vdwg.mxu0
      %v1798 = vlaneseq
      %v1799 = vshrl.u32 %v1798, 7
      %v1800 = vsub.s32 0, %v1799
      %v1801 = vrot.slane %v1643, %v1800
      %1803 = vmatprep.subr.mxu0 0.0
      %1804 = vmatpush1.msra.mxu0 %v1638
      %1805 = vmatprep.subr.mxu0 0.0
      %1806 = vmatpush1.msra.mxu0 %v1639
      %1807 = vmatprep.subr.mxu0 0.0
      %1808 = vmatpush1.msra.mxu0 %v1640
      %1809 = vmatprep.subr.mxu0 0.0
      %1810 = vmatpush1.msra.mxu0 %v1641
      %1811 = vmatprep.subr.mxu0 0.0
      %1812 = vmatpush1.msra.mxu0 0.0
      %1813 = vmatprep.subr.mxu0 0.0
      %1814 = vmatpush1.msra.mxu0 0.0
      %1815 = vmatprep.subr.mxu0 0.0
      %1816 = vmatpush1.msra.mxu0 0.0
      %1817 = vmatprep.subr.mxu0 0.0
      %1818 = vmatpush1.msra.mxu0 0.0
      %1819 = vmatprep.subr.mxu0 0.0
      %1820 = vmatpush1.msra.mxu0 0.0
      %1821 = vmatprep.subr.mxu0 0.0
      %1822 = vmatpush1.msra.mxu0 0.0
      %1823 = vmatprep.subr.mxu0 0.0
      %1824 = vmatpush1.msra.mxu0 0.0
      %1825 = vmatprep.subr.mxu0 0.0
      %1826 = vmatpush1.msra.mxu0 0.0
      %1827 = vmatprep.subr.mxu0 0.0
      %1828 = vmatpush1.msra.mxu0 0.0
      %1829 = vmatprep.subr.mxu0 0.0
      %1830 = vmatpush1.msra.mxu0 0.0
      %1831 = vmatprep.subr.mxu0 0.0
      %1832 = vmatpush1.msra.mxu0 0.0
      %1833 = vmatprep.subr.mxu0 0.0
      %1834 = vmatpush1.msra.mxu0 0.0
      %1835 = vmatprep.subr.mxu0 0.0
      %1836 = vmatpush1.msra.mxu0 0.0
      %1837 = vmatprep.subr.mxu0 0.0
      %1838 = vmatpush1.msra.mxu0 0.0
      %1839 = vmatprep.subr.mxu0 0.0
      %1840 = vmatpush1.msra.mxu0 0.0
      %1841 = vmatprep.subr.mxu0 0.0
      %1842 = vmatpush1.msra.mxu0 0.0
      %1843 = vmatprep.subr.mxu0 0.0
      %1844 = vmatpush1.msra.mxu0 0.0
      %1845 = vmatprep.subr.mxu0 0.0
      %1846 = vmatpush1.msra.mxu0 0.0
      %1847 = vmatprep.subr.mxu0 0.0
      %1848 = vmatpush1.msra.mxu0 0.0
      %1849 = vmatprep.subr.mxu0 0.0
      %1850 = vmatpush1.msra.mxu0 0.0
      %1851 = vmatprep.subr.mxu0 0.0
      %1852 = vmatpush1.msra.mxu0 0.0
      %1853 = vmatprep.subr.mxu0 0.0
      %1854 = vmatpush1.msra.mxu0 0.0
      %1855 = vmatprep.subr.mxu0 0.0
      %1856 = vmatpush1.msra.mxu0 0.0
      %1857 = vmatprep.subr.mxu0 0.0
      %1858 = vmatpush1.msra.mxu0 0.0
      %1859 = vmatprep.subr.mxu0 0.0
      %1860 = vmatpush1.msra.mxu0 0.0
      %1861 = vmatprep.subr.mxu0 0.0
      %1862 = vmatpush1.msra.mxu0 0.0
      %1863 = vmatprep.subr.mxu0 0.0
      %1864 = vmatpush1.msra.mxu0 0.0
      %1865 = vmatprep.subr.mxu0 0.0
      %1866 = vmatpush1.msra.mxu0 0.0
      %1867 = vmatprep.mubr.f32.mxu0 0.0
      %1868 = vmatmul.mubr.f32.gmra.mrb[0].mxu0 %v678
      %v1869 = vpop.f32.mrb[0].mxu0
      %v1870 = vadd.f32 %v1801, %v1869
      %v1871 = vpop.f32.mrb[0].mxu0
      %1872 = vdwg.mxu0
      %v1874 = vsel %vm903, %v1720, 0
      %v1877 = vsel %vm903, %v1794, 0
      %1879 = vmatprep.subr.mxu0 0.0
      %1880 = vmatpush1.xpose.msra.mxu0 %v1877
      %1881 = vmatprep.subr.mxu0 0.0
      %1882 = vmatpush1.xpose.msra.mxu0 0.0
      %1883 = vmatprep.subr.mxu0 0.0
      %1884 = vmatpush1.xpose.msra.mxu0 0.0
      %1885 = vmatprep.subr.mxu0 0.0
      %1886 = vmatpush1.xpose.msra.mxu0 0.0
      %1887 = vmatprep.subr.mxu0 0.0
      %1888 = vmatpush1.xpose.msra.mxu0 0.0
      %1889 = vmatprep.subr.mxu0 0.0
      %1890 = vmatpush1.xpose.msra.mxu0 0.0
      %1891 = vmatprep.subr.mxu0 0.0
      %1892 = vmatpush1.xpose.msra.mxu0 0.0
      %1893 = vmatprep.subr.mxu0 0.0
      %1894 = vmatpush1.xpose.msra.mxu0 0.0
      %1895 = vmatprep.subr.mxu0 0.0
      %1896 = vmatpush1.xpose.msra.mxu0 0.0
      %1897 = vmatprep.subr.mxu0 0.0
      %1898 = vmatpush1.xpose.msra.mxu0 0.0
      %1899 = vmatprep.subr.mxu0 0.0
      %1900 = vmatpush1.xpose.msra.mxu0 0.0
      %1901 = vmatprep.subr.mxu0 0.0
      %1902 = vmatpush1.xpose.msra.mxu0 0.0
      %1903 = vmatprep.subr.mxu0 0.0
      %1904 = vmatpush1.xpose.msra.mxu0 0.0
      %1905 = vmatprep.subr.mxu0 0.0
      %1906 = vmatpush1.xpose.msra.mxu0 0.0
      %1907 = vmatprep.subr.mxu0 0.0
      %1908 = vmatpush1.xpose.msra.mxu0 0.0
      %1909 = vmatprep.subr.mxu0 0.0
      %1910 = vmatpush1.xpose.msra.mxu0 0.0
      %1911 = vmatprep.subr.mxu0 0.0
      %1912 = vmatpush1.xpose.msra.mxu0 0.0
      %1913 = vmatprep.subr.mxu0 0.0
      %1914 = vmatpush1.xpose.msra.mxu0 0.0
      %1915 = vmatprep.subr.mxu0 0.0
      %1916 = vmatpush1.xpose.msra.mxu0 0.0
      %1917 = vmatprep.subr.mxu0 0.0
      %1918 = vmatpush1.xpose.msra.mxu0 0.0
      %1919 = vmatprep.subr.mxu0 0.0
      %1920 = vmatpush1.xpose.msra.mxu0 0.0
      %1921 = vmatprep.subr.mxu0 0.0
      %1922 = vmatpush1.xpose.msra.mxu0 0.0
      %1923 = vmatprep.subr.mxu0 0.0
      %1924 = vmatpush1.xpose.msra.mxu0 0.0
      %1925 = vmatprep.subr.mxu0 0.0
      %1926 = vmatpush1.xpose.msra.mxu0 0.0
      %1927 = vmatprep.subr.mxu0 0.0
      %1928 = vmatpush1.xpose.msra.mxu0 0.0
      %1929 = vmatprep.subr.mxu0 0.0
      %1930 = vmatpush1.xpose.msra.mxu0 0.0
      %1931 = vmatprep.subr.mxu0 0.0
      %1932 = vmatpush1.xpose.msra.mxu0 0.0
      %1933 = vmatprep.subr.mxu0 0.0
      %1934 = vmatpush1.xpose.msra.mxu0 0.0
      %1935 = vmatprep.subr.mxu0 0.0
      %1936 = vmatpush1.xpose.msra.mxu0 0.0
      %1937 = vmatprep.subr.mxu0 0.0
      %1938 = vmatpush1.xpose.msra.mxu0 0.0
      %1939 = vmatprep.subr.mxu0 0.0
      %1940 = vmatpush1.xpose.msra.mxu0 0.0
      %1941 = vmatprep.subr.mxu0 0.0
      %1942 = vmatpush1.xpose.msra.mxu0 0.0
      %1943 = vmatprep.mubr.f32.mxu0 0.0
      %1944 = vmatmul.mubr.f32.gmra.mrb[0].mxu0 %v1874
      %v1945 = vpop.f32.mrb[0].mxu0
      %v1946 = vadd.f32 0.0, %v1945
      %v1947 = vpop.f32.mrb[0].mxu0
      %1948 = vdwg.mxu0
      %v1949 = vsel %vm903, %v1946, -inf
      %1950 = vmax.xlane.f32.xlu0 %v1949
      %v1951 = vpop.xlane.xlu0 %1950
      %v1952 = vsub.f32 %v1946, %v1951
      %v1953 = vmul.f32 %v1952, 1.442695
      %v1954 = vpow.pop %v1953
      %v1955 = vsel %vm903, %v1954, 0.0
      %1956 = vadd.xlane.f32.xlu0 %v1955
      %v1957 = vpop.xlane.xlu0 %1956
      %v1958 = vrcp.pop %v1957
      %v1959 = vmul.f32 %v1954, %v1958
      %v1961 = vsel %vm903, %v1959, 0
      %1963 = vmatprep.subr.mxu0 0.0
      %1964 = vmatpush1.msra.mxu0 %v1870
      %1965 = vmatprep.subr.mxu0 0.0
      %1966 = vmatpush1.msra.mxu0 0.0
      %1967 = vmatprep.subr.mxu0 0.0
      %1968 = vmatpush1.msra.mxu0 0.0
      %1969 = vmatprep.subr.mxu0 0.0
      %1970 = vmatpush1.msra.mxu0 0.0
      %1971 = vmatprep.subr.mxu0 0.0
      %1972 = vmatpush1.msra.mxu0 0.0
      %1973 = vmatprep.subr.mxu0 0.0
      %1974 = vmatpush1.msra.mxu0 0.0
      %1975 = vmatprep.subr.mxu0 0.0
      %1976 = vmatpush1.msra.mxu0 0.0
      %1977 = vmatprep.subr.mxu0 0.0
      %1978 = vmatpush1.msra.mxu0 0.0
      %1979 = vmatprep.subr.mxu0 0.0
      %1980 = vmatpush1.msra.mxu0 0.0
      %1981 = vmatprep.subr.mxu0 0.0
      %1982 = vmatpush1.msra.mxu0 0.0
      %1983 = vmatprep.subr.mxu0 0.0
      %1984 = vmatpush1.msra.mxu0 0.0
      %1985 = vmatprep.subr.mxu0 0.0
      %1986 = vmatpush1.msra.mxu0 0.0
      %1987 = vmatprep.subr.mxu0 0.0
      %1988 = vmatpush1.msra.mxu0 0.0
      %1989 = vmatprep.subr.mxu0 0.0
      %1990 = vmatpush1.msra.mxu0 0.0
      %1991 = vmatprep.subr.mxu0 0.0
      %1992 = vmatpush1.msra.mxu0 0.0
      %1993 = vmatprep.subr.mxu0 0.0
      %1994 = vmatpush1.msra.mxu0 0.0
      %1995 = vmatprep.subr.mxu0 0.0
      %1996 = vmatpush1.msra.mxu0 0.0
      %1997 = vmatprep.subr.mxu0 0.0
      %1998 = vmatpush1.msra.mxu0 0.0
      %1999 = vmatprep.subr.mxu0 0.0
      %2000 = vmatpush1.msra.mxu0 0.0
      %2001 = vmatprep.subr.mxu0 0.0
      %2002 = vmatpush1.msra.mxu0 0.0
      %2003 = vmatprep.subr.mxu0 0.0
      %2004 = vmatpush1.msra.mxu0 0.0
      %2005 = vmatprep.subr.mxu0 0.0
      %2006 = vmatpush1.msra.mxu0 0.0
      %2007 = vmatprep.subr.mxu0 0.0
      %2008 = vmatpush1.msra.mxu0 0.0
      %2009 = vmatprep.subr.mxu0 0.0
      %2010 = vmatpush1.msra.mxu0 0.0
      %2011 = vmatprep.subr.mxu0 0.0
      %2012 = vmatpush1.msra.mxu0 0.0
      %2013 = vmatprep.subr.mxu0 0.0
      %2014 = vmatpush1.msra.mxu0 0.0
      %2015 = vmatprep.subr.mxu0 0.0
      %2016 = vmatpush1.msra.mxu0 0.0
      %2017 = vmatprep.subr.mxu0 0.0
      %2018 = vmatpush1.msra.mxu0 0.0
      %2019 = vmatprep.subr.mxu0 0.0
      %2020 = vmatpush1.msra.mxu0 0.0
      %2021 = vmatprep.subr.mxu0 0.0
      %2022 = vmatpush1.msra.mxu0 0.0
      %2023 = vmatprep.subr.mxu0 0.0
      %2024 = vmatpush1.msra.mxu0 0.0
      %2025 = vmatprep.subr.mxu0 0.0
      %2026 = vmatpush1.msra.mxu0 0.0
      %2027 = vmatprep.mubr.f32.mxu0 0.0
      %2028 = vmatmul.mubr.f32.gmra.mrb[0].mxu0 %v1961
      %v2029 = vpop.f32.mrb[0].mxu0
      %v2030 = vadd.f32 0.0, %v2029
      %v2031 = vpop.f32.mrb[0].mxu0
      %2032 = vdwg.mxu0
      %s2033 = scalar_lea.vmem %s607, 16
      %v2034 = vld [vmem:[%s2033] sm:$0xff]
      %v2036 = vsel %vm903, %v2030, 0
      %2038 = vmatprep.subr.mxu0 0.0
      %2039 = vmatpush1.msra.mxu0 %v2034
      %2040 = vmatprep.subr.mxu0 0.0
      %2041 = vmatpush1.msra.mxu0 0.0
      %2042 = vmatprep.subr.mxu0 0.0
      %2043 = vmatpush1.msra.mxu0 0.0
      %2044 = vmatprep.subr.mxu0 0.0
      %2045 = vmatpush1.msra.mxu0 0.0
      %2046 = vmatprep.subr.mxu0 0.0
      %2047 = vmatpush1.msra.mxu0 0.0
      %2048 = vmatprep.subr.mxu0 0.0
      %2049 = vmatpush1.msra.mxu0 0.0
      %2050 = vmatprep.subr.mxu0 0.0
      %2051 = vmatpush1.msra.mxu0 0.0
      %2052 = vmatprep.subr.mxu0 0.0
      %2053 = vmatpush1.msra.mxu0 0.0
      %2054 = vmatprep.subr.mxu0 0.0
      %2055 = vmatpush1.msra.mxu0 0.0
      %2056 = vmatprep.subr.mxu0 0.0
      %2057 = vmatpush1.msra.mxu0 0.0
      %2058 = vmatprep.subr.mxu0 0.0
      %2059 = vmatpush1.msra.mxu0 0.0
      %2060 = vmatprep.subr.mxu0 0.0
      %2061 = vmatpush1.msra.mxu0 0.0
      %2062 = vmatprep.subr.mxu0 0.0
      %2063 = vmatpush1.msra.mxu0 0.0
      %2064 = vmatprep.subr.mxu0 0.0
      %2065 = vmatpush1.msra.mxu0 0.0
      %2066 = vmatprep.subr.mxu0 0.0
      %2067 = vmatpush1.msra.mxu0 0.0
      %2068 = vmatprep.subr.mxu0 0.0
      %2069 = vmatpush1.msra.mxu0 0.0
      %2070 = vmatprep.subr.mxu0 0.0
      %2071 = vmatpush1.msra.mxu0 0.0
      %2072 = vmatprep.subr.mxu0 0.0
      %2073 = vmatpush1.msra.mxu0 0.0
      %2074 = vmatprep.subr.mxu0 0.0
      %2075 = vmatpush1.msra.mxu0 0.0
      %2076 = vmatprep.subr.mxu0 0.0
      %2077 = vmatpush1.msra.mxu0 0.0
      %2078 = vmatprep.subr.mxu0 0.0
      %2079 = vmatpush1.msra.mxu0 0.0
      %2080 = vmatprep.subr.mxu0 0.0
      %2081 = vmatpush1.msra.mxu0 0.0
      %2082 = vmatprep.subr.mxu0 0.0
      %2083 = vmatpush1.msra.mxu0 0.0
      %2084 = vmatprep.subr.mxu0 0.0
      %2085 = vmatpush1.msra.mxu0 0.0
      %2086 = vmatprep.subr.mxu0 0.0
      %2087 = vmatpush1.msra.mxu0 0.0
      %2088 = vmatprep.subr.mxu0 0.0
      %2089 = vmatpush1.msra.mxu0 0.0
      %2090 = vmatprep.subr.mxu0 0.0
      %2091 = vmatpush1.msra.mxu0 0.0
      %2092 = vmatprep.subr.mxu0 0.0
      %2093 = vmatpush1.msra.mxu0 0.0
      %2094 = vmatprep.subr.mxu0 0.0
      %2095 = vmatpush1.msra.mxu0 0.0
      %2096 = vmatprep.subr.mxu0 0.0
      %2097 = vmatpush1.msra.mxu0 0.0
      %2098 = vmatprep.subr.mxu0 0.0
      %2099 = vmatpush1.msra.mxu0 0.0
      %2100 = vmatprep.subr.mxu0 0.0
      %2101 = vmatpush1.msra.mxu0 0.0
      %2102 = vmatprep.mubr.f32.mxu0 0.0
      %2103 = vmatmul.mubr.f32.gmra.mrb[0].mxu0 %v2036
      %v2104 = vpop.f32.mrb[0].mxu0
      %v2105 = vadd.f32 0.0, %v2104
      %v2106 = vpop.f32.mrb[0].mxu0
      %2107 = vdwg.mxu0
      %v2108 = vadd.f32 %v1620, %v2105
      %s2109 = scalar_lea.vmem %s598, 96
      %v2110 = vld [vmem:[%s2109] sm:$0xff]
      %v2111 = vld [vmem:[%s2109 + $0x8] sm:$0xff]
      %v2112 = vld [vmem:[%s2109 + $0x10] sm:$0xff]
      %v2113 = vld [vmem:[%s2109 + $0x18] sm:$0xff]
      %s2114 = scalar_lea.vmem %s602, 3
      %v2115 = vld [vmem:[%s2114] sm:$0x1]
      %s2116 = scalar_lea.vmem %s598, 224
      %v2117 = vld [vmem:[%s2116] sm:$0xff]
      %v2118 = vld [vmem:[%s2116 + $0x8] sm:$0xff]
      %v2119 = vld [vmem:[%s2116 + $0x10] sm:$0xff]
      %v2120 = vld [vmem:[%s2116 + $0x18] sm:$0xff]
      %s2121 = scalar_lea.vmem %s602, 7
      %v2122 = vld [vmem:[%s2121] sm:$0x1]
      %s2123 = scalar_lea.vmem %s598, 352
      %v2124 = vld [vmem:[%s2123] sm:$0xff]
      %v2125 = vld [vmem:[%s2123 + $0x8] sm:$0xff]
      %v2126 = vld [vmem:[%s2123 + $0x10] sm:$0xff]
      %v2127 = vld [vmem:[%s2123 + $0x18] sm:$0xff]
      %s2128 = scalar_lea.vmem %s602, 11
      %v2129 = vld [vmem:[%s2128] sm:$0x1]
      %v2131 = vlaneseq
      %v2132 = vshrl.u32 %v2131, 7
      %v2133 = vsub.s32 0, %v2132
      %v2134 = vrot.slane %v2115, %v2133
      %2136 = vmatprep.subr.mxu0 0.0
      %2137 = vmatpush1.msra.mxu0 %v2110
      %2138 = vmatprep.subr.mxu0 0.0
      %2139 = vmatpush1.msra.mxu0 %v2111
      %2140 = vmatprep.subr.mxu0 0.0
      %2141 = vmatpush1.msra.mxu0 %v2112
      %2142 = vmatprep.subr.mxu0 0.0
      %2143 = vmatpush1.msra.mxu0 %v2113
      %2144 = vmatprep.subr.mxu0 0.0
      %2145 = vmatpush1.msra.mxu0 0.0
      %2146 = vmatprep.subr.mxu0 0.0
      %2147 = vmatpush1.msra.mxu0 0.0
      %2148 = vmatprep.subr.mxu0 0.0
      %2149 = vmatpush1.msra.mxu0 0.0
      %2150 = vmatprep.subr.mxu0 0.0
      %2151 = vmatpush1.msra.mxu0 0.0
      %2152 = vmatprep.subr.mxu0 0.0
      %2153 = vmatpush1.msra.mxu0 0.0
      %2154 = vmatprep.subr.mxu0 0.0
      %2155 = vmatpush1.msra.mxu0 0.0
      %2156 = vmatprep.subr.mxu0 0.0
      %2157 = vmatpush1.msra.mxu0 0.0
      %2158 = vmatprep.subr.mxu0 0.0
      %2159 = vmatpush1.msra.mxu0 0.0
      %2160 = vmatprep.subr.mxu0 0.0
      %2161 = vmatpush1.msra.mxu0 0.0
      %2162 = vmatprep.subr.mxu0 0.0
      %2163 = vmatpush1.msra.mxu0 0.0
      %2164 = vmatprep.subr.mxu0 0.0
      %2165 = vmatpush1.msra.mxu0 0.0
      %2166 = vmatprep.subr.mxu0 0.0
      %2167 = vmatpush1.msra.mxu0 0.0
      %2168 = vmatprep.subr.mxu0 0.0
      %2169 = vmatpush1.msra.mxu0 0.0
      %2170 = vmatprep.subr.mxu0 0.0
      %2171 = vmatpush1.msra.mxu0 0.0
      %2172 = vmatprep.subr.mxu0 0.0
      %2173 = vmatpush1.msra.mxu0 0.0
      %2174 = vmatprep.subr.mxu0 0.0
      %2175 = vmatpush1.msra.mxu0 0.0
      %2176 = vmatprep.subr.mxu0 0.0
      %2177 = vmatpush1.msra.mxu0 0.0
      %2178 = vmatprep.subr.mxu0 0.0
      %2179 = vmatpush1.msra.mxu0 0.0
      %2180 = vmatprep.subr.mxu0 0.0
      %2181 = vmatpush1.msra.mxu0 0.0
      %2182 = vmatprep.subr.mxu0 0.0
      %2183 = vmatpush1.msra.mxu0 0.0
      %2184 = vmatprep.subr.mxu0 0.0
      %2185 = vmatpush1.msra.mxu0 0.0
      %2186 = vmatprep.subr.mxu0 0.0
      %2187 = vmatpush1.msra.mxu0 0.0
      %2188 = vmatprep.subr.mxu0 0.0
      %2189 = vmatpush1.msra.mxu0 0.0
      %2190 = vmatprep.subr.mxu0 0.0
      %2191 = vmatpush1.msra.mxu0 0.0
      %2192 = vmatprep.subr.mxu0 0.0
      %2193 = vmatpush1.msra.mxu0 0.0
      %2194 = vmatprep.subr.mxu0 0.0
      %2195 = vmatpush1.msra.mxu0 0.0
      %2196 = vmatprep.subr.mxu0 0.0
      %2197 = vmatpush1.msra.mxu0 0.0
      %2198 = vmatprep.subr.mxu0 0.0
      %2199 = vmatpush1.msra.mxu0 0.0
      %2200 = vmatprep.mubr.f32.mxu0 0.0
      %2201 = vmatmul.mubr.f32.gmra.mrb[0].mxu0 %v678
      %v2202 = vpop.f32.mrb[0].mxu0
      %v2203 = vadd.f32 %v2134, %v2202
      %v2204 = vpop.f32.mrb[0].mxu0
      %2205 = vdwg.mxu0
      %v2206 = vmul.f32 %v2203, 0.35355338
      %v2208 = vlaneseq
      %v2209 = vshrl.u32 %v2208, 7
      %v2210 = vsub.s32 0, %v2209
      %v2211 = vrot.slane %v2122, %v2210
      %2213 = vmatprep.subr.mxu0 0.0
      %2214 = vmatpush1.msra.mxu0 %v2117
      %2215 = vmatprep.subr.mxu0 0.0
      %2216 = vmatpush1.msra.mxu0 %v2118
      %2217 = vmatprep.subr.mxu0 0.0
      %2218 = vmatpush1.msra.mxu0 %v2119
      %2219 = vmatprep.subr.mxu0 0.0
      %2220 = vmatpush1.msra.mxu0 %v2120
      %2221 = vmatprep.subr.mxu0 0.0
      %2222 = vmatpush1.msra.mxu0 0.0
      %2223 = vmatprep.subr.mxu0 0.0
      %2224 = vmatpush1.msra.mxu0 0.0
      %2225 = vmatprep.subr.mxu0 0.0
      %2226 = vmatpush1.msra.mxu0 0.0
      %2227 = vmatprep.subr.mxu0 0.0
      %2228 = vmatpush1.msra.mxu0 0.0
      %2229 = vmatprep.subr.mxu0 0.0
      %2230 = vmatpush1.msra.mxu0 0.0
      %2231 = vmatprep.subr.mxu0 0.0
      %2232 = vmatpush1.msra.mxu0 0.0
      %2233 = vmatprep.subr.mxu0 0.0
      %2234 = vmatpush1.msra.mxu0 0.0
      %2235 = vmatprep.subr.mxu0 0.0
      %2236 = vmatpush1.msra.mxu0 0.0
      %2237 = vmatprep.subr.mxu0 0.0
      %2238 = vmatpush1.msra.mxu0 0.0
      %2239 = vmatprep.subr.mxu0 0.0
      %2240 = vmatpush1.msra.mxu0 0.0
      %2241 = vmatprep.subr.mxu0 0.0
      %2242 = vmatpush1.msra.mxu0 0.0
      %2243 = vmatprep.subr.mxu0 0.0
      %2244 = vmatpush1.msra.mxu0 0.0
      %2245 = vmatprep.subr.mxu0 0.0
      %2246 = vmatpush1.msra.mxu0 0.0
      %2247 = vmatprep.subr.mxu0 0.0
      %2248 = vmatpush1.msra.mxu0 0.0
      %2249 = vmatprep.subr.mxu0 0.0
      %2250 = vmatpush1.msra.mxu0 0.0
      %2251 = vmatprep.subr.mxu0 0.0
      %2252 = vmatpush1.msra.mxu0 0.0
      %2253 = vmatprep.subr.mxu0 0.0
      %2254 = vmatpush1.msra.mxu0 0.0
      %2255 = vmatprep.subr.mxu0 0.0
      %2256 = vmatpush1.msra.mxu0 0.0
      %2257 = vmatprep.subr.mxu0 0.0
      %2258 = vmatpush1.msra.mxu0 0.0
      %2259 = vmatprep.subr.mxu0 0.0
      %2260 = vmatpush1.msra.mxu0 0.0
      %2261 = vmatprep.subr.mxu0 0.0
      %2262 = vmatpush1.msra.mxu0 0.0
      %2263 = vmatprep.subr.mxu0 0.0
      %2264 = vmatpush1.msra.mxu0 0.0
      %2265 = vmatprep.subr.mxu0 0.0
      %2266 = vmatpush1.msra.mxu0 0.0
      %2267 = vmatprep.subr.mxu0 0.0
      %2268 = vmatpush1.msra.mxu0 0.0
      %2269 = vmatprep.subr.mxu0 0.0
      %2270 = vmatpush1.msra.mxu0 0.0
      %2271 = vmatprep.subr.mxu0 0.0
      %2272 = vmatpush1.msra.mxu0 0.0
      %2273 = vmatprep.subr.mxu0 0.0
      %2274 = vmatpush1.msra.mxu0 0.0
      %2275 = vmatprep.subr.mxu0 0.0
      %2276 = vmatpush1.msra.mxu0 0.0
      %2277 = vmatprep.mubr.f32.mxu0 0.0
      %2278 = vmatmul.mubr.f32.gmra.mrb[0].mxu0 %v678
      %v2279 = vpop.f32.mrb[0].mxu0
      %v2280 = vadd.f32 %v2211, %v2279
      %v2281 = vpop.f32.mrb[0].mxu0
      %2282 = vdwg.mxu0
      %v2284 = vlaneseq
      %v2285 = vshrl.u32 %v2284, 7
      %v2286 = vsub.s32 0, %v2285
      %v2287 = vrot.slane %v2129, %v2286
      %2289 = vmatprep.subr.mxu0 0.0
      %2290 = vmatpush1.msra.mxu0 %v2124
      %2291 = vmatprep.subr.mxu0 0.0
      %2292 = vmatpush1.msra.mxu0 %v2125
      %2293 = vmatprep.subr.mxu0 0.0
      %2294 = vmatpush1.msra.mxu0 %v2126
      %2295 = vmatprep.subr.mxu0 0.0
      %2296 = vmatpush1.msra.mxu0 %v2127
      %2297 = vmatprep.subr.mxu0 0.0
      %2298 = vmatpush1.msra.mxu0 0.0
      %2299 = vmatprep.subr.mxu0 0.0
      %2300 = vmatpush1.msra.mxu0 0.0
      %2301 = vmatprep.subr.mxu0 0.0
      %2302 = vmatpush1.msra.mxu0 0.0
      %2303 = vmatprep.subr.mxu0 0.0
      %2304 = vmatpush1.msra.mxu0 0.0
      %2305 = vmatprep.subr.mxu0 0.0
      %2306 = vmatpush1.msra.mxu0 0.0
      %2307 = vmatprep.subr.mxu0 0.0
      %2308 = vmatpush1.msra.mxu0 0.0
      %2309 = vmatprep.subr.mxu0 0.0
      %2310 = vmatpush1.msra.mxu0 0.0
      %2311 = vmatprep.subr.mxu0 0.0
      %2312 = vmatpush1.msra.mxu0 0.0
      %2313 = vmatprep.subr.mxu0 0.0
      %2314 = vmatpush1.msra.mxu0 0.0
      %2315 = vmatprep.subr.mxu0 0.0
      %2316 = vmatpush1.msra.mxu0 0.0
      %2317 = vmatprep.subr.mxu0 0.0
      %2318 = vmatpush1.msra.mxu0 0.0
      %2319 = vmatprep.subr.mxu0 0.0
      %2320 = vmatpush1.msra.mxu0 0.0
      %2321 = vmatprep.subr.mxu0 0.0
      %2322 = vmatpush1.msra.mxu0 0.0
      %2323 = vmatprep.subr.mxu0 0.0
      %2324 = vmatpush1.msra.mxu0 0.0
      %2325 = vmatprep.subr.mxu0 0.0
      %2326 = vmatpush1.msra.mxu0 0.0
      %2327 = vmatprep.subr.mxu0 0.0
      %2328 = vmatpush1.msra.mxu0 0.0
      %2329 = vmatprep.subr.mxu0 0.0
      %2330 = vmatpush1.msra.mxu0 0.0
      %2331 = vmatprep.subr.mxu0 0.0
      %2332 = vmatpush1.msra.mxu0 0.0
      %2333 = vmatprep.subr.mxu0 0.0
      %2334 = vmatpush1.msra.mxu0 0.0
      %2335 = vmatprep.subr.mxu0 0.0
      %2336 = vmatpush1.msra.mxu0 0.0
      %2337 = vmatprep.subr.mxu0 0.0
      %2338 = vmatpush1.msra.mxu0 0.0
      %2339 = vmatprep.subr.mxu0 0.0
      %2340 = vmatpush1.msra.mxu0 0.0
      %2341 = vmatprep.subr.mxu0 0.0
      %2342 = vmatpush1.msra.mxu0 0.0
      %2343 = vmatprep.subr.mxu0 0.0
      %2344 = vmatpush1.msra.mxu0 0.0
      %2345 = vmatprep.subr.mxu0 0.0
      %2346 = vmatpush1.msra.mxu0 0.0
      %2347 = vmatprep.subr.mxu0 0.0
      %2348 = vmatpush1.msra.mxu0 0.0
      %2349 = vmatprep.subr.mxu0 0.0
      %2350 = vmatpush1.msra.mxu0 0.0
      %2351 = vmatprep.subr.mxu0 0.0
      %2352 = vmatpush1.msra.mxu0 0.0
      %2353 = vmatprep.mubr.f32.mxu0 0.0
      %2354 = vmatmul.mubr.f32.gmra.mrb[0].mxu0 %v678
      %v2355 = vpop.f32.mrb[0].mxu0
      %v2356 = vadd.f32 %v2287, %v2355
      %v2357 = vpop.f32.mrb[0].mxu0
      %2358 = vdwg.mxu0
      %v2360 = vsel %vm903, %v2206, 0
      %v2363 = vsel %vm903, %v2280, 0
      %2365 = vmatprep.subr.mxu0 0.0
      %2366 = vmatpush1.xpose.msra.mxu0 %v2363
      %2367 = vmatprep.subr.mxu0 0.0
      %2368 = vmatpush1.xpose.msra.mxu0 0.0
      %2369 = vmatprep.subr.mxu0 0.0
      %2370 = vmatpush1.xpose.msra.mxu0 0.0
      %2371 = vmatprep.subr.mxu0 0.0
      %2372 = vmatpush1.xpose.msra.mxu0 0.0
      %2373 = vmatprep.subr.mxu0 0.0
      %2374 = vmatpush1.xpose.msra.mxu0 0.0
      %2375 = vmatprep.subr.mxu0 0.0
      %2376 = vmatpush1.xpose.msra.mxu0 0.0
      %2377 = vmatprep.subr.mxu0 0.0
      %2378 = vmatpush1.xpose.msra.mxu0 0.0
      %2379 = vmatprep.subr.mxu0 0.0
      %2380 = vmatpush1.xpose.msra.mxu0 0.0
      %2381 = vmatprep.subr.mxu0 0.0
      %2382 = vmatpush1.xpose.msra.mxu0 0.0
      %2383 = vmatprep.subr.mxu0 0.0
      %2384 = vmatpush1.xpose.msra.mxu0 0.0
      %2385 = vmatprep.subr.mxu0 0.0
      %2386 = vmatpush1.xpose.msra.mxu0 0.0
      %2387 = vmatprep.subr.mxu0 0.0
      %2388 = vmatpush1.xpose.msra.mxu0 0.0
      %2389 = vmatprep.subr.mxu0 0.0
      %2390 = vmatpush1.xpose.msra.mxu0 0.0
      %2391 = vmatprep.subr.mxu0 0.0
      %2392 = vmatpush1.xpose.msra.mxu0 0.0
      %2393 = vmatprep.subr.mxu0 0.0
      %2394 = vmatpush1.xpose.msra.mxu0 0.0
      %2395 = vmatprep.subr.mxu0 0.0
      %2396 = vmatpush1.xpose.msra.mxu0 0.0
      %2397 = vmatprep.subr.mxu0 0.0
      %2398 = vmatpush1.xpose.msra.mxu0 0.0
      %2399 = vmatprep.subr.mxu0 0.0
      %2400 = vmatpush1.xpose.msra.mxu0 0.0
      %2401 = vmatprep.subr.mxu0 0.0
      %2402 = vmatpush1.xpose.msra.mxu0 0.0
      %2403 = vmatprep.subr.mxu0 0.0
      %2404 = vmatpush1.xpose.msra.mxu0 0.0
      %2405 = vmatprep.subr.mxu0 0.0
      %2406 = vmatpush1.xpose.msra.mxu0 0.0
      %2407 = vmatprep.subr.mxu0 0.0
      %2408 = vmatpush1.xpose.msra.mxu0 0.0
      %2409 = vmatprep.subr.mxu0 0.0
      %2410 = vmatpush1.xpose.msra.mxu0 0.0
      %2411 = vmatprep.subr.mxu0 0.0
      %2412 = vmatpush1.xpose.msra.mxu0 0.0
      %2413 = vmatprep.subr.mxu0 0.0
      %2414 = vmatpush1.xpose.msra.mxu0 0.0
      %2415 = vmatprep.subr.mxu0 0.0
      %2416 = vmatpush1.xpose.msra.mxu0 0.0
      %2417 = vmatprep.subr.mxu0 0.0
      %2418 = vmatpush1.xpose.msra.mxu0 0.0
      %2419 = vmatprep.subr.mxu0 0.0
      %2420 = vmatpush1.xpose.msra.mxu0 0.0
      %2421 = vmatprep.subr.mxu0 0.0
      %2422 = vmatpush1.xpose.msra.mxu0 0.0
      %2423 = vmatprep.subr.mxu0 0.0
      %2424 = vmatpush1.xpose.msra.mxu0 0.0
      %2425 = vmatprep.subr.mxu0 0.0
      %2426 = vmatpush1.xpose.msra.mxu0 0.0
      %2427 = vmatprep.subr.mxu0 0.0
      %2428 = vmatpush1.xpose.msra.mxu0 0.0
      %2429 = vmatprep.mubr.f32.mxu0 0.0
      %2430 = vmatmul.mubr.f32.gmra.mrb[0].mxu0 %v2360
      %v2431 = vpop.f32.mrb[0].mxu0
      %v2432 = vadd.f32 0.0, %v2431
      %v2433 = vpop.f32.mrb[0].mxu0
      %2434 = vdwg.mxu0
      %v2435 = vsel %vm903, %v2432, -inf
      %2436 = vmax.xlane.f32.xlu0 %v2435
      %v2437 = vpop.xlane.xlu0 %2436
      %v2438 = vsub.f32 %v2432, %v2437
      %v2439 = vmul.f32 %v2438, 1.442695
      %v2440 = vpow.pop %v2439
      %v2441 = vsel %vm903, %v2440, 0.0
      %2442 = vadd.xlane.f32.xlu0 %v2441
      %v2443 = vpop.xlane.xlu0 %2442
      %v2444 = vrcp.pop %v2443
      %v2445 = vmul.f32 %v2440, %v2444
      %v2447 = vsel %vm903, %v2445, 0
      %2449 = vmatprep.subr.mxu0 0.0
      %2450 = vmatpush1.msra.mxu0 %v2356
      %2451 = vmatprep.subr.mxu0 0.0
      %2452 = vmatpush1.msra.mxu0 0.0
      %2453 = vmatprep.subr.mxu0 0.0
      %2454 = vmatpush1.msra.mxu0 0.0
      %2455 = vmatprep.subr.mxu0 0.0
      %2456 = vmatpush1.msra.mxu0 0.0
      %2457 = vmatprep.subr.mxu0 0.0
      %2458 = vmatpush1.msra.mxu0 0.0
      %2459 = vmatprep.subr.mxu0 0.0
      %2460 = vmatpush1.msra.mxu0 0.0
      %2461 = vmatprep.subr.mxu0 0.0
      %2462 = vmatpush1.msra.mxu0 0.0
      %2463 = vmatprep.subr.mxu0 0.0
      %2464 = vmatpush1.msra.mxu0 0.0
      %2465 = vmatprep.subr.mxu0 0.0
      %2466 = vmatpush1.msra.mxu0 0.0
      %2467 = vmatprep.subr.mxu0 0.0
      %2468 = vmatpush1.msra.mxu0 0.0
      %2469 = vmatprep.subr.mxu0 0.0
      %2470 = vmatpush1.msra.mxu0 0.0
      %2471 = vmatprep.subr.mxu0 0.0
      %2472 = vmatpush1.msra.mxu0 0.0
      %2473 = vmatprep.subr.mxu0 0.0
      %2474 = vmatpush1.msra.mxu0 0.0
      %2475 = vmatprep.subr.mxu0 0.0
      %2476 = vmatpush1.msra.mxu0 0.0
      %2477 = vmatprep.subr.mxu0 0.0
      %2478 = vmatpush1.msra.mxu0 0.0
      %2479 = vmatprep.subr.mxu0 0.0
      %2480 = vmatpush1.msra.mxu0 0.0
      %2481 = vmatprep.subr.mxu0 0.0
      %2482 = vmatpush1.msra.mxu0 0.0
      %2483 = vmatprep.subr.mxu0 0.0
      %2484 = vmatpush1.msra.mxu0 0.0
      %2485 = vmatprep.subr.mxu0 0.0
      %2486 = vmatpush1.msra.mxu0 0.0
      %2487 = vmatprep.subr.mxu0 0.0
      %2488 = vmatpush1.msra.mxu0 0.0
      %2489 = vmatprep.subr.mxu0 0.0
      %2490 = vmatpush1.msra.mxu0 0.0
      %2491 = vmatprep.subr.mxu0 0.0
      %2492 = vmatpush1.msra.mxu0 0.0
      %2493 = vmatprep.subr.mxu0 0.0
      %2494 = vmatpush1.msra.mxu0 0.0
      %2495 = vmatprep.subr.mxu0 0.0
      %2496 = vmatpush1.msra.mxu0 0.0
      %2497 = vmatprep.subr.mxu0 0.0
      %2498 = vmatpush1.msra.mxu0 0.0
      %2499 = vmatprep.subr.mxu0 0.0
      %2500 = vmatpush1.msra.mxu0 0.0
      %2501 = vmatprep.subr.mxu0 0.0
      %2502 = vmatpush1.msra.mxu0 0.0
      %2503 = vmatprep.subr.mxu0 0.0
      %2504 = vmatpush1.msra.mxu0 0.0
      %2505 = vmatprep.subr.mxu0 0.0
      %2506 = vmatpush1.msra.mxu0 0.0
      %2507 = vmatprep.subr.mxu0 0.0
      %2508 = vmatpush1.msra.mxu0 0.0
      %2509 = vmatprep.subr.mxu0 0.0
      %2510 = vmatpush1.msra.mxu0 0.0
      %2511 = vmatprep.subr.mxu0 0.0
      %2512 = vmatpush1.msra.mxu0 0.0
      %2513 = vmatprep.mubr.f32.mxu0 0.0
      %2514 = vmatmul.mubr.f32.gmra.mrb[0].mxu0 %v2447
      %v2515 = vpop.f32.mrb[0].mxu0
      %v2516 = vadd.f32 0.0, %v2515
      %v2517 = vpop.f32.mrb[0].mxu0
      %2518 = vdwg.mxu0
      %s2519 = scalar_lea.vmem %s607, 24
      %v2520 = vld [vmem:[%s2519] sm:$0xff]
      %v2522 = vsel %vm903, %v2516, 0
      %2524 = vmatprep.subr.mxu0 0.0
      %2525 = vmatpush1.msra.mxu0 %v2520
      %2526 = vmatprep.subr.mxu0 0.0
      %2527 = vmatpush1.msra.mxu0 0.0
      %2528 = vmatprep.subr.mxu0 0.0
      %2529 = vmatpush1.msra.mxu0 0.0
      %2530 = vmatprep.subr.mxu0 0.0
      %2531 = vmatpush1.msra.mxu0 0.0
      %2532 = vmatprep.subr.mxu0 0.0
      %2533 = vmatpush1.msra.mxu0 0.0
      %2534 = vmatprep.subr.mxu0 0.0
      %2535 = vmatpush1.msra.mxu0 0.0
      %2536 = vmatprep.subr.mxu0 0.0
      %2537 = vmatpush1.msra.mxu0 0.0
      %2538 = vmatprep.subr.mxu0 0.0
      %2539 = vmatpush1.msra.mxu0 0.0
      %2540 = vmatprep.subr.mxu0 0.0
      %2541 = vmatpush1.msra.mxu0 0.0
      %2542 = vmatprep.subr.mxu0 0.0
      %2543 = vmatpush1.msra.mxu0 0.0
      %2544 = vmatprep.subr.mxu0 0.0
      %2545 = vmatpush1.msra.mxu0 0.0
      %2546 = vmatprep.subr.mxu0 0.0
      %2547 = vmatpush1.msra.mxu0 0.0
      %2548 = vmatprep.subr.mxu0 0.0
      %2549 = vmatpush1.msra.mxu0 0.0
      %2550 = vmatprep.subr.mxu0 0.0
      %2551 = vmatpush1.msra.mxu0 0.0
      %2552 = vmatprep.subr.mxu0 0.0
      %2553 = vmatpush1.msra.mxu0 0.0
      %2554 = vmatprep.subr.mxu0 0.0
      %2555 = vmatpush1.msra.mxu0 0.0
      %2556 = vmatprep.subr.mxu0 0.0
      %2557 = vmatpush1.msra.mxu0 0.0
      %2558 = vmatprep.subr.mxu0 0.0
      %2559 = vmatpush1.msra.mxu0 0.0
      %2560 = vmatprep.subr.mxu0 0.0
      %2561 = vmatpush1.msra.mxu0 0.0
      %2562 = vmatprep.subr.mxu0 0.0
      %2563 = vmatpush1.msra.mxu0 0.0
      %2564 = vmatprep.subr.mxu0 0.0
      %2565 = vmatpush1.msra.mxu0 0.0
      %2566 = vmatprep.subr.mxu0 0.0
      %2567 = vmatpush1.msra.mxu0 0.0
      %2568 = vmatprep.subr.mxu0 0.0
      %2569 = vmatpush1.msra.mxu0 0.0
      %2570 = vmatprep.subr.mxu0 0.0
      %2571 = vmatpush1.msra.mxu0 0.0
      %2572 = vmatprep.subr.mxu0 0.0
      %2573 = vmatpush1.msra.mxu0 0.0
      %2574 = vmatprep.subr.mxu0 0.0
      %2575 = vmatpush1.msra.mxu0 0.0
      %2576 = vmatprep.subr.mxu0 0.0
      %2577 = vmatpush1.msra.mxu0 0.0
      %2578 = vmatprep.subr.mxu0 0.0
      %2579 = vmatpush1.msra.mxu0 0.0
      %2580 = vmatprep.subr.mxu0 0.0
      %2581 = vmatpush1.msra.mxu0 0.0
      %2582 = vmatprep.subr.mxu0 0.0
      %2583 = vmatpush1.msra.mxu0 0.0
      %2584 = vmatprep.subr.mxu0 0.0
      %2585 = vmatpush1.msra.mxu0 0.0
      %2586 = vmatprep.subr.mxu0 0.0
      %2587 = vmatpush1.msra.mxu0 0.0
      %2588 = vmatprep.mubr.f32.mxu0 0.0
      %2589 = vmatmul.mubr.f32.gmra.mrb[0].mxu0 %v2522
      %v2590 = vpop.f32.mrb[0].mxu0
      %v2591 = vadd.f32 0.0, %v2590
      %v2592 = vpop.f32.mrb[0].mxu0
      %2593 = vdwg.mxu0
      %v2594 = vadd.f32 %v2108, %v2591
      %v2595 = vld [vmem:[%s610] sm:$0x1]
      %v2597 = vlaneseq
      %v2598 = vshrl.u32 %v2597, 7
      %v2599 = vsub.s32 0, %v2598
      %v2600 = vrot.slane %v2595, %v2599
      %v2602 = vadd.f32 %v2594, %v2600
      %v2603 = vadd.f32 %v650, %v2602
      %v2604 = vld [vmem:[%s613] sm:$0x1]
      %v2605 = vld [vmem:[%s616] sm:$0x1]
      %v2606 = vsel %vm676, %v2603, 0.0
      %2607 = vadd.xlane.f32.xlu0 %v2606
      %v2608 = vpop.xlane.xlu0 %2607
      %v2609 = vrcp.pop 32.0
      %v2610 = vmul.f32 %v2608, %v2609
      %v2611 = vsub.f32 %v2603, %v2610
      %v2612 = vmul.f32 %v2611, %v2611
      %v2613 = vsel %vm676, %v2612, 0.0
      %2614 = vadd.xlane.f32.xlu0 %v2613
      %v2615 = vpop.xlane.xlu0 %2614
      %v2616 = vmul.f32 %v2615, %v2609
      %v2617 = vadd.f32 %v2616, 1e-05
      %v2618 = vrsqrt.pop %v2617
      %v2619 = vmul.f32 %v2611, %v2618
      %v2621 = vlaneseq
      %v2622 = vshrl.u32 %v2621, 7
      %v2623 = vsub.s32 0, %v2622
      %v2624 = vrot.slane %v2604, %v2623
      %v2626 = vmul.f32 %v2619, %v2624
      %v2628 = vlaneseq
      %v2629 = vshrl.u32 %v2628, 7
      %v2630 = vsub.s32 0, %v2629
      %v2631 = vrot.slane %v2605, %v2630
      %v2633 = vadd.f32 %v2626, %v2631
      %v2634 = vld [vmem:[%s621] sm:$0xff]
      %v2635 = vld [vmem:[%s621 + $0x8] sm:$0xff]
      %v2636 = vld [vmem:[%s621 + $0x10] sm:$0xff]
      %v2637 = vld [vmem:[%s621 + $0x18] sm:$0xff]
      %v2638 = vld [vmem:[%s624] sm:$0x1]
      %v2640 = vlaneseq
      %v2641 = vshrl.u32 %v2640, 7
      %v2642 = vsub.s32 0, %v2641
      %v2643 = vrot.slane %v2638, %v2642
      %v2646 = vsel %vm676, %v2633, 0
      %2648 = vmatprep.subr.mxu0 0.0
      %2649 = vmatpush1.msra.mxu0 %v2634
      %2650 = vmatprep.subr.mxu0 0.0
      %2651 = vmatpush1.msra.mxu0 %v2635
      %2652 = vmatprep.subr.mxu0 0.0
      %2653 = vmatpush1.msra.mxu0 %v2636
      %2654 = vmatprep.subr.mxu0 0.0
      %2655 = vmatpush1.msra.mxu0 %v2637
      %2656 = vmatprep.subr.mxu0 0.0
      %2657 = vmatpush1.msra.mxu0 0.0
      %2658 = vmatprep.subr.mxu0 0.0
      %2659 = vmatpush1.msra.mxu0 0.0
      %2660 = vmatprep.subr.mxu0 0.0
      %2661 = vmatpush1.msra.mxu0 0.0
      %2662 = vmatprep.subr.mxu0 0.0
      %2663 = vmatpush1.msra.mxu0 0.0
      %2664 = vmatprep.subr.mxu0 0.0
      %2665 = vmatpush1.msra.mxu0 0.0
      %2666 = vmatprep.subr.mxu0 0.0
      %2667 = vmatpush1.msra.mxu0 0.0
      %2668 = vmatprep.subr.mxu0 0.0
      %2669 = vmatpush1.msra.mxu0 0.0
      %2670 = vmatprep.subr.mxu0 0.0
      %2671 = vmatpush1.msra.mxu0 0.0
      %2672 = vmatprep.subr.mxu0 0.0
      %2673 = vmatpush1.msra.mxu0 0.0
      %2674 = vmatprep.subr.mxu0 0.0
      %2675 = vmatpush1.msra.mxu0 0.0
      %2676 = vmatprep.subr.mxu0 0.0
      %2677 = vmatpush1.msra.mxu0 0.0
      %2678 = vmatprep.subr.mxu0 0.0
      %2679 = vmatpush1.msra.mxu0 0.0
      %2680 = vmatprep.subr.mxu0 0.0
      %2681 = vmatpush1.msra.mxu0 0.0
      %2682 = vmatprep.subr.mxu0 0.0
      %2683 = vmatpush1.msra.mxu0 0.0
      %2684 = vmatprep.subr.mxu0 0.0
      %2685 = vmatpush1.msra.mxu0 0.0
      %2686 = vmatprep.subr.mxu0 0.0
      %2687 = vmatpush1.msra.mxu0 0.0
      %2688 = vmatprep.subr.mxu0 0.0
      %2689 = vmatpush1.msra.mxu0 0.0
      %2690 = vmatprep.subr.mxu0 0.0
      %2691 = vmatpush1.msra.mxu0 0.0
      %2692 = vmatprep.subr.mxu0 0.0
      %2693 = vmatpush1.msra.mxu0 0.0
      %2694 = vmatprep.subr.mxu0 0.0
      %2695 = vmatpush1.msra.mxu0 0.0
      %2696 = vmatprep.subr.mxu0 0.0
      %2697 = vmatpush1.msra.mxu0 0.0
      %2698 = vmatprep.subr.mxu0 0.0
      %2699 = vmatpush1.msra.mxu0 0.0
      %2700 = vmatprep.subr.mxu0 0.0
      %2701 = vmatpush1.msra.mxu0 0.0
      %2702 = vmatprep.subr.mxu0 0.0
      %2703 = vmatpush1.msra.mxu0 0.0
      %2704 = vmatprep.subr.mxu0 0.0
      %2705 = vmatpush1.msra.mxu0 0.0
      %2706 = vmatprep.subr.mxu0 0.0
      %2707 = vmatpush1.msra.mxu0 0.0
      %2708 = vmatprep.subr.mxu0 0.0
      %2709 = vmatpush1.msra.mxu0 0.0
      %2710 = vmatprep.subr.mxu0 0.0
      %2711 = vmatpush1.msra.mxu0 0.0
      %2712 = vmatprep.mubr.f32.mxu0 0.0
      %2713 = vmatmul.mubr.f32.gmra.mrb[0].mxu0 %v2646
      %v2714 = vpop.f32.mrb[0].mxu0
      %v2715 = vadd.f32 %v2643, %v2714
      %v2716 = vpop.f32.mrb[0].mxu0
      %2717 = vdwg.mxu0
      %v2718 = vmax.f32 %v2715, 0.0
      %v2719 = vld [vmem:[%s629] sm:$0xff]
      %v2720 = vld [vmem:[%s629 + $0x8] sm:$0xff]
      %v2721 = vld [vmem:[%s629 + $0x10] sm:$0xff]
      %v2722 = vld [vmem:[%s629 + $0x18] sm:$0xff]
      %v2723 = vld [vmem:[%s632] sm:$0x1]
      %v2725 = vlaneseq
      %v2726 = vshrl.u32 %v2725, 7
      %v2727 = vsub.s32 0, %v2726
      %v2728 = vrot.slane %v2723, %v2727
      %v2731 = vsel %vm676, %v2718, 0
      %2733 = vmatprep.subr.mxu0 0.0
      %2734 = vmatpush1.msra.mxu0 %v2719
      %2735 = vmatprep.subr.mxu0 0.0
      %2736 = vmatpush1.msra.mxu0 %v2720
      %2737 = vmatprep.subr.mxu0 0.0
      %2738 = vmatpush1.msra.mxu0 %v2721
      %2739 = vmatprep.subr.mxu0 0.0
      %2740 = vmatpush1.msra.mxu0 %v2722
      %2741 = vmatprep.subr.mxu0 0.0
      %2742 = vmatpush1.msra.mxu0 0.0
      %2743 = vmatprep.subr.mxu0 0.0
      %2744 = vmatpush1.msra.mxu0 0.0
      %2745 = vmatprep.subr.mxu0 0.0
      %2746 = vmatpush1.msra.mxu0 0.0
      %2747 = vmatprep.subr.mxu0 0.0
      %2748 = vmatpush1.msra.mxu0 0.0
      %2749 = vmatprep.subr.mxu0 0.0
      %2750 = vmatpush1.msra.mxu0 0.0
      %2751 = vmatprep.subr.mxu0 0.0
      %2752 = vmatpush1.msra.mxu0 0.0
      %2753 = vmatprep.subr.mxu0 0.0
      %2754 = vmatpush1.msra.mxu0 0.0
      %2755 = vmatprep.subr.mxu0 0.0
      %2756 = vmatpush1.msra.mxu0 0.0
      %2757 = vmatprep.subr.mxu0 0.0
      %2758 = vmatpush1.msra.mxu0 0.0
      %2759 = vmatprep.subr.mxu0 0.0
      %2760 = vmatpush1.msra.mxu0 0.0
      %2761 = vmatprep.subr.mxu0 0.0
      %2762 = vmatpush1.msra.mxu0 0.0
      %2763 = vmatprep.subr.mxu0 0.0
      %2764 = vmatpush1.msra.mxu0 0.0
      %2765 = vmatprep.subr.mxu0 0.0
      %2766 = vmatpush1.msra.mxu0 0.0
      %2767 = vmatprep.subr.mxu0 0.0
      %2768 = vmatpush1.msra.mxu0 0.0
      %2769 = vmatprep.subr.mxu0 0.0
      %2770 = vmatpush1.msra.mxu0 0.0
      %2771 = vmatprep.subr.mxu0 0.0
      %2772 = vmatpush1.msra.mxu0 0.0
      %2773 = vmatprep.subr.mxu0 0.0
      %2774 = vmatpush1.msra.mxu0 0.0
      %2775 = vmatprep.subr.mxu0 0.0
      %2776 = vmatpush1.msra.mxu0 0.0
      %2777 = vmatprep.subr.mxu0 0.0
      %2778 = vmatpush1.msra.mxu0 0.0
      %2779 = vmatprep.subr.mxu0 0.0
      %2780 = vmatpush1.msra.mxu0 0.0
      %2781 = vmatprep.subr.mxu0 0.0
      %2782 = vmatpush1.msra.mxu0 0.0
      %2783 = vmatprep.subr.mxu0 0.0
      %2784 = vmatpush1.msra.mxu0 0.0
      %2785 = vmatprep.subr.mxu0 0.0
      %2786 = vmatpush1.msra.mxu0 0.0
      %2787 = vmatprep.subr.mxu0 0.0
      %2788 = vmatpush1.msra.mxu0 0.0
      %2789 = vmatprep.subr.mxu0 0.0
      %2790 = vmatpush1.msra.mxu0 0.0
      %2791 = vmatprep.subr.mxu0 0.0
      %2792 = vmatpush1.msra.mxu0 0.0
      %2793 = vmatprep.subr.mxu0 0.0
      %2794 = vmatpush1.msra.mxu0 0.0
      %2795 = vmatprep.subr.mxu0 0.0
      %2796 = vmatpush1.msra.mxu0 0.0
      %2797 = vmatprep.mubr.f32.mxu0 0.0
      %2798 = vmatmul.mubr.f32.gmra.mrb[0].mxu0 %v2731
      %v2799 = vpop.f32.mrb[0].mxu0
      %v2800 = vadd.f32 %v2728, %v2799
      %v2801 = vpop.f32.mrb[0].mxu0
      %2802 = vdwg.mxu0
      %v2803 = vadd.f32 %v2633, %v2800
      %v2804 = vld [vmem:[%s635] sm:$0x1]
      %v2805 = vld [vmem:[%s638] sm:$0x1]
      %v2806 = vsel %vm676, %v2803, 0.0
      %2807 = vadd.xlane.f32.xlu0 %v2806
      %v2808 = vpop.xlane.xlu0 %2807
      %v2809 = vmul.f32 %v2808, %v2609
      %v2810 = vsub.f32 %v2803, %v2809
      %v2811 = vmul.f32 %v2810, %v2810
      %v2812 = vsel %vm676, %v2811, 0.0
      %2813 = vadd.xlane.f32.xlu0 %v2812
      %v2814 = vpop.xlane.xlu0 %2813
      %v2815 = vmul.f32 %v2814, %v2609
      %v2816 = vadd.f32 %v2815, 1e-05
      %v2817 = vrsqrt.pop %v2816
      %v2818 = vmul.f32 %v2810, %v2817
      %v2820 = vlaneseq
      %v2821 = vshrl.u32 %v2820, 7
      %v2822 = vsub.s32 0, %v2821
      %v2823 = vrot.slane %v2804, %v2822
      %v2825 = vmul.f32 %v2818, %v2823
      %v2827 = vlaneseq
      %v2828 = vshrl.u32 %v2827, 7
      %v2829 = vsub.s32 0, %v2828
      %v2830 = vrot.slane %v2805, %v2829
      %v2832 = vadd.f32 %v2825, %v2830
      %2833 = vst.msk [vmem:[#allocation2] sm:$0xff] %vm676, %v2832
      %p2834 = scmp.eq.s32.totalorder %s29, 3
      // Predicated region
      $region77: #{transformer_forward.2} parent=71 // pred_check
        %p2835 = pneg %p2834
      $region78: #{transformer_forward.2} parent=71 // pred_check_branch
        %2837 = sbr.rel (%p2835) target = $region80
      $region79: #{transformer_forward.2} parent=71 // pred_region
        %2838 = vst.msk [vmem:[%s642] sm:$0xff] %vm676, %v2832
      $region80: #{transformer_forward.2} parent=71 // pred_fallthru
        _
      %p2839 = scmp.lt.s32.totalorder %s28, 1
      %s2840 = scalar_select %p2839, %s28, 1
      %s2841 = smul.addr %s2840, 8
      %s2842 = scalar_lea.vmem %s13, %s2841
      // Predicated region
      $region81: #{transformer_forward.2} parent=71 // pred_check
        %p2843 = pneg %p392
      $region82: #{transformer_forward.2} parent=71 // pred_check_branch
        %2845 = sbr.rel (%p2843) target = $region84
      $region83: #{transformer_forward.2} parent=71 // pred_region
        _
      $region84: #{transformer_forward.2} parent=71 // pred_fallthru
        _
    $region72: #{transformer_forward.2} parent=5 // pred_fallthru
      _
    %p2846 = scmp.le.s32.totalorder 2, %s19
    // Predicated region
    $region85: #{transformer_forward.2} parent=5 // pred_check
      %p2847 = pneg %p2846
    $region86: #{transformer_forward.2} parent=5 // pred_check_branch
      %2849 = sbr.rel (%p2847) target = $region88
    $region87: #{transformer_forward.2} parent=5 // pred_region
      %s2850 = ssub.s32 %s19, 2
      // Predicated region
      $region89: #{transformer_forward.2} parent=87 // pred_check
        %p2851 = pneg %p398
      $region90: #{transformer_forward.2} parent=87 // pred_check_branch
        %2853 = sbr.rel (%p2851) target = $region92
      $region91: #{transformer_forward.2} parent=87 // pred_region
        %p2854 = scmp.lt.s32.totalorder %s30, 1
        %s2855 = scalar_select %p2854, %s30, 1
        %s2856 = smul.addr %s2855, 8
        %s2857 = scalar_lea.vmem %s13, %s2856
      $region92: #{transformer_forward.2} parent=87 // pred_fallthru
        _
    $region88: #{transformer_forward.2} parent=5 // pred_fallthru
      _
  $region6: #{transformer_forward.2} parent=0 // loop_footer
    %s23 = sadd.s32 1, %s19
  $region7: #{transformer_forward.2} parent=0 // loop_footer_branch
    %18 = sbr.rel target = $region3
  $region8: #{transformer_forward.2} parent=0 // loop_exit
    _

// kernel: transformer_forward.3
$region0: #{transformer_forward.3}
  #allocation0 [shape = 'u32[]', space=smem, size = 0x4, offset = 0x4, fixed_abs, tag = 'smem constant byte address 0x4 - core index']
  #allocation1 [shape = 'u32[144,128]{1,0:T(1,128)}', space=vmem, size = 0x12000, scoped, tag = 'internal scratch']
  #allocation2 [shape = 'f32[8,32]{1,0:T(8,128)}', space=vmem, size = 0x1000, scoped, tag = 'scratch operand']
  %s0 = inlined_call_operand.vmem [shape: f32[16,32], index: 0, kind: input, shape index: {}]
  %s1 = inlined_call_operand.vmem [shape: f32[16,32], index: 1, kind: input, shape index: {}]
  %s2 = inlined_call_operand.vmem [shape: f32[8,8], index: 2, kind: input, shape index: {}]
  %s3 = inlined_call_operand.vmem [shape: f32[4,12,32,8], index: 3, kind: input, shape index: {}]
  %s4 = inlined_call_operand.vmem [shape: f32[4,12,1,8], index: 4, kind: input, shape index: {}]
  %s5 = inlined_call_operand.vmem [shape: f32[4,4,8,32], index: 5, kind: input, shape index: {}]
  %s6 = inlined_call_operand.vmem [shape: f32[4,1,32], index: 6, kind: input, shape index: {}]
  %s7 = inlined_call_operand.vmem [shape: f32[4,12,32,8], index: 7, kind: input, shape index: {}]
  %s8 = inlined_call_operand.vmem [shape: f32[4,12,1,8], index: 8, kind: input, shape index: {}]
  %s9 = inlined_call_operand.vmem [shape: f32[4,4,8,32], index: 9, kind: input, shape index: {}]
  %s10 = inlined_call_operand.vmem [shape: f32[4,1,32], index: 10, kind: input, shape index: {}]
  %s11 = inlined_call_operand.vmem [shape: f32[4,32,32], index: 11, kind: input, shape index: {}]
  %s12 = inlined_call_operand.vmem [shape: f32[4,1,32], index: 12, kind: input, shape index: {}]
  %s13 = inlined_call_operand.vmem [shape: f32[4,32,32], index: 13, kind: input, shape index: {}]
  %s14 = inlined_call_operand.vmem [shape: f32[4,1,32], index: 14, kind: input, shape index: {}]
  %s15 = inlined_call_operand.vmem [shape: f32[4,1,32], index: 15, kind: input, shape index: {}]
  %s16 = inlined_call_operand.vmem [shape: f32[4,1,32], index: 16, kind: input, shape index: {}]
  %s17 = inlined_call_operand.vmem [shape: f32[4,1,32], index: 17, kind: input, shape index: {}]
  %s18 = inlined_call_operand.vmem [shape: f32[4,1,32], index: 18, kind: input, shape index: {}]
  %s19 = inlined_call_operand.vmem [shape: f32[4,1,32], index: 19, kind: input, shape index: {}]
  %s20 = inlined_call_operand.vmem [shape: f32[4,1,32], index: 20, kind: input, shape index: {}]
  %s21 = inlined_call_operand.vmem [shape: f32[32,128], index: 21, kind: input, shape index: {}]
  %s22 = inlined_call_operand.vmem [shape: f32[1,128], index: 22, kind: input, shape index: {}]
  %s23 = inlined_call_operand.vmem [shape: f32[16,128], index: 23, kind: output, shape index: {}]
  %s24 = sld [smem:[#allocation0]]
  $region133: #{transformer_forward.3} parent=0
    _
  %s26 = ssub.s32 1, %s24
  %s27 = scalar_select 0, %s26, %s24
  loop: start=0, step=1, limit=10
  $region2: #{transformer_forward.3} parent=0 // loop_pre_header
    _
  $region3: #{transformer_forward.3} parent=0 // loop_header
    %s29 = sphi 0, %s33
    %p30 = scmp.ge.s32.totalorder %s29, 10
    %s36 = sphi 0, %s48
    %s37 = sphi 0, %s44
    %s38 = sphi 0, %s36
    %s39 = sphi 0, %s37
    %s40 = sphi 0, %s38
    %s41 = sphi 0, %s39
    %s51 = sphi 0, %s53
    %s54 = sphi 0, %s51
    %s55 = sphi 0, %s54
    %s71 = sphi 0, %s55
    %s77 = sphi 0, %s79
    %s80 = sphi 0, %s77
    %s81 = sphi 0, %s80
    %s97 = sphi 0, %s81
    %s101 = sphi 0, %s101
    %s103 = sphi 0, %s101
    %s104 = sphi 0, %s103
    %s118 = sphi 0, %s104
    %s124 = sphi 0, %s126
    %s127 = sphi 0, %s124
    %s128 = sphi 0, %s127
    %s144 = sphi 0, %s128
    %s150 = sphi 0, %s152
    %s153 = sphi 0, %s150
    %s154 = sphi 0, %s153
    %s170 = sphi 0, %s154
    %s176 = sphi 0, %s178
    %s179 = sphi 0, %s176
    %s180 = sphi 0, %s179
    %s196 = sphi 0, %s180
    %s202 = sphi 0, %s204
    %s205 = sphi 0, %s202
    %s206 = sphi 0, %s205
    %s222 = sphi 0, %s206
    %s228 = sphi 0, %s230
    %s231 = sphi 0, %s228
    %s232 = sphi 0, %s231
    %s248 = sphi 0, %s232
    %s254 = sphi 0, %s256
    %s257 = sphi 0, %s254
    %s258 = sphi 0, %s257
    %s274 = sphi 0, %s258
    %s280 = sphi 0, %s282
    %s283 = sphi 0, %s280
    %s284 = sphi 0, %s283
    %s300 = sphi 0, %s284
    %s306 = sphi 0, %s308
    %s309 = sphi 0, %s306
    %s310 = sphi 0, %s309
    %s326 = sphi 0, %s310
    %s332 = sphi 0, %s334
    %s335 = sphi 0, %s332
    %s336 = sphi 0, %s335
    %s352 = sphi 0, %s336
    %s358 = sphi 0, %s360
    %s361 = sphi 0, %s358
    %s362 = sphi 0, %s361
    %s378 = sphi 0, %s362
    %s384 = sphi 0, %s386
    %s387 = sphi 0, %s384
    %s388 = sphi 0, %s387
    %s404 = sphi 0, %s388
    %s410 = sphi 0, %s412
    %s413 = sphi 0, %s410
    %s414 = sphi 0, %s413
    %s430 = sphi 0, %s414
    %s436 = sphi 0, %s438
    %s439 = sphi 0, %s436
    %s440 = sphi 0, %s439
    %s456 = sphi 0, %s440
    %s462 = sphi 0, %s464
    %s465 = sphi 0, %s462
    %s466 = sphi 0, %s465
    %s482 = sphi 0, %s466
    %s488 = sphi 0, %s490
    %s491 = sphi 0, %s488
    %s492 = sphi 0, %s491
    %s508 = sphi 0, %s492
    %s514 = sphi 0, %s516
    %s517 = sphi 0, %s514
    %s518 = sphi 0, %s517
    %s534 = sphi 0, %s518
    %s540 = sphi 0, %s542
    %s543 = sphi 0, %s540
    %s544 = sphi 0, %s543
    %s560 = sphi 0, %s544
    %s566 = sphi 0, %s568
    %s569 = sphi 0, %s566
    %s570 = sphi 0, %s569
    %s586 = sphi 0, %s570
    %s590 = sphi 0, %s590
    %s592 = sphi 0, %s590
    %s593 = sphi 0, %s592
    %s607 = sphi 0, %s593
    %s611 = sphi 0, %s611
    %s613 = sphi 0, %s611
    %s614 = sphi 0, %s613
    %s628 = sphi 0, %s614
    %s634 = sphi 0, %s636
    %s637 = sphi 0, %s634
    %s638 = sphi 0, %s637
    %s654 = sphi 0, %s638
  $region4: #{transformer_forward.3} parent=0 // loop_header_branch
    %32 = sbr.rel (%p30) target = $region8
  $region5: #{transformer_forward.3} parent=0 // loop_body
    %s34 = ssub.s32 %s29, 1
    %s35 = ssub.s32 %s29, 2
    %s42 = sadd.s32 1, %s37
    %p43 = scmp.ge.s32.totalorder %s42, 4
    %s44 = scalar_select %p43, 0, %s42
    %s45 = sadd.s32 1, %s36
    %s46 = scalar_select %p43, %s45, %s36
    %p47 = scmp.ge.s32.totalorder %s46, 2
    %s48 = scalar_select %p47, 0, %s46
    %s49 = ssub.s32 %s36, %s48
    %p50 = scmp.eq.s32.totalorder %s49, 0
    %s52 = sadd.s32 %s51, 1
    %s53 = scalar_select %p50, %s51, %s52
    %p56 = pneg %p50
    %p57 = scmp.eq.s32.totalorder %s29, 7
    %p58 = por %p56, %p57
    %p59 = scmp.ne.s32.totalorder %s51, %s54
    %p60 = scmp.eq.s32.totalorder %s29, 0
    %p61 = por %p59, %p60
    %p62 = scmp.ne.s32.totalorder %s51, %s54
    %p63 = scmp.eq.s32.totalorder %s34, 7
    %p64 = por %p62, %p63
    %p65 = scmp.ne.s32.totalorder %s54, %s55
    %p66 = scmp.eq.s32.totalorder %s34, 0
    %p67 = por %p65, %p66
    %p68 = scmp.ne.s32.totalorder %s54, %s55
    %p69 = scmp.eq.s32.totalorder %s35, 7
    %p70 = por %p68, %p69
    %p72 = scmp.ne.s32.totalorder %s55, %s71
    %p73 = scmp.eq.s32.totalorder %s35, 0
    %p74 = por %p72, %p73
    %s75 = ssub.s32 %s36, %s48
    %p76 = scmp.eq.s32.totalorder %s75, 0
    %s78 = sadd.s32 %s77, 1
    %s79 = scalar_select %p76, %s77, %s78
    %p82 = pneg %p76
    %p83 = scmp.eq.s32.totalorder %s29, 7
    %p84 = por %p82, %p83
    %p85 = scmp.ne.s32.totalorder %s77, %s80
    %p86 = scmp.eq.s32.totalorder %s29, 0
    %p87 = por %p85, %p86
    %p88 = scmp.ne.s32.totalorder %s77, %s80
    %p89 = scmp.eq.s32.totalorder %s34, 7
    %p90 = por %p88, %p89
    %p91 = scmp.ne.s32.totalorder %s80, %s81
    %p92 = scmp.eq.s32.totalorder %s34, 0
    %p93 = por %p91, %p92
    %p94 = scmp.ne.s32.totalorder %s80, %s81
    %p95 = scmp.eq.s32.totalorder %s35, 7
    %p96 = por %p94, %p95
    %p98 = scmp.ne.s32.totalorder %s81, %s97
    %p99 = scmp.eq.s32.totalorder %s35, 0
    %p100 = por %p98, %p99
    %s102 = sadd.s32 %s101, 1
    %p105 = scmp.eq.s32.totalorder %s29, 7
    %p106 = scmp.ne.s32.totalorder %s101, %s103
    %p107 = scmp.eq.s32.totalorder %s29, 0
    %p108 = por %p106, %p107
    %p109 = scmp.ne.s32.totalorder %s101, %s103
    %p110 = scmp.eq.s32.totalorder %s34, 7
    %p111 = por %p109, %p110
    %p112 = scmp.ne.s32.totalorder %s103, %s104
    %p113 = scmp.eq.s32.totalorder %s34, 0
    %p114 = por %p112, %p113
    %p115 = scmp.ne.s32.totalorder %s103, %s104
    %p116 = scmp.eq.s32.totalorder %s35, 7
    %p117 = por %p115, %p116
    %p119 = scmp.ne.s32.totalorder %s104, %s118
    %p120 = scmp.eq.s32.totalorder %s35, 0
    %p121 = por %p119, %p120
    %s122 = ssub.s32 %s37, %s44
    %p123 = scmp.eq.s32.totalorder %s122, 0
    %s125 = sadd.s32 %s124, 1
    %s126 = scalar_select %p123, %s124, %s125
    %p129 = pneg %p123
    %p130 = scmp.eq.s32.totalorder %s29, 7
    %p131 = por %p129, %p130
    %p132 = scmp.ne.s32.totalorder %s124, %s127
    %p133 = scmp.eq.s32.totalorder %s29, 0
    %p134 = por %p132, %p133
    %p135 = scmp.ne.s32.totalorder %s124, %s127
    %p136 = scmp.eq.s32.totalorder %s34, 7
    %p137 = por %p135, %p136
    %p138 = scmp.ne.s32.totalorder %s127, %s128
    %p139 = scmp.eq.s32.totalorder %s34, 0
    %p140 = por %p138, %p139
    %p141 = scmp.ne.s32.totalorder %s127, %s128
    %p142 = scmp.eq.s32.totalorder %s35, 7
    %p143 = por %p141, %p142
    %p145 = scmp.ne.s32.totalorder %s128, %s144
    %p146 = scmp.eq.s32.totalorder %s35, 0
    %p147 = por %p145, %p146
    %s148 = ssub.s32 %s37, %s44
    %p149 = scmp.eq.s32.totalorder %s148, 0
    %s151 = sadd.s32 %s150, 1
    %s152 = scalar_select %p149, %s150, %s151
    %p155 = pneg %p149
    %p156 = scmp.eq.s32.totalorder %s29, 7
    %p157 = por %p155, %p156
    %p158 = scmp.ne.s32.totalorder %s150, %s153
    %p159 = scmp.eq.s32.totalorder %s29, 0
    %p160 = por %p158, %p159
    %p161 = scmp.ne.s32.totalorder %s150, %s153
    %p162 = scmp.eq.s32.totalorder %s34, 7
    %p163 = por %p161, %p162
    %p164 = scmp.ne.s32.totalorder %s153, %s154
    %p165 = scmp.eq.s32.totalorder %s34, 0
    %p166 = por %p164, %p165
    %p167 = scmp.ne.s32.totalorder %s153, %s154
    %p168 = scmp.eq.s32.totalorder %s35, 7
    %p169 = por %p167, %p168
    %p171 = scmp.ne.s32.totalorder %s154, %s170
    %p172 = scmp.eq.s32.totalorder %s35, 0
    %p173 = por %p171, %p172
    %s174 = ssub.s32 %s37, %s44
    %p175 = scmp.eq.s32.totalorder %s174, 0
    %s177 = sadd.s32 %s176, 1
    %s178 = scalar_select %p175, %s176, %s177
    %p181 = pneg %p175
    %p182 = scmp.eq.s32.totalorder %s29, 7
    %p183 = por %p181, %p182
    %p184 = scmp.ne.s32.totalorder %s176, %s179
    %p185 = scmp.eq.s32.totalorder %s29, 0
    %p186 = por %p184, %p185
    %p187 = scmp.ne.s32.totalorder %s176, %s179
    %p188 = scmp.eq.s32.totalorder %s34, 7
    %p189 = por %p187, %p188
    %p190 = scmp.ne.s32.totalorder %s179, %s180
    %p191 = scmp.eq.s32.totalorder %s34, 0
    %p192 = por %p190, %p191
    %p193 = scmp.ne.s32.totalorder %s179, %s180
    %p194 = scmp.eq.s32.totalorder %s35, 7
    %p195 = por %p193, %p194
    %p197 = scmp.ne.s32.totalorder %s180, %s196
    %p198 = scmp.eq.s32.totalorder %s35, 0
    %p199 = por %p197, %p198
    %s200 = ssub.s32 %s37, %s44
    %p201 = scmp.eq.s32.totalorder %s200, 0
    %s203 = sadd.s32 %s202, 1
    %s204 = scalar_select %p201, %s202, %s203
    %p207 = pneg %p201
    %p208 = scmp.eq.s32.totalorder %s29, 7
    %p209 = por %p207, %p208
    %p210 = scmp.ne.s32.totalorder %s202, %s205
    %p211 = scmp.eq.s32.totalorder %s29, 0
    %p212 = por %p210, %p211
    %p213 = scmp.ne.s32.totalorder %s202, %s205
    %p214 = scmp.eq.s32.totalorder %s34, 7
    %p215 = por %p213, %p214
    %p216 = scmp.ne.s32.totalorder %s205, %s206
    %p217 = scmp.eq.s32.totalorder %s34, 0
    %p218 = por %p216, %p217
    %p219 = scmp.ne.s32.totalorder %s205, %s206
    %p220 = scmp.eq.s32.totalorder %s35, 7
    %p221 = por %p219, %p220
    %p223 = scmp.ne.s32.totalorder %s206, %s222
    %p224 = scmp.eq.s32.totalorder %s35, 0
    %p225 = por %p223, %p224
    %s226 = ssub.s32 %s37, %s44
    %p227 = scmp.eq.s32.totalorder %s226, 0
    %s229 = sadd.s32 %s228, 1
    %s230 = scalar_select %p227, %s228, %s229
    %p233 = pneg %p227
    %p234 = scmp.eq.s32.totalorder %s29, 7
    %p235 = por %p233, %p234
    %p236 = scmp.ne.s32.totalorder %s228, %s231
    %p237 = scmp.eq.s32.totalorder %s29, 0
    %p238 = por %p236, %p237
    %p239 = scmp.ne.s32.totalorder %s228, %s231
    %p240 = scmp.eq.s32.totalorder %s34, 7
    %p241 = por %p239, %p240
    %p242 = scmp.ne.s32.totalorder %s231, %s232
    %p243 = scmp.eq.s32.totalorder %s34, 0
    %p244 = por %p242, %p243
    %p245 = scmp.ne.s32.totalorder %s231, %s232
    %p246 = scmp.eq.s32.totalorder %s35, 7
    %p247 = por %p245, %p246
    %p249 = scmp.ne.s32.totalorder %s232, %s248
    %p250 = scmp.eq.s32.totalorder %s35, 0
    %p251 = por %p249, %p250
    %s252 = ssub.s32 %s37, %s44
    %p253 = scmp.eq.s32.totalorder %s252, 0
    %s255 = sadd.s32 %s254, 1
    %s256 = scalar_select %p253, %s254, %s255
    %p259 = pneg %p253
    %p260 = scmp.eq.s32.totalorder %s29, 7
    %p261 = por %p259, %p260
    %p262 = scmp.ne.s32.totalorder %s254, %s257
    %p263 = scmp.eq.s32.totalorder %s29, 0
    %p264 = por %p262, %p263
    %p265 = scmp.ne.s32.totalorder %s254, %s257
    %p266 = scmp.eq.s32.totalorder %s34, 7
    %p267 = por %p265, %p266
    %p268 = scmp.ne.s32.totalorder %s257, %s258
    %p269 = scmp.eq.s32.totalorder %s34, 0
    %p270 = por %p268, %p269
    %p271 = scmp.ne.s32.totalorder %s257, %s258
    %p272 = scmp.eq.s32.totalorder %s35, 7
    %p273 = por %p271, %p272
    %p275 = scmp.ne.s32.totalorder %s258, %s274
    %p276 = scmp.eq.s32.totalorder %s35, 0
    %p277 = por %p275, %p276
    %s278 = ssub.s32 %s37, %s44
    %p279 = scmp.eq.s32.totalorder %s278, 0
    %s281 = sadd.s32 %s280, 1
    %s282 = scalar_select %p279, %s280, %s281
    %p285 = pneg %p279
    %p286 = scmp.eq.s32.totalorder %s29, 7
    %p287 = por %p285, %p286
    %p288 = scmp.ne.s32.totalorder %s280, %s283
    %p289 = scmp.eq.s32.totalorder %s29, 0
    %p290 = por %p288, %p289
    %p291 = scmp.ne.s32.totalorder %s280, %s283
    %p292 = scmp.eq.s32.totalorder %s34, 7
    %p293 = por %p291, %p292
    %p294 = scmp.ne.s32.totalorder %s283, %s284
    %p295 = scmp.eq.s32.totalorder %s34, 0
    %p296 = por %p294, %p295
    %p297 = scmp.ne.s32.totalorder %s283, %s284
    %p298 = scmp.eq.s32.totalorder %s35, 7
    %p299 = por %p297, %p298
    %p301 = scmp.ne.s32.totalorder %s284, %s300
    %p302 = scmp.eq.s32.totalorder %s35, 0
    %p303 = por %p301, %p302
    %s304 = ssub.s32 %s37, %s44
    %p305 = scmp.eq.s32.totalorder %s304, 0
    %s307 = sadd.s32 %s306, 1
    %s308 = scalar_select %p305, %s306, %s307
    %p311 = pneg %p305
    %p312 = scmp.eq.s32.totalorder %s29, 7
    %p313 = por %p311, %p312
    %p314 = scmp.ne.s32.totalorder %s306, %s309
    %p315 = scmp.eq.s32.totalorder %s29, 0
    %p316 = por %p314, %p315
    %p317 = scmp.ne.s32.totalorder %s306, %s309
    %p318 = scmp.eq.s32.totalorder %s34, 7
    %p319 = por %p317, %p318
    %p320 = scmp.ne.s32.totalorder %s309, %s310
    %p321 = scmp.eq.s32.totalorder %s34, 0
    %p322 = por %p320, %p321
    %p323 = scmp.ne.s32.totalorder %s309, %s310
    %p324 = scmp.eq.s32.totalorder %s35, 7
    %p325 = por %p323, %p324
    %p327 = scmp.ne.s32.totalorder %s310, %s326
    %p328 = scmp.eq.s32.totalorder %s35, 0
    %p329 = por %p327, %p328
    %s330 = ssub.s32 %s37, %s44
    %p331 = scmp.eq.s32.totalorder %s330, 0
    %s333 = sadd.s32 %s332, 1
    %s334 = scalar_select %p331, %s332, %s333
    %p337 = pneg %p331
    %p338 = scmp.eq.s32.totalorder %s29, 7
    %p339 = por %p337, %p338
    %p340 = scmp.ne.s32.totalorder %s332, %s335
    %p341 = scmp.eq.s32.totalorder %s29, 0
    %p342 = por %p340, %p341
    %p343 = scmp.ne.s32.totalorder %s332, %s335
    %p344 = scmp.eq.s32.totalorder %s34, 7
    %p345 = por %p343, %p344
    %p346 = scmp.ne.s32.totalorder %s335, %s336
    %p347 = scmp.eq.s32.totalorder %s34, 0
    %p348 = por %p346, %p347
    %p349 = scmp.ne.s32.totalorder %s335, %s336
    %p350 = scmp.eq.s32.totalorder %s35, 7
    %p351 = por %p349, %p350
    %p353 = scmp.ne.s32.totalorder %s336, %s352
    %p354 = scmp.eq.s32.totalorder %s35, 0
    %p355 = por %p353, %p354
    %s356 = ssub.s32 %s37, %s44
    %p357 = scmp.eq.s32.totalorder %s356, 0
    %s359 = sadd.s32 %s358, 1
    %s360 = scalar_select %p357, %s358, %s359
    %p363 = pneg %p357
    %p364 = scmp.eq.s32.totalorder %s29, 7
    %p365 = por %p363, %p364
    %p366 = scmp.ne.s32.totalorder %s358, %s361
    %p367 = scmp.eq.s32.totalorder %s29, 0
    %p368 = por %p366, %p367
    %p369 = scmp.ne.s32.totalorder %s358, %s361
    %p370 = scmp.eq.s32.totalorder %s34, 7
    %p371 = por %p369, %p370
    %p372 = scmp.ne.s32.totalorder %s361, %s362
    %p373 = scmp.eq.s32.totalorder %s34, 0
    %p374 = por %p372, %p373
    %p375 = scmp.ne.s32.totalorder %s361, %s362
    %p376 = scmp.eq.s32.totalorder %s35, 7
    %p377 = por %p375, %p376
    %p379 = scmp.ne.s32.totalorder %s362, %s378
    %p380 = scmp.eq.s32.totalorder %s35, 0
    %p381 = por %p379, %p380
    %s382 = ssub.s32 %s37, %s44
    %p383 = scmp.eq.s32.totalorder %s382, 0
    %s385 = sadd.s32 %s384, 1
    %s386 = scalar_select %p383, %s384, %s385
    %p389 = pneg %p383
    %p390 = scmp.eq.s32.totalorder %s29, 7
    %p391 = por %p389, %p390
    %p392 = scmp.ne.s32.totalorder %s384, %s387
    %p393 = scmp.eq.s32.totalorder %s29, 0
    %p394 = por %p392, %p393
    %p395 = scmp.ne.s32.totalorder %s384, %s387
    %p396 = scmp.eq.s32.totalorder %s34, 7
    %p397 = por %p395, %p396
    %p398 = scmp.ne.s32.totalorder %s387, %s388
    %p399 = scmp.eq.s32.totalorder %s34, 0
    %p400 = por %p398, %p399
    %p401 = scmp.ne.s32.totalorder %s387, %s388
    %p402 = scmp.eq.s32.totalorder %s35, 7
    %p403 = por %p401, %p402
    %p405 = scmp.ne.s32.totalorder %s388, %s404
    %p406 = scmp.eq.s32.totalorder %s35, 0
    %p407 = por %p405, %p406
    %s408 = ssub.s32 %s37, %s44
    %p409 = scmp.eq.s32.totalorder %s408, 0
    %s411 = sadd.s32 %s410, 1
    %s412 = scalar_select %p409, %s410, %s411
    %p415 = pneg %p409
    %p416 = scmp.eq.s32.totalorder %s29, 7
    %p417 = por %p415, %p416
    %p418 = scmp.ne.s32.totalorder %s410, %s413
    %p419 = scmp.eq.s32.totalorder %s29, 0
    %p420 = por %p418, %p419
    %p421 = scmp.ne.s32.totalorder %s410, %s413
    %p422 = scmp.eq.s32.totalorder %s34, 7
    %p423 = por %p421, %p422
    %p424 = scmp.ne.s32.totalorder %s413, %s414
    %p425 = scmp.eq.s32.totalorder %s34, 0
    %p426 = por %p424, %p425
    %p427 = scmp.ne.s32.totalorder %s413, %s414
    %p428 = scmp.eq.s32.totalorder %s35, 7
    %p429 = por %p427, %p428
    %p431 = scmp.ne.s32.totalorder %s414, %s430
    %p432 = scmp.eq.s32.totalorder %s35, 0
    %p433 = por %p431, %p432
    %s434 = ssub.s32 %s37, %s44
    %p435 = scmp.eq.s32.totalorder %s434, 0
    %s437 = sadd.s32 %s436, 1
    %s438 = scalar_select %p435, %s436, %s437
    %p441 = pneg %p435
    %p442 = scmp.eq.s32.totalorder %s29, 7
    %p443 = por %p441, %p442
    %p444 = scmp.ne.s32.totalorder %s436, %s439
    %p445 = scmp.eq.s32.totalorder %s29, 0
    %p446 = por %p444, %p445
    %p447 = scmp.ne.s32.totalorder %s436, %s439
    %p448 = scmp.eq.s32.totalorder %s34, 7
    %p449 = por %p447, %p448
    %p450 = scmp.ne.s32.totalorder %s439, %s440
    %p451 = scmp.eq.s32.totalorder %s34, 0
    %p452 = por %p450, %p451
    %p453 = scmp.ne.s32.totalorder %s439, %s440
    %p454 = scmp.eq.s32.totalorder %s35, 7
    %p455 = por %p453, %p454
    %p457 = scmp.ne.s32.totalorder %s440, %s456
    %p458 = scmp.eq.s32.totalorder %s35, 0
    %p459 = por %p457, %p458
    %s460 = ssub.s32 %s37, %s44
    %p461 = scmp.eq.s32.totalorder %s460, 0
    %s463 = sadd.s32 %s462, 1
    %s464 = scalar_select %p461, %s462, %s463
    %p467 = pneg %p461
    %p468 = scmp.eq.s32.totalorder %s29, 7
    %p469 = por %p467, %p468
    %p470 = scmp.ne.s32.totalorder %s462, %s465
    %p471 = scmp.eq.s32.totalorder %s29, 0
    %p472 = por %p470, %p471
    %p473 = scmp.ne.s32.totalorder %s462, %s465
    %p474 = scmp.eq.s32.totalorder %s34, 7
    %p475 = por %p473, %p474
    %p476 = scmp.ne.s32.totalorder %s465, %s466
    %p477 = scmp.eq.s32.totalorder %s34, 0
    %p478 = por %p476, %p477
    %p479 = scmp.ne.s32.totalorder %s465, %s466
    %p480 = scmp.eq.s32.totalorder %s35, 7
    %p481 = por %p479, %p480
    %p483 = scmp.ne.s32.totalorder %s466, %s482
    %p484 = scmp.eq.s32.totalorder %s35, 0
    %p485 = por %p483, %p484
    %s486 = ssub.s32 %s37, %s44
    %p487 = scmp.eq.s32.totalorder %s486, 0
    %s489 = sadd.s32 %s488, 1
    %s490 = scalar_select %p487, %s488, %s489
    %p493 = pneg %p487
    %p494 = scmp.eq.s32.totalorder %s29, 7
    %p495 = por %p493, %p494
    %p496 = scmp.ne.s32.totalorder %s488, %s491
    %p497 = scmp.eq.s32.totalorder %s29, 0
    %p498 = por %p496, %p497
    %p499 = scmp.ne.s32.totalorder %s488, %s491
    %p500 = scmp.eq.s32.totalorder %s34, 7
    %p501 = por %p499, %p500
    %p502 = scmp.ne.s32.totalorder %s491, %s492
    %p503 = scmp.eq.s32.totalorder %s34, 0
    %p504 = por %p502, %p503
    %p505 = scmp.ne.s32.totalorder %s491, %s492
    %p506 = scmp.eq.s32.totalorder %s35, 7
    %p507 = por %p505, %p506
    %p509 = scmp.ne.s32.totalorder %s492, %s508
    %p510 = scmp.eq.s32.totalorder %s35, 0
    %p511 = por %p509, %p510
    %s512 = ssub.s32 %s37, %s44
    %p513 = scmp.eq.s32.totalorder %s512, 0
    %s515 = sadd.s32 %s514, 1
    %s516 = scalar_select %p513, %s514, %s515
    %p519 = pneg %p513
    %p520 = scmp.eq.s32.totalorder %s29, 7
    %p521 = por %p519, %p520
    %p522 = scmp.ne.s32.totalorder %s514, %s517
    %p523 = scmp.eq.s32.totalorder %s29, 0
    %p524 = por %p522, %p523
    %p525 = scmp.ne.s32.totalorder %s514, %s517
    %p526 = scmp.eq.s32.totalorder %s34, 7
    %p527 = por %p525, %p526
    %p528 = scmp.ne.s32.totalorder %s517, %s518
    %p529 = scmp.eq.s32.totalorder %s34, 0
    %p530 = por %p528, %p529
    %p531 = scmp.ne.s32.totalorder %s517, %s518
    %p532 = scmp.eq.s32.totalorder %s35, 7
    %p533 = por %p531, %p532
    %p535 = scmp.ne.s32.totalorder %s518, %s534
    %p536 = scmp.eq.s32.totalorder %s35, 0
    %p537 = por %p535, %p536
    %s538 = ssub.s32 %s37, %s44
    %p539 = scmp.eq.s32.totalorder %s538, 0
    %s541 = sadd.s32 %s540, 1
    %s542 = scalar_select %p539, %s540, %s541
    %p545 = pneg %p539
    %p546 = scmp.eq.s32.totalorder %s29, 7
    %p547 = por %p545, %p546
    %p548 = scmp.ne.s32.totalorder %s540, %s543
    %p549 = scmp.eq.s32.totalorder %s29, 0
    %p550 = por %p548, %p549
    %p551 = scmp.ne.s32.totalorder %s540, %s543
    %p552 = scmp.eq.s32.totalorder %s34, 7
    %p553 = por %p551, %p552
    %p554 = scmp.ne.s32.totalorder %s543, %s544
    %p555 = scmp.eq.s32.totalorder %s34, 0
    %p556 = por %p554, %p555
    %p557 = scmp.ne.s32.totalorder %s543, %s544
    %p558 = scmp.eq.s32.totalorder %s35, 7
    %p559 = por %p557, %p558
    %p561 = scmp.ne.s32.totalorder %s544, %s560
    %p562 = scmp.eq.s32.totalorder %s35, 0
    %p563 = por %p561, %p562
    %s564 = ssub.s32 %s37, %s44
    %p565 = scmp.eq.s32.totalorder %s564, 0
    %s567 = sadd.s32 %s566, 1
    %s568 = scalar_select %p565, %s566, %s567
    %p571 = pneg %p565
    %p572 = scmp.eq.s32.totalorder %s29, 7
    %p573 = por %p571, %p572
    %p574 = scmp.ne.s32.totalorder %s566, %s569
    %p575 = scmp.eq.s32.totalorder %s29, 0
    %p576 = por %p574, %p575
    %p577 = scmp.ne.s32.totalorder %s566, %s569
    %p578 = scmp.eq.s32.totalorder %s34, 7
    %p579 = por %p577, %p578
    %p580 = scmp.ne.s32.totalorder %s569, %s570
    %p581 = scmp.eq.s32.totalorder %s34, 0
    %p582 = por %p580, %p581
    %p583 = scmp.ne.s32.totalorder %s569, %s570
    %p584 = scmp.eq.s32.totalorder %s35, 7
    %p585 = por %p583, %p584
    %p587 = scmp.ne.s32.totalorder %s570, %s586
    %p588 = scmp.eq.s32.totalorder %s35, 0
    %p589 = por %p587, %p588
    %s591 = sadd.s32 %s590, 1
    %p594 = scmp.eq.s32.totalorder %s29, 7
    %p595 = scmp.ne.s32.totalorder %s590, %s592
    %p596 = scmp.eq.s32.totalorder %s29, 0
    %p597 = por %p595, %p596
    %p598 = scmp.ne.s32.totalorder %s590, %s592
    %p599 = scmp.eq.s32.totalorder %s34, 7
    %p600 = por %p598, %p599
    %p601 = scmp.ne.s32.totalorder %s592, %s593
    %p602 = scmp.eq.s32.totalorder %s34, 0
    %p603 = por %p601, %p602
    %p604 = scmp.ne.s32.totalorder %s592, %s593
    %p605 = scmp.eq.s32.totalorder %s35, 7
    %p606 = por %p604, %p605
    %p608 = scmp.ne.s32.totalorder %s593, %s607
    %p609 = scmp.eq.s32.totalorder %s35, 0
    %p610 = por %p608, %p609
    %s612 = sadd.s32 %s611, 1
    %p615 = scmp.eq.s32.totalorder %s29, 7
    %p616 = scmp.ne.s32.totalorder %s611, %s613
    %p617 = scmp.eq.s32.totalorder %s29, 0
    %p618 = por %p616, %p617
    %p619 = scmp.ne.s32.totalorder %s611, %s613
    %p620 = scmp.eq.s32.totalorder %s34, 7
    %p621 = por %p619, %p620
    %p622 = scmp.ne.s32.totalorder %s613, %s614
    %p623 = scmp.eq.s32.totalorder %s34, 0
    %p624 = por %p622, %p623
    %p625 = scmp.ne.s32.totalorder %s613, %s614
    %p626 = scmp.eq.s32.totalorder %s35, 7
    %p627 = por %p625, %p626
    %p629 = scmp.ne.s32.totalorder %s614, %s628
    %p630 = scmp.eq.s32.totalorder %s35, 0
    %p631 = por %p629, %p630
    %s632 = ssub.s32 %s36, %s48
    %p633 = scmp.eq.s32.totalorder %s632, 0
    %s635 = sadd.s32 %s634, 1
    %s636 = scalar_select %p633, %s634, %s635
    %p639 = pneg %p633
    %p640 = scmp.eq.s32.totalorder %s29, 7
    %p641 = por %p639, %p640
    %p642 = scmp.ne.s32.totalorder %s634, %s637
    %p643 = scmp.eq.s32.totalorder %s29, 0
    %p644 = por %p642, %p643
    %p645 = scmp.ne.s32.totalorder %s634, %s637
    %p646 = scmp.eq.s32.totalorder %s34, 7
    %p647 = por %p645, %p646
    %p648 = scmp.ne.s32.totalorder %s637, %s638
    %p649 = scmp.eq.s32.totalorder %s34, 0
    %p650 = por %p648, %p649
    %p651 = scmp.ne.s32.totalorder %s637, %s638
    %p652 = scmp.eq.s32.totalorder %s35, 7
    %p653 = por %p651, %p652
    %p655 = scmp.ne.s32.totalorder %s638, %s654
    %p656 = scmp.eq.s32.totalorder %s35, 0
    %p657 = por %p655, %p656
    %p658 = scmp.le.s32.totalorder 1, %s29
    %p659 = scmp.lt.s32.totalorder %s29, 9
    %p660 = pnand %p658, %p659
    %p661 = pneg %p660
    // Predicated region
    $region9: #{transformer_forward.3} parent=5 // pred_check
      _
    $region10: #{transformer_forward.3} parent=5 // pred_check_branch
      %663 = sbr.rel (%p660) target = $region12
    $region11: #{transformer_forward.3} parent=5 // pred_region
      %s664 = ssub.s32 %s29, 1
      // Predicated region
      $region13: #{transformer_forward.3} parent=11 // pred_check
        %p665 = pneg %p114
      $region14: #{transformer_forward.3} parent=11 // pred_check_branch
        %667 = sbr.rel (%p665) target = $region16
      $region15: #{transformer_forward.3} parent=11 // pred_region
        _
      $region16: #{transformer_forward.3} parent=11 // pred_fallthru
        _
      // Predicated region
      $region17: #{transformer_forward.3} parent=11 // pred_check
        %p668 = pneg %p603
      $region18: #{transformer_forward.3} parent=11 // pred_check_branch
        %670 = sbr.rel (%p668) target = $region20
      $region19: #{transformer_forward.3} parent=11 // pred_region
        _
      $region20: #{transformer_forward.3} parent=11 // pred_fallthru
        _
      // Predicated region
      $region21: #{transformer_forward.3} parent=11 // pred_check
        %p671 = pneg %p624
      $region22: #{transformer_forward.3} parent=11 // pred_check_branch
        %673 = sbr.rel (%p671) target = $region24
      $region23: #{transformer_forward.3} parent=11 // pred_region
        _
      $region24: #{transformer_forward.3} parent=11 // pred_fallthru
        _
    $region12: #{transformer_forward.3} parent=5 // pred_fallthru
      _
    %p674 = scmp.lt.s32.totalorder %s29, 8
    // Predicated region
    $region25: #{transformer_forward.3} parent=5 // pred_check
      %p675 = pneg %p674
    $region26: #{transformer_forward.3} parent=5 // pred_check_branch
      %677 = sbr.rel (%p675) target = $region28
    $region27: #{transformer_forward.3} parent=5 // pred_region
      // Predicated region
      $region29: #{transformer_forward.3} parent=27 // pred_check
        %p678 = pneg %p61
      $region30: #{transformer_forward.3} parent=27 // pred_check_branch
        %680 = sbr.rel (%p678) target = $region32
      $region31: #{transformer_forward.3} parent=27 // pred_region
        %p681 = scmp.lt.s32.totalorder %s36, 1
        %s682 = scalar_select %p681, %s36, 1
        %s683 = smul.addr %s682, 8
        %s684 = scalar_lea.vmem %s0, %s683
      $region32: #{transformer_forward.3} parent=27 // pred_fallthru
        _
      // Predicated region
      $region33: #{transformer_forward.3} parent=27 // pred_check
        %p685 = pneg %p87
      $region34: #{transformer_forward.3} parent=27 // pred_check_branch
        %687 = sbr.rel (%p685) target = $region36
      $region35: #{transformer_forward.3} parent=27 // pred_region
        %p688 = scmp.lt.s32.totalorder %s36, 1
        %s689 = scalar_select %p688, %s36, 1
        %s690 = smul.addr %s689, 8
        %s691 = scalar_lea.vmem %s1, %s690
      $region36: #{transformer_forward.3} parent=27 // pred_fallthru
        _
      // Predicated region
      $region37: #{transformer_forward.3} parent=27 // pred_check
        %p692 = pneg %p134
      $region38: #{transformer_forward.3} parent=27 // pred_check_branch
        %694 = sbr.rel (%p692) target = $region40
      $region39: #{transformer_forward.3} parent=27 // pred_region
        %p695 = scmp.lt.s32.totalorder %s37, 3
        %s696 = scalar_select %p695, %s37, 3
        %s697 = smul.addr %s696, 48
        %s698 = smul.addr %s697, 8
        %s699 = scalar_lea.vmem %s3, %s698
      $region40: #{transformer_forward.3} parent=27 // pred_fallthru
        _
      // Predicated region
      $region41: #{transformer_forward.3} parent=27 // pred_check
        %p700 = pneg %p160
      $region42: #{transformer_forward.3} parent=27 // pred_check_branch
        %702 = sbr.rel (%p700) target = $region44
      $region43: #{transformer_forward.3} parent=27 // pred_region
        %p703 = scmp.lt.s32.totalorder %s37, 3
        %s704 = scalar_select %p703, %s37, 3
        %s705 = smul.addr %s704, 12
        %s706 = scalar_lea.vmem %s4, %s705
      $region44: #{transformer_forward.3} parent=27 // pred_fallthru
        _
      // Predicated region
      $region45: #{transformer_forward.3} parent=27 // pred_check
        %p707 = pneg %p186
      $region46: #{transformer_forward.3} parent=27 // pred_check_branch
        %709 = sbr.rel (%p707) target = $region48
      $region47: #{transformer_forward.3} parent=27 // pred_region
        %p710 = scmp.lt.s32.totalorder %s37, 3
        %s711 = scalar_select %p710, %s37, 3
        %s712 = smul.addr %s711, 4
        %s713 = smul.addr %s712, 8
        %s714 = scalar_lea.vmem %s5, %s713
      $region48: #{transformer_forward.3} parent=27 // pred_fallthru
        _
      // Predicated region
      $region49: #{transformer_forward.3} parent=27 // pred_check
        %p715 = pneg %p212
      $region50: #{transformer_forward.3} parent=27 // pred_check_branch
        %717 = sbr.rel (%p715) target = $region52
      $region51: #{transformer_forward.3} parent=27 // pred_region
        %p718 = scmp.lt.s32.totalorder %s37, 3
        %s719 = scalar_select %p718, %s37, 3
        %s720 = scalar_lea.vmem %s6, %s719
      $region52: #{transformer_forward.3} parent=27 // pred_fallthru
        _
      // Predicated region
      $region53: #{transformer_forward.3} parent=27 // pred_check
        %p721 = pneg %p238
      $region54: #{transformer_forward.3} parent=27 // pred_check_branch
        %723 = sbr.rel (%p721) target = $region56
      $region55: #{transformer_forward.3} parent=27 // pred_region
        %p724 = scmp.lt.s32.totalorder %s37, 3
        %s725 = scalar_select %p724, %s37, 3
        %s726 = smul.addr %s725, 48
        %s727 = smul.addr %s726, 8
        %s728 = scalar_lea.vmem %s7, %s727
      $region56: #{transformer_forward.3} parent=27 // pred_fallthru
        _
      // Predicated region
      $region57: #{transformer_forward.3} parent=27 // pred_check
        %p729 = pneg %p264
      $region58: #{transformer_forward.3} parent=27 // pred_check_branch
        %731 = sbr.rel (%p729) target = $region60
      $region59: #{transformer_forward.3} parent=27 // pred_region
        %p732 = scmp.lt.s32.totalorder %s37, 3
        %s733 = scalar_select %p732, %s37, 3
        %s734 = smul.addr %s733, 12
        %s735 = scalar_lea.vmem %s8, %s734
      $region60: #{transformer_forward.3} parent=27 // pred_fallthru
        _
      // Predicated region
      $region61: #{transformer_forward.3} parent=27 // pred_check
        %p736 = pneg %p290
      $region62: #{transformer_forward.3} parent=27 // pred_check_branch
        %738 = sbr.rel (%p736) target = $region64
      $region63: #{transformer_forward.3} parent=27 // pred_region
        %p739 = scmp.lt.s32.totalorder %s37, 3
        %s740 = scalar_select %p739, %s37, 3
        %s741 = smul.addr %s740, 4
        %s742 = smul.addr %s741, 8
        %s743 = scalar_lea.vmem %s9, %s742
      $region64: #{transformer_forward.3} parent=27 // pred_fallthru
        _
      // Predicated region
      $region65: #{transformer_forward.3} parent=27 // pred_check
        %p744 = pneg %p316
      $region66: #{transformer_forward.3} parent=27 // pred_check_branch
        %746 = sbr.rel (%p744) target = $region68
      $region67: #{transformer_forward.3} parent=27 // pred_region
        %p747 = scmp.lt.s32.totalorder %s37, 3
        %s748 = scalar_select %p747, %s37, 3
        %s749 = scalar_lea.vmem %s10, %s748
      $region68: #{transformer_forward.3} parent=27 // pred_fallthru
        _
      // Predicated region
      $region69: #{transformer_forward.3} parent=27 // pred_check
        %p750 = pneg %p342
      $region70: #{transformer_forward.3} parent=27 // pred_check_branch
        %752 = sbr.rel (%p750) target = $region72
      $region71: #{transformer_forward.3} parent=27 // pred_region
        %p753 = scmp.lt.s32.totalorder %s37, 3
        %s754 = scalar_select %p753, %s37, 3
        %s755 = smul.addr %s754, 4
        %s756 = smul.addr %s755, 8
        %s757 = scalar_lea.vmem %s11, %s756
      $region72: #{transformer_forward.3} parent=27 // pred_fallthru
        _
      // Predicated region
      $region73: #{transformer_forward.3} parent=27 // pred_check
        %p758 = pneg %p368
      $region74: #{transformer_forward.3} parent=27 // pred_check_branch
        %760 = sbr.rel (%p758) target = $region76
      $region75: #{transformer_forward.3} parent=27 // pred_region
        %p761 = scmp.lt.s32.totalorder %s37, 3
        %s762 = scalar_select %p761, %s37, 3
        %s763 = scalar_lea.vmem %s12, %s762
      $region76: #{transformer_forward.3} parent=27 // pred_fallthru
        _
      // Predicated region
      $region77: #{transformer_forward.3} parent=27 // pred_check
        %p764 = pneg %p394
      $region78: #{transformer_forward.3} parent=27 // pred_check_branch
        %766 = sbr.rel (%p764) target = $region80
      $region79: #{transformer_forward.3} parent=27 // pred_region
        %p767 = scmp.lt.s32.totalorder %s37, 3
        %s768 = scalar_select %p767, %s37, 3
        %s769 = smul.addr %s768, 4
        %s770 = smul.addr %s769, 8
        %s771 = scalar_lea.vmem %s13, %s770
      $region80: #{transformer_forward.3} parent=27 // pred_fallthru
        _
      // Predicated region
      $region81: #{transformer_forward.3} parent=27 // pred_check
        %p772 = pneg %p420
      $region82: #{transformer_forward.3} parent=27 // pred_check_branch
        %774 = sbr.rel (%p772) target = $region84
      $region83: #{transformer_forward.3} parent=27 // pred_region
        %p775 = scmp.lt.s32.totalorder %s37, 3
        %s776 = scalar_select %p775, %s37, 3
        %s777 = scalar_lea.vmem %s14, %s776
      $region84: #{transformer_forward.3} parent=27 // pred_fallthru
        _
      // Predicated region
      $region85: #{transformer_forward.3} parent=27 // pred_check
        %p778 = pneg %p446
      $region86: #{transformer_forward.3} parent=27 // pred_check_branch
        %780 = sbr.rel (%p778) target = $region88
      $region87: #{transformer_forward.3} parent=27 // pred_region
        %p781 = scmp.lt.s32.totalorder %s37, 3
        %s782 = scalar_select %p781, %s37, 3
        %s783 = scalar_lea.vmem %s15, %s782
      $region88: #{transformer_forward.3} parent=27 // pred_fallthru
        _
      // Predicated region
      $region89: #{transformer_forward.3} parent=27 // pred_check
        %p784 = pneg %p472
      $region90: #{transformer_forward.3} parent=27 // pred_check_branch
        %786 = sbr.rel (%p784) target = $region92
      $region91: #{transformer_forward.3} parent=27 // pred_region
        %p787 = scmp.lt.s32.totalorder %s37, 3
        %s788 = scalar_select %p787, %s37, 3
        %s789 = scalar_lea.vmem %s16, %s788
      $region92: #{transformer_forward.3} parent=27 // pred_fallthru
        _
      // Predicated region
      $region93: #{transformer_forward.3} parent=27 // pred_check
        %p790 = pneg %p498
      $region94: #{transformer_forward.3} parent=27 // pred_check_branch
        %792 = sbr.rel (%p790) target = $region96
      $region95: #{transformer_forward.3} parent=27 // pred_region
        %p793 = scmp.lt.s32.totalorder %s37, 3
        %s794 = scalar_select %p793, %s37, 3
        %s795 = scalar_lea.vmem %s17, %s794
      $region96: #{transformer_forward.3} parent=27 // pred_fallthru
        _
      // Predicated region
      $region97: #{transformer_forward.3} parent=27 // pred_check
        %p796 = pneg %p524
      $region98: #{transformer_forward.3} parent=27 // pred_check_branch
        %798 = sbr.rel (%p796) target = $region100
      $region99: #{transformer_forward.3} parent=27 // pred_region
        %p799 = scmp.lt.s32.totalorder %s37, 3
        %s800 = scalar_select %p799, %s37, 3
        %s801 = scalar_lea.vmem %s18, %s800
      $region100: #{transformer_forward.3} parent=27 // pred_fallthru
        _
      // Predicated region
      $region101: #{transformer_forward.3} parent=27 // pred_check
        %p802 = pneg %p550
      $region102: #{transformer_forward.3} parent=27 // pred_check_branch
        %804 = sbr.rel (%p802) target = $region104
      $region103: #{transformer_forward.3} parent=27 // pred_region
        %p805 = scmp.lt.s32.totalorder %s37, 3
        %s806 = scalar_select %p805, %s37, 3
        %s807 = scalar_lea.vmem %s19, %s806
      $region104: #{transformer_forward.3} parent=27 // pred_fallthru
        _
      // Predicated region
      $region105: #{transformer_forward.3} parent=27 // pred_check
        %p808 = pneg %p576
      $region106: #{transformer_forward.3} parent=27 // pred_check_branch
        %810 = sbr.rel (%p808) target = $region108
      $region107: #{transformer_forward.3} parent=27 // pred_region
        %p811 = scmp.lt.s32.totalorder %s37, 3
        %s812 = scalar_select %p811, %s37, 3
        %s813 = scalar_lea.vmem %s20, %s812
      $region108: #{transformer_forward.3} parent=27 // pred_fallthru
        _
    $region28: #{transformer_forward.3} parent=5 // pred_fallthru
      _
    %p814 = scmp.le.s32.totalorder 1, %s29
    %p815 = scmp.lt.s32.totalorder %s29, 9
    %p816 = pnand %p814, %p815
    %p817 = pneg %p816
    // Predicated region
    $region109: #{transformer_forward.3} parent=5 // pred_check
      _
    $region110: #{transformer_forward.3} parent=5 // pred_check_branch
      %819 = sbr.rel (%p816) target = $region112
    $region111: #{transformer_forward.3} parent=5 // pred_region
      %s820 = ssub.s32 %s29, 1
      %p821 = scmp.lt.s32.totalorder %s38, 1
      %s822 = scalar_select %p821, %s38, 1
      %s823 = smul.addr %s822, 8
      %s824 = scalar_lea.vmem %s0, %s823
      %p825 = pneg %p67
      %p826 = pneg %p64
      %p827 = scmp.lt.s32.totalorder %s38, 1
      %s828 = scalar_select %p827, %s38, 1
      %s829 = smul.addr %s828, 8
      %s830 = scalar_lea.vmem %s1, %s829
      %p831 = pneg %p93
      %p832 = pneg %p90
      %p833 = pneg %p114
      %p834 = pneg %p111
      %p835 = scmp.lt.s32.totalorder %s39, 3
      %s836 = scalar_select %p835, %s39, 3
      %s837 = smul.addr %s836, 48
      %s838 = smul.addr %s837, 8
      %s839 = scalar_lea.vmem %s3, %s838
      %p840 = pneg %p140
      %p841 = pneg %p137
      %p842 = scmp.lt.s32.totalorder %s39, 3
      %s843 = scalar_select %p842, %s39, 3
      %s844 = smul.addr %s843, 12
      %s845 = scalar_lea.vmem %s4, %s844
      %p846 = pneg %p166
      %p847 = pneg %p163
      %p848 = scmp.lt.s32.totalorder %s39, 3
      %s849 = scalar_select %p848, %s39, 3
      %s850 = smul.addr %s849, 4
      %s851 = smul.addr %s850, 8
      %s852 = scalar_lea.vmem %s5, %s851
      %p853 = pneg %p192
      %p854 = pneg %p189
      %p855 = scmp.lt.s32.totalorder %s39, 3
      %s856 = scalar_select %p855, %s39, 3
      %s857 = scalar_lea.vmem %s6, %s856
      %p858 = pneg %p218
      %p859 = pneg %p215
      %p860 = scmp.lt.s32.totalorder %s39, 3
      %s861 = scalar_select %p860, %s39, 3
      %s862 = smul.addr %s861, 48
      %s863 = smul.addr %s862, 8
      %s864 = scalar_lea.vmem %s7, %s863
      %p865 = pneg %p244
      %p866 = pneg %p241
      %p867 = scmp.lt.s32.totalorder %s39, 3
      %s868 = scalar_select %p867, %s39, 3
      %s869 = smul.addr %s868, 12
      %s870 = scalar_lea.vmem %s8, %s869
      %p871 = pneg %p270
      %p872 = pneg %p267
      %p873 = scmp.lt.s32.totalorder %s39, 3
      %s874 = scalar_select %p873, %s39, 3
      %s875 = smul.addr %s874, 4
      %s876 = smul.addr %s875, 8
      %s877 = scalar_lea.vmem %s9, %s876
      %p878 = pneg %p296
      %p879 = pneg %p293
      %p880 = scmp.lt.s32.totalorder %s39, 3
      %s881 = scalar_select %p880, %s39, 3
      %s882 = scalar_lea.vmem %s10, %s881
      %p883 = pneg %p322
      %p884 = pneg %p319
      %p885 = scmp.lt.s32.totalorder %s39, 3
      %s886 = scalar_select %p885, %s39, 3
      %s887 = smul.addr %s886, 4
      %s888 = smul.addr %s887, 8
      %s889 = scalar_lea.vmem %s11, %s888
      %p890 = pneg %p348
      %p891 = pneg %p345
      %p892 = scmp.lt.s32.totalorder %s39, 3
      %s893 = scalar_select %p892, %s39, 3
      %s894 = scalar_lea.vmem %s12, %s893
      %p895 = pneg %p374
      %p896 = pneg %p371
      %p897 = scmp.lt.s32.totalorder %s39, 3
      %s898 = scalar_select %p897, %s39, 3
      %s899 = smul.addr %s898, 4
      %s900 = smul.addr %s899, 8
      %s901 = scalar_lea.vmem %s13, %s900
      %p902 = pneg %p400
      %p903 = pneg %p397
      %p904 = scmp.lt.s32.totalorder %s39, 3
      %s905 = scalar_select %p904, %s39, 3
      %s906 = scalar_lea.vmem %s14, %s905
      %p907 = pneg %p426
      %p908 = pneg %p423
      %p909 = scmp.lt.s32.totalorder %s39, 3
      %s910 = scalar_select %p909, %s39, 3
      %s911 = scalar_lea.vmem %s15, %s910
      %p912 = pneg %p452
      %p913 = pneg %p449
      %p914 = scmp.lt.s32.totalorder %s39, 3
      %s915 = scalar_select %p914, %s39, 3
      %s916 = scalar_lea.vmem %s16, %s915
      %p917 = pneg %p478
      %p918 = pneg %p475
      %p919 = scmp.lt.s32.totalorder %s39, 3
      %s920 = scalar_select %p919, %s39, 3
      %s921 = scalar_lea.vmem %s17, %s920
      %p922 = pneg %p504
      %p923 = pneg %p501
      %p924 = scmp.lt.s32.totalorder %s39, 3
      %s925 = scalar_select %p924, %s39, 3
      %s926 = scalar_lea.vmem %s18, %s925
      %p927 = pneg %p530
      %p928 = pneg %p527
      %p929 = scmp.lt.s32.totalorder %s39, 3
      %s930 = scalar_select %p929, %s39, 3
      %s931 = scalar_lea.vmem %s19, %s930
      %p932 = pneg %p556
      %p933 = pneg %p553
      %p934 = scmp.lt.s32.totalorder %s39, 3
      %s935 = scalar_select %p934, %s39, 3
      %s936 = scalar_lea.vmem %s20, %s935
      %p937 = pneg %p582
      %p938 = pneg %p579
      %p939 = pneg %p603
      %p940 = pneg %p600
      %p941 = pneg %p624
      %p942 = pneg %p621
      %p943 = pneg %p650
      %p944 = pneg %p647
      %p945 = scmp.lt.s32.totalorder %s38, 1
      %s946 = scalar_select %p945, %s38, 1
      %s947 = smul.addr %s946, 8
      %s948 = scalar_lea.vmem %s23, %s947
      %p949 = scmp.lt.s32.totalorder %s38, 1
      %s950 = scalar_select %p949, %s38, 1
      %s951 = smul.addr %s950, 8
      %s952 = scalar_lea.vmem %s0, %s951
      %p953 = scmp.lt.s32.totalorder %s38, 1
      %s954 = scalar_select %p953, %s38, 1
      %s955 = smul.addr %s954, 8
      %s956 = scalar_lea.vmem %s1, %s955
      %p957 = scmp.lt.s32.totalorder %s39, 3
      %s958 = scalar_select %p957, %s39, 3
      %s959 = smul.addr %s958, 48
      %s960 = smul.addr %s959, 8
      %s961 = scalar_lea.vmem %s3, %s960
      %p962 = scmp.lt.s32.totalorder %s39, 3
      %s963 = scalar_select %p962, %s39, 3
      %s964 = smul.addr %s963, 12
      %s965 = scalar_lea.vmem %s4, %s964
      %p966 = scmp.lt.s32.totalorder %s39, 3
      %s967 = scalar_select %p966, %s39, 3
      %s968 = smul.addr %s967, 4
      %s969 = smul.addr %s968, 8
      %s970 = scalar_lea.vmem %s5, %s969
      %p971 = scmp.lt.s32.totalorder %s39, 3
      %s972 = scalar_select %p971, %s39, 3
      %s973 = scalar_lea.vmem %s6, %s972
      %p974 = scmp.lt.s32.totalorder %s39, 3
      %s975 = scalar_select %p974, %s39, 3
      %s976 = smul.addr %s975, 48
      %s977 = smul.addr %s976, 8
      %s978 = scalar_lea.vmem %s7, %s977
      %p979 = scmp.lt.s32.totalorder %s39, 3
      %s980 = scalar_select %p979, %s39, 3
      %s981 = smul.addr %s980, 12
      %s982 = scalar_lea.vmem %s8, %s981
      %p983 = scmp.lt.s32.totalorder %s39, 3
      %s984 = scalar_select %p983, %s39, 3
      %s985 = smul.addr %s984, 4
      %s986 = smul.addr %s985, 8
      %s987 = scalar_lea.vmem %s9, %s986
      %p988 = scmp.lt.s32.totalorder %s39, 3
      %s989 = scalar_select %p988, %s39, 3
      %s990 = scalar_lea.vmem %s10, %s989
      %p991 = scmp.lt.s32.totalorder %s39, 3
      %s992 = scalar_select %p991, %s39, 3
      %s993 = smul.addr %s992, 4
      %s994 = smul.addr %s993, 8
      %s995 = scalar_lea.vmem %s11, %s994
      %p996 = scmp.lt.s32.totalorder %s39, 3
      %s997 = scalar_select %p996, %s39, 3
      %s998 = scalar_lea.vmem %s12, %s997
      %p999 = scmp.lt.s32.totalorder %s39, 3
      %s1000 = scalar_select %p999, %s39, 3
      %s1001 = smul.addr %s1000, 4
      %s1002 = smul.addr %s1001, 8
      %s1003 = scalar_lea.vmem %s13, %s1002
      %p1004 = scmp.lt.s32.totalorder %s39, 3
      %s1005 = scalar_select %p1004, %s39, 3
      %s1006 = scalar_lea.vmem %s14, %s1005
      %p1007 = scmp.lt.s32.totalorder %s39, 3
      %s1008 = scalar_select %p1007, %s39, 3
      %s1009 = scalar_lea.vmem %s15, %s1008
      %p1010 = scmp.lt.s32.totalorder %s39, 3
      %s1011 = scalar_select %p1010, %s39, 3
      %s1012 = scalar_lea.vmem %s16, %s1011
      %p1013 = scmp.lt.s32.totalorder %s39, 3
      %s1014 = scalar_select %p1013, %s39, 3
      %s1015 = scalar_lea.vmem %s17, %s1014
      %p1016 = scmp.lt.s32.totalorder %s39, 3
      %s1017 = scalar_select %p1016, %s39, 3
      %s1018 = scalar_lea.vmem %s18, %s1017
      %p1019 = scmp.lt.s32.totalorder %s39, 3
      %s1020 = scalar_select %p1019, %s39, 3
      %s1021 = scalar_lea.vmem %s19, %s1020
      %p1022 = scmp.lt.s32.totalorder %s39, 3
      %s1023 = scalar_select %p1022, %s39, 3
      %s1024 = scalar_lea.vmem %s20, %s1023
      %p1025 = scmp.lt.s32.totalorder %s38, 1
      %s1026 = scalar_select %p1025, %s38, 1
      %s1027 = smul.addr %s1026, 8
      %s1028 = scalar_lea.vmem %s23, %s1027
      %p1029 = scmp.eq.s32.totalorder %s39, 0
      // Predicated region
      $region113: #{transformer_forward.3} parent=111 // pred_check
        %p1030 = pneg %p1029
      $region114: #{transformer_forward.3} parent=111 // pred_check_branch
        %1032 = sbr.rel (%p1030) target = $region116
      $region115: #{transformer_forward.3} parent=111 // pred_region
        %v1033 = vld [vmem:[%s952] sm:$0xff]
        %vm1034 = vcmask 261120
        %1035 = vst.msk [vmem:[#allocation2] sm:$0xff] %vm1034, %v1033
      $region116: #{transformer_forward.3} parent=111 // pred_fallthru
        _
      %v1036 = vld [vmem:[#allocation2] sm:$0xff]
      %v1037 = vld [vmem:[%s2] sm:$0xff]
      %v1038 = vld [vmem:[%s961] sm:$0xff]
      %v1039 = vld [vmem:[%s961 + $0x8] sm:$0xff]
      %v1040 = vld [vmem:[%s961 + $0x10] sm:$0xff]
      %v1041 = vld [vmem:[%s961 + $0x18] sm:$0xff]
      %v1042 = vld [vmem:[%s965] sm:$0x1]
      %s1043 = scalar_lea.vmem %s961, 128
      %v1044 = vld [vmem:[%s1043] sm:$0xff]
      %v1045 = vld [vmem:[%s1043 + $0x8] sm:$0xff]
      %v1046 = vld [vmem:[%s1043 + $0x10] sm:$0xff]
      %v1047 = vld [vmem:[%s1043 + $0x18] sm:$0xff]
      %s1048 = scalar_lea.vmem %s965, 4
      %v1049 = vld [vmem:[%s1048] sm:$0x1]
      %s1050 = scalar_lea.vmem %s961, 256
      %v1051 = vld [vmem:[%s1050] sm:$0xff]
      %v1052 = vld [vmem:[%s1050 + $0x8] sm:$0xff]
      %v1053 = vld [vmem:[%s1050 + $0x10] sm:$0xff]
      %v1054 = vld [vmem:[%s1050 + $0x18] sm:$0xff]
      %s1055 = scalar_lea.vmem %s965, 8
      %v1056 = vld [vmem:[%s1055] sm:$0x1]
      %v1058 = vlaneseq
      %v1059 = vshrl.u32 %v1058, 7
      %v1060 = vsub.s32 0, %v1059
      %v1061 = vrot.slane %v1042, %v1060
      %vm1063 = vcmask 261120
      %v1065 = vsel %vm1063, %v1036, 0
      %1067 = vmatprep.subr.mxu0 0.0
      %1068 = vmatpush1.msra.mxu0 %v1038
      %1069 = vmatprep.subr.mxu0 0.0
      %1070 = vmatpush1.msra.mxu0 %v1039
      %1071 = vmatprep.subr.mxu0 0.0
      %1072 = vmatpush1.msra.mxu0 %v1040
      %1073 = vmatprep.subr.mxu0 0.0
      %1074 = vmatpush1.msra.mxu0 %v1041
      %1075 = vmatprep.subr.mxu0 0.0
      %1076 = vmatpush1.msra.mxu0 0.0
      %1077 = vmatprep.subr.mxu0 0.0
      %1078 = vmatpush1.msra.mxu0 0.0
      %1079 = vmatprep.subr.mxu0 0.0
      %1080 = vmatpush1.msra.mxu0 0.0
      %1081 = vmatprep.subr.mxu0 0.0
      %1082 = vmatpush1.msra.mxu0 0.0
      %1083 = vmatprep.subr.mxu0 0.0
      %1084 = vmatpush1.msra.mxu0 0.0
      %1085 = vmatprep.subr.mxu0 0.0
      %1086 = vmatpush1.msra.mxu0 0.0
      %1087 = vmatprep.subr.mxu0 0.0
      %1088 = vmatpush1.msra.mxu0 0.0
      %1089 = vmatprep.subr.mxu0 0.0
      %1090 = vmatpush1.msra.mxu0 0.0
      %1091 = vmatprep.subr.mxu0 0.0
      %1092 = vmatpush1.msra.mxu0 0.0
      %1093 = vmatprep.subr.mxu0 0.0
      %1094 = vmatpush1.msra.mxu0 0.0
      %1095 = vmatprep.subr.mxu0 0.0
      %1096 = vmatpush1.msra.mxu0 0.0
      %1097 = vmatprep.subr.mxu0 0.0
      %1098 = vmatpush1.msra.mxu0 0.0
      %1099 = vmatprep.subr.mxu0 0.0
      %1100 = vmatpush1.msra.mxu0 0.0
      %1101 = vmatprep.subr.mxu0 0.0
      %1102 = vmatpush1.msra.mxu0 0.0
      %1103 = vmatprep.subr.mxu0 0.0
      %1104 = vmatpush1.msra.mxu0 0.0
      %1105 = vmatprep.subr.mxu0 0.0
      %1106 = vmatpush1.msra.mxu0 0.0
      %1107 = vmatprep.subr.mxu0 0.0
      %1108 = vmatpush1.msra.mxu0 0.0
      %1109 = vmatprep.subr.mxu0 0.0
      %1110 = vmatpush1.msra.mxu0 0.0
      %1111 = vmatprep.subr.mxu0 0.0
      %1112 = vmatpush1.msra.mxu0 0.0
      %1113 = vmatprep.subr.mxu0 0.0
      %1114 = vmatpush1.msra.mxu0 0.0
      %1115 = vmatprep.subr.mxu0 0.0
      %1116 = vmatpush1.msra.mxu0 0.0
      %1117 = vmatprep.subr.mxu0 0.0
      %1118 = vmatpush1.msra.mxu0 0.0
      %1119 = vmatprep.subr.mxu0 0.0
      %1120 = vmatpush1.msra.mxu0 0.0
      %1121 = vmatprep.subr.mxu0 0.0
      %1122 = vmatpush1.msra.mxu0 0.0
      %1123 = vmatprep.subr.mxu0 0.0
      %1124 = vmatpush1.msra.mxu0 0.0
      %1125 = vmatprep.subr.mxu0 0.0
      %1126 = vmatpush1.msra.mxu0 0.0
      %1127 = vmatprep.subr.mxu0 0.0
      %1128 = vmatpush1.msra.mxu0 0.0
      %1129 = vmatprep.subr.mxu0 0.0
      %1130 = vmatpush1.msra.mxu0 0.0
      %1131 = vmatprep.mubr.f32.mxu0 0.0
      %1132 = vmatmul.mubr.f32.gmra.mrb[0].mxu0 %v1065
      %v1133 = vpop.f32.mrb[0].mxu0
      %v1134 = vadd.f32 %v1061, %v1133
      %v1135 = vpop.f32.mrb[0].mxu0
      %1136 = vdwg.mxu0
      %v1137 = vmul.f32 %v1134, 0.35355338
      %v1139 = vlaneseq
      %v1140 = vshrl.u32 %v1139, 7
      %v1141 = vsub.s32 0, %v1140
      %v1142 = vrot.slane %v1049, %v1141
      %1144 = vmatprep.subr.mxu0 0.0
      %1145 = vmatpush1.msra.mxu0 %v1044
      %1146 = vmatprep.subr.mxu0 0.0
      %1147 = vmatpush1.msra.mxu0 %v1045
      %1148 = vmatprep.subr.mxu0 0.0
      %1149 = vmatpush1.msra.mxu0 %v1046
      %1150 = vmatprep.subr.mxu0 0.0
      %1151 = vmatpush1.msra.mxu0 %v1047
      %1152 = vmatprep.subr.mxu0 0.0
      %1153 = vmatpush1.msra.mxu0 0.0
      %1154 = vmatprep.subr.mxu0 0.0
      %1155 = vmatpush1.msra.mxu0 0.0
      %1156 = vmatprep.subr.mxu0 0.0
      %1157 = vmatpush1.msra.mxu0 0.0
      %1158 = vmatprep.subr.mxu0 0.0
      %1159 = vmatpush1.msra.mxu0 0.0
      %1160 = vmatprep.subr.mxu0 0.0
      %1161 = vmatpush1.msra.mxu0 0.0
      %1162 = vmatprep.subr.mxu0 0.0
      %1163 = vmatpush1.msra.mxu0 0.0
      %1164 = vmatprep.subr.mxu0 0.0
      %1165 = vmatpush1.msra.mxu0 0.0
      %1166 = vmatprep.subr.mxu0 0.0
      %1167 = vmatpush1.msra.mxu0 0.0
      %1168 = vmatprep.subr.mxu0 0.0
      %1169 = vmatpush1.msra.mxu0 0.0
      %1170 = vmatprep.subr.mxu0 0.0
      %1171 = vmatpush1.msra.mxu0 0.0
      %1172 = vmatprep.subr.mxu0 0.0
      %1173 = vmatpush1.msra.mxu0 0.0
      %1174 = vmatprep.subr.mxu0 0.0
      %1175 = vmatpush1.msra.mxu0 0.0
      %1176 = vmatprep.subr.mxu0 0.0
      %1177 = vmatpush1.msra.mxu0 0.0
      %1178 = vmatprep.subr.mxu0 0.0
      %1179 = vmatpush1.msra.mxu0 0.0
      %1180 = vmatprep.subr.mxu0 0.0
      %1181 = vmatpush1.msra.mxu0 0.0
      %1182 = vmatprep.subr.mxu0 0.0
      %1183 = vmatpush1.msra.mxu0 0.0
      %1184 = vmatprep.subr.mxu0 0.0
      %1185 = vmatpush1.msra.mxu0 0.0
      %1186 = vmatprep.subr.mxu0 0.0
      %1187 = vmatpush1.msra.mxu0 0.0
      %1188 = vmatprep.subr.mxu0 0.0
      %1189 = vmatpush1.msra.mxu0 0.0
      %1190 = vmatprep.subr.mxu0 0.0
      %1191 = vmatpush1.msra.mxu0 0.0
      %1192 = vmatprep.subr.mxu0 0.0
      %1193 = vmatpush1.msra.mxu0 0.0
      %1194 = vmatprep.subr.mxu0 0.0
      %1195 = vmatpush1.msra.mxu0 0.0
      %1196 = vmatprep.subr.mxu0 0.0
      %1197 = vmatpush1.msra.mxu0 0.0
      %1198 = vmatprep.subr.mxu0 0.0
      %1199 = vmatpush1.msra.mxu0 0.0
      %1200 = vmatprep.subr.mxu0 0.0
      %1201 = vmatpush1.msra.mxu0 0.0
      %1202 = vmatprep.subr.mxu0 0.0
      %1203 = vmatpush1.msra.mxu0 0.0
      %1204 = vmatprep.subr.mxu0 0.0
      %1205 = vmatpush1.msra.mxu0 0.0
      %1206 = vmatprep.subr.mxu0 0.0
      %1207 = vmatpush1.msra.mxu0 0.0
      %1208 = vmatprep.mubr.f32.mxu0 0.0
      %1209 = vmatmul.mubr.f32.gmra.mrb[0].mxu0 %v1065
      %v1210 = vpop.f32.mrb[0].mxu0
      %v1211 = vadd.f32 %v1142, %v1210
      %v1212 = vpop.f32.mrb[0].mxu0
      %1213 = vdwg.mxu0
      %v1215 = vlaneseq
      %v1216 = vshrl.u32 %v1215, 7
      %v1217 = vsub.s32 0, %v1216
      %v1218 = vrot.slane %v1056, %v1217
      %1220 = vmatprep.subr.mxu0 0.0
      %1221 = vmatpush1.msra.mxu0 %v1051
      %1222 = vmatprep.subr.mxu0 0.0
      %1223 = vmatpush1.msra.mxu0 %v1052
      %1224 = vmatprep.subr.mxu0 0.0
      %1225 = vmatpush1.msra.mxu0 %v1053
      %1226 = vmatprep.subr.mxu0 0.0
      %1227 = vmatpush1.msra.mxu0 %v1054
      %1228 = vmatprep.subr.mxu0 0.0
      %1229 = vmatpush1.msra.mxu0 0.0
      %1230 = vmatprep.subr.mxu0 0.0
      %1231 = vmatpush1.msra.mxu0 0.0
      %1232 = vmatprep.subr.mxu0 0.0
      %1233 = vmatpush1.msra.mxu0 0.0
      %1234 = vmatprep.subr.mxu0 0.0
      %1235 = vmatpush1.msra.mxu0 0.0
      %1236 = vmatprep.subr.mxu0 0.0
      %1237 = vmatpush1.msra.mxu0 0.0
      %1238 = vmatprep.subr.mxu0 0.0
      %1239 = vmatpush1.msra.mxu0 0.0
      %1240 = vmatprep.subr.mxu0 0.0
      %1241 = vmatpush1.msra.mxu0 0.0
      %1242 = vmatprep.subr.mxu0 0.0
      %1243 = vmatpush1.msra.mxu0 0.0
      %1244 = vmatprep.subr.mxu0 0.0
      %1245 = vmatpush1.msra.mxu0 0.0
      %1246 = vmatprep.subr.mxu0 0.0
      %1247 = vmatpush1.msra.mxu0 0.0
      %1248 = vmatprep.subr.mxu0 0.0
      %1249 = vmatpush1.msra.mxu0 0.0
      %1250 = vmatprep.subr.mxu0 0.0
      %1251 = vmatpush1.msra.mxu0 0.0
      %1252 = vmatprep.subr.mxu0 0.0
      %1253 = vmatpush1.msra.mxu0 0.0
      %1254 = vmatprep.subr.mxu0 0.0
      %1255 = vmatpush1.msra.mxu0 0.0
      %1256 = vmatprep.subr.mxu0 0.0
      %1257 = vmatpush1.msra.mxu0 0.0
      %1258 = vmatprep.subr.mxu0 0.0
      %1259 = vmatpush1.msra.mxu0 0.0
      %1260 = vmatprep.subr.mxu0 0.0
      %1261 = vmatpush1.msra.mxu0 0.0
      %1262 = vmatprep.subr.mxu0 0.0
      %1263 = vmatpush1.msra.mxu0 0.0
      %1264 = vmatprep.subr.mxu0 0.0
      %1265 = vmatpush1.msra.mxu0 0.0
      %1266 = vmatprep.subr.mxu0 0.0
      %1267 = vmatpush1.msra.mxu0 0.0
      %1268 = vmatprep.subr.mxu0 0.0
      %1269 = vmatpush1.msra.mxu0 0.0
      %1270 = vmatprep.subr.mxu0 0.0
      %1271 = vmatpush1.msra.mxu0 0.0
      %1272 = vmatprep.subr.mxu0 0.0
      %1273 = vmatpush1.msra.mxu0 0.0
      %1274 = vmatprep.subr.mxu0 0.0
      %1275 = vmatpush1.msra.mxu0 0.0
      %1276 = vmatprep.subr.mxu0 0.0
      %1277 = vmatpush1.msra.mxu0 0.0
      %1278 = vmatprep.subr.mxu0 0.0
      %1279 = vmatpush1.msra.mxu0 0.0
      %1280 = vmatprep.subr.mxu0 0.0
      %1281 = vmatpush1.msra.mxu0 0.0
      %1282 = vmatprep.subr.mxu0 0.0
      %1283 = vmatpush1.msra.mxu0 0.0
      %1284 = vmatprep.mubr.f32.mxu0 0.0
      %1285 = vmatmul.mubr.f32.gmra.mrb[0].mxu0 %v1065
      %v1286 = vpop.f32.mrb[0].mxu0
      %v1287 = vadd.f32 %v1218, %v1286
      %v1288 = vpop.f32.mrb[0].mxu0
      %1289 = vdwg.mxu0
      %vm1290 = vcmask 64512
      %v1292 = vsel %vm1290, %v1137, 0
      %v1295 = vsel %vm1290, %v1211, 0
      %1297 = vmatprep.subr.mxu0 0.0
      %1298 = vmatpush1.xpose.msra.mxu0 %v1295
      %1299 = vmatprep.subr.mxu0 0.0
      %1300 = vmatpush1.xpose.msra.mxu0 0.0
      %1301 = vmatprep.subr.mxu0 0.0
      %1302 = vmatpush1.xpose.msra.mxu0 0.0
      %1303 = vmatprep.subr.mxu0 0.0
      %1304 = vmatpush1.xpose.msra.mxu0 0.0
      %1305 = vmatprep.subr.mxu0 0.0
      %1306 = vmatpush1.xpose.msra.mxu0 0.0
      %1307 = vmatprep.subr.mxu0 0.0
      %1308 = vmatpush1.xpose.msra.mxu0 0.0
      %1309 = vmatprep.subr.mxu0 0.0
      %1310 = vmatpush1.xpose.msra.mxu0 0.0
      %1311 = vmatprep.subr.mxu0 0.0
      %1312 = vmatpush1.xpose.msra.mxu0 0.0
      %1313 = vmatprep.subr.mxu0 0.0
      %1314 = vmatpush1.xpose.msra.mxu0 0.0
      %1315 = vmatprep.subr.mxu0 0.0
      %1316 = vmatpush1.xpose.msra.mxu0 0.0
      %1317 = vmatprep.subr.mxu0 0.0
      %1318 = vmatpush1.xpose.msra.mxu0 0.0
      %1319 = vmatprep.subr.mxu0 0.0
      %1320 = vmatpush1.xpose.msra.mxu0 0.0
      %1321 = vmatprep.subr.mxu0 0.0
      %1322 = vmatpush1.xpose.msra.mxu0 0.0
      %1323 = vmatprep.subr.mxu0 0.0
      %1324 = vmatpush1.xpose.msra.mxu0 0.0
      %1325 = vmatprep.subr.mxu0 0.0
      %1326 = vmatpush1.xpose.msra.mxu0 0.0
      %1327 = vmatprep.subr.mxu0 0.0
      %1328 = vmatpush1.xpose.msra.mxu0 0.0
      %1329 = vmatprep.subr.mxu0 0.0
      %1330 = vmatpush1.xpose.msra.mxu0 0.0
      %1331 = vmatprep.subr.mxu0 0.0
      %1332 = vmatpush1.xpose.msra.mxu0 0.0
      %1333 = vmatprep.subr.mxu0 0.0
      %1334 = vmatpush1.xpose.msra.mxu0 0.0
      %1335 = vmatprep.subr.mxu0 0.0
      %1336 = vmatpush1.xpose.msra.mxu0 0.0
      %1337 = vmatprep.subr.mxu0 0.0
      %1338 = vmatpush1.xpose.msra.mxu0 0.0
      %1339 = vmatprep.subr.mxu0 0.0
      %1340 = vmatpush1.xpose.msra.mxu0 0.0
      %1341 = vmatprep.subr.mxu0 0.0
      %1342 = vmatpush1.xpose.msra.mxu0 0.0
      %1343 = vmatprep.subr.mxu0 0.0
      %1344 = vmatpush1.xpose.msra.mxu0 0.0
      %1345 = vmatprep.subr.mxu0 0.0
      %1346 = vmatpush1.xpose.msra.mxu0 0.0
      %1347 = vmatprep.subr.mxu0 0.0
      %1348 = vmatpush1.xpose.msra.mxu0 0.0
      %1349 = vmatprep.subr.mxu0 0.0
      %1350 = vmatpush1.xpose.msra.mxu0 0.0
      %1351 = vmatprep.subr.mxu0 0.0
      %1352 = vmatpush1.xpose.msra.mxu0 0.0
      %1353 = vmatprep.subr.mxu0 0.0
      %1354 = vmatpush1.xpose.msra.mxu0 0.0
      %1355 = vmatprep.subr.mxu0 0.0
      %1356 = vmatpush1.xpose.msra.mxu0 0.0
      %1357 = vmatprep.subr.mxu0 0.0
      %1358 = vmatpush1.xpose.msra.mxu0 0.0
      %1359 = vmatprep.subr.mxu0 0.0
      %1360 = vmatpush1.xpose.msra.mxu0 0.0
      %1361 = vmatprep.mubr.f32.mxu0 0.0
      %1362 = vmatmul.mubr.f32.gmra.mrb[0].mxu0 %v1292
      %v1363 = vpop.f32.mrb[0].mxu0
      %v1364 = vadd.f32 %v1037, %v1363
      %v1365 = vpop.f32.mrb[0].mxu0
      %1366 = vdwg.mxu0
      %v1367 = vsel %vm1290, %v1364, -inf
      %1368 = vmax.xlane.f32.xlu0 %v1367
      %v1369 = vpop.xlane.xlu0 %1368
      %v1370 = vsub.f32 %v1364, %v1369
      %v1371 = vmul.f32 %v1370, 1.442695
      %v1372 = vpow.pop %v1371
      %v1373 = vsel %vm1290, %v1372, 0.0
      %1374 = vadd.xlane.f32.xlu0 %v1373
      %v1375 = vpop.xlane.xlu0 %1374
      %v1376 = vrcp.pop %v1375
      %v1377 = vmul.f32 %v1372, %v1376
      %v1379 = vsel %vm1290, %v1377, 0
      %1381 = vmatprep.subr.mxu0 0.0
      %1382 = vmatpush1.msra.mxu0 %v1287
      %1383 = vmatprep.subr.mxu0 0.0
      %1384 = vmatpush1.msra.mxu0 0.0
      %1385 = vmatprep.subr.mxu0 0.0
      %1386 = vmatpush1.msra.mxu0 0.0
      %1387 = vmatprep.subr.mxu0 0.0
      %1388 = vmatpush1.msra.mxu0 0.0
      %1389 = vmatprep.subr.mxu0 0.0
      %1390 = vmatpush1.msra.mxu0 0.0
      %1391 = vmatprep.subr.mxu0 0.0
      %1392 = vmatpush1.msra.mxu0 0.0
      %1393 = vmatprep.subr.mxu0 0.0
      %1394 = vmatpush1.msra.mxu0 0.0
      %1395 = vmatprep.subr.mxu0 0.0
      %1396 = vmatpush1.msra.mxu0 0.0
      %1397 = vmatprep.subr.mxu0 0.0
      %1398 = vmatpush1.msra.mxu0 0.0
      %1399 = vmatprep.subr.mxu0 0.0
      %1400 = vmatpush1.msra.mxu0 0.0
      %1401 = vmatprep.subr.mxu0 0.0
      %1402 = vmatpush1.msra.mxu0 0.0
      %1403 = vmatprep.subr.mxu0 0.0
      %1404 = vmatpush1.msra.mxu0 0.0
      %1405 = vmatprep.subr.mxu0 0.0
      %1406 = vmatpush1.msra.mxu0 0.0
      %1407 = vmatprep.subr.mxu0 0.0
      %1408 = vmatpush1.msra.mxu0 0.0
      %1409 = vmatprep.subr.mxu0 0.0
      %1410 = vmatpush1.msra.mxu0 0.0
      %1411 = vmatprep.subr.mxu0 0.0
      %1412 = vmatpush1.msra.mxu0 0.0
      %1413 = vmatprep.subr.mxu0 0.0
      %1414 = vmatpush1.msra.mxu0 0.0
      %1415 = vmatprep.subr.mxu0 0.0
      %1416 = vmatpush1.msra.mxu0 0.0
      %1417 = vmatprep.subr.mxu0 0.0
      %1418 = vmatpush1.msra.mxu0 0.0
      %1419 = vmatprep.subr.mxu0 0.0
      %1420 = vmatpush1.msra.mxu0 0.0
      %1421 = vmatprep.subr.mxu0 0.0
      %1422 = vmatpush1.msra.mxu0 0.0
      %1423 = vmatprep.subr.mxu0 0.0
      %1424 = vmatpush1.msra.mxu0 0.0
      %1425 = vmatprep.subr.mxu0 0.0
      %1426 = vmatpush1.msra.mxu0 0.0
      %1427 = vmatprep.subr.mxu0 0.0
      %1428 = vmatpush1.msra.mxu0 0.0
      %1429 = vmatprep.subr.mxu0 0.0
      %1430 = vmatpush1.msra.mxu0 0.0
      %1431 = vmatprep.subr.mxu0 0.0
      %1432 = vmatpush1.msra.mxu0 0.0
      %1433 = vmatprep.subr.mxu0 0.0
      %1434 = vmatpush1.msra.mxu0 0.0
      %1435 = vmatprep.subr.mxu0 0.0
      %1436 = vmatpush1.msra.mxu0 0.0
      %1437 = vmatprep.subr.mxu0 0.0
      %1438 = vmatpush1.msra.mxu0 0.0
      %1439 = vmatprep.subr.mxu0 0.0
      %1440 = vmatpush1.msra.mxu0 0.0
      %1441 = vmatprep.subr.mxu0 0.0
      %1442 = vmatpush1.msra.mxu0 0.0
      %1443 = vmatprep.subr.mxu0 0.0
      %1444 = vmatpush1.msra.mxu0 0.0
      %1445 = vmatprep.mubr.f32.mxu0 0.0
      %1446 = vmatmul.mubr.f32.gmra.mrb[0].mxu0 %v1379
      %v1447 = vpop.f32.mrb[0].mxu0
      %v1448 = vadd.f32 0.0, %v1447
      %v1449 = vpop.f32.mrb[0].mxu0
      %1450 = vdwg.mxu0
      %v1451 = vld [vmem:[%s970] sm:$0xff]
      %s1452 = scalar_lea.vmem %s961, 32
      %v1453 = vld [vmem:[%s1452] sm:$0xff]
      %v1454 = vld [vmem:[%s1452 + $0x8] sm:$0xff]
      %v1455 = vld [vmem:[%s1452 + $0x10] sm:$0xff]
      %v1456 = vld [vmem:[%s1452 + $0x18] sm:$0xff]
      %s1457 = scalar_lea.vmem %s965, 1
      %v1458 = vld [vmem:[%s1457] sm:$0x1]
      %s1459 = scalar_lea.vmem %s961, 160
      %v1460 = vld [vmem:[%s1459] sm:$0xff]
      %v1461 = vld [vmem:[%s1459 + $0x8] sm:$0xff]
      %v1462 = vld [vmem:[%s1459 + $0x10] sm:$0xff]
      %v1463 = vld [vmem:[%s1459 + $0x18] sm:$0xff]
      %s1464 = scalar_lea.vmem %s965, 5
      %v1465 = vld [vmem:[%s1464] sm:$0x1]
      %s1466 = scalar_lea.vmem %s961, 288
      %v1467 = vld [vmem:[%s1466] sm:$0xff]
      %v1468 = vld [vmem:[%s1466 + $0x8] sm:$0xff]
      %v1469 = vld [vmem:[%s1466 + $0x10] sm:$0xff]
      %v1470 = vld [vmem:[%s1466 + $0x18] sm:$0xff]
      %s1471 = scalar_lea.vmem %s965, 9
      %v1472 = vld [vmem:[%s1471] sm:$0x1]
      %v1474 = vlaneseq
      %v1475 = vshrl.u32 %v1474, 7
      %v1476 = vsub.s32 0, %v1475
      %v1477 = vrot.slane %v1458, %v1476
      %1479 = vmatprep.subr.mxu0 0.0
      %1480 = vmatpush1.msra.mxu0 %v1453
      %1481 = vmatprep.subr.mxu0 0.0
      %1482 = vmatpush1.msra.mxu0 %v1454
      %1483 = vmatprep.subr.mxu0 0.0
      %1484 = vmatpush1.msra.mxu0 %v1455
      %1485 = vmatprep.subr.mxu0 0.0
      %1486 = vmatpush1.msra.mxu0 %v1456
      %1487 = vmatprep.subr.mxu0 0.0
      %1488 = vmatpush1.msra.mxu0 0.0
      %1489 = vmatprep.subr.mxu0 0.0
      %1490 = vmatpush1.msra.mxu0 0.0
      %1491 = vmatprep.subr.mxu0 0.0
      %1492 = vmatpush1.msra.mxu0 0.0
      %1493 = vmatprep.subr.mxu0 0.0
      %1494 = vmatpush1.msra.mxu0 0.0
      %1495 = vmatprep.subr.mxu0 0.0
      %1496 = vmatpush1.msra.mxu0 0.0
      %1497 = vmatprep.subr.mxu0 0.0
      %1498 = vmatpush1.msra.mxu0 0.0
      %1499 = vmatprep.subr.mxu0 0.0
      %1500 = vmatpush1.msra.mxu0 0.0
      %1501 = vmatprep.subr.mxu0 0.0
      %1502 = vmatpush1.msra.mxu0 0.0
      %1503 = vmatprep.subr.mxu0 0.0
      %1504 = vmatpush1.msra.mxu0 0.0
      %1505 = vmatprep.subr.mxu0 0.0
      %1506 = vmatpush1.msra.mxu0 0.0
      %1507 = vmatprep.subr.mxu0 0.0
      %1508 = vmatpush1.msra.mxu0 0.0
      %1509 = vmatprep.subr.mxu0 0.0
      %1510 = vmatpush1.msra.mxu0 0.0
      %1511 = vmatprep.subr.mxu0 0.0
      %1512 = vmatpush1.msra.mxu0 0.0
      %1513 = vmatprep.subr.mxu0 0.0
      %1514 = vmatpush1.msra.mxu0 0.0
      %1515 = vmatprep.subr.mxu0 0.0
      %1516 = vmatpush1.msra.mxu0 0.0
      %1517 = vmatprep.subr.mxu0 0.0
      %1518 = vmatpush1.msra.mxu0 0.0
      %1519 = vmatprep.subr.mxu0 0.0
      %1520 = vmatpush1.msra.mxu0 0.0
      %1521 = vmatprep.subr.mxu0 0.0
      %1522 = vmatpush1.msra.mxu0 0.0
      %1523 = vmatprep.subr.mxu0 0.0
      %1524 = vmatpush1.msra.mxu0 0.0
      %1525 = vmatprep.subr.mxu0 0.0
      %1526 = vmatpush1.msra.mxu0 0.0
      %1527 = vmatprep.subr.mxu0 0.0
      %1528 = vmatpush1.msra.mxu0 0.0
      %1529 = vmatprep.subr.mxu0 0.0
      %1530 = vmatpush1.msra.mxu0 0.0
      %1531 = vmatprep.subr.mxu0 0.0
      %1532 = vmatpush1.msra.mxu0 0.0
      %1533 = vmatprep.subr.mxu0 0.0
      %1534 = vmatpush1.msra.mxu0 0.0
      %1535 = vmatprep.subr.mxu0 0.0
      %1536 = vmatpush1.msra.mxu0 0.0
      %1537 = vmatprep.subr.mxu0 0.0
      %1538 = vmatpush1.msra.mxu0 0.0
      %1539 = vmatprep.subr.mxu0 0.0
      %1540 = vmatpush1.msra.mxu0 0.0
      %1541 = vmatprep.subr.mxu0 0.0
      %1542 = vmatpush1.msra.mxu0 0.0
      %1543 = vmatprep.mubr.f32.mxu0 0.0
      %1544 = vmatmul.mubr.f32.gmra.mrb[0].mxu0 %v1065
      %v1545 = vpop.f32.mrb[0].mxu0
      %v1546 = vadd.f32 %v1477, %v1545
      %v1547 = vpop.f32.mrb[0].mxu0
      %1548 = vdwg.mxu0
      %v1549 = vmul.f32 %v1546, 0.35355338
      %v1551 = vlaneseq
      %v1552 = vshrl.u32 %v1551, 7
      %v1553 = vsub.s32 0, %v1552
      %v1554 = vrot.slane %v1465, %v1553
      %1556 = vmatprep.subr.mxu0 0.0
      %1557 = vmatpush1.msra.mxu0 %v1460
      %1558 = vmatprep.subr.mxu0 0.0
      %1559 = vmatpush1.msra.mxu0 %v1461
      %1560 = vmatprep.subr.mxu0 0.0
      %1561 = vmatpush1.msra.mxu0 %v1462
      %1562 = vmatprep.subr.mxu0 0.0
      %1563 = vmatpush1.msra.mxu0 %v1463
      %1564 = vmatprep.subr.mxu0 0.0
      %1565 = vmatpush1.msra.mxu0 0.0
      %1566 = vmatprep.subr.mxu0 0.0
      %1567 = vmatpush1.msra.mxu0 0.0
      %1568 = vmatprep.subr.mxu0 0.0
      %1569 = vmatpush1.msra.mxu0 0.0
      %1570 = vmatprep.subr.mxu0 0.0
      %1571 = vmatpush1.msra.mxu0 0.0
      %1572 = vmatprep.subr.mxu0 0.0
      %1573 = vmatpush1.msra.mxu0 0.0
      %1574 = vmatprep.subr.mxu0 0.0
      %1575 = vmatpush1.msra.mxu0 0.0
      %1576 = vmatprep.subr.mxu0 0.0
      %1577 = vmatpush1.msra.mxu0 0.0
      %1578 = vmatprep.subr.mxu0 0.0
      %1579 = vmatpush1.msra.mxu0 0.0
      %1580 = vmatprep.subr.mxu0 0.0
      %1581 = vmatpush1.msra.mxu0 0.0
      %1582 = vmatprep.subr.mxu0 0.0
      %1583 = vmatpush1.msra.mxu0 0.0
      %1584 = vmatprep.subr.mxu0 0.0
      %1585 = vmatpush1.msra.mxu0 0.0
      %1586 = vmatprep.subr.mxu0 0.0
      %1587 = vmatpush1.msra.mxu0 0.0
      %1588 = vmatprep.subr.mxu0 0.0
      %1589 = vmatpush1.msra.mxu0 0.0
      %1590 = vmatprep.subr.mxu0 0.0
      %1591 = vmatpush1.msra.mxu0 0.0
      %1592 = vmatprep.subr.mxu0 0.0
      %1593 = vmatpush1.msra.mxu0 0.0
      %1594 = vmatprep.subr.mxu0 0.0
      %1595 = vmatpush1.msra.mxu0 0.0
      %1596 = vmatprep.subr.mxu0 0.0
      %1597 = vmatpush1.msra.mxu0 0.0
      %1598 = vmatprep.subr.mxu0 0.0
      %1599 = vmatpush1.msra.mxu0 0.0
      %1600 = vmatprep.subr.mxu0 0.0
      %1601 = vmatpush1.msra.mxu0 0.0
      %1602 = vmatprep.subr.mxu0 0.0
      %1603 = vmatpush1.msra.mxu0 0.0
      %1604 = vmatprep.subr.mxu0 0.0
      %1605 = vmatpush1.msra.mxu0 0.0
      %1606 = vmatprep.subr.mxu0 0.0
      %1607 = vmatpush1.msra.mxu0 0.0
      %1608 = vmatprep.subr.mxu0 0.0
      %1609 = vmatpush1.msra.mxu0 0.0
      %1610 = vmatprep.subr.mxu0 0.0
      %1611 = vmatpush1.msra.mxu0 0.0
      %1612 = vmatprep.subr.mxu0 0.0
      %1613 = vmatpush1.msra.mxu0 0.0
      %1614 = vmatprep.subr.mxu0 0.0
      %1615 = vmatpush1.msra.mxu0 0.0
      %1616 = vmatprep.subr.mxu0 0.0
      %1617 = vmatpush1.msra.mxu0 0.0
      %1618 = vmatprep.subr.mxu0 0.0
      %1619 = vmatpush1.msra.mxu0 0.0
      %1620 = vmatprep.mubr.f32.mxu0 0.0
      %1621 = vmatmul.mubr.f32.gmra.mrb[0].mxu0 %v1065
      %v1622 = vpop.f32.mrb[0].mxu0
      %v1623 = vadd.f32 %v1554, %v1622
      %v1624 = vpop.f32.mrb[0].mxu0
      %1625 = vdwg.mxu0
      %v1627 = vlaneseq
      %v1628 = vshrl.u32 %v1627, 7
      %v1629 = vsub.s32 0, %v1628
      %v1630 = vrot.slane %v1472, %v1629
      %1632 = vmatprep.subr.mxu0 0.0
      %1633 = vmatpush1.msra.mxu0 %v1467
      %1634 = vmatprep.subr.mxu0 0.0
      %1635 = vmatpush1.msra.mxu0 %v1468
      %1636 = vmatprep.subr.mxu0 0.0
      %1637 = vmatpush1.msra.mxu0 %v1469
      %1638 = vmatprep.subr.mxu0 0.0
      %1639 = vmatpush1.msra.mxu0 %v1470
      %1640 = vmatprep.subr.mxu0 0.0
      %1641 = vmatpush1.msra.mxu0 0.0
      %1642 = vmatprep.subr.mxu0 0.0
      %1643 = vmatpush1.msra.mxu0 0.0
      %1644 = vmatprep.subr.mxu0 0.0
      %1645 = vmatpush1.msra.mxu0 0.0
      %1646 = vmatprep.subr.mxu0 0.0
      %1647 = vmatpush1.msra.mxu0 0.0
      %1648 = vmatprep.subr.mxu0 0.0
      %1649 = vmatpush1.msra.mxu0 0.0
      %1650 = vmatprep.subr.mxu0 0.0
      %1651 = vmatpush1.msra.mxu0 0.0
      %1652 = vmatprep.subr.mxu0 0.0
      %1653 = vmatpush1.msra.mxu0 0.0
      %1654 = vmatprep.subr.mxu0 0.0
      %1655 = vmatpush1.msra.mxu0 0.0
      %1656 = vmatprep.subr.mxu0 0.0
      %1657 = vmatpush1.msra.mxu0 0.0
      %1658 = vmatprep.subr.mxu0 0.0
      %1659 = vmatpush1.msra.mxu0 0.0
      %1660 = vmatprep.subr.mxu0 0.0
      %1661 = vmatpush1.msra.mxu0 0.0
      %1662 = vmatprep.subr.mxu0 0.0
      %1663 = vmatpush1.msra.mxu0 0.0
      %1664 = vmatprep.subr.mxu0 0.0
      %1665 = vmatpush1.msra.mxu0 0.0
      %1666 = vmatprep.subr.mxu0 0.0
      %1667 = vmatpush1.msra.mxu0 0.0
      %1668 = vmatprep.subr.mxu0 0.0
      %1669 = vmatpush1.msra.mxu0 0.0
      %1670 = vmatprep.subr.mxu0 0.0
      %1671 = vmatpush1.msra.mxu0 0.0
      %1672 = vmatprep.subr.mxu0 0.0
      %1673 = vmatpush1.msra.mxu0 0.0
      %1674 = vmatprep.subr.mxu0 0.0
      %1675 = vmatpush1.msra.mxu0 0.0
      %1676 = vmatprep.subr.mxu0 0.0
      %1677 = vmatpush1.msra.mxu0 0.0
      %1678 = vmatprep.subr.mxu0 0.0
      %1679 = vmatpush1.msra.mxu0 0.0
      %1680 = vmatprep.subr.mxu0 0.0
      %1681 = vmatpush1.msra.mxu0 0.0
      %1682 = vmatprep.subr.mxu0 0.0
      %1683 = vmatpush1.msra.mxu0 0.0
      %1684 = vmatprep.subr.mxu0 0.0
      %1685 = vmatpush1.msra.mxu0 0.0
      %1686 = vmatprep.subr.mxu0 0.0
      %1687 = vmatpush1.msra.mxu0 0.0
      %1688 = vmatprep.subr.mxu0 0.0
      %1689 = vmatpush1.msra.mxu0 0.0
      %1690 = vmatprep.subr.mxu0 0.0
      %1691 = vmatpush1.msra.mxu0 0.0
      %1692 = vmatprep.subr.mxu0 0.0
      %1693 = vmatpush1.msra.mxu0 0.0
      %1694 = vmatprep.subr.mxu0 0.0
      %1695 = vmatpush1.msra.mxu0 0.0
      %1696 = vmatprep.mubr.f32.mxu0 0.0
      %1697 = vmatmul.mubr.f32.gmra.mrb[0].mxu0 %v1065
      %v1698 = vpop.f32.mrb[0].mxu0
      %v1699 = vadd.f32 %v1630, %v1698
      %v1700 = vpop.f32.mrb[0].mxu0
      %1701 = vdwg.mxu0
      %v1703 = vsel %vm1290, %v1549, 0
      %v1706 = vsel %vm1290, %v1623, 0
      %1708 = vmatprep.subr.mxu0 0.0
      %1709 = vmatpush1.xpose.msra.mxu0 %v1706
      %1710 = vmatprep.subr.mxu0 0.0
      %1711 = vmatpush1.xpose.msra.mxu0 0.0
      %1712 = vmatprep.subr.mxu0 0.0
      %1713 = vmatpush1.xpose.msra.mxu0 0.0
      %1714 = vmatprep.subr.mxu0 0.0
      %1715 = vmatpush1.xpose.msra.mxu0 0.0
      %1716 = vmatprep.subr.mxu0 0.0
      %1717 = vmatpush1.xpose.msra.mxu0 0.0
      %1718 = vmatprep.subr.mxu0 0.0
      %1719 = vmatpush1.xpose.msra.mxu0 0.0
      %1720 = vmatprep.subr.mxu0 0.0
      %1721 = vmatpush1.xpose.msra.mxu0 0.0
      %1722 = vmatprep.subr.mxu0 0.0
      %1723 = vmatpush1.xpose.msra.mxu0 0.0
      %1724 = vmatprep.subr.mxu0 0.0
      %1725 = vmatpush1.xpose.msra.mxu0 0.0
      %1726 = vmatprep.subr.mxu0 0.0
      %1727 = vmatpush1.xpose.msra.mxu0 0.0
      %1728 = vmatprep.subr.mxu0 0.0
      %1729 = vmatpush1.xpose.msra.mxu0 0.0
      %1730 = vmatprep.subr.mxu0 0.0
      %1731 = vmatpush1.xpose.msra.mxu0 0.0
      %1732 = vmatprep.subr.mxu0 0.0
      %1733 = vmatpush1.xpose.msra.mxu0 0.0
      %1734 = vmatprep.subr.mxu0 0.0
      %1735 = vmatpush1.xpose.msra.mxu0 0.0
      %1736 = vmatprep.subr.mxu0 0.0
      %1737 = vmatpush1.xpose.msra.mxu0 0.0
      %1738 = vmatprep.subr.mxu0 0.0
      %1739 = vmatpush1.xpose.msra.mxu0 0.0
      %1740 = vmatprep.subr.mxu0 0.0
      %1741 = vmatpush1.xpose.msra.mxu0 0.0
      %1742 = vmatprep.subr.mxu0 0.0
      %1743 = vmatpush1.xpose.msra.mxu0 0.0
      %1744 = vmatprep.subr.mxu0 0.0
      %1745 = vmatpush1.xpose.msra.mxu0 0.0
      %1746 = vmatprep.subr.mxu0 0.0
      %1747 = vmatpush1.xpose.msra.mxu0 0.0
      %1748 = vmatprep.subr.mxu0 0.0
      %1749 = vmatpush1.xpose.msra.mxu0 0.0
      %1750 = vmatprep.subr.mxu0 0.0
      %1751 = vmatpush1.xpose.msra.mxu0 0.0
      %1752 = vmatprep.subr.mxu0 0.0
      %1753 = vmatpush1.xpose.msra.mxu0 0.0
      %1754 = vmatprep.subr.mxu0 0.0
      %1755 = vmatpush1.xpose.msra.mxu0 0.0
      %1756 = vmatprep.subr.mxu0 0.0
      %1757 = vmatpush1.xpose.msra.mxu0 0.0
      %1758 = vmatprep.subr.mxu0 0.0
      %1759 = vmatpush1.xpose.msra.mxu0 0.0
      %1760 = vmatprep.subr.mxu0 0.0
      %1761 = vmatpush1.xpose.msra.mxu0 0.0
      %1762 = vmatprep.subr.mxu0 0.0
      %1763 = vmatpush1.xpose.msra.mxu0 0.0
      %1764 = vmatprep.subr.mxu0 0.0
      %1765 = vmatpush1.xpose.msra.mxu0 0.0
      %1766 = vmatprep.subr.mxu0 0.0
      %1767 = vmatpush1.xpose.msra.mxu0 0.0
      %1768 = vmatprep.subr.mxu0 0.0
      %1769 = vmatpush1.xpose.msra.mxu0 0.0
      %1770 = vmatprep.subr.mxu0 0.0
      %1771 = vmatpush1.xpose.msra.mxu0 0.0
      %1772 = vmatprep.mubr.f32.mxu0 0.0
      %1773 = vmatmul.mubr.f32.gmra.mrb[0].mxu0 %v1703
      %v1774 = vpop.f32.mrb[0].mxu0
      %v1775 = vadd.f32 %v1037, %v1774
      %v1776 = vpop.f32.mrb[0].mxu0
      %1777 = vdwg.mxu0
      %v1778 = vsel %vm1290, %v1775, -inf
      %1779 = vmax.xlane.f32.xlu0 %v1778
      %v1780 = vpop.xlane.xlu0 %1779
      %v1781 = vsub.f32 %v1775, %v1780
      %v1782 = vmul.f32 %v1781, 1.442695
      %v1783 = vpow.pop %v1782
      %v1784 = vsel %vm1290, %v1783, 0.0
      %1785 = vadd.xlane.f32.xlu0 %v1784
      %v1786 = vpop.xlane.xlu0 %1785
      %v1787 = vrcp.pop %v1786
      %v1788 = vmul.f32 %v1783, %v1787
      %v1790 = vsel %vm1290, %v1788, 0
      %1792 = vmatprep.subr.mxu0 0.0
      %1793 = vmatpush1.msra.mxu0 %v1699
      %1794 = vmatprep.subr.mxu0 0.0
      %1795 = vmatpush1.msra.mxu0 0.0
      %1796 = vmatprep.subr.mxu0 0.0
      %1797 = vmatpush1.msra.mxu0 0.0
      %1798 = vmatprep.subr.mxu0 0.0
      %1799 = vmatpush1.msra.mxu0 0.0
      %1800 = vmatprep.subr.mxu0 0.0
      %1801 = vmatpush1.msra.mxu0 0.0
      %1802 = vmatprep.subr.mxu0 0.0
      %1803 = vmatpush1.msra.mxu0 0.0
      %1804 = vmatprep.subr.mxu0 0.0
      %1805 = vmatpush1.msra.mxu0 0.0
      %1806 = vmatprep.subr.mxu0 0.0
      %1807 = vmatpush1.msra.mxu0 0.0
      %1808 = vmatprep.subr.mxu0 0.0
      %1809 = vmatpush1.msra.mxu0 0.0
      %1810 = vmatprep.subr.mxu0 0.0
      %1811 = vmatpush1.msra.mxu0 0.0
      %1812 = vmatprep.subr.mxu0 0.0
      %1813 = vmatpush1.msra.mxu0 0.0
      %1814 = vmatprep.subr.mxu0 0.0
      %1815 = vmatpush1.msra.mxu0 0.0
      %1816 = vmatprep.subr.mxu0 0.0
      %1817 = vmatpush1.msra.mxu0 0.0
      %1818 = vmatprep.subr.mxu0 0.0
      %1819 = vmatpush1.msra.mxu0 0.0
      %1820 = vmatprep.subr.mxu0 0.0
      %1821 = vmatpush1.msra.mxu0 0.0
      %1822 = vmatprep.subr.mxu0 0.0
      %1823 = vmatpush1.msra.mxu0 0.0
      %1824 = vmatprep.subr.mxu0 0.0
      %1825 = vmatpush1.msra.mxu0 0.0
      %1826 = vmatprep.subr.mxu0 0.0
      %1827 = vmatpush1.msra.mxu0 0.0
      %1828 = vmatprep.subr.mxu0 0.0
      %1829 = vmatpush1.msra.mxu0 0.0
      %1830 = vmatprep.subr.mxu0 0.0
      %1831 = vmatpush1.msra.mxu0 0.0
      %1832 = vmatprep.subr.mxu0 0.0
      %1833 = vmatpush1.msra.mxu0 0.0
      %1834 = vmatprep.subr.mxu0 0.0
      %1835 = vmatpush1.msra.mxu0 0.0
      %1836 = vmatprep.subr.mxu0 0.0
      %1837 = vmatpush1.msra.mxu0 0.0
      %1838 = vmatprep.subr.mxu0 0.0
      %1839 = vmatpush1.msra.mxu0 0.0
      %1840 = vmatprep.subr.mxu0 0.0
      %1841 = vmatpush1.msra.mxu0 0.0
      %1842 = vmatprep.subr.mxu0 0.0
      %1843 = vmatpush1.msra.mxu0 0.0
      %1844 = vmatprep.subr.mxu0 0.0
      %1845 = vmatpush1.msra.mxu0 0.0
      %1846 = vmatprep.subr.mxu0 0.0
      %1847 = vmatpush1.msra.mxu0 0.0
      %1848 = vmatprep.subr.mxu0 0.0
      %1849 = vmatpush1.msra.mxu0 0.0
      %1850 = vmatprep.subr.mxu0 0.0
      %1851 = vmatpush1.msra.mxu0 0.0
      %1852 = vmatprep.subr.mxu0 0.0
      %1853 = vmatpush1.msra.mxu0 0.0
      %1854 = vmatprep.subr.mxu0 0.0
      %1855 = vmatpush1.msra.mxu0 0.0
      %1856 = vmatprep.mubr.f32.mxu0 0.0
      %1857 = vmatmul.mubr.f32.gmra.mrb[0].mxu0 %v1790
      %v1858 = vpop.f32.mrb[0].mxu0
      %v1859 = vadd.f32 0.0, %v1858
      %v1860 = vpop.f32.mrb[0].mxu0
      %1861 = vdwg.mxu0
      %s1862 = scalar_lea.vmem %s970, 8
      %v1863 = vld [vmem:[%s1862] sm:$0xff]
      %v1865 = vsel %vm1290, %v1859, 0
      %1867 = vmatprep.subr.mxu0 0.0
      %1868 = vmatpush1.msra.mxu0 %v1863
      %1869 = vmatprep.subr.mxu0 0.0
      %1870 = vmatpush1.msra.mxu0 0.0
      %1871 = vmatprep.subr.mxu0 0.0
      %1872 = vmatpush1.msra.mxu0 0.0
      %1873 = vmatprep.subr.mxu0 0.0
      %1874 = vmatpush1.msra.mxu0 0.0
      %1875 = vmatprep.subr.mxu0 0.0
      %1876 = vmatpush1.msra.mxu0 0.0
      %1877 = vmatprep.subr.mxu0 0.0
      %1878 = vmatpush1.msra.mxu0 0.0
      %1879 = vmatprep.subr.mxu0 0.0
      %1880 = vmatpush1.msra.mxu0 0.0
      %1881 = vmatprep.subr.mxu0 0.0
      %1882 = vmatpush1.msra.mxu0 0.0
      %1883 = vmatprep.subr.mxu0 0.0
      %1884 = vmatpush1.msra.mxu0 0.0
      %1885 = vmatprep.subr.mxu0 0.0
      %1886 = vmatpush1.msra.mxu0 0.0
      %1887 = vmatprep.subr.mxu0 0.0
      %1888 = vmatpush1.msra.mxu0 0.0
      %1889 = vmatprep.subr.mxu0 0.0
      %1890 = vmatpush1.msra.mxu0 0.0
      %1891 = vmatprep.subr.mxu0 0.0
      %1892 = vmatpush1.msra.mxu0 0.0
      %1893 = vmatprep.subr.mxu0 0.0
      %1894 = vmatpush1.msra.mxu0 0.0
      %1895 = vmatprep.subr.mxu0 0.0
      %1896 = vmatpush1.msra.mxu0 0.0
      %1897 = vmatprep.subr.mxu0 0.0
      %1898 = vmatpush1.msra.mxu0 0.0
      %1899 = vmatprep.subr.mxu0 0.0
      %1900 = vmatpush1.msra.mxu0 0.0
      %1901 = vmatprep.subr.mxu0 0.0
      %1902 = vmatpush1.msra.mxu0 0.0
      %1903 = vmatprep.subr.mxu0 0.0
      %1904 = vmatpush1.msra.mxu0 0.0
      %1905 = vmatprep.subr.mxu0 0.0
      %1906 = vmatpush1.msra.mxu0 0.0
      %1907 = vmatprep.subr.mxu0 0.0
      %1908 = vmatpush1.msra.mxu0 0.0
      %1909 = vmatprep.subr.mxu0 0.0
      %1910 = vmatpush1.msra.mxu0 0.0
      %1911 = vmatprep.subr.mxu0 0.0
      %1912 = vmatpush1.msra.mxu0 0.0
      %1913 = vmatprep.subr.mxu0 0.0
      %1914 = vmatpush1.msra.mxu0 0.0
      %1915 = vmatprep.subr.mxu0 0.0
      %1916 = vmatpush1.msra.mxu0 0.0
      %1917 = vmatprep.subr.mxu0 0.0
      %1918 = vmatpush1.msra.mxu0 0.0
      %1919 = vmatprep.subr.mxu0 0.0
      %1920 = vmatpush1.msra.mxu0 0.0
      %1921 = vmatprep.subr.mxu0 0.0
      %1922 = vmatpush1.msra.mxu0 0.0
      %1923 = vmatprep.subr.mxu0 0.0
      %1924 = vmatpush1.msra.mxu0 0.0
      %1925 = vmatprep.subr.mxu0 0.0
      %1926 = vmatpush1.msra.mxu0 0.0
      %1927 = vmatprep.subr.mxu0 0.0
      %1928 = vmatpush1.msra.mxu0 0.0
      %1929 = vmatprep.subr.mxu0 0.0
      %1930 = vmatpush1.msra.mxu0 0.0
      %1931 = vmatprep.mubr.f32.mxu0 0.0
      %1932 = vmatmul.mubr.f32.gmra.mrb[0].mxu0 %v1865
      %v1933 = vpop.f32.mrb[0].mxu0
      %v1934 = vadd.f32 0.0, %v1933
      %v1935 = vpop.f32.mrb[0].mxu0
      %1936 = vdwg.mxu0
      %v1938 = vsel %vm1290, %v1448, 0
      %1940 = vmatprep.subr.mxu0 0.0
      %1941 = vmatpush1.msra.mxu0 %v1451
      %1942 = vmatprep.subr.mxu0 0.0
      %1943 = vmatpush1.msra.mxu0 0.0
      %1944 = vmatprep.subr.mxu0 0.0
      %1945 = vmatpush1.msra.mxu0 0.0
      %1946 = vmatprep.subr.mxu0 0.0
      %1947 = vmatpush1.msra.mxu0 0.0
      %1948 = vmatprep.subr.mxu0 0.0
      %1949 = vmatpush1.msra.mxu0 0.0
      %1950 = vmatprep.subr.mxu0 0.0
      %1951 = vmatpush1.msra.mxu0 0.0
      %1952 = vmatprep.subr.mxu0 0.0
      %1953 = vmatpush1.msra.mxu0 0.0
      %1954 = vmatprep.subr.mxu0 0.0
      %1955 = vmatpush1.msra.mxu0 0.0
      %1956 = vmatprep.subr.mxu0 0.0
      %1957 = vmatpush1.msra.mxu0 0.0
      %1958 = vmatprep.subr.mxu0 0.0
      %1959 = vmatpush1.msra.mxu0 0.0
      %1960 = vmatprep.subr.mxu0 0.0
      %1961 = vmatpush1.msra.mxu0 0.0
      %1962 = vmatprep.subr.mxu0 0.0
      %1963 = vmatpush1.msra.mxu0 0.0
      %1964 = vmatprep.subr.mxu0 0.0
      %1965 = vmatpush1.msra.mxu0 0.0
      %1966 = vmatprep.subr.mxu0 0.0
      %1967 = vmatpush1.msra.mxu0 0.0
      %1968 = vmatprep.subr.mxu0 0.0
      %1969 = vmatpush1.msra.mxu0 0.0
      %1970 = vmatprep.subr.mxu0 0.0
      %1971 = vmatpush1.msra.mxu0 0.0
      %1972 = vmatprep.subr.mxu0 0.0
      %1973 = vmatpush1.msra.mxu0 0.0
      %1974 = vmatprep.subr.mxu0 0.0
      %1975 = vmatpush1.msra.mxu0 0.0
      %1976 = vmatprep.subr.mxu0 0.0
      %1977 = vmatpush1.msra.mxu0 0.0
      %1978 = vmatprep.subr.mxu0 0.0
      %1979 = vmatpush1.msra.mxu0 0.0
      %1980 = vmatprep.subr.mxu0 0.0
      %1981 = vmatpush1.msra.mxu0 0.0
      %1982 = vmatprep.subr.mxu0 0.0
      %1983 = vmatpush1.msra.mxu0 0.0
      %1984 = vmatprep.subr.mxu0 0.0
      %1985 = vmatpush1.msra.mxu0 0.0
      %1986 = vmatprep.subr.mxu0 0.0
      %1987 = vmatpush1.msra.mxu0 0.0
      %1988 = vmatprep.subr.mxu0 0.0
      %1989 = vmatpush1.msra.mxu0 0.0
      %1990 = vmatprep.subr.mxu0 0.0
      %1991 = vmatpush1.msra.mxu0 0.0
      %1992 = vmatprep.subr.mxu0 0.0
      %1993 = vmatpush1.msra.mxu0 0.0
      %1994 = vmatprep.subr.mxu0 0.0
      %1995 = vmatpush1.msra.mxu0 0.0
      %1996 = vmatprep.subr.mxu0 0.0
      %1997 = vmatpush1.msra.mxu0 0.0
      %1998 = vmatprep.subr.mxu0 0.0
      %1999 = vmatpush1.msra.mxu0 0.0
      %2000 = vmatprep.subr.mxu0 0.0
      %2001 = vmatpush1.msra.mxu0 0.0
      %2002 = vmatprep.subr.mxu0 0.0
      %2003 = vmatpush1.msra.mxu0 0.0
      %2004 = vmatprep.mubr.f32.mxu0 0.0
      %2005 = vmatmul.mubr.f32.gmra.mrb[0].mxu0 %v1938
      %v2006 = vpop.f32.mrb[0].mxu0
      %v2007 = vadd.f32 %v1934, %v2006
      %v2008 = vpop.f32.mrb[0].mxu0
      %2009 = vdwg.mxu0
      %s2010 = scalar_lea.vmem %s961, 64
      %v2011 = vld [vmem:[%s2010] sm:$0xff]
      %v2012 = vld [vmem:[%s2010 + $0x8] sm:$0xff]
      %v2013 = vld [vmem:[%s2010 + $0x10] sm:$0xff]
      %v2014 = vld [vmem:[%s2010 + $0x18] sm:$0xff]
      %s2015 = scalar_lea.vmem %s965, 2
      %v2016 = vld [vmem:[%s2015] sm:$0x1]
      %s2017 = scalar_lea.vmem %s961, 192
      %v2018 = vld [vmem:[%s2017] sm:$0xff]
      %v2019 = vld [vmem:[%s2017 + $0x8] sm:$0xff]
      %v2020 = vld [vmem:[%s2017 + $0x10] sm:$0xff]
      %v2021 = vld [vmem:[%s2017 + $0x18] sm:$0xff]
      %s2022 = scalar_lea.vmem %s965, 6
      %v2023 = vld [vmem:[%s2022] sm:$0x1]
      %s2024 = scalar_lea.vmem %s961, 320
      %v2025 = vld [vmem:[%s2024] sm:$0xff]
      %v2026 = vld [vmem:[%s2024 + $0x8] sm:$0xff]
      %v2027 = vld [vmem:[%s2024 + $0x10] sm:$0xff]
      %v2028 = vld [vmem:[%s2024 + $0x18] sm:$0xff]
      %s2029 = scalar_lea.vmem %s965, 10
      %v2030 = vld [vmem:[%s2029] sm:$0x1]
      %v2032 = vlaneseq
      %v2033 = vshrl.u32 %v2032, 7
      %v2034 = vsub.s32 0, %v2033
      %v2035 = vrot.slane %v2016, %v2034
      %2037 = vmatprep.subr.mxu0 0.0
      %2038 = vmatpush1.msra.mxu0 %v2011
      %2039 = vmatprep.subr.mxu0 0.0
      %2040 = vmatpush1.msra.mxu0 %v2012
      %2041 = vmatprep.subr.mxu0 0.0
      %2042 = vmatpush1.msra.mxu0 %v2013
      %2043 = vmatprep.subr.mxu0 0.0
      %2044 = vmatpush1.msra.mxu0 %v2014
      %2045 = vmatprep.subr.mxu0 0.0
      %2046 = vmatpush1.msra.mxu0 0.0
      %2047 = vmatprep.subr.mxu0 0.0
      %2048 = vmatpush1.msra.mxu0 0.0
      %2049 = vmatprep.subr.mxu0 0.0
      %2050 = vmatpush1.msra.mxu0 0.0
      %2051 = vmatprep.subr.mxu0 0.0
      %2052 = vmatpush1.msra.mxu0 0.0
      %2053 = vmatprep.subr.mxu0 0.0
      %2054 = vmatpush1.msra.mxu0 0.0
      %2055 = vmatprep.subr.mxu0 0.0
      %2056 = vmatpush1.msra.mxu0 0.0
      %2057 = vmatprep.subr.mxu0 0.0
      %2058 = vmatpush1.msra.mxu0 0.0
      %2059 = vmatprep.subr.mxu0 0.0
      %2060 = vmatpush1.msra.mxu0 0.0
      %2061 = vmatprep.subr.mxu0 0.0
      %2062 = vmatpush1.msra.mxu0 0.0
      %2063 = vmatprep.subr.mxu0 0.0
      %2064 = vmatpush1.msra.mxu0 0.0
      %2065 = vmatprep.subr.mxu0 0.0
      %2066 = vmatpush1.msra.mxu0 0.0
      %2067 = vmatprep.subr.mxu0 0.0
      %2068 = vmatpush1.msra.mxu0 0.0
      %2069 = vmatprep.subr.mxu0 0.0
      %2070 = vmatpush1.msra.mxu0 0.0
      %2071 = vmatprep.subr.mxu0 0.0
      %2072 = vmatpush1.msra.mxu0 0.0
      %2073 = vmatprep.subr.mxu0 0.0
      %2074 = vmatpush1.msra.mxu0 0.0
      %2075 = vmatprep.subr.mxu0 0.0
      %2076 = vmatpush1.msra.mxu0 0.0
      %2077 = vmatprep.subr.mxu0 0.0
      %2078 = vmatpush1.msra.mxu0 0.0
      %2079 = vmatprep.subr.mxu0 0.0
      %2080 = vmatpush1.msra.mxu0 0.0
      %2081 = vmatprep.subr.mxu0 0.0
      %2082 = vmatpush1.msra.mxu0 0.0
      %2083 = vmatprep.subr.mxu0 0.0
      %2084 = vmatpush1.msra.mxu0 0.0
      %2085 = vmatprep.subr.mxu0 0.0
      %2086 = vmatpush1.msra.mxu0 0.0
      %2087 = vmatprep.subr.mxu0 0.0
      %2088 = vmatpush1.msra.mxu0 0.0
      %2089 = vmatprep.subr.mxu0 0.0
      %2090 = vmatpush1.msra.mxu0 0.0
      %2091 = vmatprep.subr.mxu0 0.0
      %2092 = vmatpush1.msra.mxu0 0.0
      %2093 = vmatprep.subr.mxu0 0.0
      %2094 = vmatpush1.msra.mxu0 0.0
      %2095 = vmatprep.subr.mxu0 0.0
      %2096 = vmatpush1.msra.mxu0 0.0
      %2097 = vmatprep.subr.mxu0 0.0
      %2098 = vmatpush1.msra.mxu0 0.0
      %2099 = vmatprep.subr.mxu0 0.0
      %2100 = vmatpush1.msra.mxu0 0.0
      %2101 = vmatprep.mubr.f32.mxu0 0.0
      %2102 = vmatmul.mubr.f32.gmra.mrb[0].mxu0 %v1065
      %v2103 = vpop.f32.mrb[0].mxu0
      %v2104 = vadd.f32 %v2035, %v2103
      %v2105 = vpop.f32.mrb[0].mxu0
      %2106 = vdwg.mxu0
      %v2107 = vmul.f32 %v2104, 0.35355338
      %v2109 = vlaneseq
      %v2110 = vshrl.u32 %v2109, 7
      %v2111 = vsub.s32 0, %v2110
      %v2112 = vrot.slane %v2023, %v2111
      %2114 = vmatprep.subr.mxu0 0.0
      %2115 = vmatpush1.msra.mxu0 %v2018
      %2116 = vmatprep.subr.mxu0 0.0
      %2117 = vmatpush1.msra.mxu0 %v2019
      %2118 = vmatprep.subr.mxu0 0.0
      %2119 = vmatpush1.msra.mxu0 %v2020
      %2120 = vmatprep.subr.mxu0 0.0
      %2121 = vmatpush1.msra.mxu0 %v2021
      %2122 = vmatprep.subr.mxu0 0.0
      %2123 = vmatpush1.msra.mxu0 0.0
      %2124 = vmatprep.subr.mxu0 0.0
      %2125 = vmatpush1.msra.mxu0 0.0
      %2126 = vmatprep.subr.mxu0 0.0
      %2127 = vmatpush1.msra.mxu0 0.0
      %2128 = vmatprep.subr.mxu0 0.0
      %2129 = vmatpush1.msra.mxu0 0.0
      %2130 = vmatprep.subr.mxu0 0.0
      %2131 = vmatpush1.msra.mxu0 0.0
      %2132 = vmatprep.subr.mxu0 0.0
      %2133 = vmatpush1.msra.mxu0 0.0
      %2134 = vmatprep.subr.mxu0 0.0
      %2135 = vmatpush1.msra.mxu0 0.0
      %2136 = vmatprep.subr.mxu0 0.0
      %2137 = vmatpush1.msra.mxu0 0.0
      %2138 = vmatprep.subr.mxu0 0.0
      %2139 = vmatpush1.msra.mxu0 0.0
      %2140 = vmatprep.subr.mxu0 0.0
      %2141 = vmatpush1.msra.mxu0 0.0
      %2142 = vmatprep.subr.mxu0 0.0
      %2143 = vmatpush1.msra.mxu0 0.0
      %2144 = vmatprep.subr.mxu0 0.0
      %2145 = vmatpush1.msra.mxu0 0.0
      %2146 = vmatprep.subr.mxu0 0.0
      %2147 = vmatpush1.msra.mxu0 0.0
      %2148 = vmatprep.subr.mxu0 0.0
      %2149 = vmatpush1.msra.mxu0 0.0
      %2150 = vmatprep.subr.mxu0 0.0
      %2151 = vmatpush1.msra.mxu0 0.0
      %2152 = vmatprep.subr.mxu0 0.0
      %2153 = vmatpush1.msra.mxu0 0.0
      %2154 = vmatprep.subr.mxu0 0.0
      %2155 = vmatpush1.msra.mxu0 0.0
      %2156 = vmatprep.subr.mxu0 0.0
      %2157 = vmatpush1.msra.mxu0 0.0
      %2158 = vmatprep.subr.mxu0 0.0
      %2159 = vmatpush1.msra.mxu0 0.0
      %2160 = vmatprep.subr.mxu0 0.0
      %2161 = vmatpush1.msra.mxu0 0.0
      %2162 = vmatprep.subr.mxu0 0.0
      %2163 = vmatpush1.msra.mxu0 0.0
      %2164 = vmatprep.subr.mxu0 0.0
      %2165 = vmatpush1.msra.mxu0 0.0
      %2166 = vmatprep.subr.mxu0 0.0
      %2167 = vmatpush1.msra.mxu0 0.0
      %2168 = vmatprep.subr.mxu0 0.0
      %2169 = vmatpush1.msra.mxu0 0.0
      %2170 = vmatprep.subr.mxu0 0.0
      %2171 = vmatpush1.msra.mxu0 0.0
      %2172 = vmatprep.subr.mxu0 0.0
      %2173 = vmatpush1.msra.mxu0 0.0
      %2174 = vmatprep.subr.mxu0 0.0
      %2175 = vmatpush1.msra.mxu0 0.0
      %2176 = vmatprep.subr.mxu0 0.0
      %2177 = vmatpush1.msra.mxu0 0.0
      %2178 = vmatprep.mubr.f32.mxu0 0.0
      %2179 = vmatmul.mubr.f32.gmra.mrb[0].mxu0 %v1065
      %v2180 = vpop.f32.mrb[0].mxu0
      %v2181 = vadd.f32 %v2112, %v2180
      %v2182 = vpop.f32.mrb[0].mxu0
      %2183 = vdwg.mxu0
      %v2185 = vlaneseq
      %v2186 = vshrl.u32 %v2185, 7
      %v2187 = vsub.s32 0, %v2186
      %v2188 = vrot.slane %v2030, %v2187
      %2190 = vmatprep.subr.mxu0 0.0
      %2191 = vmatpush1.msra.mxu0 %v2025
      %2192 = vmatprep.subr.mxu0 0.0
      %2193 = vmatpush1.msra.mxu0 %v2026
      %2194 = vmatprep.subr.mxu0 0.0
      %2195 = vmatpush1.msra.mxu0 %v2027
      %2196 = vmatprep.subr.mxu0 0.0
      %2197 = vmatpush1.msra.mxu0 %v2028
      %2198 = vmatprep.subr.mxu0 0.0
      %2199 = vmatpush1.msra.mxu0 0.0
      %2200 = vmatprep.subr.mxu0 0.0
      %2201 = vmatpush1.msra.mxu0 0.0
      %2202 = vmatprep.subr.mxu0 0.0
      %2203 = vmatpush1.msra.mxu0 0.0
      %2204 = vmatprep.subr.mxu0 0.0
      %2205 = vmatpush1.msra.mxu0 0.0
      %2206 = vmatprep.subr.mxu0 0.0
      %2207 = vmatpush1.msra.mxu0 0.0
      %2208 = vmatprep.subr.mxu0 0.0
      %2209 = vmatpush1.msra.mxu0 0.0
      %2210 = vmatprep.subr.mxu0 0.0
      %2211 = vmatpush1.msra.mxu0 0.0
      %2212 = vmatprep.subr.mxu0 0.0
      %2213 = vmatpush1.msra.mxu0 0.0
      %2214 = vmatprep.subr.mxu0 0.0
      %2215 = vmatpush1.msra.mxu0 0.0
      %2216 = vmatprep.subr.mxu0 0.0
      %2217 = vmatpush1.msra.mxu0 0.0
      %2218 = vmatprep.subr.mxu0 0.0
      %2219 = vmatpush1.msra.mxu0 0.0
      %2220 = vmatprep.subr.mxu0 0.0
      %2221 = vmatpush1.msra.mxu0 0.0
      %2222 = vmatprep.subr.mxu0 0.0
      %2223 = vmatpush1.msra.mxu0 0.0
      %2224 = vmatprep.subr.mxu0 0.0
      %2225 = vmatpush1.msra.mxu0 0.0
      %2226 = vmatprep.subr.mxu0 0.0
      %2227 = vmatpush1.msra.mxu0 0.0
      %2228 = vmatprep.subr.mxu0 0.0
      %2229 = vmatpush1.msra.mxu0 0.0
      %2230 = vmatprep.subr.mxu0 0.0
      %2231 = vmatpush1.msra.mxu0 0.0
      %2232 = vmatprep.subr.mxu0 0.0
      %2233 = vmatpush1.msra.mxu0 0.0
      %2234 = vmatprep.subr.mxu0 0.0
      %2235 = vmatpush1.msra.mxu0 0.0
      %2236 = vmatprep.subr.mxu0 0.0
      %2237 = vmatpush1.msra.mxu0 0.0
      %2238 = vmatprep.subr.mxu0 0.0
      %2239 = vmatpush1.msra.mxu0 0.0
      %2240 = vmatprep.subr.mxu0 0.0
      %2241 = vmatpush1.msra.mxu0 0.0
      %2242 = vmatprep.subr.mxu0 0.0
      %2243 = vmatpush1.msra.mxu0 0.0
      %2244 = vmatprep.subr.mxu0 0.0
      %2245 = vmatpush1.msra.mxu0 0.0
      %2246 = vmatprep.subr.mxu0 0.0
      %2247 = vmatpush1.msra.mxu0 0.0
      %2248 = vmatprep.subr.mxu0 0.0
      %2249 = vmatpush1.msra.mxu0 0.0
      %2250 = vmatprep.subr.mxu0 0.0
      %2251 = vmatpush1.msra.mxu0 0.0
      %2252 = vmatprep.subr.mxu0 0.0
      %2253 = vmatpush1.msra.mxu0 0.0
      %2254 = vmatprep.mubr.f32.mxu0 0.0
      %2255 = vmatmul.mubr.f32.gmra.mrb[0].mxu0 %v1065
      %v2256 = vpop.f32.mrb[0].mxu0
      %v2257 = vadd.f32 %v2188, %v2256
      %v2258 = vpop.f32.mrb[0].mxu0
      %2259 = vdwg.mxu0
      %v2261 = vsel %vm1290, %v2107, 0
      %v2264 = vsel %vm1290, %v2181, 0
      %2266 = vmatprep.subr.mxu0 0.0
      %2267 = vmatpush1.xpose.msra.mxu0 %v2264
      %2268 = vmatprep.subr.mxu0 0.0
      %2269 = vmatpush1.xpose.msra.mxu0 0.0
      %2270 = vmatprep.subr.mxu0 0.0
      %2271 = vmatpush1.xpose.msra.mxu0 0.0
      %2272 = vmatprep.subr.mxu0 0.0
      %2273 = vmatpush1.xpose.msra.mxu0 0.0
      %2274 = vmatprep.subr.mxu0 0.0
      %2275 = vmatpush1.xpose.msra.mxu0 0.0
      %2276 = vmatprep.subr.mxu0 0.0
      %2277 = vmatpush1.xpose.msra.mxu0 0.0
      %2278 = vmatprep.subr.mxu0 0.0
      %2279 = vmatpush1.xpose.msra.mxu0 0.0
      %2280 = vmatprep.subr.mxu0 0.0
      %2281 = vmatpush1.xpose.msra.mxu0 0.0
      %2282 = vmatprep.subr.mxu0 0.0
      %2283 = vmatpush1.xpose.msra.mxu0 0.0
      %2284 = vmatprep.subr.mxu0 0.0
      %2285 = vmatpush1.xpose.msra.mxu0 0.0
      %2286 = vmatprep.subr.mxu0 0.0
      %2287 = vmatpush1.xpose.msra.mxu0 0.0
      %2288 = vmatprep.subr.mxu0 0.0
      %2289 = vmatpush1.xpose.msra.mxu0 0.0
      %2290 = vmatprep.subr.mxu0 0.0
      %2291 = vmatpush1.xpose.msra.mxu0 0.0
      %2292 = vmatprep.subr.mxu0 0.0
      %2293 = vmatpush1.xpose.msra.mxu0 0.0
      %2294 = vmatprep.subr.mxu0 0.0
      %2295 = vmatpush1.xpose.msra.mxu0 0.0
      %2296 = vmatprep.subr.mxu0 0.0
      %2297 = vmatpush1.xpose.msra.mxu0 0.0
      %2298 = vmatprep.subr.mxu0 0.0
      %2299 = vmatpush1.xpose.msra.mxu0 0.0
      %2300 = vmatprep.subr.mxu0 0.0
      %2301 = vmatpush1.xpose.msra.mxu0 0.0
      %2302 = vmatprep.subr.mxu0 0.0
      %2303 = vmatpush1.xpose.msra.mxu0 0.0
      %2304 = vmatprep.subr.mxu0 0.0
      %2305 = vmatpush1.xpose.msra.mxu0 0.0
      %2306 = vmatprep.subr.mxu0 0.0
      %2307 = vmatpush1.xpose.msra.mxu0 0.0
      %2308 = vmatprep.subr.mxu0 0.0
      %2309 = vmatpush1.xpose.msra.mxu0 0.0
      %2310 = vmatprep.subr.mxu0 0.0
      %2311 = vmatpush1.xpose.msra.mxu0 0.0
      %2312 = vmatprep.subr.mxu0 0.0
      %2313 = vmatpush1.xpose.msra.mxu0 0.0
      %2314 = vmatprep.subr.mxu0 0.0
      %2315 = vmatpush1.xpose.msra.mxu0 0.0
      %2316 = vmatprep.subr.mxu0 0.0
      %2317 = vmatpush1.xpose.msra.mxu0 0.0
      %2318 = vmatprep.subr.mxu0 0.0
      %2319 = vmatpush1.xpose.msra.mxu0 0.0
      %2320 = vmatprep.subr.mxu0 0.0
      %2321 = vmatpush1.xpose.msra.mxu0 0.0
      %2322 = vmatprep.subr.mxu0 0.0
      %2323 = vmatpush1.xpose.msra.mxu0 0.0
      %2324 = vmatprep.subr.mxu0 0.0
      %2325 = vmatpush1.xpose.msra.mxu0 0.0
      %2326 = vmatprep.subr.mxu0 0.0
      %2327 = vmatpush1.xpose.msra.mxu0 0.0
      %2328 = vmatprep.subr.mxu0 0.0
      %2329 = vmatpush1.xpose.msra.mxu0 0.0
      %2330 = vmatprep.mubr.f32.mxu0 0.0
      %2331 = vmatmul.mubr.f32.gmra.mrb[0].mxu0 %v2261
      %v2332 = vpop.f32.mrb[0].mxu0
      %v2333 = vadd.f32 %v1037, %v2332
      %v2334 = vpop.f32.mrb[0].mxu0
      %2335 = vdwg.mxu0
      %v2336 = vsel %vm1290, %v2333, -inf
      %2337 = vmax.xlane.f32.xlu0 %v2336
      %v2338 = vpop.xlane.xlu0 %2337
      %v2339 = vsub.f32 %v2333, %v2338
      %v2340 = vmul.f32 %v2339, 1.442695
      %v2341 = vpow.pop %v2340
      %v2342 = vsel %vm1290, %v2341, 0.0
      %2343 = vadd.xlane.f32.xlu0 %v2342
      %v2344 = vpop.xlane.xlu0 %2343
      %v2345 = vrcp.pop %v2344
      %v2346 = vmul.f32 %v2341, %v2345
      %v2348 = vsel %vm1290, %v2346, 0
      %2350 = vmatprep.subr.mxu0 0.0
      %2351 = vmatpush1.msra.mxu0 %v2257
      %2352 = vmatprep.subr.mxu0 0.0
      %2353 = vmatpush1.msra.mxu0 0.0
      %2354 = vmatprep.subr.mxu0 0.0
      %2355 = vmatpush1.msra.mxu0 0.0
      %2356 = vmatprep.subr.mxu0 0.0
      %2357 = vmatpush1.msra.mxu0 0.0
      %2358 = vmatprep.subr.mxu0 0.0
      %2359 = vmatpush1.msra.mxu0 0.0
      %2360 = vmatprep.subr.mxu0 0.0
      %2361 = vmatpush1.msra.mxu0 0.0
      %2362 = vmatprep.subr.mxu0 0.0
      %2363 = vmatpush1.msra.mxu0 0.0
      %2364 = vmatprep.subr.mxu0 0.0
      %2365 = vmatpush1.msra.mxu0 0.0
      %2366 = vmatprep.subr.mxu0 0.0
      %2367 = vmatpush1.msra.mxu0 0.0
      %2368 = vmatprep.subr.mxu0 0.0
      %2369 = vmatpush1.msra.mxu0 0.0
      %2370 = vmatprep.subr.mxu0 0.0
      %2371 = vmatpush1.msra.mxu0 0.0
      %2372 = vmatprep.subr.mxu0 0.0
      %2373 = vmatpush1.msra.mxu0 0.0
      %2374 = vmatprep.subr.mxu0 0.0
      %2375 = vmatpush1.msra.mxu0 0.0
      %2376 = vmatprep.subr.mxu0 0.0
      %2377 = vmatpush1.msra.mxu0 0.0
      %2378 = vmatprep.subr.mxu0 0.0
      %2379 = vmatpush1.msra.mxu0 0.0
      %2380 = vmatprep.subr.mxu0 0.0
      %2381 = vmatpush1.msra.mxu0 0.0
      %2382 = vmatprep.subr.mxu0 0.0
      %2383 = vmatpush1.msra.mxu0 0.0
      %2384 = vmatprep.subr.mxu0 0.0
      %2385 = vmatpush1.msra.mxu0 0.0
      %2386 = vmatprep.subr.mxu0 0.0
      %2387 = vmatpush1.msra.mxu0 0.0
      %2388 = vmatprep.subr.mxu0 0.0
      %2389 = vmatpush1.msra.mxu0 0.0
      %2390 = vmatprep.subr.mxu0 0.0
      %2391 = vmatpush1.msra.mxu0 0.0
      %2392 = vmatprep.subr.mxu0 0.0
      %2393 = vmatpush1.msra.mxu0 0.0
      %2394 = vmatprep.subr.mxu0 0.0
      %2395 = vmatpush1.msra.mxu0 0.0
      %2396 = vmatprep.subr.mxu0 0.0
      %2397 = vmatpush1.msra.mxu0 0.0
      %2398 = vmatprep.subr.mxu0 0.0
      %2399 = vmatpush1.msra.mxu0 0.0
      %2400 = vmatprep.subr.mxu0 0.0
      %2401 = vmatpush1.msra.mxu0 0.0
      %2402 = vmatprep.subr.mxu0 0.0
      %2403 = vmatpush1.msra.mxu0 0.0
      %2404 = vmatprep.subr.mxu0 0.0
      %2405 = vmatpush1.msra.mxu0 0.0
      %2406 = vmatprep.subr.mxu0 0.0
      %2407 = vmatpush1.msra.mxu0 0.0
      %2408 = vmatprep.subr.mxu0 0.0
      %2409 = vmatpush1.msra.mxu0 0.0
      %2410 = vmatprep.subr.mxu0 0.0
      %2411 = vmatpush1.msra.mxu0 0.0
      %2412 = vmatprep.subr.mxu0 0.0
      %2413 = vmatpush1.msra.mxu0 0.0
      %2414 = vmatprep.mubr.f32.mxu0 0.0
      %2415 = vmatmul.mubr.f32.gmra.mrb[0].mxu0 %v2348
      %v2416 = vpop.f32.mrb[0].mxu0
      %v2417 = vadd.f32 0.0, %v2416
      %v2418 = vpop.f32.mrb[0].mxu0
      %2419 = vdwg.mxu0
      %s2420 = scalar_lea.vmem %s970, 16
      %v2421 = vld [vmem:[%s2420] sm:$0xff]
      %v2423 = vsel %vm1290, %v2417, 0
      %2425 = vmatprep.subr.mxu0 0.0
      %2426 = vmatpush1.msra.mxu0 %v2421
      %2427 = vmatprep.subr.mxu0 0.0
      %2428 = vmatpush1.msra.mxu0 0.0
      %2429 = vmatprep.subr.mxu0 0.0
      %2430 = vmatpush1.msra.mxu0 0.0
      %2431 = vmatprep.subr.mxu0 0.0
      %2432 = vmatpush1.msra.mxu0 0.0
      %2433 = vmatprep.subr.mxu0 0.0
      %2434 = vmatpush1.msra.mxu0 0.0
      %2435 = vmatprep.subr.mxu0 0.0
      %2436 = vmatpush1.msra.mxu0 0.0
      %2437 = vmatprep.subr.mxu0 0.0
      %2438 = vmatpush1.msra.mxu0 0.0
      %2439 = vmatprep.subr.mxu0 0.0
      %2440 = vmatpush1.msra.mxu0 0.0
      %2441 = vmatprep.subr.mxu0 0.0
      %2442 = vmatpush1.msra.mxu0 0.0
      %2443 = vmatprep.subr.mxu0 0.0
      %2444 = vmatpush1.msra.mxu0 0.0
      %2445 = vmatprep.subr.mxu0 0.0
      %2446 = vmatpush1.msra.mxu0 0.0
      %2447 = vmatprep.subr.mxu0 0.0
      %2448 = vmatpush1.msra.mxu0 0.0
      %2449 = vmatprep.subr.mxu0 0.0
      %2450 = vmatpush1.msra.mxu0 0.0
      %2451 = vmatprep.subr.mxu0 0.0
      %2452 = vmatpush1.msra.mxu0 0.0
      %2453 = vmatprep.subr.mxu0 0.0
      %2454 = vmatpush1.msra.mxu0 0.0
      %2455 = vmatprep.subr.mxu0 0.0
      %2456 = vmatpush1.msra.mxu0 0.0
      %2457 = vmatprep.subr.mxu0 0.0
      %2458 = vmatpush1.msra.mxu0 0.0
      %2459 = vmatprep.subr.mxu0 0.0
      %2460 = vmatpush1.msra.mxu0 0.0
      %2461 = vmatprep.subr.mxu0 0.0
      %2462 = vmatpush1.msra.mxu0 0.0
      %2463 = vmatprep.subr.mxu0 0.0
      %2464 = vmatpush1.msra.mxu0 0.0
      %2465 = vmatprep.subr.mxu0 0.0
      %2466 = vmatpush1.msra.mxu0 0.0
      %2467 = vmatprep.subr.mxu0 0.0
      %2468 = vmatpush1.msra.mxu0 0.0
      %2469 = vmatprep.subr.mxu0 0.0
      %2470 = vmatpush1.msra.mxu0 0.0
      %2471 = vmatprep.subr.mxu0 0.0
      %2472 = vmatpush1.msra.mxu0 0.0
      %2473 = vmatprep.subr.mxu0 0.0
      %2474 = vmatpush1.msra.mxu0 0.0
      %2475 = vmatprep.subr.mxu0 0.0
      %2476 = vmatpush1.msra.mxu0 0.0
      %2477 = vmatprep.subr.mxu0 0.0
      %2478 = vmatpush1.msra.mxu0 0.0
      %2479 = vmatprep.subr.mxu0 0.0
      %2480 = vmatpush1.msra.mxu0 0.0
      %2481 = vmatprep.subr.mxu0 0.0
      %2482 = vmatpush1.msra.mxu0 0.0
      %2483 = vmatprep.subr.mxu0 0.0
      %2484 = vmatpush1.msra.mxu0 0.0
      %2485 = vmatprep.subr.mxu0 0.0
      %2486 = vmatpush1.msra.mxu0 0.0
      %2487 = vmatprep.subr.mxu0 0.0
      %2488 = vmatpush1.msra.mxu0 0.0
      %2489 = vmatprep.mubr.f32.mxu0 0.0
      %2490 = vmatmul.mubr.f32.gmra.mrb[0].mxu0 %v2423
      %v2491 = vpop.f32.mrb[0].mxu0
      %v2492 = vadd.f32 0.0, %v2491
      %v2493 = vpop.f32.mrb[0].mxu0
      %2494 = vdwg.mxu0
      %v2495 = vadd.f32 %v2007, %v2492
      %s2496 = scalar_lea.vmem %s961, 96
      %v2497 = vld [vmem:[%s2496] sm:$0xff]
      %v2498 = vld [vmem:[%s2496 + $0x8] sm:$0xff]
      %v2499 = vld [vmem:[%s2496 + $0x10] sm:$0xff]
      %v2500 = vld [vmem:[%s2496 + $0x18] sm:$0xff]
      %s2501 = scalar_lea.vmem %s965, 3
      %v2502 = vld [vmem:[%s2501] sm:$0x1]
      %s2503 = scalar_lea.vmem %s961, 224
      %v2504 = vld [vmem:[%s2503] sm:$0xff]
      %v2505 = vld [vmem:[%s2503 + $0x8] sm:$0xff]
      %v2506 = vld [vmem:[%s2503 + $0x10] sm:$0xff]
      %v2507 = vld [vmem:[%s2503 + $0x18] sm:$0xff]
      %s2508 = scalar_lea.vmem %s965, 7
      %v2509 = vld [vmem:[%s2508] sm:$0x1]
      %s2510 = scalar_lea.vmem %s961, 352
      %v2511 = vld [vmem:[%s2510] sm:$0xff]
      %v2512 = vld [vmem:[%s2510 + $0x8] sm:$0xff]
      %v2513 = vld [vmem:[%s2510 + $0x10] sm:$0xff]
      %v2514 = vld [vmem:[%s2510 + $0x18] sm:$0xff]
      %s2515 = scalar_lea.vmem %s965, 11
      %v2516 = vld [vmem:[%s2515] sm:$0x1]
      %v2518 = vlaneseq
      %v2519 = vshrl.u32 %v2518, 7
      %v2520 = vsub.s32 0, %v2519
      %v2521 = vrot.slane %v2502, %v2520
      %2523 = vmatprep.subr.mxu0 0.0
      %2524 = vmatpush1.msra.mxu0 %v2497
      %2525 = vmatprep.subr.mxu0 0.0
      %2526 = vmatpush1.msra.mxu0 %v2498
      %2527 = vmatprep.subr.mxu0 0.0
      %2528 = vmatpush1.msra.mxu0 %v2499
      %2529 = vmatprep.subr.mxu0 0.0
      %2530 = vmatpush1.msra.mxu0 %v2500
      %2531 = vmatprep.subr.mxu0 0.0
      %2532 = vmatpush1.msra.mxu0 0.0
      %2533 = vmatprep.subr.mxu0 0.0
      %2534 = vmatpush1.msra.mxu0 0.0
      %2535 = vmatprep.subr.mxu0 0.0
      %2536 = vmatpush1.msra.mxu0 0.0
      %2537 = vmatprep.subr.mxu0 0.0
      %2538 = vmatpush1.msra.mxu0 0.0
      %2539 = vmatprep.subr.mxu0 0.0
      %2540 = vmatpush1.msra.mxu0 0.0
      %2541 = vmatprep.subr.mxu0 0.0
      %2542 = vmatpush1.msra.mxu0 0.0
      %2543 = vmatprep.subr.mxu0 0.0
      %2544 = vmatpush1.msra.mxu0 0.0
      %2545 = vmatprep.subr.mxu0 0.0
      %2546 = vmatpush1.msra.mxu0 0.0
      %2547 = vmatprep.subr.mxu0 0.0
      %2548 = vmatpush1.msra.mxu0 0.0
      %2549 = vmatprep.subr.mxu0 0.0
      %2550 = vmatpush1.msra.mxu0 0.0
      %2551 = vmatprep.subr.mxu0 0.0
      %2552 = vmatpush1.msra.mxu0 0.0
      %2553 = vmatprep.subr.mxu0 0.0
      %2554 = vmatpush1.msra.mxu0 0.0
      %2555 = vmatprep.subr.mxu0 0.0
      %2556 = vmatpush1.msra.mxu0 0.0
      %2557 = vmatprep.subr.mxu0 0.0
      %2558 = vmatpush1.msra.mxu0 0.0
      %2559 = vmatprep.subr.mxu0 0.0
      %2560 = vmatpush1.msra.mxu0 0.0
      %2561 = vmatprep.subr.mxu0 0.0
      %2562 = vmatpush1.msra.mxu0 0.0
      %2563 = vmatprep.subr.mxu0 0.0
      %2564 = vmatpush1.msra.mxu0 0.0
      %2565 = vmatprep.subr.mxu0 0.0
      %2566 = vmatpush1.msra.mxu0 0.0
      %2567 = vmatprep.subr.mxu0 0.0
      %2568 = vmatpush1.msra.mxu0 0.0
      %2569 = vmatprep.subr.mxu0 0.0
      %2570 = vmatpush1.msra.mxu0 0.0
      %2571 = vmatprep.subr.mxu0 0.0
      %2572 = vmatpush1.msra.mxu0 0.0
      %2573 = vmatprep.subr.mxu0 0.0
      %2574 = vmatpush1.msra.mxu0 0.0
      %2575 = vmatprep.subr.mxu0 0.0
      %2576 = vmatpush1.msra.mxu0 0.0
      %2577 = vmatprep.subr.mxu0 0.0
      %2578 = vmatpush1.msra.mxu0 0.0
      %2579 = vmatprep.subr.mxu0 0.0
      %2580 = vmatpush1.msra.mxu0 0.0
      %2581 = vmatprep.subr.mxu0 0.0
      %2582 = vmatpush1.msra.mxu0 0.0
      %2583 = vmatprep.subr.mxu0 0.0
      %2584 = vmatpush1.msra.mxu0 0.0
      %2585 = vmatprep.subr.mxu0 0.0
      %2586 = vmatpush1.msra.mxu0 0.0
      %2587 = vmatprep.mubr.f32.mxu0 0.0
      %2588 = vmatmul.mubr.f32.gmra.mrb[0].mxu0 %v1065
      %v2589 = vpop.f32.mrb[0].mxu0
      %v2590 = vadd.f32 %v2521, %v2589
      %v2591 = vpop.f32.mrb[0].mxu0
      %2592 = vdwg.mxu0
      %v2593 = vmul.f32 %v2590, 0.35355338
      %v2595 = vlaneseq
      %v2596 = vshrl.u32 %v2595, 7
      %v2597 = vsub.s32 0, %v2596
      %v2598 = vrot.slane %v2509, %v2597
      %2600 = vmatprep.subr.mxu0 0.0
      %2601 = vmatpush1.msra.mxu0 %v2504
      %2602 = vmatprep.subr.mxu0 0.0
      %2603 = vmatpush1.msra.mxu0 %v2505
      %2604 = vmatprep.subr.mxu0 0.0
      %2605 = vmatpush1.msra.mxu0 %v2506
      %2606 = vmatprep.subr.mxu0 0.0
      %2607 = vmatpush1.msra.mxu0 %v2507
      %2608 = vmatprep.subr.mxu0 0.0
      %2609 = vmatpush1.msra.mxu0 0.0
      %2610 = vmatprep.subr.mxu0 0.0
      %2611 = vmatpush1.msra.mxu0 0.0
      %2612 = vmatprep.subr.mxu0 0.0
      %2613 = vmatpush1.msra.mxu0 0.0
      %2614 = vmatprep.subr.mxu0 0.0
      %2615 = vmatpush1.msra.mxu0 0.0
      %2616 = vmatprep.subr.mxu0 0.0
      %2617 = vmatpush1.msra.mxu0 0.0
      %2618 = vmatprep.subr.mxu0 0.0
      %2619 = vmatpush1.msra.mxu0 0.0
      %2620 = vmatprep.subr.mxu0 0.0
      %2621 = vmatpush1.msra.mxu0 0.0
      %2622 = vmatprep.subr.mxu0 0.0
      %2623 = vmatpush1.msra.mxu0 0.0
      %2624 = vmatprep.subr.mxu0 0.0
      %2625 = vmatpush1.msra.mxu0 0.0
      %2626 = vmatprep.subr.mxu0 0.0
      %2627 = vmatpush1.msra.mxu0 0.0
      %2628 = vmatprep.subr.mxu0 0.0
      %2629 = vmatpush1.msra.mxu0 0.0
      %2630 = vmatprep.subr.mxu0 0.0
      %2631 = vmatpush1.msra.mxu0 0.0
      %2632 = vmatprep.subr.mxu0 0.0
      %2633 = vmatpush1.msra.mxu0 0.0
      %2634 = vmatprep.subr.mxu0 0.0
      %2635 = vmatpush1.msra.mxu0 0.0
      %2636 = vmatprep.subr.mxu0 0.0
      %2637 = vmatpush1.msra.mxu0 0.0
      %2638 = vmatprep.subr.mxu0 0.0
      %2639 = vmatpush1.msra.mxu0 0.0
      %2640 = vmatprep.subr.mxu0 0.0
      %2641 = vmatpush1.msra.mxu0 0.0
      %2642 = vmatprep.subr.mxu0 0.0
      %2643 = vmatpush1.msra.mxu0 0.0
      %2644 = vmatprep.subr.mxu0 0.0
      %2645 = vmatpush1.msra.mxu0 0.0
      %2646 = vmatprep.subr.mxu0 0.0
      %2647 = vmatpush1.msra.mxu0 0.0
      %2648 = vmatprep.subr.mxu0 0.0
      %2649 = vmatpush1.msra.mxu0 0.0
      %2650 = vmatprep.subr.mxu0 0.0
      %2651 = vmatpush1.msra.mxu0 0.0
      %2652 = vmatprep.subr.mxu0 0.0
      %2653 = vmatpush1.msra.mxu0 0.0
      %2654 = vmatprep.subr.mxu0 0.0
      %2655 = vmatpush1.msra.mxu0 0.0
      %2656 = vmatprep.subr.mxu0 0.0
      %2657 = vmatpush1.msra.mxu0 0.0
      %2658 = vmatprep.subr.mxu0 0.0
      %2659 = vmatpush1.msra.mxu0 0.0
      %2660 = vmatprep.subr.mxu0 0.0
      %2661 = vmatpush1.msra.mxu0 0.0
      %2662 = vmatprep.subr.mxu0 0.0
      %2663 = vmatpush1.msra.mxu0 0.0
      %2664 = vmatprep.mubr.f32.mxu0 0.0
      %2665 = vmatmul.mubr.f32.gmra.mrb[0].mxu0 %v1065
      %v2666 = vpop.f32.mrb[0].mxu0
      %v2667 = vadd.f32 %v2598, %v2666
      %v2668 = vpop.f32.mrb[0].mxu0
      %2669 = vdwg.mxu0
      %v2671 = vlaneseq
      %v2672 = vshrl.u32 %v2671, 7
      %v2673 = vsub.s32 0, %v2672
      %v2674 = vrot.slane %v2516, %v2673
      %2676 = vmatprep.subr.mxu0 0.0
      %2677 = vmatpush1.msra.mxu0 %v2511
      %2678 = vmatprep.subr.mxu0 0.0
      %2679 = vmatpush1.msra.mxu0 %v2512
      %2680 = vmatprep.subr.mxu0 0.0
      %2681 = vmatpush1.msra.mxu0 %v2513
      %2682 = vmatprep.subr.mxu0 0.0
      %2683 = vmatpush1.msra.mxu0 %v2514
      %2684 = vmatprep.subr.mxu0 0.0
      %2685 = vmatpush1.msra.mxu0 0.0
      %2686 = vmatprep.subr.mxu0 0.0
      %2687 = vmatpush1.msra.mxu0 0.0
      %2688 = vmatprep.subr.mxu0 0.0
      %2689 = vmatpush1.msra.mxu0 0.0
      %2690 = vmatprep.subr.mxu0 0.0
      %2691 = vmatpush1.msra.mxu0 0.0
      %2692 = vmatprep.subr.mxu0 0.0
      %2693 = vmatpush1.msra.mxu0 0.0
      %2694 = vmatprep.subr.mxu0 0.0
      %2695 = vmatpush1.msra.mxu0 0.0
      %2696 = vmatprep.subr.mxu0 0.0
      %2697 = vmatpush1.msra.mxu0 0.0
      %2698 = vmatprep.subr.mxu0 0.0
      %2699 = vmatpush1.msra.mxu0 0.0
      %2700 = vmatprep.subr.mxu0 0.0
      %2701 = vmatpush1.msra.mxu0 0.0
      %2702 = vmatprep.subr.mxu0 0.0
      %2703 = vmatpush1.msra.mxu0 0.0
      %2704 = vmatprep.subr.mxu0 0.0
      %2705 = vmatpush1.msra.mxu0 0.0
      %2706 = vmatprep.subr.mxu0 0.0
      %2707 = vmatpush1.msra.mxu0 0.0
      %2708 = vmatprep.subr.mxu0 0.0
      %2709 = vmatpush1.msra.mxu0 0.0
      %2710 = vmatprep.subr.mxu0 0.0
      %2711 = vmatpush1.msra.mxu0 0.0
      %2712 = vmatprep.subr.mxu0 0.0
      %2713 = vmatpush1.msra.mxu0 0.0
      %2714 = vmatprep.subr.mxu0 0.0
      %2715 = vmatpush1.msra.mxu0 0.0
      %2716 = vmatprep.subr.mxu0 0.0
      %2717 = vmatpush1.msra.mxu0 0.0
      %2718 = vmatprep.subr.mxu0 0.0
      %2719 = vmatpush1.msra.mxu0 0.0
      %2720 = vmatprep.subr.mxu0 0.0
      %2721 = vmatpush1.msra.mxu0 0.0
      %2722 = vmatprep.subr.mxu0 0.0
      %2723 = vmatpush1.msra.mxu0 0.0
      %2724 = vmatprep.subr.mxu0 0.0
      %2725 = vmatpush1.msra.mxu0 0.0
      %2726 = vmatprep.subr.mxu0 0.0
      %2727 = vmatpush1.msra.mxu0 0.0
      %2728 = vmatprep.subr.mxu0 0.0
      %2729 = vmatpush1.msra.mxu0 0.0
      %2730 = vmatprep.subr.mxu0 0.0
      %2731 = vmatpush1.msra.mxu0 0.0
      %2732 = vmatprep.subr.mxu0 0.0
      %2733 = vmatpush1.msra.mxu0 0.0
      %2734 = vmatprep.subr.mxu0 0.0
      %2735 = vmatpush1.msra.mxu0 0.0
      %2736 = vmatprep.subr.mxu0 0.0
      %2737 = vmatpush1.msra.mxu0 0.0
      %2738 = vmatprep.subr.mxu0 0.0
      %2739 = vmatpush1.msra.mxu0 0.0
      %2740 = vmatprep.mubr.f32.mxu0 0.0
      %2741 = vmatmul.mubr.f32.gmra.mrb[0].mxu0 %v1065
      %v2742 = vpop.f32.mrb[0].mxu0
      %v2743 = vadd.f32 %v2674, %v2742
      %v2744 = vpop.f32.mrb[0].mxu0
      %2745 = vdwg.mxu0
      %v2747 = vsel %vm1290, %v2593, 0
      %v2750 = vsel %vm1290, %v2667, 0
      %2752 = vmatprep.subr.mxu0 0.0
      %2753 = vmatpush1.xpose.msra.mxu0 %v2750
      %2754 = vmatprep.subr.mxu0 0.0
      %2755 = vmatpush1.xpose.msra.mxu0 0.0
      %2756 = vmatprep.subr.mxu0 0.0
      %2757 = vmatpush1.xpose.msra.mxu0 0.0
      %2758 = vmatprep.subr.mxu0 0.0
      %2759 = vmatpush1.xpose.msra.mxu0 0.0
      %2760 = vmatprep.subr.mxu0 0.0
      %2761 = vmatpush1.xpose.msra.mxu0 0.0
      %2762 = vmatprep.subr.mxu0 0.0
      %2763 = vmatpush1.xpose.msra.mxu0 0.0
      %2764 = vmatprep.subr.mxu0 0.0
      %2765 = vmatpush1.xpose.msra.mxu0 0.0
      %2766 = vmatprep.subr.mxu0 0.0
      %2767 = vmatpush1.xpose.msra.mxu0 0.0
      %2768 = vmatprep.subr.mxu0 0.0
      %2769 = vmatpush1.xpose.msra.mxu0 0.0
      %2770 = vmatprep.subr.mxu0 0.0
      %2771 = vmatpush1.xpose.msra.mxu0 0.0
      %2772 = vmatprep.subr.mxu0 0.0
      %2773 = vmatpush1.xpose.msra.mxu0 0.0
      %2774 = vmatprep.subr.mxu0 0.0
      %2775 = vmatpush1.xpose.msra.mxu0 0.0
      %2776 = vmatprep.subr.mxu0 0.0
      %2777 = vmatpush1.xpose.msra.mxu0 0.0
      %2778 = vmatprep.subr.mxu0 0.0
      %2779 = vmatpush1.xpose.msra.mxu0 0.0
      %2780 = vmatprep.subr.mxu0 0.0
      %2781 = vmatpush1.xpose.msra.mxu0 0.0
      %2782 = vmatprep.subr.mxu0 0.0
      %2783 = vmatpush1.xpose.msra.mxu0 0.0
      %2784 = vmatprep.subr.mxu0 0.0
      %2785 = vmatpush1.xpose.msra.mxu0 0.0
      %2786 = vmatprep.subr.mxu0 0.0
      %2787 = vmatpush1.xpose.msra.mxu0 0.0
      %2788 = vmatprep.subr.mxu0 0.0
      %2789 = vmatpush1.xpose.msra.mxu0 0.0
      %2790 = vmatprep.subr.mxu0 0.0
      %2791 = vmatpush1.xpose.msra.mxu0 0.0
      %2792 = vmatprep.subr.mxu0 0.0
      %2793 = vmatpush1.xpose.msra.mxu0 0.0
      %2794 = vmatprep.subr.mxu0 0.0
      %2795 = vmatpush1.xpose.msra.mxu0 0.0
      %2796 = vmatprep.subr.mxu0 0.0
      %2797 = vmatpush1.xpose.msra.mxu0 0.0
      %2798 = vmatprep.subr.mxu0 0.0
      %2799 = vmatpush1.xpose.msra.mxu0 0.0
      %2800 = vmatprep.subr.mxu0 0.0
      %2801 = vmatpush1.xpose.msra.mxu0 0.0
      %2802 = vmatprep.subr.mxu0 0.0
      %2803 = vmatpush1.xpose.msra.mxu0 0.0
      %2804 = vmatprep.subr.mxu0 0.0
      %2805 = vmatpush1.xpose.msra.mxu0 0.0
      %2806 = vmatprep.subr.mxu0 0.0
      %2807 = vmatpush1.xpose.msra.mxu0 0.0
      %2808 = vmatprep.subr.mxu0 0.0
      %2809 = vmatpush1.xpose.msra.mxu0 0.0
      %2810 = vmatprep.subr.mxu0 0.0
      %2811 = vmatpush1.xpose.msra.mxu0 0.0
      %2812 = vmatprep.subr.mxu0 0.0
      %2813 = vmatpush1.xpose.msra.mxu0 0.0
      %2814 = vmatprep.subr.mxu0 0.0
      %2815 = vmatpush1.xpose.msra.mxu0 0.0
      %2816 = vmatprep.mubr.f32.mxu0 0.0
      %2817 = vmatmul.mubr.f32.gmra.mrb[0].mxu0 %v2747
      %v2818 = vpop.f32.mrb[0].mxu0
      %v2819 = vadd.f32 %v1037, %v2818
      %v2820 = vpop.f32.mrb[0].mxu0
      %2821 = vdwg.mxu0
      %v2822 = vsel %vm1290, %v2819, -inf
      %2823 = vmax.xlane.f32.xlu0 %v2822
      %v2824 = vpop.xlane.xlu0 %2823
      %v2825 = vsub.f32 %v2819, %v2824
      %v2826 = vmul.f32 %v2825, 1.442695
      %v2827 = vpow.pop %v2826
      %v2828 = vsel %vm1290, %v2827, 0.0
      %2829 = vadd.xlane.f32.xlu0 %v2828
      %v2830 = vpop.xlane.xlu0 %2829
      %v2831 = vrcp.pop %v2830
      %v2832 = vmul.f32 %v2827, %v2831
      %v2834 = vsel %vm1290, %v2832, 0
      %2836 = vmatprep.subr.mxu0 0.0
      %2837 = vmatpush1.msra.mxu0 %v2743
      %2838 = vmatprep.subr.mxu0 0.0
      %2839 = vmatpush1.msra.mxu0 0.0
      %2840 = vmatprep.subr.mxu0 0.0
      %2841 = vmatpush1.msra.mxu0 0.0
      %2842 = vmatprep.subr.mxu0 0.0
      %2843 = vmatpush1.msra.mxu0 0.0
      %2844 = vmatprep.subr.mxu0 0.0
      %2845 = vmatpush1.msra.mxu0 0.0
      %2846 = vmatprep.subr.mxu0 0.0
      %2847 = vmatpush1.msra.mxu0 0.0
      %2848 = vmatprep.subr.mxu0 0.0
      %2849 = vmatpush1.msra.mxu0 0.0
      %2850 = vmatprep.subr.mxu0 0.0
      %2851 = vmatpush1.msra.mxu0 0.0
      %2852 = vmatprep.subr.mxu0 0.0
      %2853 = vmatpush1.msra.mxu0 0.0
      %2854 = vmatprep.subr.mxu0 0.0
      %2855 = vmatpush1.msra.mxu0 0.0
      %2856 = vmatprep.subr.mxu0 0.0
      %2857 = vmatpush1.msra.mxu0 0.0
      %2858 = vmatprep.subr.mxu0 0.0
      %2859 = vmatpush1.msra.mxu0 0.0
      %2860 = vmatprep.subr.mxu0 0.0
      %2861 = vmatpush1.msra.mxu0 0.0
      %2862 = vmatprep.subr.mxu0 0.0
      %2863 = vmatpush1.msra.mxu0 0.0
      %2864 = vmatprep.subr.mxu0 0.0
      %2865 = vmatpush1.msra.mxu0 0.0
      %2866 = vmatprep.subr.mxu0 0.0
      %2867 = vmatpush1.msra.mxu0 0.0
      %2868 = vmatprep.subr.mxu0 0.0
      %2869 = vmatpush1.msra.mxu0 0.0
      %2870 = vmatprep.subr.mxu0 0.0
      %2871 = vmatpush1.msra.mxu0 0.0
      %2872 = vmatprep.subr.mxu0 0.0
      %2873 = vmatpush1.msra.mxu0 0.0
      %2874 = vmatprep.subr.mxu0 0.0
      %2875 = vmatpush1.msra.mxu0 0.0
      %2876 = vmatprep.subr.mxu0 0.0
      %2877 = vmatpush1.msra.mxu0 0.0
      %2878 = vmatprep.subr.mxu0 0.0
      %2879 = vmatpush1.msra.mxu0 0.0
      %2880 = vmatprep.subr.mxu0 0.0
      %2881 = vmatpush1.msra.mxu0 0.0
      %2882 = vmatprep.subr.mxu0 0.0
      %2883 = vmatpush1.msra.mxu0 0.0
      %2884 = vmatprep.subr.mxu0 0.0
      %2885 = vmatpush1.msra.mxu0 0.0
      %2886 = vmatprep.subr.mxu0 0.0
      %2887 = vmatpush1.msra.mxu0 0.0
      %2888 = vmatprep.subr.mxu0 0.0
      %2889 = vmatpush1.msra.mxu0 0.0
      %2890 = vmatprep.subr.mxu0 0.0
      %2891 = vmatpush1.msra.mxu0 0.0
      %2892 = vmatprep.subr.mxu0 0.0
      %2893 = vmatpush1.msra.mxu0 0.0
      %2894 = vmatprep.subr.mxu0 0.0
      %2895 = vmatpush1.msra.mxu0 0.0
      %2896 = vmatprep.subr.mxu0 0.0
      %2897 = vmatpush1.msra.mxu0 0.0
      %2898 = vmatprep.subr.mxu0 0.0
      %2899 = vmatpush1.msra.mxu0 0.0
      %2900 = vmatprep.mubr.f32.mxu0 0.0
      %2901 = vmatmul.mubr.f32.gmra.mrb[0].mxu0 %v2834
      %v2902 = vpop.f32.mrb[0].mxu0
      %v2903 = vadd.f32 0.0, %v2902
      %v2904 = vpop.f32.mrb[0].mxu0
      %2905 = vdwg.mxu0
      %s2906 = scalar_lea.vmem %s970, 24
      %v2907 = vld [vmem:[%s2906] sm:$0xff]
      %v2909 = vsel %vm1290, %v2903, 0
      %2911 = vmatprep.subr.mxu0 0.0
      %2912 = vmatpush1.msra.mxu0 %v2907
      %2913 = vmatprep.subr.mxu0 0.0
      %2914 = vmatpush1.msra.mxu0 0.0
      %2915 = vmatprep.subr.mxu0 0.0
      %2916 = vmatpush1.msra.mxu0 0.0
      %2917 = vmatprep.subr.mxu0 0.0
      %2918 = vmatpush1.msra.mxu0 0.0
      %2919 = vmatprep.subr.mxu0 0.0
      %2920 = vmatpush1.msra.mxu0 0.0
      %2921 = vmatprep.subr.mxu0 0.0
      %2922 = vmatpush1.msra.mxu0 0.0
      %2923 = vmatprep.subr.mxu0 0.0
      %2924 = vmatpush1.msra.mxu0 0.0
      %2925 = vmatprep.subr.mxu0 0.0
      %2926 = vmatpush1.msra.mxu0 0.0
      %2927 = vmatprep.subr.mxu0 0.0
      %2928 = vmatpush1.msra.mxu0 0.0
      %2929 = vmatprep.subr.mxu0 0.0
      %2930 = vmatpush1.msra.mxu0 0.0
      %2931 = vmatprep.subr.mxu0 0.0
      %2932 = vmatpush1.msra.mxu0 0.0
      %2933 = vmatprep.subr.mxu0 0.0
      %2934 = vmatpush1.msra.mxu0 0.0
      %2935 = vmatprep.subr.mxu0 0.0
      %2936 = vmatpush1.msra.mxu0 0.0
      %2937 = vmatprep.subr.mxu0 0.0
      %2938 = vmatpush1.msra.mxu0 0.0
      %2939 = vmatprep.subr.mxu0 0.0
      %2940 = vmatpush1.msra.mxu0 0.0
      %2941 = vmatprep.subr.mxu0 0.0
      %2942 = vmatpush1.msra.mxu0 0.0
      %2943 = vmatprep.subr.mxu0 0.0
      %2944 = vmatpush1.msra.mxu0 0.0
      %2945 = vmatprep.subr.mxu0 0.0
      %2946 = vmatpush1.msra.mxu0 0.0
      %2947 = vmatprep.subr.mxu0 0.0
      %2948 = vmatpush1.msra.mxu0 0.0
      %2949 = vmatprep.subr.mxu0 0.0
      %2950 = vmatpush1.msra.mxu0 0.0
      %2951 = vmatprep.subr.mxu0 0.0
      %2952 = vmatpush1.msra.mxu0 0.0
      %2953 = vmatprep.subr.mxu0 0.0
      %2954 = vmatpush1.msra.mxu0 0.0
      %2955 = vmatprep.subr.mxu0 0.0
      %2956 = vmatpush1.msra.mxu0 0.0
      %2957 = vmatprep.subr.mxu0 0.0
      %2958 = vmatpush1.msra.mxu0 0.0
      %2959 = vmatprep.subr.mxu0 0.0
      %2960 = vmatpush1.msra.mxu0 0.0
      %2961 = vmatprep.subr.mxu0 0.0
      %2962 = vmatpush1.msra.mxu0 0.0
      %2963 = vmatprep.subr.mxu0 0.0
      %2964 = vmatpush1.msra.mxu0 0.0
      %2965 = vmatprep.subr.mxu0 0.0
      %2966 = vmatpush1.msra.mxu0 0.0
      %2967 = vmatprep.subr.mxu0 0.0
      %2968 = vmatpush1.msra.mxu0 0.0
      %2969 = vmatprep.subr.mxu0 0.0
      %2970 = vmatpush1.msra.mxu0 0.0
      %2971 = vmatprep.subr.mxu0 0.0
      %2972 = vmatpush1.msra.mxu0 0.0
      %2973 = vmatprep.subr.mxu0 0.0
      %2974 = vmatpush1.msra.mxu0 0.0
      %2975 = vmatprep.mubr.f32.mxu0 0.0
      %2976 = vmatmul.mubr.f32.gmra.mrb[0].mxu0 %v2909
      %v2977 = vpop.f32.mrb[0].mxu0
      %v2978 = vadd.f32 0.0, %v2977
      %v2979 = vpop.f32.mrb[0].mxu0
      %2980 = vdwg.mxu0
      %v2981 = vadd.f32 %v2495, %v2978
      %v2982 = vld [vmem:[%s973] sm:$0x1]
      %v2984 = vlaneseq
      %v2985 = vshrl.u32 %v2984, 7
      %v2986 = vsub.s32 0, %v2985
      %v2987 = vrot.slane %v2982, %v2986
      %v2989 = vadd.f32 %v2981, %v2987
      %v2990 = vadd.f32 %v1036, %v2989
      %v2991 = vld [vmem:[%s1009] sm:$0x1]
      %v2992 = vld [vmem:[%s1012] sm:$0x1]
      %v2993 = vsel %vm1063, %v2990, 0.0
      %2994 = vadd.xlane.f32.xlu0 %v2993
      %v2995 = vpop.xlane.xlu0 %2994
      %v2996 = vrcp.pop 32.0
      %v2997 = vmul.f32 %v2995, %v2996
      %v2998 = vsub.f32 %v2990, %v2997
      %v2999 = vmul.f32 %v2998, %v2998
      %v3000 = vsel %vm1063, %v2999, 0.0
      %3001 = vadd.xlane.f32.xlu0 %v3000
      %v3002 = vpop.xlane.xlu0 %3001
      %v3003 = vmul.f32 %v3002, %v2996
      %v3004 = vadd.f32 %v3003, 1e-05
      %v3005 = vrsqrt.pop %v3004
      %v3006 = vmul.f32 %v2998, %v3005
      %v3008 = vlaneseq
      %v3009 = vshrl.u32 %v3008, 7
      %v3010 = vsub.s32 0, %v3009
      %v3011 = vrot.slane %v2991, %v3010
      %v3013 = vmul.f32 %v3006, %v3011
      %v3015 = vlaneseq
      %v3016 = vshrl.u32 %v3015, 7
      %v3017 = vsub.s32 0, %v3016
      %v3018 = vrot.slane %v2992, %v3017
      %v3020 = vadd.f32 %v3013, %v3018
      %v3021 = vld [vmem:[%s956] sm:$0xff]
      %v3022 = vld [vmem:[%s978] sm:$0xff]
      %v3023 = vld [vmem:[%s978 + $0x8] sm:$0xff]
      %v3024 = vld [vmem:[%s978 + $0x10] sm:$0xff]
      %v3025 = vld [vmem:[%s978 + $0x18] sm:$0xff]
      %v3026 = vld [vmem:[%s982] sm:$0x1]
      %s3027 = scalar_lea.vmem %s978, 128
      %v3028 = vld [vmem:[%s3027] sm:$0xff]
      %v3029 = vld [vmem:[%s3027 + $0x8] sm:$0xff]
      %v3030 = vld [vmem:[%s3027 + $0x10] sm:$0xff]
      %v3031 = vld [vmem:[%s3027 + $0x18] sm:$0xff]
      %s3032 = scalar_lea.vmem %s982, 4
      %v3033 = vld [vmem:[%s3032] sm:$0x1]
      %s3034 = scalar_lea.vmem %s978, 256
      %v3035 = vld [vmem:[%s3034] sm:$0xff]
      %v3036 = vld [vmem:[%s3034 + $0x8] sm:$0xff]
      %v3037 = vld [vmem:[%s3034 + $0x10] sm:$0xff]
      %v3038 = vld [vmem:[%s3034 + $0x18] sm:$0xff]
      %s3039 = scalar_lea.vmem %s982, 8
      %v3040 = vld [vmem:[%s3039] sm:$0x1]
      %v3042 = vlaneseq
      %v3043 = vshrl.u32 %v3042, 7
      %v3044 = vsub.s32 0, %v3043
      %v3045 = vrot.slane %v3026, %v3044
      %v3048 = vsel %vm1063, %v3020, 0
      %3050 = vmatprep.subr.mxu0 0.0
      %3051 = vmatpush1.msra.mxu0 %v3022
      %3052 = vmatprep.subr.mxu0 0.0
      %3053 = vmatpush1.msra.mxu0 %v3023
      %3054 = vmatprep.subr.mxu0 0.0
      %3055 = vmatpush1.msra.mxu0 %v3024
      %3056 = vmatprep.subr.mxu0 0.0
      %3057 = vmatpush1.msra.mxu0 %v3025
      %3058 = vmatprep.subr.mxu0 0.0
      %3059 = vmatpush1.msra.mxu0 0.0
      %3060 = vmatprep.subr.mxu0 0.0
      %3061 = vmatpush1.msra.mxu0 0.0
      %3062 = vmatprep.subr.mxu0 0.0
      %3063 = vmatpush1.msra.mxu0 0.0
      %3064 = vmatprep.subr.mxu0 0.0
      %3065 = vmatpush1.msra.mxu0 0.0
      %3066 = vmatprep.subr.mxu0 0.0
      %3067 = vmatpush1.msra.mxu0 0.0
      %3068 = vmatprep.subr.mxu0 0.0
      %3069 = vmatpush1.msra.mxu0 0.0
      %3070 = vmatprep.subr.mxu0 0.0
      %3071 = vmatpush1.msra.mxu0 0.0
      %3072 = vmatprep.subr.mxu0 0.0
      %3073 = vmatpush1.msra.mxu0 0.0
      %3074 = vmatprep.subr.mxu0 0.0
      %3075 = vmatpush1.msra.mxu0 0.0
      %3076 = vmatprep.subr.mxu0 0.0
      %3077 = vmatpush1.msra.mxu0 0.0
      %3078 = vmatprep.subr.mxu0 0.0
      %3079 = vmatpush1.msra.mxu0 0.0
      %3080 = vmatprep.subr.mxu0 0.0
      %3081 = vmatpush1.msra.mxu0 0.0
      %3082 = vmatprep.subr.mxu0 0.0
      %3083 = vmatpush1.msra.mxu0 0.0
      %3084 = vmatprep.subr.mxu0 0.0
      %3085 = vmatpush1.msra.mxu0 0.0
      %3086 = vmatprep.subr.mxu0 0.0
      %3087 = vmatpush1.msra.mxu0 0.0
      %3088 = vmatprep.subr.mxu0 0.0
      %3089 = vmatpush1.msra.mxu0 0.0
      %3090 = vmatprep.subr.mxu0 0.0
      %3091 = vmatpush1.msra.mxu0 0.0
      %3092 = vmatprep.subr.mxu0 0.0
      %3093 = vmatpush1.msra.mxu0 0.0
      %3094 = vmatprep.subr.mxu0 0.0
      %3095 = vmatpush1.msra.mxu0 0.0
      %3096 = vmatprep.subr.mxu0 0.0
      %3097 = vmatpush1.msra.mxu0 0.0
      %3098 = vmatprep.subr.mxu0 0.0
      %3099 = vmatpush1.msra.mxu0 0.0
      %3100 = vmatprep.subr.mxu0 0.0
      %3101 = vmatpush1.msra.mxu0 0.0
      %3102 = vmatprep.subr.mxu0 0.0
      %3103 = vmatpush1.msra.mxu0 0.0
      %3104 = vmatprep.subr.mxu0 0.0
      %3105 = vmatpush1.msra.mxu0 0.0
      %3106 = vmatprep.subr.mxu0 0.0
      %3107 = vmatpush1.msra.mxu0 0.0
      %3108 = vmatprep.subr.mxu0 0.0
      %3109 = vmatpush1.msra.mxu0 0.0
      %3110 = vmatprep.subr.mxu0 0.0
      %3111 = vmatpush1.msra.mxu0 0.0
      %3112 = vmatprep.subr.mxu0 0.0
      %3113 = vmatpush1.msra.mxu0 0.0
      %3114 = vmatprep.mubr.f32.mxu0 0.0
      %3115 = vmatmul.mubr.f32.gmra.mrb[0].mxu0 %v3048
      %v3116 = vpop.f32.mrb[0].mxu0
      %v3117 = vadd.f32 %v3045, %v3116
      %v3118 = vpop.f32.mrb[0].mxu0
      %3119 = vdwg.mxu0
      %v3120 = vmul.f32 %v3117, 0.35355338
      %v3122 = vlaneseq
      %v3123 = vshrl.u32 %v3122, 7
      %v3124 = vsub.s32 0, %v3123
      %v3125 = vrot.slane %v3033, %v3124
      %v3128 = vsel %vm1063, %v3021, 0
      %3130 = vmatprep.subr.mxu0 0.0
      %3131 = vmatpush1.msra.mxu0 %v3028
      %3132 = vmatprep.subr.mxu0 0.0
      %3133 = vmatpush1.msra.mxu0 %v3029
      %3134 = vmatprep.subr.mxu0 0.0
      %3135 = vmatpush1.msra.mxu0 %v3030
      %3136 = vmatprep.subr.mxu0 0.0
      %3137 = vmatpush1.msra.mxu0 %v3031
      %3138 = vmatprep.subr.mxu0 0.0
      %3139 = vmatpush1.msra.mxu0 0.0
      %3140 = vmatprep.subr.mxu0 0.0
      %3141 = vmatpush1.msra.mxu0 0.0
      %3142 = vmatprep.subr.mxu0 0.0
      %3143 = vmatpush1.msra.mxu0 0.0
      %3144 = vmatprep.subr.mxu0 0.0
      %3145 = vmatpush1.msra.mxu0 0.0
      %3146 = vmatprep.subr.mxu0 0.0
      %3147 = vmatpush1.msra.mxu0 0.0
      %3148 = vmatprep.subr.mxu0 0.0
      %3149 = vmatpush1.msra.mxu0 0.0
      %3150 = vmatprep.subr.mxu0 0.0
      %3151 = vmatpush1.msra.mxu0 0.0
      %3152 = vmatprep.subr.mxu0 0.0
      %3153 = vmatpush1.msra.mxu0 0.0
      %3154 = vmatprep.subr.mxu0 0.0
      %3155 = vmatpush1.msra.mxu0 0.0
      %3156 = vmatprep.subr.mxu0 0.0
      %3157 = vmatpush1.msra.mxu0 0.0
      %3158 = vmatprep.subr.mxu0 0.0
      %3159 = vmatpush1.msra.mxu0 0.0
      %3160 = vmatprep.subr.mxu0 0.0
      %3161 = vmatpush1.msra.mxu0 0.0
      %3162 = vmatprep.subr.mxu0 0.0
      %3163 = vmatpush1.msra.mxu0 0.0
      %3164 = vmatprep.subr.mxu0 0.0
      %3165 = vmatpush1.msra.mxu0 0.0
      %3166 = vmatprep.subr.mxu0 0.0
      %3167 = vmatpush1.msra.mxu0 0.0
      %3168 = vmatprep.subr.mxu0 0.0
      %3169 = vmatpush1.msra.mxu0 0.0
      %3170 = vmatprep.subr.mxu0 0.0
      %3171 = vmatpush1.msra.mxu0 0.0
      %3172 = vmatprep.subr.mxu0 0.0
      %3173 = vmatpush1.msra.mxu0 0.0
      %3174 = vmatprep.subr.mxu0 0.0
      %3175 = vmatpush1.msra.mxu0 0.0
      %3176 = vmatprep.subr.mxu0 0.0
      %3177 = vmatpush1.msra.mxu0 0.0
      %3178 = vmatprep.subr.mxu0 0.0
      %3179 = vmatpush1.msra.mxu0 0.0
      %3180 = vmatprep.subr.mxu0 0.0
      %3181 = vmatpush1.msra.mxu0 0.0
      %3182 = vmatprep.subr.mxu0 0.0
      %3183 = vmatpush1.msra.mxu0 0.0
      %3184 = vmatprep.subr.mxu0 0.0
      %3185 = vmatpush1.msra.mxu0 0.0
      %3186 = vmatprep.subr.mxu0 0.0
      %3187 = vmatpush1.msra.mxu0 0.0
      %3188 = vmatprep.subr.mxu0 0.0
      %3189 = vmatpush1.msra.mxu0 0.0
      %3190 = vmatprep.subr.mxu0 0.0
      %3191 = vmatpush1.msra.mxu0 0.0
      %3192 = vmatprep.subr.mxu0 0.0
      %3193 = vmatpush1.msra.mxu0 0.0
      %3194 = vmatprep.mubr.f32.mxu0 0.0
      %3195 = vmatmul.mubr.f32.gmra.mrb[0].mxu0 %v3128
      %v3196 = vpop.f32.mrb[0].mxu0
      %v3197 = vadd.f32 %v3125, %v3196
      %v3198 = vpop.f32.mrb[0].mxu0
      %3199 = vdwg.mxu0
      %v3201 = vlaneseq
      %v3202 = vshrl.u32 %v3201, 7
      %v3203 = vsub.s32 0, %v3202
      %v3204 = vrot.slane %v3040, %v3203
      %3206 = vmatprep.subr.mxu0 0.0
      %3207 = vmatpush1.msra.mxu0 %v3035
      %3208 = vmatprep.subr.mxu0 0.0
      %3209 = vmatpush1.msra.mxu0 %v3036
      %3210 = vmatprep.subr.mxu0 0.0
      %3211 = vmatpush1.msra.mxu0 %v3037
      %3212 = vmatprep.subr.mxu0 0.0
      %3213 = vmatpush1.msra.mxu0 %v3038
      %3214 = vmatprep.subr.mxu0 0.0
      %3215 = vmatpush1.msra.mxu0 0.0
      %3216 = vmatprep.subr.mxu0 0.0
      %3217 = vmatpush1.msra.mxu0 0.0
      %3218 = vmatprep.subr.mxu0 0.0
      %3219 = vmatpush1.msra.mxu0 0.0
      %3220 = vmatprep.subr.mxu0 0.0
      %3221 = vmatpush1.msra.mxu0 0.0
      %3222 = vmatprep.subr.mxu0 0.0
      %3223 = vmatpush1.msra.mxu0 0.0
      %3224 = vmatprep.subr.mxu0 0.0
      %3225 = vmatpush1.msra.mxu0 0.0
      %3226 = vmatprep.subr.mxu0 0.0
      %3227 = vmatpush1.msra.mxu0 0.0
      %3228 = vmatprep.subr.mxu0 0.0
      %3229 = vmatpush1.msra.mxu0 0.0
      %3230 = vmatprep.subr.mxu0 0.0
      %3231 = vmatpush1.msra.mxu0 0.0
      %3232 = vmatprep.subr.mxu0 0.0
      %3233 = vmatpush1.msra.mxu0 0.0
      %3234 = vmatprep.subr.mxu0 0.0
      %3235 = vmatpush1.msra.mxu0 0.0
      %3236 = vmatprep.subr.mxu0 0.0
      %3237 = vmatpush1.msra.mxu0 0.0
      %3238 = vmatprep.subr.mxu0 0.0
      %3239 = vmatpush1.msra.mxu0 0.0
      %3240 = vmatprep.subr.mxu0 0.0
      %3241 = vmatpush1.msra.mxu0 0.0
      %3242 = vmatprep.subr.mxu0 0.0
      %3243 = vmatpush1.msra.mxu0 0.0
      %3244 = vmatprep.subr.mxu0 0.0
      %3245 = vmatpush1.msra.mxu0 0.0
      %3246 = vmatprep.subr.mxu0 0.0
      %3247 = vmatpush1.msra.mxu0 0.0
      %3248 = vmatprep.subr.mxu0 0.0
      %3249 = vmatpush1.msra.mxu0 0.0
      %3250 = vmatprep.subr.mxu0 0.0
      %3251 = vmatpush1.msra.mxu0 0.0
      %3252 = vmatprep.subr.mxu0 0.0
      %3253 = vmatpush1.msra.mxu0 0.0
      %3254 = vmatprep.subr.mxu0 0.0
      %3255 = vmatpush1.msra.mxu0 0.0
      %3256 = vmatprep.subr.mxu0 0.0
      %3257 = vmatpush1.msra.mxu0 0.0
      %3258 = vmatprep.subr.mxu0 0.0
      %3259 = vmatpush1.msra.mxu0 0.0
      %3260 = vmatprep.subr.mxu0 0.0
      %3261 = vmatpush1.msra.mxu0 0.0
      %3262 = vmatprep.subr.mxu0 0.0
      %3263 = vmatpush1.msra.mxu0 0.0
      %3264 = vmatprep.subr.mxu0 0.0
      %3265 = vmatpush1.msra.mxu0 0.0
      %3266 = vmatprep.subr.mxu0 0.0
      %3267 = vmatpush1.msra.mxu0 0.0
      %3268 = vmatprep.subr.mxu0 0.0
      %3269 = vmatpush1.msra.mxu0 0.0
      %3270 = vmatprep.mubr.f32.mxu0 0.0
      %3271 = vmatmul.mubr.f32.gmra.mrb[0].mxu0 %v3128
      %v3272 = vpop.f32.mrb[0].mxu0
      %v3273 = vadd.f32 %v3204, %v3272
      %v3274 = vpop.f32.mrb[0].mxu0
      %3275 = vdwg.mxu0
      %v3277 = vsel %vm1290, %v3120, 0
      %v3280 = vsel %vm1290, %v3197, 0
      %3282 = vmatprep.subr.mxu0 0.0
      %3283 = vmatpush1.xpose.msra.mxu0 %v3280
      %3284 = vmatprep.subr.mxu0 0.0
      %3285 = vmatpush1.xpose.msra.mxu0 0.0
      %3286 = vmatprep.subr.mxu0 0.0
      %3287 = vmatpush1.xpose.msra.mxu0 0.0
      %3288 = vmatprep.subr.mxu0 0.0
      %3289 = vmatpush1.xpose.msra.mxu0 0.0
      %3290 = vmatprep.subr.mxu0 0.0
      %3291 = vmatpush1.xpose.msra.mxu0 0.0
      %3292 = vmatprep.subr.mxu0 0.0
      %3293 = vmatpush1.xpose.msra.mxu0 0.0
      %3294 = vmatprep.subr.mxu0 0.0
      %3295 = vmatpush1.xpose.msra.mxu0 0.0
      %3296 = vmatprep.subr.mxu0 0.0
      %3297 = vmatpush1.xpose.msra.mxu0 0.0
      %3298 = vmatprep.subr.mxu0 0.0
      %3299 = vmatpush1.xpose.msra.mxu0 0.0
      %3300 = vmatprep.subr.mxu0 0.0
      %3301 = vmatpush1.xpose.msra.mxu0 0.0
      %3302 = vmatprep.subr.mxu0 0.0
      %3303 = vmatpush1.xpose.msra.mxu0 0.0
      %3304 = vmatprep.subr.mxu0 0.0
      %3305 = vmatpush1.xpose.msra.mxu0 0.0
      %3306 = vmatprep.subr.mxu0 0.0
      %3307 = vmatpush1.xpose.msra.mxu0 0.0
      %3308 = vmatprep.subr.mxu0 0.0
      %3309 = vmatpush1.xpose.msra.mxu0 0.0
      %3310 = vmatprep.subr.mxu0 0.0
      %3311 = vmatpush1.xpose.msra.mxu0 0.0
      %3312 = vmatprep.subr.mxu0 0.0
      %3313 = vmatpush1.xpose.msra.mxu0 0.0
      %3314 = vmatprep.subr.mxu0 0.0
      %3315 = vmatpush1.xpose.msra.mxu0 0.0
      %3316 = vmatprep.subr.mxu0 0.0
      %3317 = vmatpush1.xpose.msra.mxu0 0.0
      %3318 = vmatprep.subr.mxu0 0.0
      %3319 = vmatpush1.xpose.msra.mxu0 0.0
      %3320 = vmatprep.subr.mxu0 0.0
      %3321 = vmatpush1.xpose.msra.mxu0 0.0
      %3322 = vmatprep.subr.mxu0 0.0
      %3323 = vmatpush1.xpose.msra.mxu0 0.0
      %3324 = vmatprep.subr.mxu0 0.0
      %3325 = vmatpush1.xpose.msra.mxu0 0.0
      %3326 = vmatprep.subr.mxu0 0.0
      %3327 = vmatpush1.xpose.msra.mxu0 0.0
      %3328 = vmatprep.subr.mxu0 0.0
      %3329 = vmatpush1.xpose.msra.mxu0 0.0
      %3330 = vmatprep.subr.mxu0 0.0
      %3331 = vmatpush1.xpose.msra.mxu0 0.0
      %3332 = vmatprep.subr.mxu0 0.0
      %3333 = vmatpush1.xpose.msra.mxu0 0.0
      %3334 = vmatprep.subr.mxu0 0.0
      %3335 = vmatpush1.xpose.msra.mxu0 0.0
      %3336 = vmatprep.subr.mxu0 0.0
      %3337 = vmatpush1.xpose.msra.mxu0 0.0
      %3338 = vmatprep.subr.mxu0 0.0
      %3339 = vmatpush1.xpose.msra.mxu0 0.0
      %3340 = vmatprep.subr.mxu0 0.0
      %3341 = vmatpush1.xpose.msra.mxu0 0.0
      %3342 = vmatprep.subr.mxu0 0.0
      %3343 = vmatpush1.xpose.msra.mxu0 0.0
      %3344 = vmatprep.subr.mxu0 0.0
      %3345 = vmatpush1.xpose.msra.mxu0 0.0
      %3346 = vmatprep.mubr.f32.mxu0 0.0
      %3347 = vmatmul.mubr.f32.gmra.mrb[0].mxu0 %v3277
      %v3348 = vpop.f32.mrb[0].mxu0
      %v3349 = vadd.f32 0.0, %v3348
      %v3350 = vpop.f32.mrb[0].mxu0
      %3351 = vdwg.mxu0
      %v3352 = vsel %vm1290, %v3349, -inf
      %3353 = vmax.xlane.f32.xlu0 %v3352
      %v3354 = vpop.xlane.xlu0 %3353
      %v3355 = vsub.f32 %v3349, %v3354
      %v3356 = vmul.f32 %v3355, 1.442695
      %v3357 = vpow.pop %v3356
      %v3358 = vsel %vm1290, %v3357, 0.0
      %3359 = vadd.xlane.f32.xlu0 %v3358
      %v3360 = vpop.xlane.xlu0 %3359
      %v3361 = vrcp.pop %v3360
      %v3362 = vmul.f32 %v3357, %v3361
      %v3364 = vsel %vm1290, %v3362, 0
      %3366 = vmatprep.subr.mxu0 0.0
      %3367 = vmatpush1.msra.mxu0 %v3273
      %3368 = vmatprep.subr.mxu0 0.0
      %3369 = vmatpush1.msra.mxu0 0.0
      %3370 = vmatprep.subr.mxu0 0.0
      %3371 = vmatpush1.msra.mxu0 0.0
      %3372 = vmatprep.subr.mxu0 0.0
      %3373 = vmatpush1.msra.mxu0 0.0
      %3374 = vmatprep.subr.mxu0 0.0
      %3375 = vmatpush1.msra.mxu0 0.0
      %3376 = vmatprep.subr.mxu0 0.0
      %3377 = vmatpush1.msra.mxu0 0.0
      %3378 = vmatprep.subr.mxu0 0.0
      %3379 = vmatpush1.msra.mxu0 0.0
      %3380 = vmatprep.subr.mxu0 0.0
      %3381 = vmatpush1.msra.mxu0 0.0
      %3382 = vmatprep.subr.mxu0 0.0
      %3383 = vmatpush1.msra.mxu0 0.0
      %3384 = vmatprep.subr.mxu0 0.0
      %3385 = vmatpush1.msra.mxu0 0.0
      %3386 = vmatprep.subr.mxu0 0.0
      %3387 = vmatpush1.msra.mxu0 0.0
      %3388 = vmatprep.subr.mxu0 0.0
      %3389 = vmatpush1.msra.mxu0 0.0
      %3390 = vmatprep.subr.mxu0 0.0
      %3391 = vmatpush1.msra.mxu0 0.0
      %3392 = vmatprep.subr.mxu0 0.0
      %3393 = vmatpush1.msra.mxu0 0.0
      %3394 = vmatprep.subr.mxu0 0.0
      %3395 = vmatpush1.msra.mxu0 0.0
      %3396 = vmatprep.subr.mxu0 0.0
      %3397 = vmatpush1.msra.mxu0 0.0
      %3398 = vmatprep.subr.mxu0 0.0
      %3399 = vmatpush1.msra.mxu0 0.0
      %3400 = vmatprep.subr.mxu0 0.0
      %3401 = vmatpush1.msra.mxu0 0.0
      %3402 = vmatprep.subr.mxu0 0.0
      %3403 = vmatpush1.msra.mxu0 0.0
      %3404 = vmatprep.subr.mxu0 0.0
      %3405 = vmatpush1.msra.mxu0 0.0
      %3406 = vmatprep.subr.mxu0 0.0
      %3407 = vmatpush1.msra.mxu0 0.0
      %3408 = vmatprep.subr.mxu0 0.0
      %3409 = vmatpush1.msra.mxu0 0.0
      %3410 = vmatprep.subr.mxu0 0.0
      %3411 = vmatpush1.msra.mxu0 0.0
      %3412 = vmatprep.subr.mxu0 0.0
      %3413 = vmatpush1.msra.mxu0 0.0
      %3414 = vmatprep.subr.mxu0 0.0
      %3415 = vmatpush1.msra.mxu0 0.0
      %3416 = vmatprep.subr.mxu0 0.0
      %3417 = vmatpush1.msra.mxu0 0.0
      %3418 = vmatprep.subr.mxu0 0.0
      %3419 = vmatpush1.msra.mxu0 0.0
      %3420 = vmatprep.subr.mxu0 0.0
      %3421 = vmatpush1.msra.mxu0 0.0
      %3422 = vmatprep.subr.mxu0 0.0
      %3423 = vmatpush1.msra.mxu0 0.0
      %3424 = vmatprep.subr.mxu0 0.0
      %3425 = vmatpush1.msra.mxu0 0.0
      %3426 = vmatprep.subr.mxu0 0.0
      %3427 = vmatpush1.msra.mxu0 0.0
      %3428 = vmatprep.subr.mxu0 0.0
      %3429 = vmatpush1.msra.mxu0 0.0
      %3430 = vmatprep.mubr.f32.mxu0 0.0
      %3431 = vmatmul.mubr.f32.gmra.mrb[0].mxu0 %v3364
      %v3432 = vpop.f32.mrb[0].mxu0
      %v3433 = vadd.f32 0.0, %v3432
      %v3434 = vpop.f32.mrb[0].mxu0
      %3435 = vdwg.mxu0
      %v3436 = vld [vmem:[%s987] sm:$0xff]
      %s3437 = scalar_lea.vmem %s978, 32
      %v3438 = vld [vmem:[%s3437] sm:$0xff]
      %v3439 = vld [vmem:[%s3437 + $0x8] sm:$0xff]
      %v3440 = vld [vmem:[%s3437 + $0x10] sm:$0xff]
      %v3441 = vld [vmem:[%s3437 + $0x18] sm:$0xff]
      %s3442 = scalar_lea.vmem %s982, 1
      %v3443 = vld [vmem:[%s3442] sm:$0x1]
      %s3444 = scalar_lea.vmem %s978, 160
      %v3445 = vld [vmem:[%s3444] sm:$0xff]
      %v3446 = vld [vmem:[%s3444 + $0x8] sm:$0xff]
      %v3447 = vld [vmem:[%s3444 + $0x10] sm:$0xff]
      %v3448 = vld [vmem:[%s3444 + $0x18] sm:$0xff]
      %s3449 = scalar_lea.vmem %s982, 5
      %v3450 = vld [vmem:[%s3449] sm:$0x1]
      %s3451 = scalar_lea.vmem %s978, 288
      %v3452 = vld [vmem:[%s3451] sm:$0xff]
      %v3453 = vld [vmem:[%s3451 + $0x8] sm:$0xff]
      %v3454 = vld [vmem:[%s3451 + $0x10] sm:$0xff]
      %v3455 = vld [vmem:[%s3451 + $0x18] sm:$0xff]
      %s3456 = scalar_lea.vmem %s982, 9
      %v3457 = vld [vmem:[%s3456] sm:$0x1]
      %v3459 = vlaneseq
      %v3460 = vshrl.u32 %v3459, 7
      %v3461 = vsub.s32 0, %v3460
      %v3462 = vrot.slane %v3443, %v3461
      %3464 = vmatprep.subr.mxu0 0.0
      %3465 = vmatpush1.msra.mxu0 %v3438
      %3466 = vmatprep.subr.mxu0 0.0
      %3467 = vmatpush1.msra.mxu0 %v3439
      %3468 = vmatprep.subr.mxu0 0.0
      %3469 = vmatpush1.msra.mxu0 %v3440
      %3470 = vmatprep.subr.mxu0 0.0
      %3471 = vmatpush1.msra.mxu0 %v3441
      %3472 = vmatprep.subr.mxu0 0.0
      %3473 = vmatpush1.msra.mxu0 0.0
      %3474 = vmatprep.subr.mxu0 0.0
      %3475 = vmatpush1.msra.mxu0 0.0
      %3476 = vmatprep.subr.mxu0 0.0
      %3477 = vmatpush1.msra.mxu0 0.0
      %3478 = vmatprep.subr.mxu0 0.0
      %3479 = vmatpush1.msra.mxu0 0.0
      %3480 = vmatprep.subr.mxu0 0.0
      %3481 = vmatpush1.msra.mxu0 0.0
      %3482 = vmatprep.subr.mxu0 0.0
      %3483 = vmatpush1.msra.mxu0 0.0
      %3484 = vmatprep.subr.mxu0 0.0
      %3485 = vmatpush1.msra.mxu0 0.0
      %3486 = vmatprep.subr.mxu0 0.0
      %3487 = vmatpush1.msra.mxu0 0.0
      %3488 = vmatprep.subr.mxu0 0.0
      %3489 = vmatpush1.msra.mxu0 0.0
      %3490 = vmatprep.subr.mxu0 0.0
      %3491 = vmatpush1.msra.mxu0 0.0
      %3492 = vmatprep.subr.mxu0 0.0
      %3493 = vmatpush1.msra.mxu0 0.0
      %3494 = vmatprep.subr.mxu0 0.0
      %3495 = vmatpush1.msra.mxu0 0.0
      %3496 = vmatprep.subr.mxu0 0.0
      %3497 = vmatpush1.msra.mxu0 0.0
      %3498 = vmatprep.subr.mxu0 0.0
      %3499 = vmatpush1.msra.mxu0 0.0
      %3500 = vmatprep.subr.mxu0 0.0
      %3501 = vmatpush1.msra.mxu0 0.0
      %3502 = vmatprep.subr.mxu0 0.0
      %3503 = vmatpush1.msra.mxu0 0.0
      %3504 = vmatprep.subr.mxu0 0.0
      %3505 = vmatpush1.msra.mxu0 0.0
      %3506 = vmatprep.subr.mxu0 0.0
      %3507 = vmatpush1.msra.mxu0 0.0
      %3508 = vmatprep.subr.mxu0 0.0
      %3509 = vmatpush1.msra.mxu0 0.0
      %3510 = vmatprep.subr.mxu0 0.0
      %3511 = vmatpush1.msra.mxu0 0.0
      %3512 = vmatprep.subr.mxu0 0.0
      %3513 = vmatpush1.msra.mxu0 0.0
      %3514 = vmatprep.subr.mxu0 0.0
      %3515 = vmatpush1.msra.mxu0 0.0
      %3516 = vmatprep.subr.mxu0 0.0
      %3517 = vmatpush1.msra.mxu0 0.0
      %3518 = vmatprep.subr.mxu0 0.0
      %3519 = vmatpush1.msra.mxu0 0.0
      %3520 = vmatprep.subr.mxu0 0.0
      %3521 = vmatpush1.msra.mxu0 0.0
      %3522 = vmatprep.subr.mxu0 0.0
      %3523 = vmatpush1.msra.mxu0 0.0
      %3524 = vmatprep.subr.mxu0 0.0
      %3525 = vmatpush1.msra.mxu0 0.0
      %3526 = vmatprep.subr.mxu0 0.0
      %3527 = vmatpush1.msra.mxu0 0.0
      %3528 = vmatprep.mubr.f32.mxu0 0.0
      %3529 = vmatmul.mubr.f32.gmra.mrb[0].mxu0 %v3048
      %v3530 = vpop.f32.mrb[0].mxu0
      %v3531 = vadd.f32 %v3462, %v3530
      %v3532 = vpop.f32.mrb[0].mxu0
      %3533 = vdwg.mxu0
      %v3534 = vmul.f32 %v3531, 0.35355338
      %v3536 = vlaneseq
      %v3537 = vshrl.u32 %v3536, 7
      %v3538 = vsub.s32 0, %v3537
      %v3539 = vrot.slane %v3450, %v3538
      %3541 = vmatprep.subr.mxu0 0.0
      %3542 = vmatpush1.msra.mxu0 %v3445
      %3543 = vmatprep.subr.mxu0 0.0
      %3544 = vmatpush1.msra.mxu0 %v3446
      %3545 = vmatprep.subr.mxu0 0.0
      %3546 = vmatpush1.msra.mxu0 %v3447
      %3547 = vmatprep.subr.mxu0 0.0
      %3548 = vmatpush1.msra.mxu0 %v3448
      %3549 = vmatprep.subr.mxu0 0.0
      %3550 = vmatpush1.msra.mxu0 0.0
      %3551 = vmatprep.subr.mxu0 0.0
      %3552 = vmatpush1.msra.mxu0 0.0
      %3553 = vmatprep.subr.mxu0 0.0
      %3554 = vmatpush1.msra.mxu0 0.0
      %3555 = vmatprep.subr.mxu0 0.0
      %3556 = vmatpush1.msra.mxu0 0.0
      %3557 = vmatprep.subr.mxu0 0.0
      %3558 = vmatpush1.msra.mxu0 0.0
      %3559 = vmatprep.subr.mxu0 0.0
      %3560 = vmatpush1.msra.mxu0 0.0
      %3561 = vmatprep.subr.mxu0 0.0
      %3562 = vmatpush1.msra.mxu0 0.0
      %3563 = vmatprep.subr.mxu0 0.0
      %3564 = vmatpush1.msra.mxu0 0.0
      %3565 = vmatprep.subr.mxu0 0.0
      %3566 = vmatpush1.msra.mxu0 0.0
      %3567 = vmatprep.subr.mxu0 0.0
      %3568 = vmatpush1.msra.mxu0 0.0
      %3569 = vmatprep.subr.mxu0 0.0
      %3570 = vmatpush1.msra.mxu0 0.0
      %3571 = vmatprep.subr.mxu0 0.0
      %3572 = vmatpush1.msra.mxu0 0.0
      %3573 = vmatprep.subr.mxu0 0.0
      %3574 = vmatpush1.msra.mxu0 0.0
      %3575 = vmatprep.subr.mxu0 0.0
      %3576 = vmatpush1.msra.mxu0 0.0
      %3577 = vmatprep.subr.mxu0 0.0
      %3578 = vmatpush1.msra.mxu0 0.0
      %3579 = vmatprep.subr.mxu0 0.0
      %3580 = vmatpush1.msra.mxu0 0.0
      %3581 = vmatprep.subr.mxu0 0.0
      %3582 = vmatpush1.msra.mxu0 0.0
      %3583 = vmatprep.subr.mxu0 0.0
      %3584 = vmatpush1.msra.mxu0 0.0
      %3585 = vmatprep.subr.mxu0 0.0
      %3586 = vmatpush1.msra.mxu0 0.0
      %3587 = vmatprep.subr.mxu0 0.0
      %3588 = vmatpush1.msra.mxu0 0.0
      %3589 = vmatprep.subr.mxu0 0.0
      %3590 = vmatpush1.msra.mxu0 0.0
      %3591 = vmatprep.subr.mxu0 0.0
      %3592 = vmatpush1.msra.mxu0 0.0
      %3593 = vmatprep.subr.mxu0 0.0
      %3594 = vmatpush1.msra.mxu0 0.0
      %3595 = vmatprep.subr.mxu0 0.0
      %3596 = vmatpush1.msra.mxu0 0.0
      %3597 = vmatprep.subr.mxu0 0.0
      %3598 = vmatpush1.msra.mxu0 0.0
      %3599 = vmatprep.subr.mxu0 0.0
      %3600 = vmatpush1.msra.mxu0 0.0
      %3601 = vmatprep.subr.mxu0 0.0
      %3602 = vmatpush1.msra.mxu0 0.0
      %3603 = vmatprep.subr.mxu0 0.0
      %3604 = vmatpush1.msra.mxu0 0.0
      %3605 = vmatprep.mubr.f32.mxu0 0.0
      %3606 = vmatmul.mubr.f32.gmra.mrb[0].mxu0 %v3128
      %v3607 = vpop.f32.mrb[0].mxu0
      %v3608 = vadd.f32 %v3539, %v3607
      %v3609 = vpop.f32.mrb[0].mxu0
      %3610 = vdwg.mxu0
      %v3612 = vlaneseq
      %v3613 = vshrl.u32 %v3612, 7
      %v3614 = vsub.s32 0, %v3613
      %v3615 = vrot.slane %v3457, %v3614
      %3617 = vmatprep.subr.mxu0 0.0
      %3618 = vmatpush1.msra.mxu0 %v3452
      %3619 = vmatprep.subr.mxu0 0.0
      %3620 = vmatpush1.msra.mxu0 %v3453
      %3621 = vmatprep.subr.mxu0 0.0
      %3622 = vmatpush1.msra.mxu0 %v3454
      %3623 = vmatprep.subr.mxu0 0.0
      %3624 = vmatpush1.msra.mxu0 %v3455
      %3625 = vmatprep.subr.mxu0 0.0
      %3626 = vmatpush1.msra.mxu0 0.0
      %3627 = vmatprep.subr.mxu0 0.0
      %3628 = vmatpush1.msra.mxu0 0.0
      %3629 = vmatprep.subr.mxu0 0.0
      %3630 = vmatpush1.msra.mxu0 0.0
      %3631 = vmatprep.subr.mxu0 0.0
      %3632 = vmatpush1.msra.mxu0 0.0
      %3633 = vmatprep.subr.mxu0 0.0
      %3634 = vmatpush1.msra.mxu0 0.0
      %3635 = vmatprep.subr.mxu0 0.0
      %3636 = vmatpush1.msra.mxu0 0.0
      %3637 = vmatprep.subr.mxu0 0.0
      %3638 = vmatpush1.msra.mxu0 0.0
      %3639 = vmatprep.subr.mxu0 0.0
      %3640 = vmatpush1.msra.mxu0 0.0
      %3641 = vmatprep.subr.mxu0 0.0
      %3642 = vmatpush1.msra.mxu0 0.0
      %3643 = vmatprep.subr.mxu0 0.0
      %3644 = vmatpush1.msra.mxu0 0.0
      %3645 = vmatprep.subr.mxu0 0.0
      %3646 = vmatpush1.msra.mxu0 0.0
      %3647 = vmatprep.subr.mxu0 0.0
      %3648 = vmatpush1.msra.mxu0 0.0
      %3649 = vmatprep.subr.mxu0 0.0
      %3650 = vmatpush1.msra.mxu0 0.0
      %3651 = vmatprep.subr.mxu0 0.0
      %3652 = vmatpush1.msra.mxu0 0.0
      %3653 = vmatprep.subr.mxu0 0.0
      %3654 = vmatpush1.msra.mxu0 0.0
      %3655 = vmatprep.subr.mxu0 0.0
      %3656 = vmatpush1.msra.mxu0 0.0
      %3657 = vmatprep.subr.mxu0 0.0
      %3658 = vmatpush1.msra.mxu0 0.0
      %3659 = vmatprep.subr.mxu0 0.0
      %3660 = vmatpush1.msra.mxu0 0.0
      %3661 = vmatprep.subr.mxu0 0.0
      %3662 = vmatpush1.msra.mxu0 0.0
      %3663 = vmatprep.subr.mxu0 0.0
      %3664 = vmatpush1.msra.mxu0 0.0
      %3665 = vmatprep.subr.mxu0 0.0
      %3666 = vmatpush1.msra.mxu0 0.0
      %3667 = vmatprep.subr.mxu0 0.0
      %3668 = vmatpush1.msra.mxu0 0.0
      %3669 = vmatprep.subr.mxu0 0.0
      %3670 = vmatpush1.msra.mxu0 0.0
      %3671 = vmatprep.subr.mxu0 0.0
      %3672 = vmatpush1.msra.mxu0 0.0
      %3673 = vmatprep.subr.mxu0 0.0
      %3674 = vmatpush1.msra.mxu0 0.0
      %3675 = vmatprep.subr.mxu0 0.0
      %3676 = vmatpush1.msra.mxu0 0.0
      %3677 = vmatprep.subr.mxu0 0.0
      %3678 = vmatpush1.msra.mxu0 0.0
      %3679 = vmatprep.subr.mxu0 0.0
      %3680 = vmatpush1.msra.mxu0 0.0
      %3681 = vmatprep.mubr.f32.mxu0 0.0
      %3682 = vmatmul.mubr.f32.gmra.mrb[0].mxu0 %v3128
      %v3683 = vpop.f32.mrb[0].mxu0
      %v3684 = vadd.f32 %v3615, %v3683
      %v3685 = vpop.f32.mrb[0].mxu0
      %3686 = vdwg.mxu0
      %v3688 = vsel %vm1290, %v3534, 0
      %v3691 = vsel %vm1290, %v3608, 0
      %3693 = vmatprep.subr.mxu0 0.0
      %3694 = vmatpush1.xpose.msra.mxu0 %v3691
      %3695 = vmatprep.subr.mxu0 0.0
      %3696 = vmatpush1.xpose.msra.mxu0 0.0
      %3697 = vmatprep.subr.mxu0 0.0
      %3698 = vmatpush1.xpose.msra.mxu0 0.0
      %3699 = vmatprep.subr.mxu0 0.0
      %3700 = vmatpush1.xpose.msra.mxu0 0.0
      %3701 = vmatprep.subr.mxu0 0.0
      %3702 = vmatpush1.xpose.msra.mxu0 0.0
      %3703 = vmatprep.subr.mxu0 0.0
      %3704 = vmatpush1.xpose.msra.mxu0 0.0
      %3705 = vmatprep.subr.mxu0 0.0
      %3706 = vmatpush1.xpose.msra.mxu0 0.0
      %3707 = vmatprep.subr.mxu0 0.0
      %3708 = vmatpush1.xpose.msra.mxu0 0.0
      %3709 = vmatprep.subr.mxu0 0.0
      %3710 = vmatpush1.xpose.msra.mxu0 0.0
      %3711 = vmatprep.subr.mxu0 0.0
      %3712 = vmatpush1.xpose.msra.mxu0 0.0
      %3713 = vmatprep.subr.mxu0 0.0
      %3714 = vmatpush1.xpose.msra.mxu0 0.0
      %3715 = vmatprep.subr.mxu0 0.0
      %3716 = vmatpush1.xpose.msra.mxu0 0.0
      %3717 = vmatprep.subr.mxu0 0.0
      %3718 = vmatpush1.xpose.msra.mxu0 0.0
      %3719 = vmatprep.subr.mxu0 0.0
      %3720 = vmatpush1.xpose.msra.mxu0 0.0
      %3721 = vmatprep.subr.mxu0 0.0
      %3722 = vmatpush1.xpose.msra.mxu0 0.0
      %3723 = vmatprep.subr.mxu0 0.0
      %3724 = vmatpush1.xpose.msra.mxu0 0.0
      %3725 = vmatprep.subr.mxu0 0.0
      %3726 = vmatpush1.xpose.msra.mxu0 0.0
      %3727 = vmatprep.subr.mxu0 0.0
      %3728 = vmatpush1.xpose.msra.mxu0 0.0
      %3729 = vmatprep.subr.mxu0 0.0
      %3730 = vmatpush1.xpose.msra.mxu0 0.0
      %3731 = vmatprep.subr.mxu0 0.0
      %3732 = vmatpush1.xpose.msra.mxu0 0.0
      %3733 = vmatprep.subr.mxu0 0.0
      %3734 = vmatpush1.xpose.msra.mxu0 0.0
      %3735 = vmatprep.subr.mxu0 0.0
      %3736 = vmatpush1.xpose.msra.mxu0 0.0
      %3737 = vmatprep.subr.mxu0 0.0
      %3738 = vmatpush1.xpose.msra.mxu0 0.0
      %3739 = vmatprep.subr.mxu0 0.0
      %3740 = vmatpush1.xpose.msra.mxu0 0.0
      %3741 = vmatprep.subr.mxu0 0.0
      %3742 = vmatpush1.xpose.msra.mxu0 0.0
      %3743 = vmatprep.subr.mxu0 0.0
      %3744 = vmatpush1.xpose.msra.mxu0 0.0
      %3745 = vmatprep.subr.mxu0 0.0
      %3746 = vmatpush1.xpose.msra.mxu0 0.0
      %3747 = vmatprep.subr.mxu0 0.0
      %3748 = vmatpush1.xpose.msra.mxu0 0.0
      %3749 = vmatprep.subr.mxu0 0.0
      %3750 = vmatpush1.xpose.msra.mxu0 0.0
      %3751 = vmatprep.subr.mxu0 0.0
      %3752 = vmatpush1.xpose.msra.mxu0 0.0
      %3753 = vmatprep.subr.mxu0 0.0
      %3754 = vmatpush1.xpose.msra.mxu0 0.0
      %3755 = vmatprep.subr.mxu0 0.0
      %3756 = vmatpush1.xpose.msra.mxu0 0.0
      %3757 = vmatprep.mubr.f32.mxu0 0.0
      %3758 = vmatmul.mubr.f32.gmra.mrb[0].mxu0 %v3688
      %v3759 = vpop.f32.mrb[0].mxu0
      %v3760 = vadd.f32 0.0, %v3759
      %v3761 = vpop.f32.mrb[0].mxu0
      %3762 = vdwg.mxu0
      %v3763 = vsel %vm1290, %v3760, -inf
      %3764 = vmax.xlane.f32.xlu0 %v3763
      %v3765 = vpop.xlane.xlu0 %3764
      %v3766 = vsub.f32 %v3760, %v3765
      %v3767 = vmul.f32 %v3766, 1.442695
      %v3768 = vpow.pop %v3767
      %v3769 = vsel %vm1290, %v3768, 0.0
      %3770 = vadd.xlane.f32.xlu0 %v3769
      %v3771 = vpop.xlane.xlu0 %3770
      %v3772 = vrcp.pop %v3771
      %v3773 = vmul.f32 %v3768, %v3772
      %v3775 = vsel %vm1290, %v3773, 0
      %3777 = vmatprep.subr.mxu0 0.0
      %3778 = vmatpush1.msra.mxu0 %v3684
      %3779 = vmatprep.subr.mxu0 0.0
      %3780 = vmatpush1.msra.mxu0 0.0
      %3781 = vmatprep.subr.mxu0 0.0
      %3782 = vmatpush1.msra.mxu0 0.0
      %3783 = vmatprep.subr.mxu0 0.0
      %3784 = vmatpush1.msra.mxu0 0.0
      %3785 = vmatprep.subr.mxu0 0.0
      %3786 = vmatpush1.msra.mxu0 0.0
      %3787 = vmatprep.subr.mxu0 0.0
      %3788 = vmatpush1.msra.mxu0 0.0
      %3789 = vmatprep.subr.mxu0 0.0
      %3790 = vmatpush1.msra.mxu0 0.0
      %3791 = vmatprep.subr.mxu0 0.0
      %3792 = vmatpush1.msra.mxu0 0.0
      %3793 = vmatprep.subr.mxu0 0.0
      %3794 = vmatpush1.msra.mxu0 0.0
      %3795 = vmatprep.subr.mxu0 0.0
      %3796 = vmatpush1.msra.mxu0 0.0
      %3797 = vmatprep.subr.mxu0 0.0
      %3798 = vmatpush1.msra.mxu0 0.0
      %3799 = vmatprep.subr.mxu0 0.0
      %3800 = vmatpush1.msra.mxu0 0.0
      %3801 = vmatprep.subr.mxu0 0.0
      %3802 = vmatpush1.msra.mxu0 0.0
      %3803 = vmatprep.subr.mxu0 0.0
      %3804 = vmatpush1.msra.mxu0 0.0
      %3805 = vmatprep.subr.mxu0 0.0
      %3806 = vmatpush1.msra.mxu0 0.0
      %3807 = vmatprep.subr.mxu0 0.0
      %3808 = vmatpush1.msra.mxu0 0.0
      %3809 = vmatprep.subr.mxu0 0.0
      %3810 = vmatpush1.msra.mxu0 0.0
      %3811 = vmatprep.subr.mxu0 0.0
      %3812 = vmatpush1.msra.mxu0 0.0
      %3813 = vmatprep.subr.mxu0 0.0
      %3814 = vmatpush1.msra.mxu0 0.0
      %3815 = vmatprep.subr.mxu0 0.0
      %3816 = vmatpush1.msra.mxu0 0.0
      %3817 = vmatprep.subr.mxu0 0.0
      %3818 = vmatpush1.msra.mxu0 0.0
      %3819 = vmatprep.subr.mxu0 0.0
      %3820 = vmatpush1.msra.mxu0 0.0
      %3821 = vmatprep.subr.mxu0 0.0
      %3822 = vmatpush1.msra.mxu0 0.0
      %3823 = vmatprep.subr.mxu0 0.0
      %3824 = vmatpush1.msra.mxu0 0.0
      %3825 = vmatprep.subr.mxu0 0.0
      %3826 = vmatpush1.msra.mxu0 0.0
      %3827 = vmatprep.subr.mxu0 0.0
      %3828 = vmatpush1.msra.mxu0 0.0
      %3829 = vmatprep.subr.mxu0 0.0
      %3830 = vmatpush1.msra.mxu0 0.0
      %3831 = vmatprep.subr.mxu0 0.0
      %3832 = vmatpush1.msra.mxu0 0.0
      %3833 = vmatprep.subr.mxu0 0.0
      %3834 = vmatpush1.msra.mxu0 0.0
      %3835 = vmatprep.subr.mxu0 0.0
      %3836 = vmatpush1.msra.mxu0 0.0
      %3837 = vmatprep.subr.mxu0 0.0
      %3838 = vmatpush1.msra.mxu0 0.0
      %3839 = vmatprep.subr.mxu0 0.0
      %3840 = vmatpush1.msra.mxu0 0.0
      %3841 = vmatprep.mubr.f32.mxu0 0.0
      %3842 = vmatmul.mubr.f32.gmra.mrb[0].mxu0 %v3775
      %v3843 = vpop.f32.mrb[0].mxu0
      %v3844 = vadd.f32 0.0, %v3843
      %v3845 = vpop.f32.mrb[0].mxu0
      %3846 = vdwg.mxu0
      %s3847 = scalar_lea.vmem %s987, 8
      %v3848 = vld [vmem:[%s3847] sm:$0xff]
      %v3850 = vsel %vm1290, %v3844, 0
      %3852 = vmatprep.subr.mxu0 0.0
      %3853 = vmatpush1.msra.mxu0 %v3848
      %3854 = vmatprep.subr.mxu0 0.0
      %3855 = vmatpush1.msra.mxu0 0.0
      %3856 = vmatprep.subr.mxu0 0.0
      %3857 = vmatpush1.msra.mxu0 0.0
      %3858 = vmatprep.subr.mxu0 0.0
      %3859 = vmatpush1.msra.mxu0 0.0
      %3860 = vmatprep.subr.mxu0 0.0
      %3861 = vmatpush1.msra.mxu0 0.0
      %3862 = vmatprep.subr.mxu0 0.0
      %3863 = vmatpush1.msra.mxu0 0.0
      %3864 = vmatprep.subr.mxu0 0.0
      %3865 = vmatpush1.msra.mxu0 0.0
      %3866 = vmatprep.subr.mxu0 0.0
      %3867 = vmatpush1.msra.mxu0 0.0
      %3868 = vmatprep.subr.mxu0 0.0
      %3869 = vmatpush1.msra.mxu0 0.0
      %3870 = vmatprep.subr.mxu0 0.0
      %3871 = vmatpush1.msra.mxu0 0.0
      %3872 = vmatprep.subr.mxu0 0.0
      %3873 = vmatpush1.msra.mxu0 0.0
      %3874 = vmatprep.subr.mxu0 0.0
      %3875 = vmatpush1.msra.mxu0 0.0
      %3876 = vmatprep.subr.mxu0 0.0
      %3877 = vmatpush1.msra.mxu0 0.0
      %3878 = vmatprep.subr.mxu0 0.0
      %3879 = vmatpush1.msra.mxu0 0.0
      %3880 = vmatprep.subr.mxu0 0.0
      %3881 = vmatpush1.msra.mxu0 0.0
      %3882 = vmatprep.subr.mxu0 0.0
      %3883 = vmatpush1.msra.mxu0 0.0
      %3884 = vmatprep.subr.mxu0 0.0
      %3885 = vmatpush1.msra.mxu0 0.0
      %3886 = vmatprep.subr.mxu0 0.0
      %3887 = vmatpush1.msra.mxu0 0.0
      %3888 = vmatprep.subr.mxu0 0.0
      %3889 = vmatpush1.msra.mxu0 0.0
      %3890 = vmatprep.subr.mxu0 0.0
      %3891 = vmatpush1.msra.mxu0 0.0
      %3892 = vmatprep.subr.mxu0 0.0
      %3893 = vmatpush1.msra.mxu0 0.0
      %3894 = vmatprep.subr.mxu0 0.0
      %3895 = vmatpush1.msra.mxu0 0.0
      %3896 = vmatprep.subr.mxu0 0.0
      %3897 = vmatpush1.msra.mxu0 0.0
      %3898 = vmatprep.subr.mxu0 0.0
      %3899 = vmatpush1.msra.mxu0 0.0
      %3900 = vmatprep.subr.mxu0 0.0
      %3901 = vmatpush1.msra.mxu0 0.0
      %3902 = vmatprep.subr.mxu0 0.0
      %3903 = vmatpush1.msra.mxu0 0.0
      %3904 = vmatprep.subr.mxu0 0.0
      %3905 = vmatpush1.msra.mxu0 0.0
      %3906 = vmatprep.subr.mxu0 0.0
      %3907 = vmatpush1.msra.mxu0 0.0
      %3908 = vmatprep.subr.mxu0 0.0
      %3909 = vmatpush1.msra.mxu0 0.0
      %3910 = vmatprep.subr.mxu0 0.0
      %3911 = vmatpush1.msra.mxu0 0.0
      %3912 = vmatprep.subr.mxu0 0.0
      %3913 = vmatpush1.msra.mxu0 0.0
      %3914 = vmatprep.subr.mxu0 0.0
      %3915 = vmatpush1.msra.mxu0 0.0
      %3916 = vmatprep.mubr.f32.mxu0 0.0
      %3917 = vmatmul.mubr.f32.gmra.mrb[0].mxu0 %v3850
      %v3918 = vpop.f32.mrb[0].mxu0
      %v3919 = vadd.f32 0.0, %v3918
      %v3920 = vpop.f32.mrb[0].mxu0
      %3921 = vdwg.mxu0
      %v3923 = vsel %vm1290, %v3433, 0
      %3925 = vmatprep.subr.mxu0 0.0
      %3926 = vmatpush1.msra.mxu0 %v3436
      %3927 = vmatprep.subr.mxu0 0.0
      %3928 = vmatpush1.msra.mxu0 0.0
      %3929 = vmatprep.subr.mxu0 0.0
      %3930 = vmatpush1.msra.mxu0 0.0
      %3931 = vmatprep.subr.mxu0 0.0
      %3932 = vmatpush1.msra.mxu0 0.0
      %3933 = vmatprep.subr.mxu0 0.0
      %3934 = vmatpush1.msra.mxu0 0.0
      %3935 = vmatprep.subr.mxu0 0.0
      %3936 = vmatpush1.msra.mxu0 0.0
      %3937 = vmatprep.subr.mxu0 0.0
      %3938 = vmatpush1.msra.mxu0 0.0
      %3939 = vmatprep.subr.mxu0 0.0
      %3940 = vmatpush1.msra.mxu0 0.0
      %3941 = vmatprep.subr.mxu0 0.0
      %3942 = vmatpush1.msra.mxu0 0.0
      %3943 = vmatprep.subr.mxu0 0.0
      %3944 = vmatpush1.msra.mxu0 0.0
      %3945 = vmatprep.subr.mxu0 0.0
      %3946 = vmatpush1.msra.mxu0 0.0
      %3947 = vmatprep.subr.mxu0 0.0
      %3948 = vmatpush1.msra.mxu0 0.0
      %3949 = vmatprep.subr.mxu0 0.0
      %3950 = vmatpush1.msra.mxu0 0.0
      %3951 = vmatprep.subr.mxu0 0.0
      %3952 = vmatpush1.msra.mxu0 0.0
      %3953 = vmatprep.subr.mxu0 0.0
      %3954 = vmatpush1.msra.mxu0 0.0
      %3955 = vmatprep.subr.mxu0 0.0
      %3956 = vmatpush1.msra.mxu0 0.0
      %3957 = vmatprep.subr.mxu0 0.0
      %3958 = vmatpush1.msra.mxu0 0.0
      %3959 = vmatprep.subr.mxu0 0.0
      %3960 = vmatpush1.msra.mxu0 0.0
      %3961 = vmatprep.subr.mxu0 0.0
      %3962 = vmatpush1.msra.mxu0 0.0
      %3963 = vmatprep.subr.mxu0 0.0
      %3964 = vmatpush1.msra.mxu0 0.0
      %3965 = vmatprep.subr.mxu0 0.0
      %3966 = vmatpush1.msra.mxu0 0.0
      %3967 = vmatprep.subr.mxu0 0.0
      %3968 = vmatpush1.msra.mxu0 0.0
      %3969 = vmatprep.subr.mxu0 0.0
      %3970 = vmatpush1.msra.mxu0 0.0
      %3971 = vmatprep.subr.mxu0 0.0
      %3972 = vmatpush1.msra.mxu0 0.0
      %3973 = vmatprep.subr.mxu0 0.0
      %3974 = vmatpush1.msra.mxu0 0.0
      %3975 = vmatprep.subr.mxu0 0.0
      %3976 = vmatpush1.msra.mxu0 0.0
      %3977 = vmatprep.subr.mxu0 0.0
      %3978 = vmatpush1.msra.mxu0 0.0
      %3979 = vmatprep.subr.mxu0 0.0
      %3980 = vmatpush1.msra.mxu0 0.0
      %3981 = vmatprep.subr.mxu0 0.0
      %3982 = vmatpush1.msra.mxu0 0.0
      %3983 = vmatprep.subr.mxu0 0.0
      %3984 = vmatpush1.msra.mxu0 0.0
      %3985 = vmatprep.subr.mxu0 0.0
      %3986 = vmatpush1.msra.mxu0 0.0
      %3987 = vmatprep.subr.mxu0 0.0
      %3988 = vmatpush1.msra.mxu0 0.0
      %3989 = vmatprep.mubr.f32.mxu0 0.0
      %3990 = vmatmul.mubr.f32.gmra.mrb[0].mxu0 %v3923
      %v3991 = vpop.f32.mrb[0].mxu0
      %v3992 = vadd.f32 %v3919, %v3991
      %v3993 = vpop.f32.mrb[0].mxu0
      %3994 = vdwg.mxu0
      %s3995 = scalar_lea.vmem %s978, 64
      %v3996 = vld [vmem:[%s3995] sm:$0xff]
      %v3997 = vld [vmem:[%s3995 + $0x8] sm:$0xff]
      %v3998 = vld [vmem:[%s3995 + $0x10] sm:$0xff]
      %v3999 = vld [vmem:[%s3995 + $0x18] sm:$0xff]
      %s4000 = scalar_lea.vmem %s982, 2
      %v4001 = vld [vmem:[%s4000] sm:$0x1]
      %s4002 = scalar_lea.vmem %s978, 192
      %v4003 = vld [vmem:[%s4002] sm:$0xff]
      %v4004 = vld [vmem:[%s4002 + $0x8] sm:$0xff]
      %v4005 = vld [vmem:[%s4002 + $0x10] sm:$0xff]
      %v4006 = vld [vmem:[%s4002 + $0x18] sm:$0xff]
      %s4007 = scalar_lea.vmem %s982, 6
      %v4008 = vld [vmem:[%s4007] sm:$0x1]
      %s4009 = scalar_lea.vmem %s978, 320
      %v4010 = vld [vmem:[%s4009] sm:$0xff]
      %v4011 = vld [vmem:[%s4009 + $0x8] sm:$0xff]
      %v4012 = vld [vmem:[%s4009 + $0x10] sm:$0xff]
      %v4013 = vld [vmem:[%s4009 + $0x18] sm:$0xff]
      %s4014 = scalar_lea.vmem %s982, 10
      %v4015 = vld [vmem:[%s4014] sm:$0x1]
      %v4017 = vlaneseq
      %v4018 = vshrl.u32 %v4017, 7
      %v4019 = vsub.s32 0, %v4018
      %v4020 = vrot.slane %v4001, %v4019
      %4022 = vmatprep.subr.mxu0 0.0
      %4023 = vmatpush1.msra.mxu0 %v3996
      %4024 = vmatprep.subr.mxu0 0.0
      %4025 = vmatpush1.msra.mxu0 %v3997
      %4026 = vmatprep.subr.mxu0 0.0
      %4027 = vmatpush1.msra.mxu0 %v3998
      %4028 = vmatprep.subr.mxu0 0.0
      %4029 = vmatpush1.msra.mxu0 %v3999
      %4030 = vmatprep.subr.mxu0 0.0
      %4031 = vmatpush1.msra.mxu0 0.0
      %4032 = vmatprep.subr.mxu0 0.0
      %4033 = vmatpush1.msra.mxu0 0.0
      %4034 = vmatprep.subr.mxu0 0.0
      %4035 = vmatpush1.msra.mxu0 0.0
      %4036 = vmatprep.subr.mxu0 0.0
      %4037 = vmatpush1.msra.mxu0 0.0
      %4038 = vmatprep.subr.mxu0 0.0
      %4039 = vmatpush1.msra.mxu0 0.0
      %4040 = vmatprep.subr.mxu0 0.0
      %4041 = vmatpush1.msra.mxu0 0.0
      %4042 = vmatprep.subr.mxu0 0.0
      %4043 = vmatpush1.msra.mxu0 0.0
      %4044 = vmatprep.subr.mxu0 0.0
      %4045 = vmatpush1.msra.mxu0 0.0
      %4046 = vmatprep.subr.mxu0 0.0
      %4047 = vmatpush1.msra.mxu0 0.0
      %4048 = vmatprep.subr.mxu0 0.0
      %4049 = vmatpush1.msra.mxu0 0.0
      %4050 = vmatprep.subr.mxu0 0.0
      %4051 = vmatpush1.msra.mxu0 0.0
      %4052 = vmatprep.subr.mxu0 0.0
      %4053 = vmatpush1.msra.mxu0 0.0
      %4054 = vmatprep.subr.mxu0 0.0
      %4055 = vmatpush1.msra.mxu0 0.0
      %4056 = vmatprep.subr.mxu0 0.0
      %4057 = vmatpush1.msra.mxu0 0.0
      %4058 = vmatprep.subr.mxu0 0.0
      %4059 = vmatpush1.msra.mxu0 0.0
      %4060 = vmatprep.subr.mxu0 0.0
      %4061 = vmatpush1.msra.mxu0 0.0
      %4062 = vmatprep.subr.mxu0 0.0
      %4063 = vmatpush1.msra.mxu0 0.0
      %4064 = vmatprep.subr.mxu0 0.0
      %4065 = vmatpush1.msra.mxu0 0.0
      %4066 = vmatprep.subr.mxu0 0.0
      %4067 = vmatpush1.msra.mxu0 0.0
      %4068 = vmatprep.subr.mxu0 0.0
      %4069 = vmatpush1.msra.mxu0 0.0
      %4070 = vmatprep.subr.mxu0 0.0
      %4071 = vmatpush1.msra.mxu0 0.0
      %4072 = vmatprep.subr.mxu0 0.0
      %4073 = vmatpush1.msra.mxu0 0.0
      %4074 = vmatprep.subr.mxu0 0.0
      %4075 = vmatpush1.msra.mxu0 0.0
      %4076 = vmatprep.subr.mxu0 0.0
      %4077 = vmatpush1.msra.mxu0 0.0
      %4078 = vmatprep.subr.mxu0 0.0
      %4079 = vmatpush1.msra.mxu0 0.0
      %4080 = vmatprep.subr.mxu0 0.0
      %4081 = vmatpush1.msra.mxu0 0.0
      %4082 = vmatprep.subr.mxu0 0.0
      %4083 = vmatpush1.msra.mxu0 0.0
      %4084 = vmatprep.subr.mxu0 0.0
      %4085 = vmatpush1.msra.mxu0 0.0
      %4086 = vmatprep.mubr.f32.mxu0 0.0
      %4087 = vmatmul.mubr.f32.gmra.mrb[0].mxu0 %v3048
      %v4088 = vpop.f32.mrb[0].mxu0
      %v4089 = vadd.f32 %v4020, %v4088
      %v4090 = vpop.f32.mrb[0].mxu0
      %4091 = vdwg.mxu0
      %v4092 = vmul.f32 %v4089, 0.35355338
      %v4094 = vlaneseq
      %v4095 = vshrl.u32 %v4094, 7
      %v4096 = vsub.s32 0, %v4095
      %v4097 = vrot.slane %v4008, %v4096
      %4099 = vmatprep.subr.mxu0 0.0
      %4100 = vmatpush1.msra.mxu0 %v4003
      %4101 = vmatprep.subr.mxu0 0.0
      %4102 = vmatpush1.msra.mxu0 %v4004
      %4103 = vmatprep.subr.mxu0 0.0
      %4104 = vmatpush1.msra.mxu0 %v4005
      %4105 = vmatprep.subr.mxu0 0.0
      %4106 = vmatpush1.msra.mxu0 %v4006
      %4107 = vmatprep.subr.mxu0 0.0
      %4108 = vmatpush1.msra.mxu0 0.0
      %4109 = vmatprep.subr.mxu0 0.0
      %4110 = vmatpush1.msra.mxu0 0.0
      %4111 = vmatprep.subr.mxu0 0.0
      %4112 = vmatpush1.msra.mxu0 0.0
      %4113 = vmatprep.subr.mxu0 0.0
      %4114 = vmatpush1.msra.mxu0 0.0
      %4115 = vmatprep.subr.mxu0 0.0
      %4116 = vmatpush1.msra.mxu0 0.0
      %4117 = vmatprep.subr.mxu0 0.0
      %4118 = vmatpush1.msra.mxu0 0.0
      %4119 = vmatprep.subr.mxu0 0.0
      %4120 = vmatpush1.msra.mxu0 0.0
      %4121 = vmatprep.subr.mxu0 0.0
      %4122 = vmatpush1.msra.mxu0 0.0
      %4123 = vmatprep.subr.mxu0 0.0
      %4124 = vmatpush1.msra.mxu0 0.0
      %4125 = vmatprep.subr.mxu0 0.0
      %4126 = vmatpush1.msra.mxu0 0.0
      %4127 = vmatprep.subr.mxu0 0.0
      %4128 = vmatpush1.msra.mxu0 0.0
      %4129 = vmatprep.subr.mxu0 0.0
      %4130 = vmatpush1.msra.mxu0 0.0
      %4131 = vmatprep.subr.mxu0 0.0
      %4132 = vmatpush1.msra.mxu0 0.0
      %4133 = vmatprep.subr.mxu0 0.0
      %4134 = vmatpush1.msra.mxu0 0.0
      %4135 = vmatprep.subr.mxu0 0.0
      %4136 = vmatpush1.msra.mxu0 0.0
      %4137 = vmatprep.subr.mxu0 0.0
      %4138 = vmatpush1.msra.mxu0 0.0
      %4139 = vmatprep.subr.mxu0 0.0
      %4140 = vmatpush1.msra.mxu0 0.0
      %4141 = vmatprep.subr.mxu0 0.0
      %4142 = vmatpush1.msra.mxu0 0.0
      %4143 = vmatprep.subr.mxu0 0.0
      %4144 = vmatpush1.msra.mxu0 0.0
      %4145 = vmatprep.subr.mxu0 0.0
      %4146 = vmatpush1.msra.mxu0 0.0
      %4147 = vmatprep.subr.mxu0 0.0
      %4148 = vmatpush1.msra.mxu0 0.0
      %4149 = vmatprep.subr.mxu0 0.0
      %4150 = vmatpush1.msra.mxu0 0.0
      %4151 = vmatprep.subr.mxu0 0.0
      %4152 = vmatpush1.msra.mxu0 0.0
      %4153 = vmatprep.subr.mxu0 0.0
      %4154 = vmatpush1.msra.mxu0 0.0
      %4155 = vmatprep.subr.mxu0 0.0
      %4156 = vmatpush1.msra.mxu0 0.0
      %4157 = vmatprep.subr.mxu0 0.0
      %4158 = vmatpush1.msra.mxu0 0.0
      %4159 = vmatprep.subr.mxu0 0.0
      %4160 = vmatpush1.msra.mxu0 0.0
      %4161 = vmatprep.subr.mxu0 0.0
      %4162 = vmatpush1.msra.mxu0 0.0
      %4163 = vmatprep.mubr.f32.mxu0 0.0
      %4164 = vmatmul.mubr.f32.gmra.mrb[0].mxu0 %v3128
      %v4165 = vpop.f32.mrb[0].mxu0
      %v4166 = vadd.f32 %v4097, %v4165
      %v4167 = vpop.f32.mrb[0].mxu0
      %4168 = vdwg.mxu0
      %v4170 = vlaneseq
      %v4171 = vshrl.u32 %v4170, 7
      %v4172 = vsub.s32 0, %v4171
      %v4173 = vrot.slane %v4015, %v4172
      %4175 = vmatprep.subr.mxu0 0.0
      %4176 = vmatpush1.msra.mxu0 %v4010
      %4177 = vmatprep.subr.mxu0 0.0
      %4178 = vmatpush1.msra.mxu0 %v4011
      %4179 = vmatprep.subr.mxu0 0.0
      %4180 = vmatpush1.msra.mxu0 %v4012
      %4181 = vmatprep.subr.mxu0 0.0
      %4182 = vmatpush1.msra.mxu0 %v4013
      %4183 = vmatprep.subr.mxu0 0.0
      %4184 = vmatpush1.msra.mxu0 0.0
      %4185 = vmatprep.subr.mxu0 0.0
      %4186 = vmatpush1.msra.mxu0 0.0
      %4187 = vmatprep.subr.mxu0 0.0
      %4188 = vmatpush1.msra.mxu0 0.0
      %4189 = vmatprep.subr.mxu0 0.0
      %4190 = vmatpush1.msra.mxu0 0.0
      %4191 = vmatprep.subr.mxu0 0.0
      %4192 = vmatpush1.msra.mxu0 0.0
      %4193 = vmatprep.subr.mxu0 0.0
      %4194 = vmatpush1.msra.mxu0 0.0
      %4195 = vmatprep.subr.mxu0 0.0
      %4196 = vmatpush1.msra.mxu0 0.0
      %4197 = vmatprep.subr.mxu0 0.0
      %4198 = vmatpush1.msra.mxu0 0.0
      %4199 = vmatprep.subr.mxu0 0.0
      %4200 = vmatpush1.msra.mxu0 0.0
      %4201 = vmatprep.subr.mxu0 0.0
      %4202 = vmatpush1.msra.mxu0 0.0
      %4203 = vmatprep.subr.mxu0 0.0
      %4204 = vmatpush1.msra.mxu0 0.0
      %4205 = vmatprep.subr.mxu0 0.0
      %4206 = vmatpush1.msra.mxu0 0.0
      %4207 = vmatprep.subr.mxu0 0.0
      %4208 = vmatpush1.msra.mxu0 0.0
      %4209 = vmatprep.subr.mxu0 0.0
      %4210 = vmatpush1.msra.mxu0 0.0
      %4211 = vmatprep.subr.mxu0 0.0
      %4212 = vmatpush1.msra.mxu0 0.0
      %4213 = vmatprep.subr.mxu0 0.0
      %4214 = vmatpush1.msra.mxu0 0.0
      %4215 = vmatprep.subr.mxu0 0.0
      %4216 = vmatpush1.msra.mxu0 0.0
      %4217 = vmatprep.subr.mxu0 0.0
      %4218 = vmatpush1.msra.mxu0 0.0
      %4219 = vmatprep.subr.mxu0 0.0
      %4220 = vmatpush1.msra.mxu0 0.0
      %4221 = vmatprep.subr.mxu0 0.0
      %4222 = vmatpush1.msra.mxu0 0.0
      %4223 = vmatprep.subr.mxu0 0.0
      %4224 = vmatpush1.msra.mxu0 0.0
      %4225 = vmatprep.subr.mxu0 0.0
      %4226 = vmatpush1.msra.mxu0 0.0
      %4227 = vmatprep.subr.mxu0 0.0
      %4228 = vmatpush1.msra.mxu0 0.0
      %4229 = vmatprep.subr.mxu0 0.0
      %4230 = vmatpush1.msra.mxu0 0.0
      %4231 = vmatprep.subr.mxu0 0.0
      %4232 = vmatpush1.msra.mxu0 0.0
      %4233 = vmatprep.subr.mxu0 0.0
      %4234 = vmatpush1.msra.mxu0 0.0
      %4235 = vmatprep.subr.mxu0 0.0
      %4236 = vmatpush1.msra.mxu0 0.0
      %4237 = vmatprep.subr.mxu0 0.0
      %4238 = vmatpush1.msra.mxu0 0.0
      %4239 = vmatprep.mubr.f32.mxu0 0.0
      %4240 = vmatmul.mubr.f32.gmra.mrb[0].mxu0 %v3128
      %v4241 = vpop.f32.mrb[0].mxu0
      %v4242 = vadd.f32 %v4173, %v4241
      %v4243 = vpop.f32.mrb[0].mxu0
      %4244 = vdwg.mxu0
      %v4246 = vsel %vm1290, %v4092, 0
      %v4249 = vsel %vm1290, %v4166, 0
      %4251 = vmatprep.subr.mxu0 0.0
      %4252 = vmatpush1.xpose.msra.mxu0 %v4249
      %4253 = vmatprep.subr.mxu0 0.0
      %4254 = vmatpush1.xpose.msra.mxu0 0.0
      %4255 = vmatprep.subr.mxu0 0.0
      %4256 = vmatpush1.xpose.msra.mxu0 0.0
      %4257 = vmatprep.subr.mxu0 0.0
      %4258 = vmatpush1.xpose.msra.mxu0 0.0
      %4259 = vmatprep.subr.mxu0 0.0
      %4260 = vmatpush1.xpose.msra.mxu0 0.0
      %4261 = vmatprep.subr.mxu0 0.0
      %4262 = vmatpush1.xpose.msra.mxu0 0.0
      %4263 = vmatprep.subr.mxu0 0.0
      %4264 = vmatpush1.xpose.msra.mxu0 0.0
      %4265 = vmatprep.subr.mxu0 0.0
      %4266 = vmatpush1.xpose.msra.mxu0 0.0
      %4267 = vmatprep.subr.mxu0 0.0
      %4268 = vmatpush1.xpose.msra.mxu0 0.0
      %4269 = vmatprep.subr.mxu0 0.0
      %4270 = vmatpush1.xpose.msra.mxu0 0.0
      %4271 = vmatprep.subr.mxu0 0.0
      %4272 = vmatpush1.xpose.msra.mxu0 0.0
      %4273 = vmatprep.subr.mxu0 0.0
      %4274 = vmatpush1.xpose.msra.mxu0 0.0
      %4275 = vmatprep.subr.mxu0 0.0
      %4276 = vmatpush1.xpose.msra.mxu0 0.0
      %4277 = vmatprep.subr.mxu0 0.0
      %4278 = vmatpush1.xpose.msra.mxu0 0.0
      %4279 = vmatprep.subr.mxu0 0.0
      %4280 = vmatpush1.xpose.msra.mxu0 0.0
      %4281 = vmatprep.subr.mxu0 0.0
      %4282 = vmatpush1.xpose.msra.mxu0 0.0
      %4283 = vmatprep.subr.mxu0 0.0
      %4284 = vmatpush1.xpose.msra.mxu0 0.0
      %4285 = vmatprep.subr.mxu0 0.0
      %4286 = vmatpush1.xpose.msra.mxu0 0.0
      %4287 = vmatprep.subr.mxu0 0.0
      %4288 = vmatpush1.xpose.msra.mxu0 0.0
      %4289 = vmatprep.subr.mxu0 0.0
      %4290 = vmatpush1.xpose.msra.mxu0 0.0
      %4291 = vmatprep.subr.mxu0 0.0
      %4292 = vmatpush1.xpose.msra.mxu0 0.0
      %4293 = vmatprep.subr.mxu0 0.0
      %4294 = vmatpush1.xpose.msra.mxu0 0.0
      %4295 = vmatprep.subr.mxu0 0.0
      %4296 = vmatpush1.xpose.msra.mxu0 0.0
      %4297 = vmatprep.subr.mxu0 0.0
      %4298 = vmatpush1.xpose.msra.mxu0 0.0
      %4299 = vmatprep.subr.mxu0 0.0
      %4300 = vmatpush1.xpose.msra.mxu0 0.0
      %4301 = vmatprep.subr.mxu0 0.0
      %4302 = vmatpush1.xpose.msra.mxu0 0.0
      %4303 = vmatprep.subr.mxu0 0.0
      %4304 = vmatpush1.xpose.msra.mxu0 0.0
      %4305 = vmatprep.subr.mxu0 0.0
      %4306 = vmatpush1.xpose.msra.mxu0 0.0
      %4307 = vmatprep.subr.mxu0 0.0
      %4308 = vmatpush1.xpose.msra.mxu0 0.0
      %4309 = vmatprep.subr.mxu0 0.0
      %4310 = vmatpush1.xpose.msra.mxu0 0.0
      %4311 = vmatprep.subr.mxu0 0.0
      %4312 = vmatpush1.xpose.msra.mxu0 0.0
      %4313 = vmatprep.subr.mxu0 0.0
      %4314 = vmatpush1.xpose.msra.mxu0 0.0
      %4315 = vmatprep.mubr.f32.mxu0 0.0
      %4316 = vmatmul.mubr.f32.gmra.mrb[0].mxu0 %v4246
      %v4317 = vpop.f32.mrb[0].mxu0
      %v4318 = vadd.f32 0.0, %v4317
      %v4319 = vpop.f32.mrb[0].mxu0
      %4320 = vdwg.mxu0
      %v4321 = vsel %vm1290, %v4318, -inf
      %4322 = vmax.xlane.f32.xlu0 %v4321
      %v4323 = vpop.xlane.xlu0 %4322
      %v4324 = vsub.f32 %v4318, %v4323
      %v4325 = vmul.f32 %v4324, 1.442695
      %v4326 = vpow.pop %v4325
      %v4327 = vsel %vm1290, %v4326, 0.0
      %4328 = vadd.xlane.f32.xlu0 %v4327
      %v4329 = vpop.xlane.xlu0 %4328
      %v4330 = vrcp.pop %v4329
      %v4331 = vmul.f32 %v4326, %v4330
      %v4333 = vsel %vm1290, %v4331, 0
      %4335 = vmatprep.subr.mxu0 0.0
      %4336 = vmatpush1.msra.mxu0 %v4242
      %4337 = vmatprep.subr.mxu0 0.0
      %4338 = vmatpush1.msra.mxu0 0.0
      %4339 = vmatprep.subr.mxu0 0.0
      %4340 = vmatpush1.msra.mxu0 0.0
      %4341 = vmatprep.subr.mxu0 0.0
      %4342 = vmatpush1.msra.mxu0 0.0
      %4343 = vmatprep.subr.mxu0 0.0
      %4344 = vmatpush1.msra.mxu0 0.0
      %4345 = vmatprep.subr.mxu0 0.0
      %4346 = vmatpush1.msra.mxu0 0.0
      %4347 = vmatprep.subr.mxu0 0.0
      %4348 = vmatpush1.msra.mxu0 0.0
      %4349 = vmatprep.subr.mxu0 0.0
      %4350 = vmatpush1.msra.mxu0 0.0
      %4351 = vmatprep.subr.mxu0 0.0
      %4352 = vmatpush1.msra.mxu0 0.0
      %4353 = vmatprep.subr.mxu0 0.0
      %4354 = vmatpush1.msra.mxu0 0.0
      %4355 = vmatprep.subr.mxu0 0.0
      %4356 = vmatpush1.msra.mxu0 0.0
      %4357 = vmatprep.subr.mxu0 0.0
      %4358 = vmatpush1.msra.mxu0 0.0
      %4359 = vmatprep.subr.mxu0 0.0
      %4360 = vmatpush1.msra.mxu0 0.0
      %4361 = vmatprep.subr.mxu0 0.0
      %4362 = vmatpush1.msra.mxu0 0.0
      %4363 = vmatprep.subr.mxu0 0.0
      %4364 = vmatpush1.msra.mxu0 0.0
      %4365 = vmatprep.subr.mxu0 0.0
      %4366 = vmatpush1.msra.mxu0 0.0
      %4367 = vmatprep.subr.mxu0 0.0
      %4368 = vmatpush1.msra.mxu0 0.0
      %4369 = vmatprep.subr.mxu0 0.0
      %4370 = vmatpush1.msra.mxu0 0.0
      %4371 = vmatprep.subr.mxu0 0.0
      %4372 = vmatpush1.msra.mxu0 0.0
      %4373 = vmatprep.subr.mxu0 0.0
      %4374 = vmatpush1.msra.mxu0 0.0
      %4375 = vmatprep.subr.mxu0 0.0
      %4376 = vmatpush1.msra.mxu0 0.0
      %4377 = vmatprep.subr.mxu0 0.0
      %4378 = vmatpush1.msra.mxu0 0.0
      %4379 = vmatprep.subr.mxu0 0.0
      %4380 = vmatpush1.msra.mxu0 0.0
      %4381 = vmatprep.subr.mxu0 0.0
      %4382 = vmatpush1.msra.mxu0 0.0
      %4383 = vmatprep.subr.mxu0 0.0
      %4384 = vmatpush1.msra.mxu0 0.0
      %4385 = vmatprep.subr.mxu0 0.0
      %4386 = vmatpush1.msra.mxu0 0.0
      %4387 = vmatprep.subr.mxu0 0.0
      %4388 = vmatpush1.msra.mxu0 0.0
      %4389 = vmatprep.subr.mxu0 0.0
      %4390 = vmatpush1.msra.mxu0 0.0
      %4391 = vmatprep.subr.mxu0 0.0
      %4392 = vmatpush1.msra.mxu0 0.0
      %4393 = vmatprep.subr.mxu0 0.0
      %4394 = vmatpush1.msra.mxu0 0.0
      %4395 = vmatprep.subr.mxu0 0.0
      %4396 = vmatpush1.msra.mxu0 0.0
      %4397 = vmatprep.subr.mxu0 0.0
      %4398 = vmatpush1.msra.mxu0 0.0
      %4399 = vmatprep.mubr.f32.mxu0 0.0
      %4400 = vmatmul.mubr.f32.gmra.mrb[0].mxu0 %v4333
      %v4401 = vpop.f32.mrb[0].mxu0
      %v4402 = vadd.f32 0.0, %v4401
      %v4403 = vpop.f32.mrb[0].mxu0
      %4404 = vdwg.mxu0
      %s4405 = scalar_lea.vmem %s987, 16
      %v4406 = vld [vmem:[%s4405] sm:$0xff]
      %v4408 = vsel %vm1290, %v4402, 0
      %4410 = vmatprep.subr.mxu0 0.0
      %4411 = vmatpush1.msra.mxu0 %v4406
      %4412 = vmatprep.subr.mxu0 0.0
      %4413 = vmatpush1.msra.mxu0 0.0
      %4414 = vmatprep.subr.mxu0 0.0
      %4415 = vmatpush1.msra.mxu0 0.0
      %4416 = vmatprep.subr.mxu0 0.0
      %4417 = vmatpush1.msra.mxu0 0.0
      %4418 = vmatprep.subr.mxu0 0.0
      %4419 = vmatpush1.msra.mxu0 0.0
      %4420 = vmatprep.subr.mxu0 0.0
      %4421 = vmatpush1.msra.mxu0 0.0
      %4422 = vmatprep.subr.mxu0 0.0
      %4423 = vmatpush1.msra.mxu0 0.0
      %4424 = vmatprep.subr.mxu0 0.0
      %4425 = vmatpush1.msra.mxu0 0.0
      %4426 = vmatprep.subr.mxu0 0.0
      %4427 = vmatpush1.msra.mxu0 0.0
      %4428 = vmatprep.subr.mxu0 0.0
      %4429 = vmatpush1.msra.mxu0 0.0
      %4430 = vmatprep.subr.mxu0 0.0
      %4431 = vmatpush1.msra.mxu0 0.0
      %4432 = vmatprep.subr.mxu0 0.0
      %4433 = vmatpush1.msra.mxu0 0.0
      %4434 = vmatprep.subr.mxu0 0.0
      %4435 = vmatpush1.msra.mxu0 0.0
      %4436 = vmatprep.subr.mxu0 0.0
      %4437 = vmatpush1.msra.mxu0 0.0
      %4438 = vmatprep.subr.mxu0 0.0
      %4439 = vmatpush1.msra.mxu0 0.0
      %4440 = vmatprep.subr.mxu0 0.0
      %4441 = vmatpush1.msra.mxu0 0.0
      %4442 = vmatprep.subr.mxu0 0.0
      %4443 = vmatpush1.msra.mxu0 0.0
      %4444 = vmatprep.subr.mxu0 0.0
      %4445 = vmatpush1.msra.mxu0 0.0
      %4446 = vmatprep.subr.mxu0 0.0
      %4447 = vmatpush1.msra.mxu0 0.0
      %4448 = vmatprep.subr.mxu0 0.0
      %4449 = vmatpush1.msra.mxu0 0.0
      %4450 = vmatprep.subr.mxu0 0.0
      %4451 = vmatpush1.msra.mxu0 0.0
      %4452 = vmatprep.subr.mxu0 0.0
      %4453 = vmatpush1.msra.mxu0 0.0
      %4454 = vmatprep.subr.mxu0 0.0
      %4455 = vmatpush1.msra.mxu0 0.0
      %4456 = vmatprep.subr.mxu0 0.0
      %4457 = vmatpush1.msra.mxu0 0.0
      %4458 = vmatprep.subr.mxu0 0.0
      %4459 = vmatpush1.msra.mxu0 0.0
      %4460 = vmatprep.subr.mxu0 0.0
      %4461 = vmatpush1.msra.mxu0 0.0
      %4462 = vmatprep.subr.mxu0 0.0
      %4463 = vmatpush1.msra.mxu0 0.0
      %4464 = vmatprep.subr.mxu0 0.0
      %4465 = vmatpush1.msra.mxu0 0.0
      %4466 = vmatprep.subr.mxu0 0.0
      %4467 = vmatpush1.msra.mxu0 0.0
      %4468 = vmatprep.subr.mxu0 0.0
      %4469 = vmatpush1.msra.mxu0 0.0
      %4470 = vmatprep.subr.mxu0 0.0
      %4471 = vmatpush1.msra.mxu0 0.0
      %4472 = vmatprep.subr.mxu0 0.0
      %4473 = vmatpush1.msra.mxu0 0.0
      %4474 = vmatprep.mubr.f32.mxu0 0.0
      %4475 = vmatmul.mubr.f32.gmra.mrb[0].mxu0 %v4408
      %v4476 = vpop.f32.mrb[0].mxu0
      %v4477 = vadd.f32 0.0, %v4476
      %v4478 = vpop.f32.mrb[0].mxu0
      %4479 = vdwg.mxu0
      %v4480 = vadd.f32 %v3992, %v4477
      %s4481 = scalar_lea.vmem %s978, 96
      %v4482 = vld [vmem:[%s4481] sm:$0xff]
      %v4483 = vld [vmem:[%s4481 + $0x8] sm:$0xff]
      %v4484 = vld [vmem:[%s4481 + $0x10] sm:$0xff]
      %v4485 = vld [vmem:[%s4481 + $0x18] sm:$0xff]
      %s4486 = scalar_lea.vmem %s982, 3
      %v4487 = vld [vmem:[%s4486] sm:$0x1]
      %s4488 = scalar_lea.vmem %s978, 224
      %v4489 = vld [vmem:[%s4488] sm:$0xff]
      %v4490 = vld [vmem:[%s4488 + $0x8] sm:$0xff]
      %v4491 = vld [vmem:[%s4488 + $0x10] sm:$0xff]
      %v4492 = vld [vmem:[%s4488 + $0x18] sm:$0xff]
      %s4493 = scalar_lea.vmem %s982, 7
      %v4494 = vld [vmem:[%s4493] sm:$0x1]
      %s4495 = scalar_lea.vmem %s978, 352
      %v4496 = vld [vmem:[%s4495] sm:$0xff]
      %v4497 = vld [vmem:[%s4495 + $0x8] sm:$0xff]
      %v4498 = vld [vmem:[%s4495 + $0x10] sm:$0xff]
      %v4499 = vld [vmem:[%s4495 + $0x18] sm:$0xff]
      %s4500 = scalar_lea.vmem %s982, 11
      %v4501 = vld [vmem:[%s4500] sm:$0x1]
      %v4503 = vlaneseq
      %v4504 = vshrl.u32 %v4503, 7
      %v4505 = vsub.s32 0, %v4504
      %v4506 = vrot.slane %v4487, %v4505
      %4508 = vmatprep.subr.mxu0 0.0
      %4509 = vmatpush1.msra.mxu0 %v4482
      %4510 = vmatprep.subr.mxu0 0.0
      %4511 = vmatpush1.msra.mxu0 %v4483
      %4512 = vmatprep.subr.mxu0 0.0
      %4513 = vmatpush1.msra.mxu0 %v4484
      %4514 = vmatprep.subr.mxu0 0.0
      %4515 = vmatpush1.msra.mxu0 %v4485
      %4516 = vmatprep.subr.mxu0 0.0
      %4517 = vmatpush1.msra.mxu0 0.0
      %4518 = vmatprep.subr.mxu0 0.0
      %4519 = vmatpush1.msra.mxu0 0.0
      %4520 = vmatprep.subr.mxu0 0.0
      %4521 = vmatpush1.msra.mxu0 0.0
      %4522 = vmatprep.subr.mxu0 0.0
      %4523 = vmatpush1.msra.mxu0 0.0
      %4524 = vmatprep.subr.mxu0 0.0
      %4525 = vmatpush1.msra.mxu0 0.0
      %4526 = vmatprep.subr.mxu0 0.0
      %4527 = vmatpush1.msra.mxu0 0.0
      %4528 = vmatprep.subr.mxu0 0.0
      %4529 = vmatpush1.msra.mxu0 0.0
      %4530 = vmatprep.subr.mxu0 0.0
      %4531 = vmatpush1.msra.mxu0 0.0
      %4532 = vmatprep.subr.mxu0 0.0
      %4533 = vmatpush1.msra.mxu0 0.0
      %4534 = vmatprep.subr.mxu0 0.0
      %4535 = vmatpush1.msra.mxu0 0.0
      %4536 = vmatprep.subr.mxu0 0.0
      %4537 = vmatpush1.msra.mxu0 0.0
      %4538 = vmatprep.subr.mxu0 0.0
      %4539 = vmatpush1.msra.mxu0 0.0
      %4540 = vmatprep.subr.mxu0 0.0
      %4541 = vmatpush1.msra.mxu0 0.0
      %4542 = vmatprep.subr.mxu0 0.0
      %4543 = vmatpush1.msra.mxu0 0.0
      %4544 = vmatprep.subr.mxu0 0.0
      %4545 = vmatpush1.msra.mxu0 0.0
      %4546 = vmatprep.subr.mxu0 0.0
      %4547 = vmatpush1.msra.mxu0 0.0
      %4548 = vmatprep.subr.mxu0 0.0
      %4549 = vmatpush1.msra.mxu0 0.0
      %4550 = vmatprep.subr.mxu0 0.0
      %4551 = vmatpush1.msra.mxu0 0.0
      %4552 = vmatprep.subr.mxu0 0.0
      %4553 = vmatpush1.msra.mxu0 0.0
      %4554 = vmatprep.subr.mxu0 0.0
      %4555 = vmatpush1.msra.mxu0 0.0
      %4556 = vmatprep.subr.mxu0 0.0
      %4557 = vmatpush1.msra.mxu0 0.0
      %4558 = vmatprep.subr.mxu0 0.0
      %4559 = vmatpush1.msra.mxu0 0.0
      %4560 = vmatprep.subr.mxu0 0.0
      %4561 = vmatpush1.msra.mxu0 0.0
      %4562 = vmatprep.subr.mxu0 0.0
      %4563 = vmatpush1.msra.mxu0 0.0
      %4564 = vmatprep.subr.mxu0 0.0
      %4565 = vmatpush1.msra.mxu0 0.0
      %4566 = vmatprep.subr.mxu0 0.0
      %4567 = vmatpush1.msra.mxu0 0.0
      %4568 = vmatprep.subr.mxu0 0.0
      %4569 = vmatpush1.msra.mxu0 0.0
      %4570 = vmatprep.subr.mxu0 0.0
      %4571 = vmatpush1.msra.mxu0 0.0
      %4572 = vmatprep.mubr.f32.mxu0 0.0
      %4573 = vmatmul.mubr.f32.gmra.mrb[0].mxu0 %v3048
      %v4574 = vpop.f32.mrb[0].mxu0
      %v4575 = vadd.f32 %v4506, %v4574
      %v4576 = vpop.f32.mrb[0].mxu0
      %4577 = vdwg.mxu0
      %v4578 = vmul.f32 %v4575, 0.35355338
      %v4580 = vlaneseq
      %v4581 = vshrl.u32 %v4580, 7
      %v4582 = vsub.s32 0, %v4581
      %v4583 = vrot.slane %v4494, %v4582
      %4585 = vmatprep.subr.mxu0 0.0
      %4586 = vmatpush1.msra.mxu0 %v4489
      %4587 = vmatprep.subr.mxu0 0.0
      %4588 = vmatpush1.msra.mxu0 %v4490
      %4589 = vmatprep.subr.mxu0 0.0
      %4590 = vmatpush1.msra.mxu0 %v4491
      %4591 = vmatprep.subr.mxu0 0.0
      %4592 = vmatpush1.msra.mxu0 %v4492
      %4593 = vmatprep.subr.mxu0 0.0
      %4594 = vmatpush1.msra.mxu0 0.0
      %4595 = vmatprep.subr.mxu0 0.0
      %4596 = vmatpush1.msra.mxu0 0.0
      %4597 = vmatprep.subr.mxu0 0.0
      %4598 = vmatpush1.msra.mxu0 0.0
      %4599 = vmatprep.subr.mxu0 0.0
      %4600 = vmatpush1.msra.mxu0 0.0
      %4601 = vmatprep.subr.mxu0 0.0
      %4602 = vmatpush1.msra.mxu0 0.0
      %4603 = vmatprep.subr.mxu0 0.0
      %4604 = vmatpush1.msra.mxu0 0.0
      %4605 = vmatprep.subr.mxu0 0.0
      %4606 = vmatpush1.msra.mxu0 0.0
      %4607 = vmatprep.subr.mxu0 0.0
      %4608 = vmatpush1.msra.mxu0 0.0
      %4609 = vmatprep.subr.mxu0 0.0
      %4610 = vmatpush1.msra.mxu0 0.0
      %4611 = vmatprep.subr.mxu0 0.0
      %4612 = vmatpush1.msra.mxu0 0.0
      %4613 = vmatprep.subr.mxu0 0.0
      %4614 = vmatpush1.msra.mxu0 0.0
      %4615 = vmatprep.subr.mxu0 0.0
      %4616 = vmatpush1.msra.mxu0 0.0
      %4617 = vmatprep.subr.mxu0 0.0
      %4618 = vmatpush1.msra.mxu0 0.0
      %4619 = vmatprep.subr.mxu0 0.0
      %4620 = vmatpush1.msra.mxu0 0.0
      %4621 = vmatprep.subr.mxu0 0.0
      %4622 = vmatpush1.msra.mxu0 0.0
      %4623 = vmatprep.subr.mxu0 0.0
      %4624 = vmatpush1.msra.mxu0 0.0
      %4625 = vmatprep.subr.mxu0 0.0
      %4626 = vmatpush1.msra.mxu0 0.0
      %4627 = vmatprep.subr.mxu0 0.0
      %4628 = vmatpush1.msra.mxu0 0.0
      %4629 = vmatprep.subr.mxu0 0.0
      %4630 = vmatpush1.msra.mxu0 0.0
      %4631 = vmatprep.subr.mxu0 0.0
      %4632 = vmatpush1.msra.mxu0 0.0
      %4633 = vmatprep.subr.mxu0 0.0
      %4634 = vmatpush1.msra.mxu0 0.0
      %4635 = vmatprep.subr.mxu0 0.0
      %4636 = vmatpush1.msra.mxu0 0.0
      %4637 = vmatprep.subr.mxu0 0.0
      %4638 = vmatpush1.msra.mxu0 0.0
      %4639 = vmatprep.subr.mxu0 0.0
      %4640 = vmatpush1.msra.mxu0 0.0
      %4641 = vmatprep.subr.mxu0 0.0
      %4642 = vmatpush1.msra.mxu0 0.0
      %4643 = vmatprep.subr.mxu0 0.0
      %4644 = vmatpush1.msra.mxu0 0.0
      %4645 = vmatprep.subr.mxu0 0.0
      %4646 = vmatpush1.msra.mxu0 0.0
      %4647 = vmatprep.subr.mxu0 0.0
      %4648 = vmatpush1.msra.mxu0 0.0
      %4649 = vmatprep.mubr.f32.mxu0 0.0
      %4650 = vmatmul.mubr.f32.gmra.mrb[0].mxu0 %v3128
      %v4651 = vpop.f32.mrb[0].mxu0
      %v4652 = vadd.f32 %v4583, %v4651
      %v4653 = vpop.f32.mrb[0].mxu0
      %4654 = vdwg.mxu0
      %v4656 = vlaneseq
      %v4657 = vshrl.u32 %v4656, 7
      %v4658 = vsub.s32 0, %v4657
      %v4659 = vrot.slane %v4501, %v4658
      %4661 = vmatprep.subr.mxu0 0.0
      %4662 = vmatpush1.msra.mxu0 %v4496
      %4663 = vmatprep.subr.mxu0 0.0
      %4664 = vmatpush1.msra.mxu0 %v4497
      %4665 = vmatprep.subr.mxu0 0.0
      %4666 = vmatpush1.msra.mxu0 %v4498
      %4667 = vmatprep.subr.mxu0 0.0
      %4668 = vmatpush1.msra.mxu0 %v4499
      %4669 = vmatprep.subr.mxu0 0.0
      %4670 = vmatpush1.msra.mxu0 0.0
      %4671 = vmatprep.subr.mxu0 0.0
      %4672 = vmatpush1.msra.mxu0 0.0
      %4673 = vmatprep.subr.mxu0 0.0
      %4674 = vmatpush1.msra.mxu0 0.0
      %4675 = vmatprep.subr.mxu0 0.0
      %4676 = vmatpush1.msra.mxu0 0.0
      %4677 = vmatprep.subr.mxu0 0.0
      %4678 = vmatpush1.msra.mxu0 0.0
      %4679 = vmatprep.subr.mxu0 0.0
      %4680 = vmatpush1.msra.mxu0 0.0
      %4681 = vmatprep.subr.mxu0 0.0
      %4682 = vmatpush1.msra.mxu0 0.0
      %4683 = vmatprep.subr.mxu0 0.0
      %4684 = vmatpush1.msra.mxu0 0.0
      %4685 = vmatprep.subr.mxu0 0.0
      %4686 = vmatpush1.msra.mxu0 0.0
      %4687 = vmatprep.subr.mxu0 0.0
      %4688 = vmatpush1.msra.mxu0 0.0
      %4689 = vmatprep.subr.mxu0 0.0
      %4690 = vmatpush1.msra.mxu0 0.0
      %4691 = vmatprep.subr.mxu0 0.0
      %4692 = vmatpush1.msra.mxu0 0.0
      %4693 = vmatprep.subr.mxu0 0.0
      %4694 = vmatpush1.msra.mxu0 0.0
      %4695 = vmatprep.subr.mxu0 0.0
      %4696 = vmatpush1.msra.mxu0 0.0
      %4697 = vmatprep.subr.mxu0 0.0
      %4698 = vmatpush1.msra.mxu0 0.0
      %4699 = vmatprep.subr.mxu0 0.0
      %4700 = vmatpush1.msra.mxu0 0.0
      %4701 = vmatprep.subr.mxu0 0.0
      %4702 = vmatpush1.msra.mxu0 0.0
      %4703 = vmatprep.subr.mxu0 0.0
      %4704 = vmatpush1.msra.mxu0 0.0
      %4705 = vmatprep.subr.mxu0 0.0
      %4706 = vmatpush1.msra.mxu0 0.0
      %4707 = vmatprep.subr.mxu0 0.0
      %4708 = vmatpush1.msra.mxu0 0.0
      %4709 = vmatprep.subr.mxu0 0.0
      %4710 = vmatpush1.msra.mxu0 0.0
      %4711 = vmatprep.subr.mxu0 0.0
      %4712 = vmatpush1.msra.mxu0 0.0
      %4713 = vmatprep.subr.mxu0 0.0
      %4714 = vmatpush1.msra.mxu0 0.0
      %4715 = vmatprep.subr.mxu0 0.0
      %4716 = vmatpush1.msra.mxu0 0.0
      %4717 = vmatprep.subr.mxu0 0.0
      %4718 = vmatpush1.msra.mxu0 0.0
      %4719 = vmatprep.subr.mxu0 0.0
      %4720 = vmatpush1.msra.mxu0 0.0
      %4721 = vmatprep.subr.mxu0 0.0
      %4722 = vmatpush1.msra.mxu0 0.0
      %4723 = vmatprep.subr.mxu0 0.0
      %4724 = vmatpush1.msra.mxu0 0.0
      %4725 = vmatprep.mubr.f32.mxu0 0.0
      %4726 = vmatmul.mubr.f32.gmra.mrb[0].mxu0 %v3128
      %v4727 = vpop.f32.mrb[0].mxu0
      %v4728 = vadd.f32 %v4659, %v4727
      %v4729 = vpop.f32.mrb[0].mxu0
      %4730 = vdwg.mxu0
      %v4732 = vsel %vm1290, %v4578, 0
      %v4735 = vsel %vm1290, %v4652, 0
      %4737 = vmatprep.subr.mxu0 0.0
      %4738 = vmatpush1.xpose.msra.mxu0 %v4735
      %4739 = vmatprep.subr.mxu0 0.0
      %4740 = vmatpush1.xpose.msra.mxu0 0.0
      %4741 = vmatprep.subr.mxu0 0.0
      %4742 = vmatpush1.xpose.msra.mxu0 0.0
      %4743 = vmatprep.subr.mxu0 0.0
      %4744 = vmatpush1.xpose.msra.mxu0 0.0
      %4745 = vmatprep.subr.mxu0 0.0
      %4746 = vmatpush1.xpose.msra.mxu0 0.0
      %4747 = vmatprep.subr.mxu0 0.0
      %4748 = vmatpush1.xpose.msra.mxu0 0.0
      %4749 = vmatprep.subr.mxu0 0.0
      %4750 = vmatpush1.xpose.msra.mxu0 0.0
      %4751 = vmatprep.subr.mxu0 0.0
      %4752 = vmatpush1.xpose.msra.mxu0 0.0
      %4753 = vmatprep.subr.mxu0 0.0
      %4754 = vmatpush1.xpose.msra.mxu0 0.0
      %4755 = vmatprep.subr.mxu0 0.0
      %4756 = vmatpush1.xpose.msra.mxu0 0.0
      %4757 = vmatprep.subr.mxu0 0.0
      %4758 = vmatpush1.xpose.msra.mxu0 0.0
      %4759 = vmatprep.subr.mxu0 0.0
      %4760 = vmatpush1.xpose.msra.mxu0 0.0
      %4761 = vmatprep.subr.mxu0 0.0
      %4762 = vmatpush1.xpose.msra.mxu0 0.0
      %4763 = vmatprep.subr.mxu0 0.0
      %4764 = vmatpush1.xpose.msra.mxu0 0.0
      %4765 = vmatprep.subr.mxu0 0.0
      %4766 = vmatpush1.xpose.msra.mxu0 0.0
      %4767 = vmatprep.subr.mxu0 0.0
      %4768 = vmatpush1.xpose.msra.mxu0 0.0
      %4769 = vmatprep.subr.mxu0 0.0
      %4770 = vmatpush1.xpose.msra.mxu0 0.0
      %4771 = vmatprep.subr.mxu0 0.0
      %4772 = vmatpush1.xpose.msra.mxu0 0.0
      %4773 = vmatprep.subr.mxu0 0.0
      %4774 = vmatpush1.xpose.msra.mxu0 0.0
      %4775 = vmatprep.subr.mxu0 0.0
      %4776 = vmatpush1.xpose.msra.mxu0 0.0
      %4777 = vmatprep.subr.mxu0 0.0
      %4778 = vmatpush1.xpose.msra.mxu0 0.0
      %4779 = vmatprep.subr.mxu0 0.0
      %4780 = vmatpush1.xpose.msra.mxu0 0.0
      %4781 = vmatprep.subr.mxu0 0.0
      %4782 = vmatpush1.xpose.msra.mxu0 0.0
      %4783 = vmatprep.subr.mxu0 0.0
      %4784 = vmatpush1.xpose.msra.mxu0 0.0
      %4785 = vmatprep.subr.mxu0 0.0
      %4786 = vmatpush1.xpose.msra.mxu0 0.0
      %4787 = vmatprep.subr.mxu0 0.0
      %4788 = vmatpush1.xpose.msra.mxu0 0.0
      %4789 = vmatprep.subr.mxu0 0.0
      %4790 = vmatpush1.xpose.msra.mxu0 0.0
      %4791 = vmatprep.subr.mxu0 0.0
      %4792 = vmatpush1.xpose.msra.mxu0 0.0
      %4793 = vmatprep.subr.mxu0 0.0
      %4794 = vmatpush1.xpose.msra.mxu0 0.0
      %4795 = vmatprep.subr.mxu0 0.0
      %4796 = vmatpush1.xpose.msra.mxu0 0.0
      %4797 = vmatprep.subr.mxu0 0.0
      %4798 = vmatpush1.xpose.msra.mxu0 0.0
      %4799 = vmatprep.subr.mxu0 0.0
      %4800 = vmatpush1.xpose.msra.mxu0 0.0
      %4801 = vmatprep.mubr.f32.mxu0 0.0
      %4802 = vmatmul.mubr.f32.gmra.mrb[0].mxu0 %v4732
      %v4803 = vpop.f32.mrb[0].mxu0
      %v4804 = vadd.f32 0.0, %v4803
      %v4805 = vpop.f32.mrb[0].mxu0
      %4806 = vdwg.mxu0
      %v4807 = vsel %vm1290, %v4804, -inf
      %4808 = vmax.xlane.f32.xlu0 %v4807
      %v4809 = vpop.xlane.xlu0 %4808
      %v4810 = vsub.f32 %v4804, %v4809
      %v4811 = vmul.f32 %v4810, 1.442695
      %v4812 = vpow.pop %v4811
      %v4813 = vsel %vm1290, %v4812, 0.0
      %4814 = vadd.xlane.f32.xlu0 %v4813
      %v4815 = vpop.xlane.xlu0 %4814
      %v4816 = vrcp.pop %v4815
      %v4817 = vmul.f32 %v4812, %v4816
      %v4819 = vsel %vm1290, %v4817, 0
      %4821 = vmatprep.subr.mxu0 0.0
      %4822 = vmatpush1.msra.mxu0 %v4728
      %4823 = vmatprep.subr.mxu0 0.0
      %4824 = vmatpush1.msra.mxu0 0.0
      %4825 = vmatprep.subr.mxu0 0.0
      %4826 = vmatpush1.msra.mxu0 0.0
      %4827 = vmatprep.subr.mxu0 0.0
      %4828 = vmatpush1.msra.mxu0 0.0
      %4829 = vmatprep.subr.mxu0 0.0
      %4830 = vmatpush1.msra.mxu0 0.0
      %4831 = vmatprep.subr.mxu0 0.0
      %4832 = vmatpush1.msra.mxu0 0.0
      %4833 = vmatprep.subr.mxu0 0.0
      %4834 = vmatpush1.msra.mxu0 0.0
      %4835 = vmatprep.subr.mxu0 0.0
      %4836 = vmatpush1.msra.mxu0 0.0
      %4837 = vmatprep.subr.mxu0 0.0
      %4838 = vmatpush1.msra.mxu0 0.0
      %4839 = vmatprep.subr.mxu0 0.0
      %4840 = vmatpush1.msra.mxu0 0.0
      %4841 = vmatprep.subr.mxu0 0.0
      %4842 = vmatpush1.msra.mxu0 0.0
      %4843 = vmatprep.subr.mxu0 0.0
      %4844 = vmatpush1.msra.mxu0 0.0
      %4845 = vmatprep.subr.mxu0 0.0
      %4846 = vmatpush1.msra.mxu0 0.0
      %4847 = vmatprep.subr.mxu0 0.0
      %4848 = vmatpush1.msra.mxu0 0.0
      %4849 = vmatprep.subr.mxu0 0.0
      %4850 = vmatpush1.msra.mxu0 0.0
      %4851 = vmatprep.subr.mxu0 0.0
      %4852 = vmatpush1.msra.mxu0 0.0
      %4853 = vmatprep.subr.mxu0 0.0
      %4854 = vmatpush1.msra.mxu0 0.0
      %4855 = vmatprep.subr.mxu0 0.0
      %4856 = vmatpush1.msra.mxu0 0.0
      %4857 = vmatprep.subr.mxu0 0.0
      %4858 = vmatpush1.msra.mxu0 0.0
      %4859 = vmatprep.subr.mxu0 0.0
      %4860 = vmatpush1.msra.mxu0 0.0
      %4861 = vmatprep.subr.mxu0 0.0
      %4862 = vmatpush1.msra.mxu0 0.0
      %4863 = vmatprep.subr.mxu0 0.0
      %4864 = vmatpush1.msra.mxu0 0.0
      %4865 = vmatprep.subr.mxu0 0.0
      %4866 = vmatpush1.msra.mxu0 0.0
      %4867 = vmatprep.subr.mxu0 0.0
      %4868 = vmatpush1.msra.mxu0 0.0
      %4869 = vmatprep.subr.mxu0 0.0
      %4870 = vmatpush1.msra.mxu0 0.0
      %4871 = vmatprep.subr.mxu0 0.0
      %4872 = vmatpush1.msra.mxu0 0.0
      %4873 = vmatprep.subr.mxu0 0.0
      %4874 = vmatpush1.msra.mxu0 0.0
      %4875 = vmatprep.subr.mxu0 0.0
      %4876 = vmatpush1.msra.mxu0 0.0
      %4877 = vmatprep.subr.mxu0 0.0
      %4878 = vmatpush1.msra.mxu0 0.0
      %4879 = vmatprep.subr.mxu0 0.0
      %4880 = vmatpush1.msra.mxu0 0.0
      %4881 = vmatprep.subr.mxu0 0.0
      %4882 = vmatpush1.msra.mxu0 0.0
      %4883 = vmatprep.subr.mxu0 0.0
      %4884 = vmatpush1.msra.mxu0 0.0
      %4885 = vmatprep.mubr.f32.mxu0 0.0
      %4886 = vmatmul.mubr.f32.gmra.mrb[0].mxu0 %v4819
      %v4887 = vpop.f32.mrb[0].mxu0
      %v4888 = vadd.f32 0.0, %v4887
      %v4889 = vpop.f32.mrb[0].mxu0
      %4890 = vdwg.mxu0
      %s4891 = scalar_lea.vmem %s987, 24
      %v4892 = vld [vmem:[%s4891] sm:$0xff]
      %v4894 = vsel %vm1290, %v4888, 0
      %4896 = vmatprep.subr.mxu0 0.0
      %4897 = vmatpush1.msra.mxu0 %v4892
      %4898 = vmatprep.subr.mxu0 0.0
      %4899 = vmatpush1.msra.mxu0 0.0
      %4900 = vmatprep.subr.mxu0 0.0
      %4901 = vmatpush1.msra.mxu0 0.0
      %4902 = vmatprep.subr.mxu0 0.0
      %4903 = vmatpush1.msra.mxu0 0.0
      %4904 = vmatprep.subr.mxu0 0.0
      %4905 = vmatpush1.msra.mxu0 0.0
      %4906 = vmatprep.subr.mxu0 0.0
      %4907 = vmatpush1.msra.mxu0 0.0
      %4908 = vmatprep.subr.mxu0 0.0
      %4909 = vmatpush1.msra.mxu0 0.0
      %4910 = vmatprep.subr.mxu0 0.0
      %4911 = vmatpush1.msra.mxu0 0.0
      %4912 = vmatprep.subr.mxu0 0.0
      %4913 = vmatpush1.msra.mxu0 0.0
      %4914 = vmatprep.subr.mxu0 0.0
      %4915 = vmatpush1.msra.mxu0 0.0
      %4916 = vmatprep.subr.mxu0 0.0
      %4917 = vmatpush1.msra.mxu0 0.0
      %4918 = vmatprep.subr.mxu0 0.0
      %4919 = vmatpush1.msra.mxu0 0.0
      %4920 = vmatprep.subr.mxu0 0.0
      %4921 = vmatpush1.msra.mxu0 0.0
      %4922 = vmatprep.subr.mxu0 0.0
      %4923 = vmatpush1.msra.mxu0 0.0
      %4924 = vmatprep.subr.mxu0 0.0
      %4925 = vmatpush1.msra.mxu0 0.0
      %4926 = vmatprep.subr.mxu0 0.0
      %4927 = vmatpush1.msra.mxu0 0.0
      %4928 = vmatprep.subr.mxu0 0.0
      %4929 = vmatpush1.msra.mxu0 0.0
      %4930 = vmatprep.subr.mxu0 0.0
      %4931 = vmatpush1.msra.mxu0 0.0
      %4932 = vmatprep.subr.mxu0 0.0
      %4933 = vmatpush1.msra.mxu0 0.0
      %4934 = vmatprep.subr.mxu0 0.0
      %4935 = vmatpush1.msra.mxu0 0.0
      %4936 = vmatprep.subr.mxu0 0.0
      %4937 = vmatpush1.msra.mxu0 0.0
      %4938 = vmatprep.subr.mxu0 0.0
      %4939 = vmatpush1.msra.mxu0 0.0
      %4940 = vmatprep.subr.mxu0 0.0
      %4941 = vmatpush1.msra.mxu0 0.0
      %4942 = vmatprep.subr.mxu0 0.0
      %4943 = vmatpush1.msra.mxu0 0.0
      %4944 = vmatprep.subr.mxu0 0.0
      %4945 = vmatpush1.msra.mxu0 0.0
      %4946 = vmatprep.subr.mxu0 0.0
      %4947 = vmatpush1.msra.mxu0 0.0
      %4948 = vmatprep.subr.mxu0 0.0
      %4949 = vmatpush1.msra.mxu0 0.0
      %4950 = vmatprep.subr.mxu0 0.0
      %4951 = vmatpush1.msra.mxu0 0.0
      %4952 = vmatprep.subr.mxu0 0.0
      %4953 = vmatpush1.msra.mxu0 0.0
      %4954 = vmatprep.subr.mxu0 0.0
      %4955 = vmatpush1.msra.mxu0 0.0
      %4956 = vmatprep.subr.mxu0 0.0
      %4957 = vmatpush1.msra.mxu0 0.0
      %4958 = vmatprep.subr.mxu0 0.0
      %4959 = vmatpush1.msra.mxu0 0.0
      %4960 = vmatprep.mubr.f32.mxu0 0.0
      %4961 = vmatmul.mubr.f32.gmra.mrb[0].mxu0 %v4894
      %v4962 = vpop.f32.mrb[0].mxu0
      %v4963 = vadd.f32 0.0, %v4962
      %v4964 = vpop.f32.mrb[0].mxu0
      %4965 = vdwg.mxu0
      %v4966 = vadd.f32 %v4480, %v4963
      %v4967 = vld [vmem:[%s990] sm:$0x1]
      %v4969 = vlaneseq
      %v4970 = vshrl.u32 %v4969, 7
      %v4971 = vsub.s32 0, %v4970
      %v4972 = vrot.slane %v4967, %v4971
      %v4974 = vadd.f32 %v4966, %v4972
      %v4975 = vadd.f32 %v3020, %v4974
      %v4976 = vld [vmem:[%s1015] sm:$0x1]
      %v4977 = vld [vmem:[%s1018] sm:$0x1]
      %v4978 = vsel %vm1063, %v4975, 0.0
      %4979 = vadd.xlane.f32.xlu0 %v4978
      %v4980 = vpop.xlane.xlu0 %4979
      %v4981 = vmul.f32 %v4980, %v2996
      %v4982 = vsub.f32 %v4975, %v4981
      %v4983 = vmul.f32 %v4982, %v4982
      %v4984 = vsel %vm1063, %v4983, 0.0
      %4985 = vadd.xlane.f32.xlu0 %v4984
      %v4986 = vpop.xlane.xlu0 %4985
      %v4987 = vmul.f32 %v4986, %v2996
      %v4988 = vadd.f32 %v4987, 1e-05
      %v4989 = vrsqrt.pop %v4988
      %v4990 = vmul.f32 %v4982, %v4989
      %v4992 = vlaneseq
      %v4993 = vshrl.u32 %v4992, 7
      %v4994 = vsub.s32 0, %v4993
      %v4995 = vrot.slane %v4976, %v4994
      %v4997 = vmul.f32 %v4990, %v4995
      %v4999 = vlaneseq
      %v5000 = vshrl.u32 %v4999, 7
      %v5001 = vsub.s32 0, %v5000
      %v5002 = vrot.slane %v4977, %v5001
      %v5004 = vadd.f32 %v4997, %v5002
      %v5005 = vld [vmem:[%s995] sm:$0xff]
      %v5006 = vld [vmem:[%s995 + $0x8] sm:$0xff]
      %v5007 = vld [vmem:[%s995 + $0x10] sm:$0xff]
      %v5008 = vld [vmem:[%s995 + $0x18] sm:$0xff]
      %v5009 = vld [vmem:[%s998] sm:$0x1]
      %v5011 = vlaneseq
      %v5012 = vshrl.u32 %v5011, 7
      %v5013 = vsub.s32 0, %v5012
      %v5014 = vrot.slane %v5009, %v5013
      %v5017 = vsel %vm1063, %v5004, 0
      %5019 = vmatprep.subr.mxu0 0.0
      %5020 = vmatpush1.msra.mxu0 %v5005
      %5021 = vmatprep.subr.mxu0 0.0
      %5022 = vmatpush1.msra.mxu0 %v5006
      %5023 = vmatprep.subr.mxu0 0.0
      %5024 = vmatpush1.msra.mxu0 %v5007
      %5025 = vmatprep.subr.mxu0 0.0
      %5026 = vmatpush1.msra.mxu0 %v5008
      %5027 = vmatprep.subr.mxu0 0.0
      %5028 = vmatpush1.msra.mxu0 0.0
      %5029 = vmatprep.subr.mxu0 0.0
      %5030 = vmatpush1.msra.mxu0 0.0
      %5031 = vmatprep.subr.mxu0 0.0
      %5032 = vmatpush1.msra.mxu0 0.0
      %5033 = vmatprep.subr.mxu0 0.0
      %5034 = vmatpush1.msra.mxu0 0.0
      %5035 = vmatprep.subr.mxu0 0.0
      %5036 = vmatpush1.msra.mxu0 0.0
      %5037 = vmatprep.subr.mxu0 0.0
      %5038 = vmatpush1.msra.mxu0 0.0
      %5039 = vmatprep.subr.mxu0 0.0
      %5040 = vmatpush1.msra.mxu0 0.0
      %5041 = vmatprep.subr.mxu0 0.0
      %5042 = vmatpush1.msra.mxu0 0.0
      %5043 = vmatprep.subr.mxu0 0.0
      %5044 = vmatpush1.msra.mxu0 0.0
      %5045 = vmatprep.subr.mxu0 0.0
      %5046 = vmatpush1.msra.mxu0 0.0
      %5047 = vmatprep.subr.mxu0 0.0
      %5048 = vmatpush1.msra.mxu0 0.0
      %5049 = vmatprep.subr.mxu0 0.0
      %5050 = vmatpush1.msra.mxu0 0.0
      %5051 = vmatprep.subr.mxu0 0.0
      %5052 = vmatpush1.msra.mxu0 0.0
      %5053 = vmatprep.subr.mxu0 0.0
      %5054 = vmatpush1.msra.mxu0 0.0
      %5055 = vmatprep.subr.mxu0 0.0
      %5056 = vmatpush1.msra.mxu0 0.0
      %5057 = vmatprep.subr.mxu0 0.0
      %5058 = vmatpush1.msra.mxu0 0.0
      %5059 = vmatprep.subr.mxu0 0.0
      %5060 = vmatpush1.msra.mxu0 0.0
      %5061 = vmatprep.subr.mxu0 0.0
      %5062 = vmatpush1.msra.mxu0 0.0
      %5063 = vmatprep.subr.mxu0 0.0
      %5064 = vmatpush1.msra.mxu0 0.0
      %5065 = vmatprep.subr.mxu0 0.0
      %5066 = vmatpush1.msra.mxu0 0.0
      %5067 = vmatprep.subr.mxu0 0.0
      %5068 = vmatpush1.msra.mxu0 0.0
      %5069 = vmatprep.subr.mxu0 0.0
      %5070 = vmatpush1.msra.mxu0 0.0
      %5071 = vmatprep.subr.mxu0 0.0
      %5072 = vmatpush1.msra.mxu0 0.0
      %5073 = vmatprep.subr.mxu0 0.0
      %5074 = vmatpush1.msra.mxu0 0.0
      %5075 = vmatprep.subr.mxu0 0.0
      %5076 = vmatpush1.msra.mxu0 0.0
      %5077 = vmatprep.subr.mxu0 0.0
      %5078 = vmatpush1.msra.mxu0 0.0
      %5079 = vmatprep.subr.mxu0 0.0
      %5080 = vmatpush1.msra.mxu0 0.0
      %5081 = vmatprep.subr.mxu0 0.0
      %5082 = vmatpush1.msra.mxu0 0.0
      %5083 = vmatprep.mubr.f32.mxu0 0.0
      %5084 = vmatmul.mubr.f32.gmra.mrb[0].mxu0 %v5017
      %v5085 = vpop.f32.mrb[0].mxu0
      %v5086 = vadd.f32 %v5014, %v5085
      %v5087 = vpop.f32.mrb[0].mxu0
      %5088 = vdwg.mxu0
      %v5089 = vmax.f32 %v5086, 0.0
      %v5090 = vld [vmem:[%s1003] sm:$0xff]
      %v5091 = vld [vmem:[%s1003 + $0x8] sm:$0xff]
      %v5092 = vld [vmem:[%s1003 + $0x10] sm:$0xff]
      %v5093 = vld [vmem:[%s1003 + $0x18] sm:$0xff]
      %v5094 = vld [vmem:[%s1006] sm:$0x1]
      %v5096 = vlaneseq
      %v5097 = vshrl.u32 %v5096, 7
      %v5098 = vsub.s32 0, %v5097
      %v5099 = vrot.slane %v5094, %v5098
      %v5102 = vsel %vm1063, %v5089, 0
      %5104 = vmatprep.subr.mxu0 0.0
      %5105 = vmatpush1.msra.mxu0 %v5090
      %5106 = vmatprep.subr.mxu0 0.0
      %5107 = vmatpush1.msra.mxu0 %v5091
      %5108 = vmatprep.subr.mxu0 0.0
      %5109 = vmatpush1.msra.mxu0 %v5092
      %5110 = vmatprep.subr.mxu0 0.0
      %5111 = vmatpush1.msra.mxu0 %v5093
      %5112 = vmatprep.subr.mxu0 0.0
      %5113 = vmatpush1.msra.mxu0 0.0
      %5114 = vmatprep.subr.mxu0 0.0
      %5115 = vmatpush1.msra.mxu0 0.0
      %5116 = vmatprep.subr.mxu0 0.0
      %5117 = vmatpush1.msra.mxu0 0.0
      %5118 = vmatprep.subr.mxu0 0.0
      %5119 = vmatpush1.msra.mxu0 0.0
      %5120 = vmatprep.subr.mxu0 0.0
      %5121 = vmatpush1.msra.mxu0 0.0
      %5122 = vmatprep.subr.mxu0 0.0
      %5123 = vmatpush1.msra.mxu0 0.0
      %5124 = vmatprep.subr.mxu0 0.0
      %5125 = vmatpush1.msra.mxu0 0.0
      %5126 = vmatprep.subr.mxu0 0.0
      %5127 = vmatpush1.msra.mxu0 0.0
      %5128 = vmatprep.subr.mxu0 0.0
      %5129 = vmatpush1.msra.mxu0 0.0
      %5130 = vmatprep.subr.mxu0 0.0
      %5131 = vmatpush1.msra.mxu0 0.0
      %5132 = vmatprep.subr.mxu0 0.0
      %5133 = vmatpush1.msra.mxu0 0.0
      %5134 = vmatprep.subr.mxu0 0.0
      %5135 = vmatpush1.msra.mxu0 0.0
      %5136 = vmatprep.subr.mxu0 0.0
      %5137 = vmatpush1.msra.mxu0 0.0
      %5138 = vmatprep.subr.mxu0 0.0
      %5139 = vmatpush1.msra.mxu0 0.0
      %5140 = vmatprep.subr.mxu0 0.0
      %5141 = vmatpush1.msra.mxu0 0.0
      %5142 = vmatprep.subr.mxu0 0.0
      %5143 = vmatpush1.msra.mxu0 0.0
      %5144 = vmatprep.subr.mxu0 0.0
      %5145 = vmatpush1.msra.mxu0 0.0
      %5146 = vmatprep.subr.mxu0 0.0
      %5147 = vmatpush1.msra.mxu0 0.0
      %5148 = vmatprep.subr.mxu0 0.0
      %5149 = vmatpush1.msra.mxu0 0.0
      %5150 = vmatprep.subr.mxu0 0.0
      %5151 = vmatpush1.msra.mxu0 0.0
      %5152 = vmatprep.subr.mxu0 0.0
      %5153 = vmatpush1.msra.mxu0 0.0
      %5154 = vmatprep.subr.mxu0 0.0
      %5155 = vmatpush1.msra.mxu0 0.0
      %5156 = vmatprep.subr.mxu0 0.0
      %5157 = vmatpush1.msra.mxu0 0.0
      %5158 = vmatprep.subr.mxu0 0.0
      %5159 = vmatpush1.msra.mxu0 0.0
      %5160 = vmatprep.subr.mxu0 0.0
      %5161 = vmatpush1.msra.mxu0 0.0
      %5162 = vmatprep.subr.mxu0 0.0
      %5163 = vmatpush1.msra.mxu0 0.0
      %5164 = vmatprep.subr.mxu0 0.0
      %5165 = vmatpush1.msra.mxu0 0.0
      %5166 = vmatprep.subr.mxu0 0.0
      %5167 = vmatpush1.msra.mxu0 0.0
      %5168 = vmatprep.mubr.f32.mxu0 0.0
      %5169 = vmatmul.mubr.f32.gmra.mrb[0].mxu0 %v5102
      %v5170 = vpop.f32.mrb[0].mxu0
      %v5171 = vadd.f32 %v5099, %v5170
      %v5172 = vpop.f32.mrb[0].mxu0
      %5173 = vdwg.mxu0
      %v5174 = vadd.f32 %v5004, %v5171
      %v5175 = vld [vmem:[%s1021] sm:$0x1]
      %v5176 = vld [vmem:[%s1024] sm:$0x1]
      %v5177 = vsel %vm1063, %v5174, 0.0
      %5178 = vadd.xlane.f32.xlu0 %v5177
      %v5179 = vpop.xlane.xlu0 %5178
      %v5180 = vmul.f32 %v5179, %v2996
      %v5181 = vsub.f32 %v5174, %v5180
      %v5182 = vmul.f32 %v5181, %v5181
      %v5183 = vsel %vm1063, %v5182, 0.0
      %5184 = vadd.xlane.f32.xlu0 %v5183
      %v5185 = vpop.xlane.xlu0 %5184
      %v5186 = vmul.f32 %v5185, %v2996
      %v5187 = vadd.f32 %v5186, 1e-05
      %v5188 = vrsqrt.pop %v5187
      %v5189 = vmul.f32 %v5181, %v5188
      %v5191 = vlaneseq
      %v5192 = vshrl.u32 %v5191, 7
      %v5193 = vsub.s32 0, %v5192
      %v5194 = vrot.slane %v5175, %v5193
      %v5196 = vmul.f32 %v5189, %v5194
      %v5198 = vlaneseq
      %v5199 = vshrl.u32 %v5198, 7
      %v5200 = vsub.s32 0, %v5199
      %v5201 = vrot.slane %v5176, %v5200
      %v5203 = vadd.f32 %v5196, %v5201
      %5204 = vst.msk [vmem:[#allocation2] sm:$0xff] %vm1063, %v5203
      %p5205 = scmp.eq.s32.totalorder %s39, 3
      // Predicated region
      $region117: #{transformer_forward.3} parent=111 // pred_check
        %p5206 = pneg %p5205
      $region118: #{transformer_forward.3} parent=111 // pred_check_branch
        %5208 = sbr.rel (%p5206) target = $region120
      $region119: #{transformer_forward.3} parent=111 // pred_region
        %v5209 = vld [vmem:[%s21] sm:$0xff]
        %v5210 = vld [vmem:[%s21 + $0x8] sm:$0xff]
        %v5211 = vld [vmem:[%s21 + $0x10] sm:$0xff]
        %v5212 = vld [vmem:[%s21 + $0x18] sm:$0xff]
        %v5213 = vld [vmem:[%s22] sm:$0x1]
        %v5215 = vlaneseq
        %v5216 = vshrl.u32 %v5215, 7
        %v5217 = vsub.s32 0, %v5216
        %v5218 = vrot.slane %v5213, %v5217
        %v5221 = vsel %vm1063, %v5203, 0
        %5223 = vmatprep.subr.mxu0 0.0
        %5224 = vmatpush1.msra.mxu0 %v5209
        %5225 = vmatprep.subr.mxu0 0.0
        %5226 = vmatpush1.msra.mxu0 %v5210
        %5227 = vmatprep.subr.mxu0 0.0
        %5228 = vmatpush1.msra.mxu0 %v5211
        %5229 = vmatprep.subr.mxu0 0.0
        %5230 = vmatpush1.msra.mxu0 %v5212
        %5231 = vmatprep.subr.mxu0 0.0
        %5232 = vmatpush1.msra.mxu0 0.0
        %5233 = vmatprep.subr.mxu0 0.0
        %5234 = vmatpush1.msra.mxu0 0.0
        %5235 = vmatprep.subr.mxu0 0.0
        %5236 = vmatpush1.msra.mxu0 0.0
        %5237 = vmatprep.subr.mxu0 0.0
        %5238 = vmatpush1.msra.mxu0 0.0
        %5239 = vmatprep.subr.mxu0 0.0
        %5240 = vmatpush1.msra.mxu0 0.0
        %5241 = vmatprep.subr.mxu0 0.0
        %5242 = vmatpush1.msra.mxu0 0.0
        %5243 = vmatprep.subr.mxu0 0.0
        %5244 = vmatpush1.msra.mxu0 0.0
        %5245 = vmatprep.subr.mxu0 0.0
        %5246 = vmatpush1.msra.mxu0 0.0
        %5247 = vmatprep.subr.mxu0 0.0
        %5248 = vmatpush1.msra.mxu0 0.0
        %5249 = vmatprep.subr.mxu0 0.0
        %5250 = vmatpush1.msra.mxu0 0.0
        %5251 = vmatprep.subr.mxu0 0.0
        %5252 = vmatpush1.msra.mxu0 0.0
        %5253 = vmatprep.subr.mxu0 0.0
        %5254 = vmatpush1.msra.mxu0 0.0
        %5255 = vmatprep.subr.mxu0 0.0
        %5256 = vmatpush1.msra.mxu0 0.0
        %5257 = vmatprep.subr.mxu0 0.0
        %5258 = vmatpush1.msra.mxu0 0.0
        %5259 = vmatprep.subr.mxu0 0.0
        %5260 = vmatpush1.msra.mxu0 0.0
        %5261 = vmatprep.subr.mxu0 0.0
        %5262 = vmatpush1.msra.mxu0 0.0
        %5263 = vmatprep.subr.mxu0 0.0
        %5264 = vmatpush1.msra.mxu0 0.0
        %5265 = vmatprep.subr.mxu0 0.0
        %5266 = vmatpush1.msra.mxu0 0.0
        %5267 = vmatprep.subr.mxu0 0.0
        %5268 = vmatpush1.msra.mxu0 0.0
        %5269 = vmatprep.subr.mxu0 0.0
        %5270 = vmatpush1.msra.mxu0 0.0
        %5271 = vmatprep.subr.mxu0 0.0
        %5272 = vmatpush1.msra.mxu0 0.0
        %5273 = vmatprep.subr.mxu0 0.0
        %5274 = vmatpush1.msra.mxu0 0.0
        %5275 = vmatprep.subr.mxu0 0.0
        %5276 = vmatpush1.msra.mxu0 0.0
        %5277 = vmatprep.subr.mxu0 0.0
        %5278 = vmatpush1.msra.mxu0 0.0
        %5279 = vmatprep.subr.mxu0 0.0
        %5280 = vmatpush1.msra.mxu0 0.0
        %5281 = vmatprep.subr.mxu0 0.0
        %5282 = vmatpush1.msra.mxu0 0.0
        %5283 = vmatprep.subr.mxu0 0.0
        %5284 = vmatpush1.msra.mxu0 0.0
        %5285 = vmatprep.subr.mxu0 0.0
        %5286 = vmatpush1.msra.mxu0 0.0
        %5287 = vmatprep.mubr.f32.mxu0 0.0
        %5288 = vmatmul.mubr.f32.gmra.mrb[0].mxu0 %v5221
        %v5289 = vpop.f32.mrb[0].mxu0
        %v5290 = vadd.f32 %v5218, %v5289
        %v5291 = vpop.f32.mrb[0].mxu0
        %5292 = vdwg.mxu0
        %5293 = vst [vmem:[%s1028] sm:$0xff] %v5290
      $region120: #{transformer_forward.3} parent=111 // pred_fallthru
        _
      %p5294 = scmp.lt.s32.totalorder %s38, 1
      %s5295 = scalar_select %p5294, %s38, 1
      %s5296 = smul.addr %s5295, 8
      %s5297 = scalar_lea.vmem %s23, %s5296
      // Predicated region
      $region121: #{transformer_forward.3} parent=111 // pred_check
        %p5298 = pneg %p647
      $region122: #{transformer_forward.3} parent=111 // pred_check_branch
        %5300 = sbr.rel (%p5298) target = $region124
      $region123: #{transformer_forward.3} parent=111 // pred_region
        _
      $region124: #{transformer_forward.3} parent=111 // pred_fallthru
        _
    $region112: #{transformer_forward.3} parent=5 // pred_fallthru
      _
    %p5301 = scmp.le.s32.totalorder 2, %s29
    // Predicated region
    $region125: #{transformer_forward.3} parent=5 // pred_check
      %p5302 = pneg %p5301
    $region126: #{transformer_forward.3} parent=5 // pred_check_branch
      %5304 = sbr.rel (%p5302) target = $region128
    $region127: #{transformer_forward.3} parent=5 // pred_region
      %s5305 = ssub.s32 %s29, 2
      // Predicated region
      $region129: #{transformer_forward.3} parent=127 // pred_check
        %p5306 = pneg %p653
      $region130: #{transformer_forward.3} parent=127 // pred_check_branch
        %5308 = sbr.rel (%p5306) target = $region132
      $region131: #{transformer_forward.3} parent=127 // pred_region
        %p5309 = scmp.lt.s32.totalorder %s40, 1
        %s5310 = scalar_select %p5309, %s40, 1
        %s5311 = smul.addr %s5310, 8
        %s5312 = scalar_lea.vmem %s23, %s5311
      $region132: #{transformer_forward.3} parent=127 // pred_fallthru
        _
    $region128: #{transformer_forward.3} parent=5 // pred_fallthru
      _
  $region6: #{transformer_forward.3} parent=0 // loop_footer
    %s33 = sadd.s32 1, %s29
  $region7: #{transformer_forward.3} parent=0 // loop_footer_branch
    %28 = sbr.rel target = $region3
  $region8: #{transformer_forward.3} parent=0 // loop_exit
    _

</llo_original>
